<compile_context>
chip_gen: v5e
topology: v5e:2x2
jax: 0.10.0
libtpu: 0.0.40
codegen_flags: <defaults>
</compile_context>

<pallas_src>
import functools
import math

import numpy as np
import jax
import jax.numpy as jnp
from jax.experimental import pallas as pl
from jax.experimental.pallas import tpu as pltpu

NB_RX = 16
NB_TX = 12
NB_VIRTUAL = NB_RX * NB_TX  # 192
_BN_EPS = 1e-5


def _round_up(x, m):
    return (x + m - 1) // m * m


# -----------------------------------------------------------------------------
# Pallas kernels
# -----------------------------------------------------------------------------
def _conv_kernel(x_ref, w_ref, b_ref, o_ref, *, relu):
    """o = [relu](W @ x + b) with all taps merged into the contraction dim."""
    y = jnp.dot(w_ref[...], x_ref[...], preferred_element_type=jnp.float32) + b_ref[...]
    if relu:
        y = jnp.maximum(y, 0.0)
    o_ref[...] = y.astype(o_ref.dtype)


def _bottleneck_kernel(x_ref, w1_ref, w2_ref, b2_ref, w3_ref, b3_ref, *rest,
                       cin, has_down):
    """Whole Bottleneck in one kernel.

    x_ref rows: nine 3x3 tap slabs of the input (9*cin rows, tap-major) followed
    by nine 0/1 tap-validity rows.  conv1(+bn1+relu) is applied block-diagonally
    per tap (bn1 shift folded against the validity rows), conv2 collapses to one
    K = 9*planes matmul, conv3 / downsample are plain 1x1 matmuls, residual uses
    the center-tap slab (== stride-sampled input).  Intermediates stay in VMEM.
    """
    if has_down:
        wd_ref, bd_ref, o_ref = rest
    else:
        (o_ref,) = rest
    x = x_ref[...]
    # conv1 + bn1 + relu, all 9 taps at once (block-diagonal weight, bias folded)
    h1 = jnp.maximum(jnp.dot(w1_ref[...], x, preferred_element_type=jnp.float32), 0.0)
    h1 = h1.astype(jnp.bfloat16)
    # conv2 (3x3, taps merged into K) + bn2 + relu
    h2 = jnp.maximum(jnp.dot(w2_ref[...], h1, preferred_element_type=jnp.float32)
                     + b2_ref[...], 0.0)
    h2 = h2.astype(jnp.bfloat16)
    # conv3 + bn3 (no relu before the residual add)
    y = jnp.dot(w3_ref[...], h2, preferred_element_type=jnp.float32) + b3_ref[...]
    # residual: center tap slab is exactly the (stride-sampled) input
    xc = x[4 * cin:5 * cin, :]
    if has_down:
        res = jnp.dot(wd_ref[...], xc, preferred_element_type=jnp.float32) + bd_ref[...]
    else:
        res = xc.astype(jnp.float32)
    o_ref[...] = jnp.maximum(y + res, 0.0).astype(o_ref.dtype)


# -----------------------------------------------------------------------------
# Launcher: tile the (lane-dense) column axis; weights ride along untiled.
# -----------------------------------------------------------------------------
def _launch(kernel, cols, weights, cout, m_valid):
    k_rows, m = cols.shape
    if m_valid <= 128:
        mpad, nt = 128, 1
    elif m_valid <= 2048:
        mpad, nt = _round_up(m_valid, 256), 2      # even grid -> both v7x cores
    else:
        mpad, nt = _round_up(m_valid, 512), 4
    tm = mpad // nt
    if mpad > m:
        cols = jnp.pad(cols, ((0, 0), (0, mpad - m)))
    in_specs = [pl.BlockSpec((k_rows, tm), lambda i: (0, i))]
    in_specs += [pl.BlockSpec(w.shape, lambda i: (0, 0)) for w in weights]
    out = pl.pallas_call(
        kernel,
        out_shape=jax.ShapeDtypeStruct((cout, mpad), jnp.bfloat16),
        grid=(nt,),
        in_specs=in_specs,
        out_specs=pl.BlockSpec((cout, tm), lambda i: (0, i)),
        compiler_params=pltpu.CompilerParams(dimension_semantics=("parallel",)),
    )(cols, *weights)
    return out[:, :m_valid]


# -----------------------------------------------------------------------------
# Wrapper-side tap stacking (im2col) -- tiny at these activation sizes.
# -----------------------------------------------------------------------------
def _tap_mask_3x3(N, H, W, Ho, Wo, stride):
    """(9, N*Ho*Wo) bf16 constant: 1 where the tap samples the real image."""
    rows = []
    for di in range(3):
        for dj in range(3):
            hs = np.arange(Ho) * stride + di
            ws = np.arange(Wo) * stride + dj
            v = ((hs >= 1) & (hs <= H))[:, None] & ((ws >= 1) & (ws <= W))[None, :]
            rows.append(np.broadcast_to(v[None], (N, Ho, Wo)).reshape(-1))
    return jnp.asarray(np.stack(rows, 0).astype(np.float32), dtype=jnp.bfloat16)


def _im2col_3x3(x, stride, with_tap_mask):
    """x: (C, N, H, W) -> (9*C [+9], N*Ho*Wo), Ho, Wo  (3x3, pad=1, given stride)."""
    C, N, H, W = x.shape
    Ho = (H - 1) // stride + 1
    Wo = (W - 1) // stride + 1
    xp = jnp.pad(x, ((0, 0), (0, 0), (1, 1), (1, 1)))
    slabs = []
    for di in range(3):
        for dj in range(3):
            s = xp[:, :, di::stride, dj::stride][:, :, :Ho, :Wo]
            slabs.append(s.reshape(C, N * Ho * Wo))
    if with_tap_mask:
        slabs.append(_tap_mask_3x3(N, H, W, Ho, Wo, stride))
    return jnp.concatenate(slabs, axis=0), Ho, Wo


def _im2col_mimo(x):
    """Circular width pad + 12 dilated (1,12)/(1,16) taps.  (32,N,H,W)->(384, N*H*W)."""
    C, N, H, W = x.shape
    pad = NB_VIRTUAL // 2  # 96
    assert W >= pad, "width must be >= 96 for circular padding semantics"
    xp = jnp.concatenate([x[..., W - pad:], x, x[..., :pad]], axis=-1)
    start = 8  # torch center-crop offset of the dilated conv output
    slabs = [xp[:, :, :, start + d * NB_RX: start + d * NB_RX + W].reshape(C, N * H * W)
             for d in range(NB_TX)]
    return jnp.concatenate(slabs, axis=0)


# -----------------------------------------------------------------------------
# Forward
# -----------------------------------------------------------------------------
def fpn_backbone_radar(x_nchw, prep):
    N, C, H, W = x_nchw.shape
    x = jnp.transpose(x_nchw, (1, 0, 2, 3)).astype(jnp.bfloat16)  # (C, N, H, W)

    # MIMO pre-encoder: 12 dilated taps merged into one K = 12*32 matmul (+BN)
    cols = _im2col_mimo(x)
    mimo = prep["pre_w"].shape[0]
    y = _launch(functools.partial(_conv_kernel, relu=False), cols,
                [prep["pre_w"], prep["pre_b"]], mimo, N * H * W)
    x = y.reshape(mimo, N, H, W)

    # stem 3x3 conv + BN + ReLU: 9 taps merged into one K = 9*mimo matmul
    cols, Ho, Wo = _im2col_3x3(x, stride=1, with_tap_mask=False)
    y = _launch(functools.partial(_conv_kernel, relu=True), cols,
                [prep["conv_w"], prep["conv_b"]], mimo, N * Ho * Wo)
    x = y.reshape(mimo, N, Ho, Wo)

    feats = {"x0": x}
    for si, stage in enumerate(prep["blocks"], start=1):
        for bp in stage:
            first = "wd" in bp
            cin = bp["w1"].shape[1] // 9 - 1
            cout = bp["w3"].shape[0]
            cols, Ho, Wo = _im2col_3x3(x, stride=2 if first else 1, with_tap_mask=True)
            weights = [bp["w1"], bp["w2"], bp["b2"], bp["w3"], bp["b3"]]
            if first:
                weights += [bp["wd"], bp["bd"]]
            kernel = functools.partial(_bottleneck_kernel, cin=cin, has_down=first)
            y = _launch(kernel, cols, weights, cout, N * Ho * Wo)
            x = y.reshape(cout, N, Ho, Wo)
        feats[f"x{si}"] = x

    return {k: jnp.transpose(v, (1, 0, 2, 3)).astype(jnp.float32)
            for k, v in feats.items()}


# -----------------------------------------------------------------------------
# Parameter preparation (BN folding + kernel-ready packing; run once, eagerly)
# -----------------------------------------------------------------------------
def prepare_params(params):
    def fold(w, bn):
        scale, shift = bn
        return w * scale[:, None, None, None], shift

    prep = {}
    w, b = fold(params["pre_w"], params["pre_bn"])
    mimo, cin_pre = w.shape[0], w.shape[1]
    prep["pre_w"] = jnp.transpose(w[:, :, 0, :], (0, 2, 1)).reshape(
        mimo, NB_TX * cin_pre).astype(jnp.bfloat16)
    prep["pre_b"] = b.reshape(mimo, 1).astype(jnp.float32)

    w, b = fold(params["conv_w"], params["conv_bn"])
    prep["conv_w"] = jnp.transpose(w, (0, 2, 3, 1)).reshape(mimo, 9 * mimo).astype(jnp.bfloat16)
    prep["conv_b"] = b.reshape(mimo, 1).astype(jnp.float32)

    blocks = []
    for stage in params["blocks"]:
        sblocks = []
        for j, bp in enumerate(stage):
            w1, b1 = fold(bp["w1"], bp["bn1"])
            w2, b2 = fold(bp["w2"], bp["bn2"])
            w3, b3 = fold(bp["w3"], bp["bn3"])
            P, Cin = w1.shape[0], w1.shape[1]
            Cout = w3.shape[0]
            # conv1 block-diagonal over the 9 taps; bn1 shift folded against the
            # per-tap 0/1 validity rows  ->  K = 9*Cin + 9.
            w1a = jnp.zeros((9 * P, 9 * Cin + 9), jnp.float32)
            w1m = w1[:, :, 0, 0]
            for t in range(9):
                w1a = w1a.at[t * P:(t + 1) * P, t * Cin:(t + 1) * Cin].set(w1m)
                w1a = w1a.at[t * P:(t + 1) * P, 9 * Cin + t].set(b1)
            entry = {
                "w1": w1a.astype(jnp.bfloat16),
                "w2": jnp.transpose(w2, (0, 2, 3, 1)).reshape(P, 9 * P).astype(jnp.bfloat16),
                "b2": b2.reshape(P, 1).astype(jnp.float32),
                "w3": w3[:, :, 0, 0].astype(jnp.bfloat16),
                "b3": b3.reshape(Cout, 1).astype(jnp.float32),
            }
            if j == 0:
                wd, bd = fold(bp["wd"], bp["bnd"])
                entry["wd"] = wd[:, :, 0, 0].astype(jnp.bfloat16)
                entry["bd"] = bd.reshape(Cout, 1).astype(jnp.float32)
            sblocks.append(entry)
        blocks.append(sblocks)
    prep["blocks"] = blocks
    return prep


# -----------------------------------------------------------------------------
# Deterministic parameter initialization (shapes mirror the PyTorch __init__)
# -----------------------------------------------------------------------------
def _conv_w(key, cout, cin, kh, kw):
    fan_in = cin * kh * kw
    return jax.random.normal(key, (cout, cin, kh, kw), jnp.float32) / math.sqrt(fan_in)


def _bn(key, c):
    k1, k2, k3, k4 = jax.random.split(key, 4)
    gamma = 1.0 + 0.1 * jax.random.normal(k1, (c,), jnp.float32)
    beta = 0.1 * jax.random.normal(k2, (c,), jnp.float32)
    mean = 0.1 * jax.random.normal(k3, (c,), jnp.float32)
    var = 1.0 + 0.1 * jax.random.uniform(k4, (c,), jnp.float32)
    scale = gamma / jnp.sqrt(var + _BN_EPS)
    shift = beta - mean * scale
    return scale, shift


def make_params(key, num_block, channels, expansion, mimo_layer):
    keys = iter(jax.random.split(key, 256))
    p = {}
    p["pre_w"] = _conv_w(next(keys), mimo_layer, 32, 1, NB_TX)   # kernel (1,12)
    p["pre_bn"] = _bn(next(keys), mimo_layer)
    p["conv_w"] = _conv_w(next(keys), mimo_layer, mimo_layer, 3, 3)
    p["conv_bn"] = _bn(next(keys), mimo_layer)
    in_planes = mimo_layer
    all_blocks = []
    for planes, nb in zip(channels, num_block):
        blocks = []
        for j in range(nb):
            bp = {}
            bp["w1"] = _conv_w(next(keys), planes, in_planes, 1, 1)
            bp["bn1"] = _bn(next(keys), planes)
            bp["w2"] = _conv_w(next(keys), planes, planes, 3, 3)
            bp["bn2"] = _bn(next(keys), planes)
            bp["w3"] = _conv_w(next(keys), expansion * planes, planes, 1, 1)
            bp["bn3"] = _bn(next(keys), expansion * planes)
            if j == 0:
                bp["wd"] = _conv_w(next(keys), expansion * planes, in_planes, 1, 1)
                bp["bnd"] = _bn(next(keys), expansion * planes)
            blocks.append(bp)
            in_planes = expansion * planes
        all_blocks.append(blocks)
    p["blocks"] = all_blocks
    return p


# -----------------------------------------------------------------------------
if __name__ == "__main__":
    key = jax.random.PRNGKey(0)
    kx, kp = jax.random.split(key)

    # small config consistent with the module: in-channels fixed at 32 (pre_enc),
    # width >= 96 so the circular MIMO padding matches PyTorch exactly.
    num_block = [1, 2, 1, 1]
    channels = [8, 8, 16, 16]
    block_expansion = 2
    mimo_layer = 16
    N, C, H, W = 2, 32, 16, 128

    x = jax.random.normal(kx, (N, C, H, W), jnp.float32)
    params = make_params(kp, num_block, channels, block_expansion, mimo_layer)
    prep = prepare_params(params)

    feats = jax.jit(fpn_backbone_radar)(x, prep)
    feats = jax.block_until_ready(feats)

    # sanity: shape checks (NCHW), mirrors the PyTorch FPN pyramid
    assert feats["x0"].shape == (N, mimo_layer, H, W)
    assert feats["x1"].shape == (N, channels[0] * block_expansion, H // 2, W // 2)
    assert feats["x2"].shape == (N, channels[1] * block_expansion, H // 4, W // 4)
    assert feats["x3"].shape == (N, channels[2] * block_expansion, H // 8, W // 8)
    assert feats["x4"].shape == (N, channels[3] * block_expansion, H // 16, W // 16)
    assert all(bool(jnp.isfinite(v).all()) for v in feats.values())

    print("KERNEL_OK")
</pallas_src>

<mosaic_0001>
module attributes {stable_mosaic.version = 11 : i64} {
  func.func @_conv_kernel(%arg0: i32, %arg1: memref<384x1024xbf16, #tpu.memory_space<vmem>>, %arg2: memref<16x384xbf16, #tpu.memory_space<vmem>>, %arg3: memref<16x1xf32, #tpu.memory_space<vmem>>, %arg4: memref<16x1024xbf16, #tpu.memory_space<vmem>>) attributes {dimension_semantics = [#tpu.dimension_semantics<parallel>], iteration_bounds = array<i64: 4>, scalar_prefetch = 0 : i64, scratch_operands = 0 : i64, tpu.core_type = #tpu.core_type<tc>, window_params = [{transform_indices = @transform_0, window_bounds = array<i64: 384, 1024>}, {pipeline_mode = #tpu.pipeline_mode<synchronous>, transform_indices = @transform_1, window_bounds = array<i64: 16, 384>}, {pipeline_mode = #tpu.pipeline_mode<synchronous>, transform_indices = @transform_2, window_bounds = array<i64: 16, 1>}, {transform_indices = @transform_3, window_bounds = array<i64: 16, 1024>}]} {
    %c0 = arith.constant 0 : index
    %c0_0 = arith.constant 0 : index
    %0 = vector.load %arg2[%c0, %c0_0] : memref<16x384xbf16, #tpu.memory_space<vmem>>, vector<16x384xbf16>
    %c0_1 = arith.constant 0 : index
    %c0_2 = arith.constant 0 : index
    %1 = vector.load %arg1[%c0_1, %c0_2] : memref<384x1024xbf16, #tpu.memory_space<vmem>>, vector<384x1024xbf16>
    %cst = arith.constant dense<0.000000e+00> : vector<16x1024xf32>
    %2 = tpu.matmul %0, %1, %cst {dimension_numbers = #tpu.dot_dimension_numbers<[1], [0], [0], [1], [0, 0, 1, 1], [], []>} : vector<16x384xbf16>, vector<384x1024xbf16>, vector<16x1024xf32> -> vector<16x1024xf32>
    %c0_3 = arith.constant 0 : index
    %c0_4 = arith.constant 0 : index
    %3 = vector.load %arg3[%c0_3, %c0_4] : memref<16x1xf32, #tpu.memory_space<vmem>>, vector<16x1xf32>
    %4 = vector.broadcast %3 : vector<16x1xf32> to vector<16x1024xf32>
    %5 = arith.addf %2, %4 : vector<16x1024xf32>
    %6 = arith.truncf %5 : vector<16x1024xf32> to vector<16x1024xbf16>
    %c0_5 = arith.constant 0 : index
    %c0_6 = arith.constant 0 : index
    %7 = vector.load %arg4[%c0_5, %c0_6] : memref<16x1024xbf16, #tpu.memory_space<vmem>>, vector<16x1024xbf16>
    tpu.vector_store %arg4[%c0_5, %c0_6], %6 {strides = array<i32>} : memref<16x1024xbf16, #tpu.memory_space<vmem>>, vector<16x1024xbf16>,
    return
  }
  func.func @transform_0(%arg0: i32) -> (i32, i32) {
    %c0_i32 = arith.constant 0 : i32
    %c0_i32_0 = arith.constant 0 : i32
    return %c0_i32, %arg0 : i32, i32
  }
  func.func @transform_1(%arg0: i32) -> (i32, i32) {
    %c0_i32 = arith.constant 0 : i32
    %c0_i32_0 = arith.constant 0 : i32
    %c0_i32_1 = arith.constant 0 : i32
    return %c0_i32, %c0_i32_0 : i32, i32
  }
  func.func @transform_2(%arg0: i32) -> (i32, i32) {
    %c0_i32 = arith.constant 0 : i32
    %c0_i32_0 = arith.constant 0 : i32
    %c0_i32_1 = arith.constant 0 : i32
    return %c0_i32, %c0_i32_0 : i32, i32
  }
  func.func @transform_3(%arg0: i32) -> (i32, i32) {
    %c0_i32 = arith.constant 0 : i32
    %c0_i32_0 = arith.constant 0 : i32
    return %c0_i32, %arg0 : i32, i32
  }
}

module attributes {stable_mosaic.version = 11 : i64} {
  func.func @_conv_kernel(%arg0: i32, %arg1: memref<144x1024xbf16, #tpu.memory_space<vmem>>, %arg2: memref<16x144xbf16, #tpu.memory_space<vmem>>, %arg3: memref<16x1xf32, #tpu.memory_space<vmem>>, %arg4: memref<16x1024xbf16, #tpu.memory_space<vmem>>) attributes {dimension_semantics = [#tpu.dimension_semantics<parallel>], iteration_bounds = array<i64: 4>, scalar_prefetch = 0 : i64, scratch_operands = 0 : i64, tpu.core_type = #tpu.core_type<tc>, window_params = [{transform_indices = @transform_0, window_bounds = array<i64: 144, 1024>}, {pipeline_mode = #tpu.pipeline_mode<synchronous>, transform_indices = @transform_1, window_bounds = array<i64: 16, 144>}, {pipeline_mode = #tpu.pipeline_mode<synchronous>, transform_indices = @transform_2, window_bounds = array<i64: 16, 1>}, {transform_indices = @transform_3, window_bounds = array<i64: 16, 1024>}]} {
    %c0 = arith.constant 0 : index
    %c0_0 = arith.constant 0 : index
    %0 = vector.load %arg2[%c0, %c0_0] : memref<16x144xbf16, #tpu.memory_space<vmem>>, vector<16x144xbf16>
    %c0_1 = arith.constant 0 : index
    %c0_2 = arith.constant 0 : index
    %1 = vector.load %arg1[%c0_1, %c0_2] : memref<144x1024xbf16, #tpu.memory_space<vmem>>, vector<144x1024xbf16>
    %cst = arith.constant dense<0.000000e+00> : vector<16x1024xf32>
    %2 = tpu.matmul %0, %1, %cst {dimension_numbers = #tpu.dot_dimension_numbers<[1], [0], [0], [1], [0, 0, 1, 1], [], []>} : vector<16x144xbf16>, vector<144x1024xbf16>, vector<16x1024xf32> -> vector<16x1024xf32>
    %c0_3 = arith.constant 0 : index
    %c0_4 = arith.constant 0 : index
    %3 = vector.load %arg3[%c0_3, %c0_4] : memref<16x1xf32, #tpu.memory_space<vmem>>, vector<16x1xf32>
    %4 = vector.broadcast %3 : vector<16x1xf32> to vector<16x1024xf32>
    %5 = arith.addf %2, %4 : vector<16x1024xf32>
    %cst_5 = arith.constant 0.000000e+00 : f32
    %6 = vector.broadcast %cst_5 : f32 to vector<16x1024xf32>
    %7 = arith.maximumf %5, %6 : vector<16x1024xf32>
    %8 = arith.truncf %7 : vector<16x1024xf32> to vector<16x1024xbf16>
    %c0_6 = arith.constant 0 : index
    %c0_7 = arith.constant 0 : index
    %9 = vector.load %arg4[%c0_6, %c0_7] : memref<16x1024xbf16, #tpu.memory_space<vmem>>, vector<16x1024xbf16>
    tpu.vector_store %arg4[%c0_6, %c0_7], %8 {strides = array<i32>} : memref<16x1024xbf16, #tpu.memory_space<vmem>>, vector<16x1024xbf16>,
    return
  }
  func.func @transform_0(%arg0: i32) -> (i32, i32) {
    %c0_i32 = arith.constant 0 : i32
    %c0_i32_0 = arith.constant 0 : i32
    return %c0_i32, %arg0 : i32, i32
  }
  func.func @transform_1(%arg0: i32) -> (i32, i32) {
    %c0_i32 = arith.constant 0 : i32
    %c0_i32_0 = arith.constant 0 : i32
    %c0_i32_1 = arith.constant 0 : i32
    return %c0_i32, %c0_i32_0 : i32, i32
  }
  func.func @transform_2(%arg0: i32) -> (i32, i32) {
    %c0_i32 = arith.constant 0 : i32
    %c0_i32_0 = arith.constant 0 : i32
    %c0_i32_1 = arith.constant 0 : i32
    return %c0_i32, %c0_i32_0 : i32, i32
  }
  func.func @transform_3(%arg0: i32) -> (i32, i32) {
    %c0_i32 = arith.constant 0 : i32
    %c0_i32_0 = arith.constant 0 : i32
    return %c0_i32, %arg0 : i32, i32
  }
}

module attributes {stable_mosaic.version = 11 : i64} {
  func.func @_bottleneck_kernel(%arg0: i32, %arg1: memref<153x512xbf16, #tpu.memory_space<vmem>>, %arg2: memref<72x153xbf16, #tpu.memory_space<vmem>>, %arg3: memref<8x72xbf16, #tpu.memory_space<vmem>>, %arg4: memref<8x1xf32, #tpu.memory_space<vmem>>, %arg5: memref<16x8xbf16, #tpu.memory_space<vmem>>, %arg6: memref<16x1xf32, #tpu.memory_space<vmem>>, %arg7: memref<16x16xbf16, #tpu.memory_space<vmem>>, %arg8: memref<16x1xf32, #tpu.memory_space<vmem>>, %arg9: memref<16x512xbf16, #tpu.memory_space<vmem>>) attributes {dimension_semantics = [#tpu.dimension_semantics<parallel>], iteration_bounds = array<i64: 2>, scalar_prefetch = 0 : i64, scratch_operands = 0 : i64, tpu.core_type = #tpu.core_type<tc>, window_params = [{transform_indices = @transform_0, window_bounds = array<i64: 153, 512>}, {pipeline_mode = #tpu.pipeline_mode<synchronous>, transform_indices = @transform_1, window_bounds = array<i64: 72, 153>}, {pipeline_mode = #tpu.pipeline_mode<synchronous>, transform_indices = @transform_2, window_bounds = array<i64: 8, 72>}, {pipeline_mode = #tpu.pipeline_mode<synchronous>, transform_indices = @transform_3, window_bounds = array<i64: 8, 1>}, {pipeline_mode = #tpu.pipeline_mode<synchronous>, transform_indices = @transform_4, window_bounds = array<i64: 16, 8>}, {pipeline_mode = #tpu.pipeline_mode<synchronous>, transform_indices = @transform_5, window_bounds = array<i64: 16, 1>}, {pipeline_mode = #tpu.pipeline_mode<synchronous>, transform_indices = @transform_6, window_bounds = array<i64: 16, 16>}, {pipeline_mode = #tpu.pipeline_mode<synchronous>, transform_indices = @transform_7, window_bounds = array<i64: 16, 1>}, {transform_indices = @transform_8, window_bounds = array<i64: 16, 512>}]} {
    %c0 = arith.constant 0 : index
    %c0_0 = arith.constant 0 : index
    %0 = vector.load %arg1[%c0, %c0_0] : memref<153x512xbf16, #tpu.memory_space<vmem>>, vector<153x512xbf16>
    %c0_1 = arith.constant 0 : index
    %c0_2 = arith.constant 0 : index
    %1 = vector.load %arg2[%c0_1, %c0_2] : memref<72x153xbf16, #tpu.memory_space<vmem>>, vector<72x153xbf16>
    %cst = arith.constant dense<0.000000e+00> : vector<72x512xf32>
    %2 = tpu.matmul %1, %0, %cst {dimension_numbers = #tpu.dot_dimension_numbers<[1], [0], [0], [1], [0, 0, 1, 1], [], []>} : vector<72x153xbf16>, vector<153x512xbf16>, vector<72x512xf32> -> vector<72x512xf32>
    %cst_3 = arith.constant 0.000000e+00 : f32
    %3 = vector.broadcast %cst_3 : f32 to vector<72x512xf32>
    %4 = arith.maximumf %2, %3 : vector<72x512xf32>
    %5 = arith.truncf %4 : vector<72x512xf32> to vector<72x512xbf16>
    %c0_4 = arith.constant 0 : index
    %c0_5 = arith.constant 0 : index
    %6 = vector.load %arg3[%c0_4, %c0_5] : memref<8x72xbf16, #tpu.memory_space<vmem>>, vector<8x72xbf16>
    %cst_6 = arith.constant dense<0.000000e+00> : vector<8x512xf32>
    %7 = tpu.matmul %6, %5, %cst_6 {dimension_numbers = #tpu.dot_dimension_numbers<[1], [0], [0], [1], [0, 0, 1, 1], [], []>} : vector<8x72xbf16>, vector<72x512xbf16>, vector<8x512xf32> -> vector<8x512xf32>
    %c0_7 = arith.constant 0 : index
    %c0_8 = arith.constant 0 : index
    %8 = vector.load %arg4[%c0_7, %c0_8] : memref<8x1xf32, #tpu.memory_space<vmem>>, vector<8x1xf32>
    %9 = vector.broadcast %8 : vector<8x1xf32> to vector<8x512xf32>
    %10 = arith.addf %7, %9 : vector<8x512xf32>
    %cst_9 = arith.constant 0.000000e+00 : f32
    %11 = vector.broadcast %cst_9 : f32 to vector<8x512xf32>
    %12 = arith.maximumf %10, %11 : vector<8x512xf32>
    %13 = arith.truncf %12 : vector<8x512xf32> to vector<8x512xbf16>
    %c0_10 = arith.constant 0 : index
    %c0_11 = arith.constant 0 : index
    %14 = vector.load %arg5[%c0_10, %c0_11] : memref<16x8xbf16, #tpu.memory_space<vmem>>, vector<16x8xbf16>
    %cst_12 = arith.constant dense<0.000000e+00> : vector<16x512xf32>
    %15 = tpu.matmul %14, %13, %cst_12 {dimension_numbers = #tpu.dot_dimension_numbers<[1], [0], [0], [1], [0, 0, 1, 1], [], []>} : vector<16x8xbf16>, vector<8x512xbf16>, vector<16x512xf32> -> vector<16x512xf32>
    %c0_13 = arith.constant 0 : index
    %c0_14 = arith.constant 0 : index
    %16 = vector.load %arg6[%c0_13, %c0_14] : memref<16x1xf32, #tpu.memory_space<vmem>>, vector<16x1xf32>
    %17 = vector.broadcast %16 : vector<16x1xf32> to vector<16x512xf32>
    %18 = arith.addf %15, %17 : vector<16x512xf32>
    %19 = vector.extract_strided_slice %0 {offsets = [64, 0], sizes = [16, 512], strides = [1, 1]} : vector<153x512xbf16> to vector<16x512xbf16>
    %c0_15 = arith.constant 0 : index
    %c0_16 = arith.constant 0 : index
    %20 = vector.load %arg7[%c0_15, %c0_16] : memref<16x16xbf16, #tpu.memory_space<vmem>>, vector<16x16xbf16>
    %cst_17 = arith.constant dense<0.000000e+00> : vector<16x512xf32>
    %21 = tpu.matmul %20, %19, %cst_17 {dimension_numbers = #tpu.dot_dimension_numbers<[1], [0], [0], [1], [0, 0, 1, 1], [], []>} : vector<16x16xbf16>, vector<16x512xbf16>, vector<16x512xf32> -> vector<16x512xf32>
    %c0_18 = arith.constant 0 : index
    %c0_19 = arith.constant 0 : index
    %22 = vector.load %arg8[%c0_18, %c0_19] : memref<16x1xf32, #tpu.memory_space<vmem>>, vector<16x1xf32>
    %23 = vector.broadcast %22 : vector<16x1xf32> to vector<16x512xf32>
    %24 = arith.addf %21, %23 : vector<16x512xf32>
    %25 = arith.addf %18, %24 : vector<16x512xf32>
    %cst_20 = arith.constant 0.000000e+00 : f32
    %26 = vector.broadcast %cst_20 : f32 to vector<16x512xf32>
    %27 = arith.maximumf %25, %26 : vector<16x512xf32>
    %28 = arith.truncf %27 : vector<16x512xf32> to vector<16x512xbf16>
    %c0_21 = arith.constant 0 : index
    %c0_22 = arith.constant 0 : index
    %29 = vector.load %arg9[%c0_21, %c0_22] : memref<16x512xbf16, #tpu.memory_space<vmem>>, vector<16x512xbf16>
    tpu.vector_store %arg9[%c0_21, %c0_22], %28 {strides = array<i32>} : memref<16x512xbf16, #tpu.memory_space<vmem>>, vector<16x512xbf16>,
    return
  }
  func.func @transform_0(%arg0: i32) -> (i32, i32) {
    %c0_i32 = arith.constant 0 : i32
    %c0_i32_0 = arith.constant 0 : i32
    return %c0_i32, %arg0 : i32, i32
  }
  func.func @transform_1(%arg0: i32) -> (i32, i32) {
    %c0_i32 = arith.constant 0 : i32
    %c0_i32_0 = arith.constant 0 : i32
    %c0_i32_1 = arith.constant 0 : i32
    return %c0_i32, %c0_i32_0 : i32, i32
  }
  func.func @transform_2(%arg0: i32) -> (i32, i32) {
    %c0_i32 = arith.constant 0 : i32
    %c0_i32_0 = arith.constant 0 : i32
    %c0_i32_1 = arith.constant 0 : i32
    return %c0_i32, %c0_i32_0 : i32, i32
  }
  func.func @transform_3(%arg0: i32) -> (i32, i32) {
    %c0_i32 = arith.constant 0 : i32
    %c0_i32_0 = arith.constant 0 : i32
    %c0_i32_1 = arith.constant 0 : i32
    return %c0_i32, %c0_i32_0 : i32, i32
  }
  func.func @transform_4(%arg0: i32) -> (i32, i32) {
    %c0_i32 = arith.constant 0 : i32
    %c0_i32_0 = arith.constant 0 : i32
    %c0_i32_1 = arith.constant 0 : i32
    return %c0_i32, %c0_i32_0 : i32, i32
  }
  func.func @transform_5(%arg0: i32) -> (i32, i32) {
    %c0_i32 = arith.constant 0 : i32
    %c0_i32_0 = arith.constant 0 : i32
    %c0_i32_1 = arith.constant 0 : i32
    return %c0_i32, %c0_i32_0 : i32, i32
  }
  func.func @transform_6(%arg0: i32) -> (i32, i32) {
    %c0_i32 = arith.constant 0 : i32
    %c0_i32_0 = arith.constant 0 : i32
    %c0_i32_1 = arith.constant 0 : i32
    return %c0_i32, %c0_i32_0 : i32, i32
  }
  func.func @transform_7(%arg0: i32) -> (i32, i32) {
    %c0_i32 = arith.constant 0 : i32
    %c0_i32_0 = arith.constant 0 : i32
    %c0_i32_1 = arith.constant 0 : i32
    return %c0_i32, %c0_i32_0 : i32, i32
  }
  func.func @transform_8(%arg0: i32) -> (i32, i32) {
    %c0_i32 = arith.constant 0 : i32
    %c0_i32_0 = arith.constant 0 : i32
    return %c0_i32, %arg0 : i32, i32
  }
}

module attributes {stable_mosaic.version = 11 : i64} {
  func.func @_bottleneck_kernel(%arg0: i32, %arg1: memref<153x128xbf16, #tpu.memory_space<vmem>>, %arg2: memref<72x153xbf16, #tpu.memory_space<vmem>>, %arg3: memref<8x72xbf16, #tpu.memory_space<vmem>>, %arg4: memref<8x1xf32, #tpu.memory_space<vmem>>, %arg5: memref<16x8xbf16, #tpu.memory_space<vmem>>, %arg6: memref<16x1xf32, #tpu.memory_space<vmem>>, %arg7: memref<16x16xbf16, #tpu.memory_space<vmem>>, %arg8: memref<16x1xf32, #tpu.memory_space<vmem>>, %arg9: memref<16x128xbf16, #tpu.memory_space<vmem>>) attributes {dimension_semantics = [#tpu.dimension_semantics<parallel>], iteration_bounds = array<i64: 2>, scalar_prefetch = 0 : i64, scratch_operands = 0 : i64, tpu.core_type = #tpu.core_type<tc>, window_params = [{transform_indices = @transform_0, window_bounds = array<i64: 153, 128>}, {pipeline_mode = #tpu.pipeline_mode<synchronous>, transform_indices = @transform_1, window_bounds = array<i64: 72, 153>}, {pipeline_mode = #tpu.pipeline_mode<synchronous>, transform_indices = @transform_2, window_bounds = array<i64: 8, 72>}, {pipeline_mode = #tpu.pipeline_mode<synchronous>, transform_indices = @transform_3, window_bounds = array<i64: 8, 1>}, {pipeline_mode = #tpu.pipeline_mode<synchronous>, transform_indices = @transform_4, window_bounds = array<i64: 16, 8>}, {pipeline_mode = #tpu.pipeline_mode<synchronous>, transform_indices = @transform_5, window_bounds = array<i64: 16, 1>}, {pipeline_mode = #tpu.pipeline_mode<synchronous>, transform_indices = @transform_6, window_bounds = array<i64: 16, 16>}, {pipeline_mode = #tpu.pipeline_mode<synchronous>, transform_indices = @transform_7, window_bounds = array<i64: 16, 1>}, {transform_indices = @transform_8, window_bounds = array<i64: 16, 128>}]} {
    %c0 = arith.constant 0 : index
    %c0_0 = arith.constant 0 : index
    %0 = vector.load %arg1[%c0, %c0_0] : memref<153x128xbf16, #tpu.memory_space<vmem>>, vector<153x128xbf16>
    %c0_1 = arith.constant 0 : index
    %c0_2 = arith.constant 0 : index
    %1 = vector.load %arg2[%c0_1, %c0_2] : memref<72x153xbf16, #tpu.memory_space<vmem>>, vector<72x153xbf16>
    %cst = arith.constant dense<0.000000e+00> : vector<72x128xf32>
    %2 = tpu.matmul %1, %0, %cst {dimension_numbers = #tpu.dot_dimension_numbers<[1], [0], [0], [1], [0, 0, 1, 1], [], []>} : vector<72x153xbf16>, vector<153x128xbf16>, vector<72x128xf32> -> vector<72x128xf32>
    %cst_3 = arith.constant 0.000000e+00 : f32
    %3 = vector.broadcast %cst_3 : f32 to vector<72x128xf32>
    %4 = arith.maximumf %2, %3 : vector<72x128xf32>
    %5 = arith.truncf %4 : vector<72x128xf32> to vector<72x128xbf16>
    %c0_4 = arith.constant 0 : index
    %c0_5 = arith.constant 0 : index
    %6 = vector.load %arg3[%c0_4, %c0_5] : memref<8x72xbf16, #tpu.memory_space<vmem>>, vector<8x72xbf16>
    %cst_6 = arith.constant dense<0.000000e+00> : vector<8x128xf32>
    %7 = tpu.matmul %6, %5, %cst_6 {dimension_numbers = #tpu.dot_dimension_numbers<[1], [0], [0], [1], [0, 0, 1, 1], [], []>} : vector<8x72xbf16>, vector<72x128xbf16>, vector<8x128xf32> -> vector<8x128xf32>
    %c0_7 = arith.constant 0 : index
    %c0_8 = arith.constant 0 : index
    %8 = vector.load %arg4[%c0_7, %c0_8] : memref<8x1xf32, #tpu.memory_space<vmem>>, vector<8x1xf32>
    %9 = vector.broadcast %8 : vector<8x1xf32> to vector<8x128xf32>
    %10 = arith.addf %7, %9 : vector<8x128xf32>
    %cst_9 = arith.constant 0.000000e+00 : f32
    %11 = vector.broadcast %cst_9 : f32 to vector<8x128xf32>
    %12 = arith.maximumf %10, %11 : vector<8x128xf32>
    %13 = arith.truncf %12 : vector<8x128xf32> to vector<8x128xbf16>
    %c0_10 = arith.constant 0 : index
    %c0_11 = arith.constant 0 : index
    %14 = vector.load %arg5[%c0_10, %c0_11] : memref<16x8xbf16, #tpu.memory_space<vmem>>, vector<16x8xbf16>
    %cst_12 = arith.constant dense<0.000000e+00> : vector<16x128xf32>
    %15 = tpu.matmul %14, %13, %cst_12 {dimension_numbers = #tpu.dot_dimension_numbers<[1], [0], [0], [1], [0, 0, 1, 1], [], []>} : vector<16x8xbf16>, vector<8x128xbf16>, vector<16x128xf32> -> vector<16x128xf32>
    %c0_13 = arith.constant 0 : index
    %c0_14 = arith.constant 0 : index
    %16 = vector.load %arg6[%c0_13, %c0_14] : memref<16x1xf32, #tpu.memory_space<vmem>>, vector<16x1xf32>
    %17 = vector.broadcast %16 : vector<16x1xf32> to vector<16x128xf32>
    %18 = arith.addf %15, %17 : vector<16x128xf32>
    %19 = vector.extract_strided_slice %0 {offsets = [64, 0], sizes = [16, 128], strides = [1, 1]} : vector<153x128xbf16> to vector<16x128xbf16>
    %c0_15 = arith.constant 0 : index
    %c0_16 = arith.constant 0 : index
    %20 = vector.load %arg7[%c0_15, %c0_16] : memref<16x16xbf16, #tpu.memory_space<vmem>>, vector<16x16xbf16>
    %cst_17 = arith.constant dense<0.000000e+00> : vector<16x128xf32>
    %21 = tpu.matmul %20, %19, %cst_17 {dimension_numbers = #tpu.dot_dimension_numbers<[1], [0], [0], [1], [0, 0, 1, 1], [], []>} : vector<16x16xbf16>, vector<16x128xbf16>, vector<16x128xf32> -> vector<16x128xf32>
    %c0_18 = arith.constant 0 : index
    %c0_19 = arith.constant 0 : index
    %22 = vector.load %arg8[%c0_18, %c0_19] : memref<16x1xf32, #tpu.memory_space<vmem>>, vector<16x1xf32>
    %23 = vector.broadcast %22 : vector<16x1xf32> to vector<16x128xf32>
    %24 = arith.addf %21, %23 : vector<16x128xf32>
    %25 = arith.addf %18, %24 : vector<16x128xf32>
    %cst_20 = arith.constant 0.000000e+00 : f32
    %26 = vector.broadcast %cst_20 : f32 to vector<16x128xf32>
    %27 = arith.maximumf %25, %26 : vector<16x128xf32>
    %28 = arith.truncf %27 : vector<16x128xf32> to vector<16x128xbf16>
    %c0_21 = arith.constant 0 : index
    %c0_22 = arith.constant 0 : index
    %29 = vector.load %arg9[%c0_21, %c0_22] : memref<16x128xbf16, #tpu.memory_space<vmem>>, vector<16x128xbf16>
    tpu.vector_store %arg9[%c0_21, %c0_22], %28 {strides = array<i32>} : memref<16x128xbf16, #tpu.memory_space<vmem>>, vector<16x128xbf16>,
    return
  }
  func.func @transform_0(%arg0: i32) -> (i32, i32) {
    %c0_i32 = arith.constant 0 : i32
    %c0_i32_0 = arith.constant 0 : i32
    return %c0_i32, %arg0 : i32, i32
  }
  func.func @transform_1(%arg0: i32) -> (i32, i32) {
    %c0_i32 = arith.constant 0 : i32
    %c0_i32_0 = arith.constant 0 : i32
    %c0_i32_1 = arith.constant 0 : i32
    return %c0_i32, %c0_i32_0 : i32, i32
  }
  func.func @transform_2(%arg0: i32) -> (i32, i32) {
    %c0_i32 = arith.constant 0 : i32
    %c0_i32_0 = arith.constant 0 : i32
    %c0_i32_1 = arith.constant 0 : i32
    return %c0_i32, %c0_i32_0 : i32, i32
  }
  func.func @transform_3(%arg0: i32) -> (i32, i32) {
    %c0_i32 = arith.constant 0 : i32
    %c0_i32_0 = arith.constant 0 : i32
    %c0_i32_1 = arith.constant 0 : i32
    return %c0_i32, %c0_i32_0 : i32, i32
  }
  func.func @transform_4(%arg0: i32) -> (i32, i32) {
    %c0_i32 = arith.constant 0 : i32
    %c0_i32_0 = arith.constant 0 : i32
    %c0_i32_1 = arith.constant 0 : i32
    return %c0_i32, %c0_i32_0 : i32, i32
  }
  func.func @transform_5(%arg0: i32) -> (i32, i32) {
    %c0_i32 = arith.constant 0 : i32
    %c0_i32_0 = arith.constant 0 : i32
    %c0_i32_1 = arith.constant 0 : i32
    return %c0_i32, %c0_i32_0 : i32, i32
  }
  func.func @transform_6(%arg0: i32) -> (i32, i32) {
    %c0_i32 = arith.constant 0 : i32
    %c0_i32_0 = arith.constant 0 : i32
    %c0_i32_1 = arith.constant 0 : i32
    return %c0_i32, %c0_i32_0 : i32, i32
  }
  func.func @transform_7(%arg0: i32) -> (i32, i32) {
    %c0_i32 = arith.constant 0 : i32
    %c0_i32_0 = arith.constant 0 : i32
    %c0_i32_1 = arith.constant 0 : i32
    return %c0_i32, %c0_i32_0 : i32, i32
  }
  func.func @transform_8(%arg0: i32) -> (i32, i32) {
    %c0_i32 = arith.constant 0 : i32
    %c0_i32_0 = arith.constant 0 : i32
    return %c0_i32, %arg0 : i32, i32
  }
}

module attributes {stable_mosaic.version = 11 : i64} {
  func.func @_bottleneck_kernel(%arg0: i32, %arg1: memref<153x128xbf16, #tpu.memory_space<vmem>>, %arg2: memref<72x153xbf16, #tpu.memory_space<vmem>>, %arg3: memref<8x72xbf16, #tpu.memory_space<vmem>>, %arg4: memref<8x1xf32, #tpu.memory_space<vmem>>, %arg5: memref<16x8xbf16, #tpu.memory_space<vmem>>, %arg6: memref<16x1xf32, #tpu.memory_space<vmem>>, %arg7: memref<16x128xbf16, #tpu.memory_space<vmem>>) attributes {dimension_semantics = [#tpu.dimension_semantics<parallel>], iteration_bounds = array<i64: 2>, scalar_prefetch = 0 : i64, scratch_operands = 0 : i64, tpu.core_type = #tpu.core_type<tc>, window_params = [{transform_indices = @transform_0, window_bounds = array<i64: 153, 128>}, {pipeline_mode = #tpu.pipeline_mode<synchronous>, transform_indices = @transform_1, window_bounds = array<i64: 72, 153>}, {pipeline_mode = #tpu.pipeline_mode<synchronous>, transform_indices = @transform_2, window_bounds = array<i64: 8, 72>}, {pipeline_mode = #tpu.pipeline_mode<synchronous>, transform_indices = @transform_3, window_bounds = array<i64: 8, 1>}, {pipeline_mode = #tpu.pipeline_mode<synchronous>, transform_indices = @transform_4, window_bounds = array<i64: 16, 8>}, {pipeline_mode = #tpu.pipeline_mode<synchronous>, transform_indices = @transform_5, window_bounds = array<i64: 16, 1>}, {transform_indices = @transform_6, window_bounds = array<i64: 16, 128>}]} {
    %c0 = arith.constant 0 : index
    %c0_0 = arith.constant 0 : index
    %0 = vector.load %arg1[%c0, %c0_0] : memref<153x128xbf16, #tpu.memory_space<vmem>>, vector<153x128xbf16>
    %c0_1 = arith.constant 0 : index
    %c0_2 = arith.constant 0 : index
    %1 = vector.load %arg2[%c0_1, %c0_2] : memref<72x153xbf16, #tpu.memory_space<vmem>>, vector<72x153xbf16>
    %cst = arith.constant dense<0.000000e+00> : vector<72x128xf32>
    %2 = tpu.matmul %1, %0, %cst {dimension_numbers = #tpu.dot_dimension_numbers<[1], [0], [0], [1], [0, 0, 1, 1], [], []>} : vector<72x153xbf16>, vector<153x128xbf16>, vector<72x128xf32> -> vector<72x128xf32>
    %cst_3 = arith.constant 0.000000e+00 : f32
    %3 = vector.broadcast %cst_3 : f32 to vector<72x128xf32>
    %4 = arith.maximumf %2, %3 : vector<72x128xf32>
    %5 = arith.truncf %4 : vector<72x128xf32> to vector<72x128xbf16>
    %c0_4 = arith.constant 0 : index
    %c0_5 = arith.constant 0 : index
    %6 = vector.load %arg3[%c0_4, %c0_5] : memref<8x72xbf16, #tpu.memory_space<vmem>>, vector<8x72xbf16>
    %cst_6 = arith.constant dense<0.000000e+00> : vector<8x128xf32>
    %7 = tpu.matmul %6, %5, %cst_6 {dimension_numbers = #tpu.dot_dimension_numbers<[1], [0], [0], [1], [0, 0, 1, 1], [], []>} : vector<8x72xbf16>, vector<72x128xbf16>, vector<8x128xf32> -> vector<8x128xf32>
    %c0_7 = arith.constant 0 : index
    %c0_8 = arith.constant 0 : index
    %8 = vector.load %arg4[%c0_7, %c0_8] : memref<8x1xf32, #tpu.memory_space<vmem>>, vector<8x1xf32>
    %9 = vector.broadcast %8 : vector<8x1xf32> to vector<8x128xf32>
    %10 = arith.addf %7, %9 : vector<8x128xf32>
    %cst_9 = arith.constant 0.000000e+00 : f32
    %11 = vector.broadcast %cst_9 : f32 to vector<8x128xf32>
    %12 = arith.maximumf %10, %11 : vector<8x128xf32>
    %13 = arith.truncf %12 : vector<8x128xf32> to vector<8x128xbf16>
    %c0_10 = arith.constant 0 : index
    %c0_11 = arith.constant 0 : index
    %14 = vector.load %arg5[%c0_10, %c0_11] : memref<16x8xbf16, #tpu.memory_space<vmem>>, vector<16x8xbf16>
    %cst_12 = arith.constant dense<0.000000e+00> : vector<16x128xf32>
    %15 = tpu.matmul %14, %13, %cst_12 {dimension_numbers = #tpu.dot_dimension_numbers<[1], [0], [0], [1], [0, 0, 1, 1], [], []>} : vector<16x8xbf16>, vector<8x128xbf16>, vector<16x128xf32> -> vector<16x128xf32>
    %c0_13 = arith.constant 0 : index
    %c0_14 = arith.constant 0 : index
    %16 = vector.load %arg6[%c0_13, %c0_14] : memref<16x1xf32, #tpu.memory_space<vmem>>, vector<16x1xf32>
    %17 = vector.broadcast %16 : vector<16x1xf32> to vector<16x128xf32>
    %18 = arith.addf %15, %17 : vector<16x128xf32>
    %19 = vector.extract_strided_slice %0 {offsets = [64, 0], sizes = [16, 128], strides = [1, 1]} : vector<153x128xbf16> to vector<16x128xbf16>
    %20 = arith.extf %19 : vector<16x128xbf16> to vector<16x128xf32>
    %21 = arith.addf %18, %20 : vector<16x128xf32>
    %cst_15 = arith.constant 0.000000e+00 : f32
    %22 = vector.broadcast %cst_15 : f32 to vector<16x128xf32>
    %23 = arith.maximumf %21, %22 : vector<16x128xf32>
    %24 = arith.truncf %23 : vector<16x128xf32> to vector<16x128xbf16>
    %c0_16 = arith.constant 0 : index
    %c0_17 = arith.constant 0 : index
    %25 = vector.load %arg7[%c0_16, %c0_17] : memref<16x128xbf16, #tpu.memory_space<vmem>>, vector<16x128xbf16>
    tpu.vector_store %arg7[%c0_16, %c0_17], %24 {strides = array<i32>} : memref<16x128xbf16, #tpu.memory_space<vmem>>, vector<16x128xbf16>,
    return
  }
  func.func @transform_0(%arg0: i32) -> (i32, i32) {
    %c0_i32 = arith.constant 0 : i32
    %c0_i32_0 = arith.constant 0 : i32
    return %c0_i32, %arg0 : i32, i32
  }
  func.func @transform_1(%arg0: i32) -> (i32, i32) {
    %c0_i32 = arith.constant 0 : i32
    %c0_i32_0 = arith.constant 0 : i32
    %c0_i32_1 = arith.constant 0 : i32
    return %c0_i32, %c0_i32_0 : i32, i32
  }
  func.func @transform_2(%arg0: i32) -> (i32, i32) {
    %c0_i32 = arith.constant 0 : i32
    %c0_i32_0 = arith.constant 0 : i32
    %c0_i32_1 = arith.constant 0 : i32
    return %c0_i32, %c0_i32_0 : i32, i32
  }
  func.func @transform_3(%arg0: i32) -> (i32, i32) {
    %c0_i32 = arith.constant 0 : i32
    %c0_i32_0 = arith.constant 0 : i32
    %c0_i32_1 = arith.constant 0 : i32
    return %c0_i32, %c0_i32_0 : i32, i32
  }
  func.func @transform_4(%arg0: i32) -> (i32, i32) {
    %c0_i32 = arith.constant 0 : i32
    %c0_i32_0 = arith.constant 0 : i32
    %c0_i32_1 = arith.constant 0 : i32
    return %c0_i32, %c0_i32_0 : i32, i32
  }
  func.func @transform_5(%arg0: i32) -> (i32, i32) {
    %c0_i32 = arith.constant 0 : i32
    %c0_i32_0 = arith.constant 0 : i32
    %c0_i32_1 = arith.constant 0 : i32
    return %c0_i32, %c0_i32_0 : i32, i32
  }
  func.func @transform_6(%arg0: i32) -> (i32, i32) {
    %c0_i32 = arith.constant 0 : i32
    %c0_i32_0 = arith.constant 0 : i32
    return %c0_i32, %arg0 : i32, i32
  }
}

module attributes {stable_mosaic.version = 11 : i64} {
  func.func @_bottleneck_kernel(%arg0: i32, %arg1: memref<153x128xbf16, #tpu.memory_space<vmem>>, %arg2: memref<144x153xbf16, #tpu.memory_space<vmem>>, %arg3: memref<16x144xbf16, #tpu.memory_space<vmem>>, %arg4: memref<16x1xf32, #tpu.memory_space<vmem>>, %arg5: memref<32x16xbf16, #tpu.memory_space<vmem>>, %arg6: memref<32x1xf32, #tpu.memory_space<vmem>>, %arg7: memref<32x16xbf16, #tpu.memory_space<vmem>>, %arg8: memref<32x1xf32, #tpu.memory_space<vmem>>, %arg9: memref<32x128xbf16, #tpu.memory_space<vmem>>) attributes {dimension_semantics = [#tpu.dimension_semantics<parallel>], iteration_bounds = array<i64: 1>, scalar_prefetch = 0 : i64, scratch_operands = 0 : i64, tpu.core_type = #tpu.core_type<tc>, window_params = [{transform_indices = @transform_0, window_bounds = array<i64: 153, 128>}, {pipeline_mode = #tpu.pipeline_mode<synchronous>, transform_indices = @transform_1, window_bounds = array<i64: 144, 153>}, {pipeline_mode = #tpu.pipeline_mode<synchronous>, transform_indices = @transform_2, window_bounds = array<i64: 16, 144>}, {pipeline_mode = #tpu.pipeline_mode<synchronous>, transform_indices = @transform_3, window_bounds = array<i64: 16, 1>}, {pipeline_mode = #tpu.pipeline_mode<synchronous>, transform_indices = @transform_4, window_bounds = array<i64: 32, 16>}, {pipeline_mode = #tpu.pipeline_mode<synchronous>, transform_indices = @transform_5, window_bounds = array<i64: 32, 1>}, {pipeline_mode = #tpu.pipeline_mode<synchronous>, transform_indices = @transform_6, window_bounds = array<i64: 32, 16>}, {pipeline_mode = #tpu.pipeline_mode<synchronous>, transform_indices = @transform_7, window_bounds = array<i64: 32, 1>}, {transform_indices = @transform_8, window_bounds = array<i64: 32, 128>}]} {
    %c0 = arith.constant 0 : index
    %c0_0 = arith.constant 0 : index
    %0 = vector.load %arg1[%c0, %c0_0] : memref<153x128xbf16, #tpu.memory_space<vmem>>, vector<153x128xbf16>
    %c0_1 = arith.constant 0 : index
    %c0_2 = arith.constant 0 : index
    %1 = vector.load %arg2[%c0_1, %c0_2] : memref<144x153xbf16, #tpu.memory_space<vmem>>, vector<144x153xbf16>
    %cst = arith.constant dense<0.000000e+00> : vector<144x128xf32>
    %2 = tpu.matmul %1, %0, %cst {dimension_numbers = #tpu.dot_dimension_numbers<[1], [0], [0], [1], [0, 0, 1, 1], [], []>} : vector<144x153xbf16>, vector<153x128xbf16>, vector<144x128xf32> -> vector<144x128xf32>
    %cst_3 = arith.constant 0.000000e+00 : f32
    %3 = vector.broadcast %cst_3 : f32 to vector<144x128xf32>
    %4 = arith.maximumf %2, %3 : vector<144x128xf32>
    %5 = arith.truncf %4 : vector<144x128xf32> to vector<144x128xbf16>
    %c0_4 = arith.constant 0 : index
    %c0_5 = arith.constant 0 : index
    %6 = vector.load %arg3[%c0_4, %c0_5] : memref<16x144xbf16, #tpu.memory_space<vmem>>, vector<16x144xbf16>
    %cst_6 = arith.constant dense<0.000000e+00> : vector<16x128xf32>
    %7 = tpu.matmul %6, %5, %cst_6 {dimension_numbers = #tpu.dot_dimension_numbers<[1], [0], [0], [1], [0, 0, 1, 1], [], []>} : vector<16x144xbf16>, vector<144x128xbf16>, vector<16x128xf32> -> vector<16x128xf32>
    %c0_7 = arith.constant 0 : index
    %c0_8 = arith.constant 0 : index
    %8 = vector.load %arg4[%c0_7, %c0_8] : memref<16x1xf32, #tpu.memory_space<vmem>>, vector<16x1xf32>
    %9 = vector.broadcast %8 : vector<16x1xf32> to vector<16x128xf32>
    %10 = arith.addf %7, %9 : vector<16x128xf32>
    %cst_9 = arith.constant 0.000000e+00 : f32
    %11 = vector.broadcast %cst_9 : f32 to vector<16x128xf32>
    %12 = arith.maximumf %10, %11 : vector<16x128xf32>
    %13 = arith.truncf %12 : vector<16x128xf32> to vector<16x128xbf16>
    %c0_10 = arith.constant 0 : index
    %c0_11 = arith.constant 0 : index
    %14 = vector.load %arg5[%c0_10, %c0_11] : memref<32x16xbf16, #tpu.memory_space<vmem>>, vector<32x16xbf16>
    %cst_12 = arith.constant dense<0.000000e+00> : vector<32x128xf32>
    %15 = tpu.matmul %14, %13, %cst_12 {dimension_numbers = #tpu.dot_dimension_numbers<[1], [0], [0], [1], [0, 0, 1, 1], [], []>} : vector<32x16xbf16>, vector<16x128xbf16>, vector<32x128xf32> -> vector<32x128xf32>
    %c0_13 = arith.constant 0 : index
    %c0_14 = arith.constant 0 : index
    %16 = vector.load %arg6[%c0_13, %c0_14] : memref<32x1xf32, #tpu.memory_space<vmem>>, vector<32x1xf32>
    %17 = vector.broadcast %16 : vector<32x1xf32> to vector<32x128xf32>
    %18 = arith.addf %15, %17 : vector<32x128xf32>
    %19 = vector.extract_strided_slice %0 {offsets = [64, 0], sizes = [16, 128], strides = [1, 1]} : vector<153x128xbf16> to vector<16x128xbf16>
    %c0_15 = arith.constant 0 : index
    %c0_16 = arith.constant 0 : index
    %20 = vector.load %arg7[%c0_15, %c0_16] : memref<32x16xbf16, #tpu.memory_space<vmem>>, vector<32x16xbf16>
    %cst_17 = arith.constant dense<0.000000e+00> : vector<32x128xf32>
    %21 = tpu.matmul %20, %19, %cst_17 {dimension_numbers = #tpu.dot_dimension_numbers<[1], [0], [0], [1], [0, 0, 1, 1], [], []>} : vector<32x16xbf16>, vector<16x128xbf16>, vector<32x128xf32> -> vector<32x128xf32>
    %c0_18 = arith.constant 0 : index
    %c0_19 = arith.constant 0 : index
    %22 = vector.load %arg8[%c0_18, %c0_19] : memref<32x1xf32, #tpu.memory_space<vmem>>, vector<32x1xf32>
    %23 = vector.broadcast %22 : vector<32x1xf32> to vector<32x128xf32>
    %24 = arith.addf %21, %23 : vector<32x128xf32>
    %25 = arith.addf %18, %24 : vector<32x128xf32>
    %cst_20 = arith.constant 0.000000e+00 : f32
    %26 = vector.broadcast %cst_20 : f32 to vector<32x128xf32>
    %27 = arith.maximumf %25, %26 : vector<32x128xf32>
    %28 = arith.truncf %27 : vector<32x128xf32> to vector<32x128xbf16>
    %c0_21 = arith.constant 0 : index
    %c0_22 = arith.constant 0 : index
    %29 = vector.load %arg9[%c0_21, %c0_22] : memref<32x128xbf16, #tpu.memory_space<vmem>>, vector<32x128xbf16>
    tpu.vector_store %arg9[%c0_21, %c0_22], %28 {strides = array<i32>} : memref<32x128xbf16, #tpu.memory_space<vmem>>, vector<32x128xbf16>,
    return
  }
  func.func @transform_0(%arg0: i32) -> (i32, i32) {
    %c0_i32 = arith.constant 0 : i32
    %c0_i32_0 = arith.constant 0 : i32
    return %c0_i32, %arg0 : i32, i32
  }
  func.func @transform_1(%arg0: i32) -> (i32, i32) {
    %c0_i32 = arith.constant 0 : i32
    %c0_i32_0 = arith.constant 0 : i32
    %c0_i32_1 = arith.constant 0 : i32
    return %c0_i32, %c0_i32_0 : i32, i32
  }
  func.func @transform_2(%arg0: i32) -> (i32, i32) {
    %c0_i32 = arith.constant 0 : i32
    %c0_i32_0 = arith.constant 0 : i32
    %c0_i32_1 = arith.constant 0 : i32
    return %c0_i32, %c0_i32_0 : i32, i32
  }
  func.func @transform_3(%arg0: i32) -> (i32, i32) {
    %c0_i32 = arith.constant 0 : i32
    %c0_i32_0 = arith.constant 0 : i32
    %c0_i32_1 = arith.constant 0 : i32
    return %c0_i32, %c0_i32_0 : i32, i32
  }
  func.func @transform_4(%arg0: i32) -> (i32, i32) {
    %c0_i32 = arith.constant 0 : i32
    %c0_i32_0 = arith.constant 0 : i32
    %c0_i32_1 = arith.constant 0 : i32
    return %c0_i32, %c0_i32_0 : i32, i32
  }
  func.func @transform_5(%arg0: i32) -> (i32, i32) {
    %c0_i32 = arith.constant 0 : i32
    %c0_i32_0 = arith.constant 0 : i32
    %c0_i32_1 = arith.constant 0 : i32
    return %c0_i32, %c0_i32_0 : i32, i32
  }
  func.func @transform_6(%arg0: i32) -> (i32, i32) {
    %c0_i32 = arith.constant 0 : i32
    %c0_i32_0 = arith.constant 0 : i32
    %c0_i32_1 = arith.constant 0 : i32
    return %c0_i32, %c0_i32_0 : i32, i32
  }
  func.func @transform_7(%arg0: i32) -> (i32, i32) {
    %c0_i32 = arith.constant 0 : i32
    %c0_i32_0 = arith.constant 0 : i32
    %c0_i32_1 = arith.constant 0 : i32
    return %c0_i32, %c0_i32_0 : i32, i32
  }
  func.func @transform_8(%arg0: i32) -> (i32, i32) {
    %c0_i32 = arith.constant 0 : i32
    %c0_i32_0 = arith.constant 0 : i32
    return %c0_i32, %arg0 : i32, i32
  }
}

module attributes {stable_mosaic.version = 11 : i64} {
  func.func @_bottleneck_kernel(%arg0: i32, %arg1: memref<297x128xbf16, #tpu.memory_space<vmem>>, %arg2: memref<144x297xbf16, #tpu.memory_space<vmem>>, %arg3: memref<16x144xbf16, #tpu.memory_space<vmem>>, %arg4: memref<16x1xf32, #tpu.memory_space<vmem>>, %arg5: memref<32x16xbf16, #tpu.memory_space<vmem>>, %arg6: memref<32x1xf32, #tpu.memory_space<vmem>>, %arg7: memref<32x32xbf16, #tpu.memory_space<vmem>>, %arg8: memref<32x1xf32, #tpu.memory_space<vmem>>, %arg9: memref<32x128xbf16, #tpu.memory_space<vmem>>) attributes {dimension_semantics = [#tpu.dimension_semantics<parallel>], iteration_bounds = array<i64: 1>, scalar_prefetch = 0 : i64, scratch_operands = 0 : i64, tpu.core_type = #tpu.core_type<tc>, window_params = [{transform_indices = @transform_0, window_bounds = array<i64: 297, 128>}, {pipeline_mode = #tpu.pipeline_mode<synchronous>, transform_indices = @transform_1, window_bounds = array<i64: 144, 297>}, {pipeline_mode = #tpu.pipeline_mode<synchronous>, transform_indices = @transform_2, window_bounds = array<i64: 16, 144>}, {pipeline_mode = #tpu.pipeline_mode<synchronous>, transform_indices = @transform_3, window_bounds = array<i64: 16, 1>}, {pipeline_mode = #tpu.pipeline_mode<synchronous>, transform_indices = @transform_4, window_bounds = array<i64: 32, 16>}, {pipeline_mode = #tpu.pipeline_mode<synchronous>, transform_indices = @transform_5, window_bounds = array<i64: 32, 1>}, {pipeline_mode = #tpu.pipeline_mode<synchronous>, transform_indices = @transform_6, window_bounds = array<i64: 32, 32>}, {pipeline_mode = #tpu.pipeline_mode<synchronous>, transform_indices = @transform_7, window_bounds = array<i64: 32, 1>}, {transform_indices = @transform_8, window_bounds = array<i64: 32, 128>}]} {
    %c0 = arith.constant 0 : index
    %c0_0 = arith.constant 0 : index
    %0 = vector.load %arg1[%c0, %c0_0] : memref<297x128xbf16, #tpu.memory_space<vmem>>, vector<297x128xbf16>
    %c0_1 = arith.constant 0 : index
    %c0_2 = arith.constant 0 : index
    %1 = vector.load %arg2[%c0_1, %c0_2] : memref<144x297xbf16, #tpu.memory_space<vmem>>, vector<144x297xbf16>
    %cst = arith.constant dense<0.000000e+00> : vector<144x128xf32>
    %2 = tpu.matmul %1, %0, %cst {dimension_numbers = #tpu.dot_dimension_numbers<[1], [0], [0], [1], [0, 0, 1, 1], [], []>} : vector<144x297xbf16>, vector<297x128xbf16>, vector<144x128xf32> -> vector<144x128xf32>
    %cst_3 = arith.constant 0.000000e+00 : f32
    %3 = vector.broadcast %cst_3 : f32 to vector<144x128xf32>
    %4 = arith.maximumf %2, %3 : vector<144x128xf32>
    %5 = arith.truncf %4 : vector<144x128xf32> to vector<144x128xbf16>
    %c0_4 = arith.constant 0 : index
    %c0_5 = arith.constant 0 : index
    %6 = vector.load %arg3[%c0_4, %c0_5] : memref<16x144xbf16, #tpu.memory_space<vmem>>, vector<16x144xbf16>
    %cst_6 = arith.constant dense<0.000000e+00> : vector<16x128xf32>
    %7 = tpu.matmul %6, %5, %cst_6 {dimension_numbers = #tpu.dot_dimension_numbers<[1], [0], [0], [1], [0, 0, 1, 1], [], []>} : vector<16x144xbf16>, vector<144x128xbf16>, vector<16x128xf32> -> vector<16x128xf32>
    %c0_7 = arith.constant 0 : index
    %c0_8 = arith.constant 0 : index
    %8 = vector.load %arg4[%c0_7, %c0_8] : memref<16x1xf32, #tpu.memory_space<vmem>>, vector<16x1xf32>
    %9 = vector.broadcast %8 : vector<16x1xf32> to vector<16x128xf32>
    %10 = arith.addf %7, %9 : vector<16x128xf32>
    %cst_9 = arith.constant 0.000000e+00 : f32
    %11 = vector.broadcast %cst_9 : f32 to vector<16x128xf32>
    %12 = arith.maximumf %10, %11 : vector<16x128xf32>
    %13 = arith.truncf %12 : vector<16x128xf32> to vector<16x128xbf16>
    %c0_10 = arith.constant 0 : index
    %c0_11 = arith.constant 0 : index
    %14 = vector.load %arg5[%c0_10, %c0_11] : memref<32x16xbf16, #tpu.memory_space<vmem>>, vector<32x16xbf16>
    %cst_12 = arith.constant dense<0.000000e+00> : vector<32x128xf32>
    %15 = tpu.matmul %14, %13, %cst_12 {dimension_numbers = #tpu.dot_dimension_numbers<[1], [0], [0], [1], [0, 0, 1, 1], [], []>} : vector<32x16xbf16>, vector<16x128xbf16>, vector<32x128xf32> -> vector<32x128xf32>
    %c0_13 = arith.constant 0 : index
    %c0_14 = arith.constant 0 : index
    %16 = vector.load %arg6[%c0_13, %c0_14] : memref<32x1xf32, #tpu.memory_space<vmem>>, vector<32x1xf32>
    %17 = vector.broadcast %16 : vector<32x1xf32> to vector<32x128xf32>
    %18 = arith.addf %15, %17 : vector<32x128xf32>
    %19 = vector.extract_strided_slice %0 {offsets = [128, 0], sizes = [32, 128], strides = [1, 1]} : vector<297x128xbf16> to vector<32x128xbf16>
    %c0_15 = arith.constant 0 : index
    %c0_16 = arith.constant 0 : index
    %20 = vector.load %arg7[%c0_15, %c0_16] : memref<32x32xbf16, #tpu.memory_space<vmem>>, vector<32x32xbf16>
    %cst_17 = arith.constant dense<0.000000e+00> : vector<32x128xf32>
    %21 = tpu.matmul %20, %19, %cst_17 {dimension_numbers = #tpu.dot_dimension_numbers<[1], [0], [0], [1], [0, 0, 1, 1], [], []>} : vector<32x32xbf16>, vector<32x128xbf16>, vector<32x128xf32> -> vector<32x128xf32>
    %c0_18 = arith.constant 0 : index
    %c0_19 = arith.constant 0 : index
    %22 = vector.load %arg8[%c0_18, %c0_19] : memref<32x1xf32, #tpu.memory_space<vmem>>, vector<32x1xf32>
    %23 = vector.broadcast %22 : vector<32x1xf32> to vector<32x128xf32>
    %24 = arith.addf %21, %23 : vector<32x128xf32>
    %25 = arith.addf %18, %24 : vector<32x128xf32>
    %cst_20 = arith.constant 0.000000e+00 : f32
    %26 = vector.broadcast %cst_20 : f32 to vector<32x128xf32>
    %27 = arith.maximumf %25, %26 : vector<32x128xf32>
    %28 = arith.truncf %27 : vector<32x128xf32> to vector<32x128xbf16>
    %c0_21 = arith.constant 0 : index
    %c0_22 = arith.constant 0 : index
    %29 = vector.load %arg9[%c0_21, %c0_22] : memref<32x128xbf16, #tpu.memory_space<vmem>>, vector<32x128xbf16>
    tpu.vector_store %arg9[%c0_21, %c0_22], %28 {strides = array<i32>} : memref<32x128xbf16, #tpu.memory_space<vmem>>, vector<32x128xbf16>,
    return
  }
  func.func @transform_0(%arg0: i32) -> (i32, i32) {
    %c0_i32 = arith.constant 0 : i32
    %c0_i32_0 = arith.constant 0 : i32
    return %c0_i32, %arg0 : i32, i32
  }
  func.func @transform_1(%arg0: i32) -> (i32, i32) {
    %c0_i32 = arith.constant 0 : i32
    %c0_i32_0 = arith.constant 0 : i32
    %c0_i32_1 = arith.constant 0 : i32
    return %c0_i32, %c0_i32_0 : i32, i32
  }
  func.func @transform_2(%arg0: i32) -> (i32, i32) {
    %c0_i32 = arith.constant 0 : i32
    %c0_i32_0 = arith.constant 0 : i32
    %c0_i32_1 = arith.constant 0 : i32
    return %c0_i32, %c0_i32_0 : i32, i32
  }
  func.func @transform_3(%arg0: i32) -> (i32, i32) {
    %c0_i32 = arith.constant 0 : i32
    %c0_i32_0 = arith.constant 0 : i32
    %c0_i32_1 = arith.constant 0 : i32
    return %c0_i32, %c0_i32_0 : i32, i32
  }
  func.func @transform_4(%arg0: i32) -> (i32, i32) {
    %c0_i32 = arith.constant 0 : i32
    %c0_i32_0 = arith.constant 0 : i32
    %c0_i32_1 = arith.constant 0 : i32
    return %c0_i32, %c0_i32_0 : i32, i32
  }
  func.func @transform_5(%arg0: i32) -> (i32, i32) {
    %c0_i32 = arith.constant 0 : i32
    %c0_i32_0 = arith.constant 0 : i32
    %c0_i32_1 = arith.constant 0 : i32
    return %c0_i32, %c0_i32_0 : i32, i32
  }
  func.func @transform_6(%arg0: i32) -> (i32, i32) {
    %c0_i32 = arith.constant 0 : i32
    %c0_i32_0 = arith.constant 0 : i32
    %c0_i32_1 = arith.constant 0 : i32
    return %c0_i32, %c0_i32_0 : i32, i32
  }
  func.func @transform_7(%arg0: i32) -> (i32, i32) {
    %c0_i32 = arith.constant 0 : i32
    %c0_i32_0 = arith.constant 0 : i32
    %c0_i32_1 = arith.constant 0 : i32
    return %c0_i32, %c0_i32_0 : i32, i32
  }
  func.func @transform_8(%arg0: i32) -> (i32, i32) {
    %c0_i32 = arith.constant 0 : i32
    %c0_i32_0 = arith.constant 0 : i32
    return %c0_i32, %arg0 : i32, i32
  }
}

</mosaic_0001>

<llo_original>
// kernel: fpn_backbone_radar.7
$region0: #{fpn_backbone_radar.7}
  #allocation0 [shape = 'u32[]', space=smem, size = 0x4, offset = 0x4, fixed_abs, tag = 'smem constant byte address 0x4 - core index']
  #allocation1 [shape = 'u32[72,128]{1,0:T(1,128)}', space=vmem, size = 0x9000, scoped, tag = 'internal scratch']
  %s0 = inlined_call_operand.vmem [shape: bf16[384,4096], index: 0, kind: input, shape index: {}]
  %s1 = inlined_call_operand.vmem [shape: bf16[16,384], index: 1, kind: input, shape index: {}]
  %s2 = inlined_call_operand.vmem [shape: f32[16,1], index: 2, kind: input, shape index: {}]
  %s3 = inlined_call_operand.vmem [shape: bf16[16,4096], index: 3, kind: output, shape index: {}]
  %s4 = sld [smem:[#allocation0]]
  $region87: #{fpn_backbone_radar.7} parent=0
    _
  %s6 = ssub.s32 1, %s4
  %s7 = scalar_select 0, %s6, %s4
  $region1: #{fpn_backbone_radar.7} parent=0
    #allocation2 [shape = 'u8[1572864]{0}', space=vmem, size = 0x180000, scoped, tag = 'input window, operand 0']
    #allocation3 [shape = 'u8[65536]{0}', space=vmem, size = 0x10000, scoped, tag = 'output window, operand 0']
    loop: start=0, step=1, limit=6
    $region2: #{fpn_backbone_radar.7} parent=1 // loop_pre_header
      _
    $region3: #{fpn_backbone_radar.7} parent=1 // loop_header
      %s9 = sphi 0, %s13
      %p10 = scmp.ge.s32.totalorder %s9, 6
      %s19 = sphi 0, %s21
      %s22 = sphi 0, %s19
      %s23 = sphi 0, %s22
      %s39 = sphi 0, %s23
      %s43 = sphi 0, %s43
      %s45 = sphi 0, %s43
      %s46 = sphi 0, %s45
      %s60 = sphi 0, %s46
      %s64 = sphi 0, %s64
      %s66 = sphi 0, %s64
      %s67 = sphi 0, %s66
      %s81 = sphi 0, %s67
      %s87 = sphi 0, %s89
      %s90 = sphi 0, %s87
      %s91 = sphi 0, %s90
      %s107 = sphi 0, %s91
    $region4: #{fpn_backbone_radar.7} parent=1 // loop_header_branch
      %12 = sbr.rel (%p10) target = $region8
    $region5: #{fpn_backbone_radar.7} parent=1 // loop_body
      %s14 = ssub.s32 %s9, 1
      %s15 = ssub.s32 %s9, 2
      %s16 = sadd.s32 %s9, 1
      %s17 = ssub.s32 %s9, %s16
      %p18 = scmp.eq.s32.totalorder %s17, 0
      %s20 = sadd.s32 %s19, 1
      %s21 = scalar_select %p18, %s19, %s20
      %p24 = pneg %p18
      %p25 = scmp.eq.s32.totalorder %s9, 3
      %p26 = por %p24, %p25
      %p27 = scmp.ne.s32.totalorder %s19, %s22
      %p28 = scmp.eq.s32.totalorder %s9, 0
      %p29 = por %p27, %p28
      %p30 = scmp.ne.s32.totalorder %s19, %s22
      %p31 = scmp.eq.s32.totalorder %s14, 3
      %p32 = por %p30, %p31
      %p33 = scmp.ne.s32.totalorder %s22, %s23
      %p34 = scmp.eq.s32.totalorder %s14, 0
      %p35 = por %p33, %p34
      %p36 = scmp.ne.s32.totalorder %s22, %s23
      %p37 = scmp.eq.s32.totalorder %s15, 3
      %p38 = por %p36, %p37
      %p40 = scmp.ne.s32.totalorder %s23, %s39
      %p41 = scmp.eq.s32.totalorder %s15, 0
      %p42 = por %p40, %p41
      %s44 = sadd.s32 %s43, 1
      %p47 = scmp.eq.s32.totalorder %s9, 3
      %p48 = scmp.ne.s32.totalorder %s43, %s45
      %p49 = scmp.eq.s32.totalorder %s9, 0
      %p50 = por %p48, %p49
      %p51 = scmp.ne.s32.totalorder %s43, %s45
      %p52 = scmp.eq.s32.totalorder %s14, 3
      %p53 = por %p51, %p52
      %p54 = scmp.ne.s32.totalorder %s45, %s46
      %p55 = scmp.eq.s32.totalorder %s14, 0
      %p56 = por %p54, %p55
      %p57 = scmp.ne.s32.totalorder %s45, %s46
      %p58 = scmp.eq.s32.totalorder %s15, 3
      %p59 = por %p57, %p58
      %p61 = scmp.ne.s32.totalorder %s46, %s60
      %p62 = scmp.eq.s32.totalorder %s15, 0
      %p63 = por %p61, %p62
      %s65 = sadd.s32 %s64, 1
      %p68 = scmp.eq.s32.totalorder %s9, 3
      %p69 = scmp.ne.s32.totalorder %s64, %s66
      %p70 = scmp.eq.s32.totalorder %s9, 0
      %p71 = por %p69, %p70
      %p72 = scmp.ne.s32.totalorder %s64, %s66
      %p73 = scmp.eq.s32.totalorder %s14, 3
      %p74 = por %p72, %p73
      %p75 = scmp.ne.s32.totalorder %s66, %s67
      %p76 = scmp.eq.s32.totalorder %s14, 0
      %p77 = por %p75, %p76
      %p78 = scmp.ne.s32.totalorder %s66, %s67
      %p79 = scmp.eq.s32.totalorder %s15, 3
      %p80 = por %p78, %p79
      %p82 = scmp.ne.s32.totalorder %s67, %s81
      %p83 = scmp.eq.s32.totalorder %s15, 0
      %p84 = por %p82, %p83
      %s85 = ssub.s32 %s9, %s16
      %p86 = scmp.eq.s32.totalorder %s85, 0
      %s88 = sadd.s32 %s87, 1
      %s89 = scalar_select %p86, %s87, %s88
      %p92 = pneg %p86
      %p93 = scmp.eq.s32.totalorder %s9, 3
      %p94 = por %p92, %p93
      %p95 = scmp.ne.s32.totalorder %s87, %s90
      %p96 = scmp.eq.s32.totalorder %s9, 0
      %p97 = por %p95, %p96
      %p98 = scmp.ne.s32.totalorder %s87, %s90
      %p99 = scmp.eq.s32.totalorder %s14, 3
      %p100 = por %p98, %p99
      %p101 = scmp.ne.s32.totalorder %s90, %s91
      %p102 = scmp.eq.s32.totalorder %s14, 0
      %p103 = por %p101, %p102
      %p104 = scmp.ne.s32.totalorder %s90, %s91
      %p105 = scmp.eq.s32.totalorder %s15, 3
      %p106 = por %p104, %p105
      %p108 = scmp.ne.s32.totalorder %s91, %s107
      %p109 = scmp.eq.s32.totalorder %s15, 0
      %p110 = por %p108, %p109
      %p111 = scmp.le.s32.totalorder 1, %s9
      %p112 = scmp.lt.s32.totalorder %s9, 5
      %p113 = pnand %p111, %p112
      %p114 = pneg %p113
      // Predicated region
      $region9: #{fpn_backbone_radar.7} parent=5 // pred_check
        _
      $region10: #{fpn_backbone_radar.7} parent=5 // pred_check_branch
        %116 = sbr.rel (%p113) target = $region12
      $region11: #{fpn_backbone_radar.7} parent=5 // pred_region
        %s117 = ssub.s32 %s9, 1
        // Predicated region
        $region13: #{fpn_backbone_radar.7} parent=11 // pred_check
          %p118 = pneg %p56
        $region14: #{fpn_backbone_radar.7} parent=11 // pred_check_branch
          %120 = sbr.rel (%p118) target = $region16
        $region15: #{fpn_backbone_radar.7} parent=11 // pred_region
          _
        $region16: #{fpn_backbone_radar.7} parent=11 // pred_fallthru
          _
        // Predicated region
        $region17: #{fpn_backbone_radar.7} parent=11 // pred_check
          %p121 = pneg %p77
        $region18: #{fpn_backbone_radar.7} parent=11 // pred_check_branch
          %123 = sbr.rel (%p121) target = $region20
        $region19: #{fpn_backbone_radar.7} parent=11 // pred_region
          _
        $region20: #{fpn_backbone_radar.7} parent=11 // pred_fallthru
          _
      $region12: #{fpn_backbone_radar.7} parent=5 // pred_fallthru
        _
      %p124 = scmp.lt.s32.totalorder %s9, 4
      // Predicated region
      $region21: #{fpn_backbone_radar.7} parent=5 // pred_check
        %p125 = pneg %p124
      $region22: #{fpn_backbone_radar.7} parent=5 // pred_check_branch
        %127 = sbr.rel (%p125) target = $region24
      $region23: #{fpn_backbone_radar.7} parent=5 // pred_region
        // Predicated region
        $region25: #{fpn_backbone_radar.7} parent=23 // pred_check
          %p128 = pneg %p29
        $region26: #{fpn_backbone_radar.7} parent=23 // pred_check_branch
          %130 = sbr.rel (%p128) target = $region28
        $region27: #{fpn_backbone_radar.7} parent=23 // pred_region
          %s131 = sand.u32 %s19, 1
          %s132 = sand.u32 %s19, 1
          %s133 = smul.addr %s132, 1536
          %s134 = scalar_lea.vmem [#allocation2], %s133
          %s135 = smul.u32 8, %s9
          %s136 = smul.addr %s135, 4
          %s137 = scalar_lea.vmem %s0, %s136
          // Predicated region
          $region29: #{fpn_backbone_radar.7} parent=27 // pred_check
            _
          $region30: #{fpn_backbone_radar.7} parent=27 // pred_check_branch
            %139 = sbr.rel (0) target = $region32
          $region31: #{fpn_backbone_radar.7} parent=27 // pred_region
            // Predicated region
            $region33: #{fpn_backbone_radar.7} parent=31 // pred_check
              _
            $region34: #{fpn_backbone_radar.7} parent=31 // pred_check_branch
              %141 = sbr.rel (0) target = $region36
            $region35: #{fpn_backbone_radar.7} parent=31 // pred_region
              loop: start=0, step=1, limit=1
              $region37: #{fpn_backbone_radar.7} parent=35 // loop_pre_header
                _
              $region38: #{fpn_backbone_radar.7} parent=35 // loop_header
                %s143 = sphi 0, %s147
                %p144 = scmp.ge.s32.totalorder %s143, 1
                %s148 = sphi %s137, %s137
                %s149 = sphi %s134, %s134
              $region39: #{fpn_backbone_radar.7} parent=35 // loop_header_branch
                %146 = sbr.rel (%p144) target = $region43
              $region40: #{fpn_backbone_radar.7} parent=35 // loop_body
                %v150 = vld [vmem:[%s148] sm:$0xff]
                %151 = vst [vmem:[%s149] sm:$0xff] %v150
                %v152 = vld [vmem:[%s148 + $0x8] sm:$0xff]
                %153 = vst [vmem:[%s149 + $0x8] sm:$0xff] %v152
                %v154 = vld [vmem:[%s148 + $0x10] sm:$0xff]
                %155 = vst [vmem:[%s149 + $0x10] sm:$0xff] %v154
                %v156 = vld [vmem:[%s148 + $0x18] sm:$0xff]
                %157 = vst [vmem:[%s149 + $0x18] sm:$0xff] %v156
                %v158 = vld [vmem:[%s148 + $0x80] sm:$0xff]
                %159 = vst [vmem:[%s149 + $0x20] sm:$0xff] %v158
                %v160 = vld [vmem:[%s148 + $0x88] sm:$0xff]
                %161 = vst [vmem:[%s149 + $0x28] sm:$0xff] %v160
                %v162 = vld [vmem:[%s148 + $0x90] sm:$0xff]
                %163 = vst [vmem:[%s149 + $0x30] sm:$0xff] %v162
                %v164 = vld [vmem:[%s148 + $0x98] sm:$0xff]
                %165 = vst [vmem:[%s149 + $0x38] sm:$0xff] %v164
                %v166 = vld [vmem:[%s148 + $0x100] sm:$0xff]
                %167 = vst [vmem:[%s149 + $0x40] sm:$0xff] %v166
                %v168 = vld [vmem:[%s148 + $0x108] sm:$0xff]
                %169 = vst [vmem:[%s149 + $0x48] sm:$0xff] %v168
                %v170 = vld [vmem:[%s148 + $0x110] sm:$0xff]
                %171 = vst [vmem:[%s149 + $0x50] sm:$0xff] %v170
                %v172 = vld [vmem:[%s148 + $0x118] sm:$0xff]
                %173 = vst [vmem:[%s149 + $0x58] sm:$0xff] %v172
                %v174 = vld [vmem:[%s148 + $0x180] sm:$0xff]
                %175 = vst [vmem:[%s149 + $0x60] sm:$0xff] %v174
                %v176 = vld [vmem:[%s148 + $0x188] sm:$0xff]
                %177 = vst [vmem:[%s149 + $0x68] sm:$0xff] %v176
                %v178 = vld [vmem:[%s148 + $0x190] sm:$0xff]
                %179 = vst [vmem:[%s149 + $0x70] sm:$0xff] %v178
                %v180 = vld [vmem:[%s148 + $0x198] sm:$0xff]
                %181 = vst [vmem:[%s149 + $0x78] sm:$0xff] %v180
                %v182 = vld [vmem:[%s148 + $0x200] sm:$0xff]
                %183 = vst [vmem:[%s149 + $0x80] sm:$0xff] %v182
                %v184 = vld [vmem:[%s148 + $0x208] sm:$0xff]
                %185 = vst [vmem:[%s149 + $0x88] sm:$0xff] %v184
                %v186 = vld [vmem:[%s148 + $0x210] sm:$0xff]
                %187 = vst [vmem:[%s149 + $0x90] sm:$0xff] %v186
                %v188 = vld [vmem:[%s148 + $0x218] sm:$0xff]
                %189 = vst [vmem:[%s149 + $0x98] sm:$0xff] %v188
                %v190 = vld [vmem:[%s148 + $0x280] sm:$0xff]
                %191 = vst [vmem:[%s149 + $0xa0] sm:$0xff] %v190
                %v192 = vld [vmem:[%s148 + $0x288] sm:$0xff]
                %193 = vst [vmem:[%s149 + $0xa8] sm:$0xff] %v192
                %v194 = vld [vmem:[%s148 + $0x290] sm:$0xff]
                %195 = vst [vmem:[%s149 + $0xb0] sm:$0xff] %v194
                %v196 = vld [vmem:[%s148 + $0x298] sm:$0xff]
                %197 = vst [vmem:[%s149 + $0xb8] sm:$0xff] %v196
                %v198 = vld [vmem:[%s148 + $0x300] sm:$0xff]
                %199 = vst [vmem:[%s149 + $0xc0] sm:$0xff] %v198
                %v200 = vld [vmem:[%s148 + $0x308] sm:$0xff]
                %201 = vst [vmem:[%s149 + $0xc8] sm:$0xff] %v200
                %v202 = vld [vmem:[%s148 + $0x310] sm:$0xff]
                %203 = vst [vmem:[%s149 + $0xd0] sm:$0xff] %v202
                %v204 = vld [vmem:[%s148 + $0x318] sm:$0xff]
                %205 = vst [vmem:[%s149 + $0xd8] sm:$0xff] %v204
                %v206 = vld [vmem:[%s148 + $0x380] sm:$0xff]
                %207 = vst [vmem:[%s149 + $0xe0] sm:$0xff] %v206
                %v208 = vld [vmem:[%s148 + $0x388] sm:$0xff]
                %209 = vst [vmem:[%s149 + $0xe8] sm:$0xff] %v208
                %v210 = vld [vmem:[%s148 + $0x390] sm:$0xff]
                %211 = vst [vmem:[%s149 + $0xf0] sm:$0xff] %v210
                %v212 = vld [vmem:[%s148 + $0x398] sm:$0xff]
                %213 = vst [vmem:[%s149 + $0xf8] sm:$0xff] %v212
                %v214 = vld [vmem:[%s148 + $0x400] sm:$0xff]
                %215 = vst [vmem:[%s149 + $0x100] sm:$0xff] %v214
                %v216 = vld [vmem:[%s148 + $0x408] sm:$0xff]
                %217 = vst [vmem:[%s149 + $0x108] sm:$0xff] %v216
                %v218 = vld [vmem:[%s148 + $0x410] sm:$0xff]
                %219 = vst [vmem:[%s149 + $0x110] sm:$0xff] %v218
                %v220 = vld [vmem:[%s148 + $0x418] sm:$0xff]
                %221 = vst [vmem:[%s149 + $0x118] sm:$0xff] %v220
                %v222 = vld [vmem:[%s148 + $0x480] sm:$0xff]
                %223 = vst [vmem:[%s149 + $0x120] sm:$0xff] %v222
                %v224 = vld [vmem:[%s148 + $0x488] sm:$0xff]
                %225 = vst [vmem:[%s149 + $0x128] sm:$0xff] %v224
                %v226 = vld [vmem:[%s148 + $0x490] sm:$0xff]
                %227 = vst [vmem:[%s149 + $0x130] sm:$0xff] %v226
                %v228 = vld [vmem:[%s148 + $0x498] sm:$0xff]
                %229 = vst [vmem:[%s149 + $0x138] sm:$0xff] %v228
                %v230 = vld [vmem:[%s148 + $0x500] sm:$0xff]
                %231 = vst [vmem:[%s149 + $0x140] sm:$0xff] %v230
                %v232 = vld [vmem:[%s148 + $0x508] sm:$0xff]
                %233 = vst [vmem:[%s149 + $0x148] sm:$0xff] %v232
                %v234 = vld [vmem:[%s148 + $0x510] sm:$0xff]
                %235 = vst [vmem:[%s149 + $0x150] sm:$0xff] %v234
                %v236 = vld [vmem:[%s148 + $0x518] sm:$0xff]
                %237 = vst [vmem:[%s149 + $0x158] sm:$0xff] %v236
                %v238 = vld [vmem:[%s148 + $0x580] sm:$0xff]
                %239 = vst [vmem:[%s149 + $0x160] sm:$0xff] %v238
                %v240 = vld [vmem:[%s148 + $0x588] sm:$0xff]
                %241 = vst [vmem:[%s149 + $0x168] sm:$0xff] %v240
                %v242 = vld [vmem:[%s148 + $0x590] sm:$0xff]
                %243 = vst [vmem:[%s149 + $0x170] sm:$0xff] %v242
                %v244 = vld [vmem:[%s148 + $0x598] sm:$0xff]
                %245 = vst [vmem:[%s149 + $0x178] sm:$0xff] %v244
                %v246 = vld [vmem:[%s148 + $0x600] sm:$0xff]
                %247 = vst [vmem:[%s149 + $0x180] sm:$0xff] %v246
                %v248 = vld [vmem:[%s148 + $0x608] sm:$0xff]
                %249 = vst [vmem:[%s149 + $0x188] sm:$0xff] %v248
                %v250 = vld [vmem:[%s148 + $0x610] sm:$0xff]
                %251 = vst [vmem:[%s149 + $0x190] sm:$0xff] %v250
                %v252 = vld [vmem:[%s148 + $0x618] sm:$0xff]
                %253 = vst [vmem:[%s149 + $0x198] sm:$0xff] %v252
                %v254 = vld [vmem:[%s148 + $0x680] sm:$0xff]
                %255 = vst [vmem:[%s149 + $0x1a0] sm:$0xff] %v254
                %v256 = vld [vmem:[%s148 + $0x688] sm:$0xff]
                %257 = vst [vmem:[%s149 + $0x1a8] sm:$0xff] %v256
                %v258 = vld [vmem:[%s148 + $0x690] sm:$0xff]
                %259 = vst [vmem:[%s149 + $0x1b0] sm:$0xff] %v258
                %v260 = vld [vmem:[%s148 + $0x698] sm:$0xff]
                %261 = vst [vmem:[%s149 + $0x1b8] sm:$0xff] %v260
                %v262 = vld [vmem:[%s148 + $0x700] sm:$0xff]
                %263 = vst [vmem:[%s149 + $0x1c0] sm:$0xff] %v262
                %v264 = vld [vmem:[%s148 + $0x708] sm:$0xff]
                %265 = vst [vmem:[%s149 + $0x1c8] sm:$0xff] %v264
                %v266 = vld [vmem:[%s148 + $0x710] sm:$0xff]
                %267 = vst [vmem:[%s149 + $0x1d0] sm:$0xff] %v266
                %v268 = vld [vmem:[%s148 + $0x718] sm:$0xff]
                %269 = vst [vmem:[%s149 + $0x1d8] sm:$0xff] %v268
                %v270 = vld [vmem:[%s148 + $0x780] sm:$0xff]
                %271 = vst [vmem:[%s149 + $0x1e0] sm:$0xff] %v270
                %v272 = vld [vmem:[%s148 + $0x788] sm:$0xff]
                %273 = vst [vmem:[%s149 + $0x1e8] sm:$0xff] %v272
                %v274 = vld [vmem:[%s148 + $0x790] sm:$0xff]
                %275 = vst [vmem:[%s149 + $0x1f0] sm:$0xff] %v274
                %v276 = vld [vmem:[%s148 + $0x798] sm:$0xff]
                %277 = vst [vmem:[%s149 + $0x1f8] sm:$0xff] %v276
                %v278 = vld [vmem:[%s148 + $0x800] sm:$0xff]
                %279 = vst [vmem:[%s149 + $0x200] sm:$0xff] %v278
                %v280 = vld [vmem:[%s148 + $0x808] sm:$0xff]
                %281 = vst [vmem:[%s149 + $0x208] sm:$0xff] %v280
                %v282 = vld [vmem:[%s148 + $0x810] sm:$0xff]
                %283 = vst [vmem:[%s149 + $0x210] sm:$0xff] %v282
                %v284 = vld [vmem:[%s148 + $0x818] sm:$0xff]
                %285 = vst [vmem:[%s149 + $0x218] sm:$0xff] %v284
                %v286 = vld [vmem:[%s148 + $0x880] sm:$0xff]
                %287 = vst [vmem:[%s149 + $0x220] sm:$0xff] %v286
                %v288 = vld [vmem:[%s148 + $0x888] sm:$0xff]
                %289 = vst [vmem:[%s149 + $0x228] sm:$0xff] %v288
                %v290 = vld [vmem:[%s148 + $0x890] sm:$0xff]
                %291 = vst [vmem:[%s149 + $0x230] sm:$0xff] %v290
                %v292 = vld [vmem:[%s148 + $0x898] sm:$0xff]
                %293 = vst [vmem:[%s149 + $0x238] sm:$0xff] %v292
                %v294 = vld [vmem:[%s148 + $0x900] sm:$0xff]
                %295 = vst [vmem:[%s149 + $0x240] sm:$0xff] %v294
                %v296 = vld [vmem:[%s148 + $0x908] sm:$0xff]
                %297 = vst [vmem:[%s149 + $0x248] sm:$0xff] %v296
                %v298 = vld [vmem:[%s148 + $0x910] sm:$0xff]
                %299 = vst [vmem:[%s149 + $0x250] sm:$0xff] %v298
                %v300 = vld [vmem:[%s148 + $0x918] sm:$0xff]
                %301 = vst [vmem:[%s149 + $0x258] sm:$0xff] %v300
                %v302 = vld [vmem:[%s148 + $0x980] sm:$0xff]
                %303 = vst [vmem:[%s149 + $0x260] sm:$0xff] %v302
                %v304 = vld [vmem:[%s148 + $0x988] sm:$0xff]
                %305 = vst [vmem:[%s149 + $0x268] sm:$0xff] %v304
                %v306 = vld [vmem:[%s148 + $0x990] sm:$0xff]
                %307 = vst [vmem:[%s149 + $0x270] sm:$0xff] %v306
                %v308 = vld [vmem:[%s148 + $0x998] sm:$0xff]
                %309 = vst [vmem:[%s149 + $0x278] sm:$0xff] %v308
                %v310 = vld [vmem:[%s148 + $0xa00] sm:$0xff]
                %311 = vst [vmem:[%s149 + $0x280] sm:$0xff] %v310
                %v312 = vld [vmem:[%s148 + $0xa08] sm:$0xff]
                %313 = vst [vmem:[%s149 + $0x288] sm:$0xff] %v312
                %v314 = vld [vmem:[%s148 + $0xa10] sm:$0xff]
                %315 = vst [vmem:[%s149 + $0x290] sm:$0xff] %v314
                %v316 = vld [vmem:[%s148 + $0xa18] sm:$0xff]
                %317 = vst [vmem:[%s149 + $0x298] sm:$0xff] %v316
                %v318 = vld [vmem:[%s148 + $0xa80] sm:$0xff]
                %319 = vst [vmem:[%s149 + $0x2a0] sm:$0xff] %v318
                %v320 = vld [vmem:[%s148 + $0xa88] sm:$0xff]
                %321 = vst [vmem:[%s149 + $0x2a8] sm:$0xff] %v320
                %v322 = vld [vmem:[%s148 + $0xa90] sm:$0xff]
                %323 = vst [vmem:[%s149 + $0x2b0] sm:$0xff] %v322
                %v324 = vld [vmem:[%s148 + $0xa98] sm:$0xff]
                %325 = vst [vmem:[%s149 + $0x2b8] sm:$0xff] %v324
                %v326 = vld [vmem:[%s148 + $0xb00] sm:$0xff]
                %327 = vst [vmem:[%s149 + $0x2c0] sm:$0xff] %v326
                %v328 = vld [vmem:[%s148 + $0xb08] sm:$0xff]
                %329 = vst [vmem:[%s149 + $0x2c8] sm:$0xff] %v328
                %v330 = vld [vmem:[%s148 + $0xb10] sm:$0xff]
                %331 = vst [vmem:[%s149 + $0x2d0] sm:$0xff] %v330
                %v332 = vld [vmem:[%s148 + $0xb18] sm:$0xff]
                %333 = vst [vmem:[%s149 + $0x2d8] sm:$0xff] %v332
                %v334 = vld [vmem:[%s148 + $0xb80] sm:$0xff]
                %335 = vst [vmem:[%s149 + $0x2e0] sm:$0xff] %v334
                %v336 = vld [vmem:[%s148 + $0xb88] sm:$0xff]
                %337 = vst [vmem:[%s149 + $0x2e8] sm:$0xff] %v336
                %v338 = vld [vmem:[%s148 + $0xb90] sm:$0xff]
                %339 = vst [vmem:[%s149 + $0x2f0] sm:$0xff] %v338
                %v340 = vld [vmem:[%s148 + $0xb98] sm:$0xff]
                %341 = vst [vmem:[%s149 + $0x2f8] sm:$0xff] %v340
                %v342 = vld [vmem:[%s148 + $0xc00] sm:$0xff]
                %343 = vst [vmem:[%s149 + $0x300] sm:$0xff] %v342
                %v344 = vld [vmem:[%s148 + $0xc08] sm:$0xff]
                %345 = vst [vmem:[%s149 + $0x308] sm:$0xff] %v344
                %v346 = vld [vmem:[%s148 + $0xc10] sm:$0xff]
                %347 = vst [vmem:[%s149 + $0x310] sm:$0xff] %v346
                %v348 = vld [vmem:[%s148 + $0xc18] sm:$0xff]
                %349 = vst [vmem:[%s149 + $0x318] sm:$0xff] %v348
                %v350 = vld [vmem:[%s148 + $0xc80] sm:$0xff]
                %351 = vst [vmem:[%s149 + $0x320] sm:$0xff] %v350
                %v352 = vld [vmem:[%s148 + $0xc88] sm:$0xff]
                %353 = vst [vmem:[%s149 + $0x328] sm:$0xff] %v352
                %v354 = vld [vmem:[%s148 + $0xc90] sm:$0xff]
                %355 = vst [vmem:[%s149 + $0x330] sm:$0xff] %v354
                %v356 = vld [vmem:[%s148 + $0xc98] sm:$0xff]
                %357 = vst [vmem:[%s149 + $0x338] sm:$0xff] %v356
                %v358 = vld [vmem:[%s148 + $0xd00] sm:$0xff]
                %359 = vst [vmem:[%s149 + $0x340] sm:$0xff] %v358
                %v360 = vld [vmem:[%s148 + $0xd08] sm:$0xff]
                %361 = vst [vmem:[%s149 + $0x348] sm:$0xff] %v360
                %v362 = vld [vmem:[%s148 + $0xd10] sm:$0xff]
                %363 = vst [vmem:[%s149 + $0x350] sm:$0xff] %v362
                %v364 = vld [vmem:[%s148 + $0xd18] sm:$0xff]
                %365 = vst [vmem:[%s149 + $0x358] sm:$0xff] %v364
                %v366 = vld [vmem:[%s148 + $0xd80] sm:$0xff]
                %367 = vst [vmem:[%s149 + $0x360] sm:$0xff] %v366
                %v368 = vld [vmem:[%s148 + $0xd88] sm:$0xff]
                %369 = vst [vmem:[%s149 + $0x368] sm:$0xff] %v368
                %v370 = vld [vmem:[%s148 + $0xd90] sm:$0xff]
                %371 = vst [vmem:[%s149 + $0x370] sm:$0xff] %v370
                %v372 = vld [vmem:[%s148 + $0xd98] sm:$0xff]
                %373 = vst [vmem:[%s149 + $0x378] sm:$0xff] %v372
                %v374 = vld [vmem:[%s148 + $0xe00] sm:$0xff]
                %375 = vst [vmem:[%s149 + $0x380] sm:$0xff] %v374
                %v376 = vld [vmem:[%s148 + $0xe08] sm:$0xff]
                %377 = vst [vmem:[%s149 + $0x388] sm:$0xff] %v376
                %v378 = vld [vmem:[%s148 + $0xe10] sm:$0xff]
                %379 = vst [vmem:[%s149 + $0x390] sm:$0xff] %v378
                %v380 = vld [vmem:[%s148 + $0xe18] sm:$0xff]
                %381 = vst [vmem:[%s149 + $0x398] sm:$0xff] %v380
                %v382 = vld [vmem:[%s148 + $0xe80] sm:$0xff]
                %383 = vst [vmem:[%s149 + $0x3a0] sm:$0xff] %v382
                %v384 = vld [vmem:[%s148 + $0xe88] sm:$0xff]
                %385 = vst [vmem:[%s149 + $0x3a8] sm:$0xff] %v384
                %v386 = vld [vmem:[%s148 + $0xe90] sm:$0xff]
                %387 = vst [vmem:[%s149 + $0x3b0] sm:$0xff] %v386
                %v388 = vld [vmem:[%s148 + $0xe98] sm:$0xff]
                %389 = vst [vmem:[%s149 + $0x3b8] sm:$0xff] %v388
                %v390 = vld [vmem:[%s148 + $0xf00] sm:$0xff]
                %391 = vst [vmem:[%s149 + $0x3c0] sm:$0xff] %v390
                %v392 = vld [vmem:[%s148 + $0xf08] sm:$0xff]
                %393 = vst [vmem:[%s149 + $0x3c8] sm:$0xff] %v392
                %v394 = vld [vmem:[%s148 + $0xf10] sm:$0xff]
                %395 = vst [vmem:[%s149 + $0x3d0] sm:$0xff] %v394
                %v396 = vld [vmem:[%s148 + $0xf18] sm:$0xff]
                %397 = vst [vmem:[%s149 + $0x3d8] sm:$0xff] %v396
                %v398 = vld [vmem:[%s148 + $0xf80] sm:$0xff]
                %399 = vst [vmem:[%s149 + $0x3e0] sm:$0xff] %v398
                %v400 = vld [vmem:[%s148 + $0xf88] sm:$0xff]
                %401 = vst [vmem:[%s149 + $0x3e8] sm:$0xff] %v400
                %v402 = vld [vmem:[%s148 + $0xf90] sm:$0xff]
                %403 = vst [vmem:[%s149 + $0x3f0] sm:$0xff] %v402
                %v404 = vld [vmem:[%s148 + $0xf98] sm:$0xff]
                %405 = vst [vmem:[%s149 + $0x3f8] sm:$0xff] %v404
                %v406 = vld [vmem:[%s148 + $0x1000] sm:$0xff]
                %407 = vst [vmem:[%s149 + $0x400] sm:$0xff] %v406
                %v408 = vld [vmem:[%s148 + $0x1008] sm:$0xff]
                %409 = vst [vmem:[%s149 + $0x408] sm:$0xff] %v408
                %v410 = vld [vmem:[%s148 + $0x1010] sm:$0xff]
                %411 = vst [vmem:[%s149 + $0x410] sm:$0xff] %v410
                %v412 = vld [vmem:[%s148 + $0x1018] sm:$0xff]
                %413 = vst [vmem:[%s149 + $0x418] sm:$0xff] %v412
                %v414 = vld [vmem:[%s148 + $0x1080] sm:$0xff]
                %415 = vst [vmem:[%s149 + $0x420] sm:$0xff] %v414
                %v416 = vld [vmem:[%s148 + $0x1088] sm:$0xff]
                %417 = vst [vmem:[%s149 + $0x428] sm:$0xff] %v416
                %v418 = vld [vmem:[%s148 + $0x1090] sm:$0xff]
                %419 = vst [vmem:[%s149 + $0x430] sm:$0xff] %v418
                %v420 = vld [vmem:[%s148 + $0x1098] sm:$0xff]
                %421 = vst [vmem:[%s149 + $0x438] sm:$0xff] %v420
                %v422 = vld [vmem:[%s148 + $0x1100] sm:$0xff]
                %423 = vst [vmem:[%s149 + $0x440] sm:$0xff] %v422
                %v424 = vld [vmem:[%s148 + $0x1108] sm:$0xff]
                %425 = vst [vmem:[%s149 + $0x448] sm:$0xff] %v424
                %v426 = vld [vmem:[%s148 + $0x1110] sm:$0xff]
                %427 = vst [vmem:[%s149 + $0x450] sm:$0xff] %v426
                %v428 = vld [vmem:[%s148 + $0x1118] sm:$0xff]
                %429 = vst [vmem:[%s149 + $0x458] sm:$0xff] %v428
                %v430 = vld [vmem:[%s148 + $0x1180] sm:$0xff]
                %431 = vst [vmem:[%s149 + $0x460] sm:$0xff] %v430
                %v432 = vld [vmem:[%s148 + $0x1188] sm:$0xff]
                %433 = vst [vmem:[%s149 + $0x468] sm:$0xff] %v432
                %v434 = vld [vmem:[%s148 + $0x1190] sm:$0xff]
                %435 = vst [vmem:[%s149 + $0x470] sm:$0xff] %v434
                %v436 = vld [vmem:[%s148 + $0x1198] sm:$0xff]
                %437 = vst [vmem:[%s149 + $0x478] sm:$0xff] %v436
                %v438 = vld [vmem:[%s148 + $0x1200] sm:$0xff]
                %439 = vst [vmem:[%s149 + $0x480] sm:$0xff] %v438
                %v440 = vld [vmem:[%s148 + $0x1208] sm:$0xff]
                %441 = vst [vmem:[%s149 + $0x488] sm:$0xff] %v440
                %v442 = vld [vmem:[%s148 + $0x1210] sm:$0xff]
                %443 = vst [vmem:[%s149 + $0x490] sm:$0xff] %v442
                %v444 = vld [vmem:[%s148 + $0x1218] sm:$0xff]
                %445 = vst [vmem:[%s149 + $0x498] sm:$0xff] %v444
                %v446 = vld [vmem:[%s148 + $0x1280] sm:$0xff]
                %447 = vst [vmem:[%s149 + $0x4a0] sm:$0xff] %v446
                %v448 = vld [vmem:[%s148 + $0x1288] sm:$0xff]
                %449 = vst [vmem:[%s149 + $0x4a8] sm:$0xff] %v448
                %v450 = vld [vmem:[%s148 + $0x1290] sm:$0xff]
                %451 = vst [vmem:[%s149 + $0x4b0] sm:$0xff] %v450
                %v452 = vld [vmem:[%s148 + $0x1298] sm:$0xff]
                %453 = vst [vmem:[%s149 + $0x4b8] sm:$0xff] %v452
                %v454 = vld [vmem:[%s148 + $0x1300] sm:$0xff]
                %455 = vst [vmem:[%s149 + $0x4c0] sm:$0xff] %v454
                %v456 = vld [vmem:[%s148 + $0x1308] sm:$0xff]
                %457 = vst [vmem:[%s149 + $0x4c8] sm:$0xff] %v456
                %v458 = vld [vmem:[%s148 + $0x1310] sm:$0xff]
                %459 = vst [vmem:[%s149 + $0x4d0] sm:$0xff] %v458
                %v460 = vld [vmem:[%s148 + $0x1318] sm:$0xff]
                %461 = vst [vmem:[%s149 + $0x4d8] sm:$0xff] %v460
                %v462 = vld [vmem:[%s148 + $0x1380] sm:$0xff]
                %463 = vst [vmem:[%s149 + $0x4e0] sm:$0xff] %v462
                %v464 = vld [vmem:[%s148 + $0x1388] sm:$0xff]
                %465 = vst [vmem:[%s149 + $0x4e8] sm:$0xff] %v464
                %v466 = vld [vmem:[%s148 + $0x1390] sm:$0xff]
                %467 = vst [vmem:[%s149 + $0x4f0] sm:$0xff] %v466
                %v468 = vld [vmem:[%s148 + $0x1398] sm:$0xff]
                %469 = vst [vmem:[%s149 + $0x4f8] sm:$0xff] %v468
                %v470 = vld [vmem:[%s148 + $0x1400] sm:$0xff]
                %471 = vst [vmem:[%s149 + $0x500] sm:$0xff] %v470
                %v472 = vld [vmem:[%s148 + $0x1408] sm:$0xff]
                %473 = vst [vmem:[%s149 + $0x508] sm:$0xff] %v472
                %v474 = vld [vmem:[%s148 + $0x1410] sm:$0xff]
                %475 = vst [vmem:[%s149 + $0x510] sm:$0xff] %v474
                %v476 = vld [vmem:[%s148 + $0x1418] sm:$0xff]
                %477 = vst [vmem:[%s149 + $0x518] sm:$0xff] %v476
                %v478 = vld [vmem:[%s148 + $0x1480] sm:$0xff]
                %479 = vst [vmem:[%s149 + $0x520] sm:$0xff] %v478
                %v480 = vld [vmem:[%s148 + $0x1488] sm:$0xff]
                %481 = vst [vmem:[%s149 + $0x528] sm:$0xff] %v480
                %v482 = vld [vmem:[%s148 + $0x1490] sm:$0xff]
                %483 = vst [vmem:[%s149 + $0x530] sm:$0xff] %v482
                %v484 = vld [vmem:[%s148 + $0x1498] sm:$0xff]
                %485 = vst [vmem:[%s149 + $0x538] sm:$0xff] %v484
                %v486 = vld [vmem:[%s148 + $0x1500] sm:$0xff]
                %487 = vst [vmem:[%s149 + $0x540] sm:$0xff] %v486
                %v488 = vld [vmem:[%s148 + $0x1508] sm:$0xff]
                %489 = vst [vmem:[%s149 + $0x548] sm:$0xff] %v488
                %v490 = vld [vmem:[%s148 + $0x1510] sm:$0xff]
                %491 = vst [vmem:[%s149 + $0x550] sm:$0xff] %v490
                %v492 = vld [vmem:[%s148 + $0x1518] sm:$0xff]
                %493 = vst [vmem:[%s149 + $0x558] sm:$0xff] %v492
                %v494 = vld [vmem:[%s148 + $0x1580] sm:$0xff]
                %495 = vst [vmem:[%s149 + $0x560] sm:$0xff] %v494
                %v496 = vld [vmem:[%s148 + $0x1588] sm:$0xff]
                %497 = vst [vmem:[%s149 + $0x568] sm:$0xff] %v496
                %v498 = vld [vmem:[%s148 + $0x1590] sm:$0xff]
                %499 = vst [vmem:[%s149 + $0x570] sm:$0xff] %v498
                %v500 = vld [vmem:[%s148 + $0x1598] sm:$0xff]
                %501 = vst [vmem:[%s149 + $0x578] sm:$0xff] %v500
                %v502 = vld [vmem:[%s148 + $0x1600] sm:$0xff]
                %503 = vst [vmem:[%s149 + $0x580] sm:$0xff] %v502
                %v504 = vld [vmem:[%s148 + $0x1608] sm:$0xff]
                %505 = vst [vmem:[%s149 + $0x588] sm:$0xff] %v504
                %v506 = vld [vmem:[%s148 + $0x1610] sm:$0xff]
                %507 = vst [vmem:[%s149 + $0x590] sm:$0xff] %v506
                %v508 = vld [vmem:[%s148 + $0x1618] sm:$0xff]
                %509 = vst [vmem:[%s149 + $0x598] sm:$0xff] %v508
                %v510 = vld [vmem:[%s148 + $0x1680] sm:$0xff]
                %511 = vst [vmem:[%s149 + $0x5a0] sm:$0xff] %v510
                %v512 = vld [vmem:[%s148 + $0x1688] sm:$0xff]
                %513 = vst [vmem:[%s149 + $0x5a8] sm:$0xff] %v512
                %v514 = vld [vmem:[%s148 + $0x1690] sm:$0xff]
                %515 = vst [vmem:[%s149 + $0x5b0] sm:$0xff] %v514
                %v516 = vld [vmem:[%s148 + $0x1698] sm:$0xff]
                %517 = vst [vmem:[%s149 + $0x5b8] sm:$0xff] %v516
                %v518 = vld [vmem:[%s148 + $0x1700] sm:$0xff]
                %519 = vst [vmem:[%s149 + $0x5c0] sm:$0xff] %v518
                %v520 = vld [vmem:[%s148 + $0x1708] sm:$0xff]
                %521 = vst [vmem:[%s149 + $0x5c8] sm:$0xff] %v520
                %v522 = vld [vmem:[%s148 + $0x1710] sm:$0xff]
                %523 = vst [vmem:[%s149 + $0x5d0] sm:$0xff] %v522
                %v524 = vld [vmem:[%s148 + $0x1718] sm:$0xff]
                %525 = vst [vmem:[%s149 + $0x5d8] sm:$0xff] %v524
                %v526 = vld [vmem:[%s148 + $0x1780] sm:$0xff]
                %527 = vst [vmem:[%s149 + $0x5e0] sm:$0xff] %v526
                %v528 = vld [vmem:[%s148 + $0x1788] sm:$0xff]
                %529 = vst [vmem:[%s149 + $0x5e8] sm:$0xff] %v528
                %v530 = vld [vmem:[%s148 + $0x1790] sm:$0xff]
                %531 = vst [vmem:[%s149 + $0x5f0] sm:$0xff] %v530
                %v532 = vld [vmem:[%s148 + $0x1798] sm:$0xff]
                %533 = vst [vmem:[%s149 + $0x5f8] sm:$0xff] %v532
              $region41: #{fpn_backbone_radar.7} parent=35 // loop_footer
                %s147 = sadd.s32 1, %s143
              $region42: #{fpn_backbone_radar.7} parent=35 // loop_footer_branch
                %142 = sbr.rel target = $region38
              $region43: #{fpn_backbone_radar.7} parent=35 // loop_exit
                _
            $region36: #{fpn_backbone_radar.7} parent=31 // pred_fallthru
              _
            // Predicated region
            $region44: #{fpn_backbone_radar.7} parent=31 // pred_check
              _
            $region45: #{fpn_backbone_radar.7} parent=31 // pred_check_branch
              %535 = sbr.rel target = $region47
            $region46: #{fpn_backbone_radar.7} parent=31 // pred_region
              _
            $region47: #{fpn_backbone_radar.7} parent=31 // pred_fallthru
              _
          $region32: #{fpn_backbone_radar.7} parent=27 // pred_fallthru
            _
          %536 = vnop
        $region28: #{fpn_backbone_radar.7} parent=23 // pred_fallthru
          _
      $region24: #{fpn_backbone_radar.7} parent=5 // pred_fallthru
        _
      %p537 = scmp.le.s32.totalorder 1, %s9
      %p538 = scmp.lt.s32.totalorder %s9, 5
      %p539 = pnand %p537, %p538
      %p540 = pneg %p539
      // Predicated region
      $region48: #{fpn_backbone_radar.7} parent=5 // pred_check
        _
      $region49: #{fpn_backbone_radar.7} parent=5 // pred_check_branch
        %542 = sbr.rel (%p539) target = $region51
      $region50: #{fpn_backbone_radar.7} parent=5 // pred_region
        %s543 = ssub.s32 %s9, 1
        %s544 = sand.u32 %s22, 1
        %s545 = sand.u32 %s22, 1
        %s546 = smul.addr %s545, 1536
        %s547 = scalar_lea.vmem [#allocation2], %s546
        // Predicated region
        $region52: #{fpn_backbone_radar.7} parent=50 // pred_check
          %p548 = pneg %p35
        $region53: #{fpn_backbone_radar.7} parent=50 // pred_check_branch
          %550 = sbr.rel (%p548) target = $region55
        $region54: #{fpn_backbone_radar.7} parent=50 // pred_region
          _
        $region55: #{fpn_backbone_radar.7} parent=50 // pred_fallthru
          _
        %s551 = sand.u32 %s22, 1
        %s552 = sand.u32 %s22, 1
        %s553 = smul.addr %s552, 1536
        %s554 = scalar_lea.vmem [#allocation2], %s553
        %p555 = pneg %p35
        %p556 = pneg %p32
        %p557 = pneg %p56
        %p558 = pneg %p53
        %p559 = pneg %p77
        %p560 = pneg %p74
        %p561 = pneg %p103
        %p562 = pneg %p100
        %s563 = sand.u32 %s90, 1
        %s564 = sand.u32 %s90, 1
        %s565 = smul.addr %s564, 64
        %s566 = scalar_lea.vmem [#allocation3], %s565
        %s567 = smul.u32 8, %s14
        %s568 = smul.u32 8, %s14
        %v569 = vld [vmem:[%s1] sm:$0xff]
        %v570 = vld [vmem:[%s1 + $0x8] sm:$0xf]
        %v571 = vld [vmem:[%s1 + $0xc] sm:$0xff]
        %v572 = vld [vmem:[%s1 + $0x14] sm:$0xf]
        %v573 = vld [vmem:[%s547] sm:$0xff]
        %v574 = vld [vmem:[%s547 + $0x8] sm:$0xff]
        %v575 = vld [vmem:[%s547 + $0x10] sm:$0xff]
        %v576 = vld [vmem:[%s547 + $0x18] sm:$0xff]
        %v577 = vld [vmem:[%s547 + $0x20] sm:$0xff]
        %v578 = vld [vmem:[%s547 + $0x28] sm:$0xff]
        %v579 = vld [vmem:[%s547 + $0x30] sm:$0xff]
        %v580 = vld [vmem:[%s547 + $0x38] sm:$0xff]
        %v581 = vld [vmem:[%s547 + $0x40] sm:$0xff]
        %v582 = vld [vmem:[%s547 + $0x48] sm:$0xff]
        %v583 = vld [vmem:[%s547 + $0x50] sm:$0xff]
        %v584 = vld [vmem:[%s547 + $0x58] sm:$0xff]
        %v585 = vld [vmem:[%s547 + $0x60] sm:$0xff]
        %v586 = vld [vmem:[%s547 + $0x68] sm:$0xff]
        %v587 = vld [vmem:[%s547 + $0x70] sm:$0xff]
        %v588 = vld [vmem:[%s547 + $0x78] sm:$0xff]
        %v589 = vld [vmem:[%s547 + $0x80] sm:$0xff]
        %v590 = vld [vmem:[%s547 + $0x88] sm:$0xff]
        %v591 = vld [vmem:[%s547 + $0x90] sm:$0xff]
        %v592 = vld [vmem:[%s547 + $0x98] sm:$0xff]
        %v593 = vld [vmem:[%s547 + $0xa0] sm:$0xff]
        %v594 = vld [vmem:[%s547 + $0xa8] sm:$0xff]
        %v595 = vld [vmem:[%s547 + $0xb0] sm:$0xff]
        %v596 = vld [vmem:[%s547 + $0xb8] sm:$0xff]
        %v597 = vld [vmem:[%s547 + $0xc0] sm:$0xff]
        %v598 = vld [vmem:[%s547 + $0xc8] sm:$0xff]
        %v599 = vld [vmem:[%s547 + $0xd0] sm:$0xff]
        %v600 = vld [vmem:[%s547 + $0xd8] sm:$0xff]
        %v601 = vld [vmem:[%s547 + $0xe0] sm:$0xff]
        %v602 = vld [vmem:[%s547 + $0xe8] sm:$0xff]
        %v603 = vld [vmem:[%s547 + $0xf0] sm:$0xff]
        %v604 = vld [vmem:[%s547 + $0xf8] sm:$0xff]
        %v605 = vld [vmem:[%s547 + $0x100] sm:$0xff]
        %v606 = vld [vmem:[%s547 + $0x108] sm:$0xff]
        %v607 = vld [vmem:[%s547 + $0x110] sm:$0xff]
        %v608 = vld [vmem:[%s547 + $0x118] sm:$0xff]
        %v609 = vld [vmem:[%s547 + $0x120] sm:$0xff]
        %v610 = vld [vmem:[%s547 + $0x128] sm:$0xff]
        %v611 = vld [vmem:[%s547 + $0x130] sm:$0xff]
        %v612 = vld [vmem:[%s547 + $0x138] sm:$0xff]
        %v613 = vld [vmem:[%s547 + $0x140] sm:$0xff]
        %v614 = vld [vmem:[%s547 + $0x148] sm:$0xff]
        %v615 = vld [vmem:[%s547 + $0x150] sm:$0xff]
        %v616 = vld [vmem:[%s547 + $0x158] sm:$0xff]
        %v617 = vld [vmem:[%s547 + $0x160] sm:$0xff]
        %v618 = vld [vmem:[%s547 + $0x168] sm:$0xff]
        %v619 = vld [vmem:[%s547 + $0x170] sm:$0xff]
        %v620 = vld [vmem:[%s547 + $0x178] sm:$0xff]
        %v621 = vld [vmem:[%s547 + $0x180] sm:$0xff]
        %v622 = vld [vmem:[%s547 + $0x188] sm:$0xff]
        %v623 = vld [vmem:[%s547 + $0x190] sm:$0xff]
        %v624 = vld [vmem:[%s547 + $0x198] sm:$0xff]
        %v625 = vld [vmem:[%s547 + $0x1a0] sm:$0xff]
        %v626 = vld [vmem:[%s547 + $0x1a8] sm:$0xff]
        %v627 = vld [vmem:[%s547 + $0x1b0] sm:$0xff]
        %v628 = vld [vmem:[%s547 + $0x1b8] sm:$0xff]
        %v629 = vld [vmem:[%s547 + $0x1c0] sm:$0xff]
        %v630 = vld [vmem:[%s547 + $0x1c8] sm:$0xff]
        %v631 = vld [vmem:[%s547 + $0x1d0] sm:$0xff]
        %v632 = vld [vmem:[%s547 + $0x1d8] sm:$0xff]
        %v633 = vld [vmem:[%s547 + $0x1e0] sm:$0xff]
        %v634 = vld [vmem:[%s547 + $0x1e8] sm:$0xff]
        %v635 = vld [vmem:[%s547 + $0x1f0] sm:$0xff]
        %v636 = vld [vmem:[%s547 + $0x1f8] sm:$0xff]
        %v637 = vld [vmem:[%s547 + $0x200] sm:$0xff]
        %v638 = vld [vmem:[%s547 + $0x208] sm:$0xff]
        %v639 = vld [vmem:[%s547 + $0x210] sm:$0xff]
        %v640 = vld [vmem:[%s547 + $0x218] sm:$0xff]
        %v641 = vld [vmem:[%s547 + $0x220] sm:$0xff]
        %v642 = vld [vmem:[%s547 + $0x228] sm:$0xff]
        %v643 = vld [vmem:[%s547 + $0x230] sm:$0xff]
        %v644 = vld [vmem:[%s547 + $0x238] sm:$0xff]
        %v645 = vld [vmem:[%s547 + $0x240] sm:$0xff]
        %v646 = vld [vmem:[%s547 + $0x248] sm:$0xff]
        %v647 = vld [vmem:[%s547 + $0x250] sm:$0xff]
        %v648 = vld [vmem:[%s547 + $0x258] sm:$0xff]
        %v649 = vld [vmem:[%s547 + $0x260] sm:$0xff]
        %v650 = vld [vmem:[%s547 + $0x268] sm:$0xff]
        %v651 = vld [vmem:[%s547 + $0x270] sm:$0xff]
        %v652 = vld [vmem:[%s547 + $0x278] sm:$0xff]
        %v653 = vld [vmem:[%s547 + $0x280] sm:$0xff]
        %v654 = vld [vmem:[%s547 + $0x288] sm:$0xff]
        %v655 = vld [vmem:[%s547 + $0x290] sm:$0xff]
        %v656 = vld [vmem:[%s547 + $0x298] sm:$0xff]
        %v657 = vld [vmem:[%s547 + $0x2a0] sm:$0xff]
        %v658 = vld [vmem:[%s547 + $0x2a8] sm:$0xff]
        %v659 = vld [vmem:[%s547 + $0x2b0] sm:$0xff]
        %v660 = vld [vmem:[%s547 + $0x2b8] sm:$0xff]
        %v661 = vld [vmem:[%s547 + $0x2c0] sm:$0xff]
        %v662 = vld [vmem:[%s547 + $0x2c8] sm:$0xff]
        %v663 = vld [vmem:[%s547 + $0x2d0] sm:$0xff]
        %v664 = vld [vmem:[%s547 + $0x2d8] sm:$0xff]
        %v665 = vld [vmem:[%s547 + $0x2e0] sm:$0xff]
        %v666 = vld [vmem:[%s547 + $0x2e8] sm:$0xff]
        %v667 = vld [vmem:[%s547 + $0x2f0] sm:$0xff]
        %v668 = vld [vmem:[%s547 + $0x2f8] sm:$0xff]
        %v669 = vld [vmem:[%s547 + $0x300] sm:$0xff]
        %v670 = vld [vmem:[%s547 + $0x308] sm:$0xff]
        %v671 = vld [vmem:[%s547 + $0x310] sm:$0xff]
        %v672 = vld [vmem:[%s547 + $0x318] sm:$0xff]
        %v673 = vld [vmem:[%s547 + $0x320] sm:$0xff]
        %v674 = vld [vmem:[%s547 + $0x328] sm:$0xff]
        %v675 = vld [vmem:[%s547 + $0x330] sm:$0xff]
        %v676 = vld [vmem:[%s547 + $0x338] sm:$0xff]
        %v677 = vld [vmem:[%s547 + $0x340] sm:$0xff]
        %v678 = vld [vmem:[%s547 + $0x348] sm:$0xff]
        %v679 = vld [vmem:[%s547 + $0x350] sm:$0xff]
        %v680 = vld [vmem:[%s547 + $0x358] sm:$0xff]
        %v681 = vld [vmem:[%s547 + $0x360] sm:$0xff]
        %v682 = vld [vmem:[%s547 + $0x368] sm:$0xff]
        %v683 = vld [vmem:[%s547 + $0x370] sm:$0xff]
        %v684 = vld [vmem:[%s547 + $0x378] sm:$0xff]
        %v685 = vld [vmem:[%s547 + $0x380] sm:$0xff]
        %v686 = vld [vmem:[%s547 + $0x388] sm:$0xff]
        %v687 = vld [vmem:[%s547 + $0x390] sm:$0xff]
        %v688 = vld [vmem:[%s547 + $0x398] sm:$0xff]
        %v689 = vld [vmem:[%s547 + $0x3a0] sm:$0xff]
        %v690 = vld [vmem:[%s547 + $0x3a8] sm:$0xff]
        %v691 = vld [vmem:[%s547 + $0x3b0] sm:$0xff]
        %v692 = vld [vmem:[%s547 + $0x3b8] sm:$0xff]
        %v693 = vld [vmem:[%s547 + $0x3c0] sm:$0xff]
        %v694 = vld [vmem:[%s547 + $0x3c8] sm:$0xff]
        %v695 = vld [vmem:[%s547 + $0x3d0] sm:$0xff]
        %v696 = vld [vmem:[%s547 + $0x3d8] sm:$0xff]
        %v697 = vld [vmem:[%s547 + $0x3e0] sm:$0xff]
        %v698 = vld [vmem:[%s547 + $0x3e8] sm:$0xff]
        %v699 = vld [vmem:[%s547 + $0x3f0] sm:$0xff]
        %v700 = vld [vmem:[%s547 + $0x3f8] sm:$0xff]
        %v701 = vld [vmem:[%s547 + $0x400] sm:$0xff]
        %v702 = vld [vmem:[%s547 + $0x408] sm:$0xff]
        %v703 = vld [vmem:[%s547 + $0x410] sm:$0xff]
        %v704 = vld [vmem:[%s547 + $0x418] sm:$0xff]
        %v705 = vld [vmem:[%s547 + $0x420] sm:$0xff]
        %v706 = vld [vmem:[%s547 + $0x428] sm:$0xff]
        %v707 = vld [vmem:[%s547 + $0x430] sm:$0xff]
        %v708 = vld [vmem:[%s547 + $0x438] sm:$0xff]
        %v709 = vld [vmem:[%s547 + $0x440] sm:$0xff]
        %v710 = vld [vmem:[%s547 + $0x448] sm:$0xff]
        %v711 = vld [vmem:[%s547 + $0x450] sm:$0xff]
        %v712 = vld [vmem:[%s547 + $0x458] sm:$0xff]
        %v713 = vld [vmem:[%s547 + $0x460] sm:$0xff]
        %v714 = vld [vmem:[%s547 + $0x468] sm:$0xff]
        %v715 = vld [vmem:[%s547 + $0x470] sm:$0xff]
        %v716 = vld [vmem:[%s547 + $0x478] sm:$0xff]
        %v717 = vld [vmem:[%s547 + $0x480] sm:$0xff]
        %v718 = vld [vmem:[%s547 + $0x488] sm:$0xff]
        %v719 = vld [vmem:[%s547 + $0x490] sm:$0xff]
        %v720 = vld [vmem:[%s547 + $0x498] sm:$0xff]
        %v721 = vld [vmem:[%s547 + $0x4a0] sm:$0xff]
        %v722 = vld [vmem:[%s547 + $0x4a8] sm:$0xff]
        %v723 = vld [vmem:[%s547 + $0x4b0] sm:$0xff]
        %v724 = vld [vmem:[%s547 + $0x4b8] sm:$0xff]
        %v725 = vld [vmem:[%s547 + $0x4c0] sm:$0xff]
        %v726 = vld [vmem:[%s547 + $0x4c8] sm:$0xff]
        %v727 = vld [vmem:[%s547 + $0x4d0] sm:$0xff]
        %v728 = vld [vmem:[%s547 + $0x4d8] sm:$0xff]
        %v729 = vld [vmem:[%s547 + $0x4e0] sm:$0xff]
        %v730 = vld [vmem:[%s547 + $0x4e8] sm:$0xff]
        %v731 = vld [vmem:[%s547 + $0x4f0] sm:$0xff]
        %v732 = vld [vmem:[%s547 + $0x4f8] sm:$0xff]
        %v733 = vld [vmem:[%s547 + $0x500] sm:$0xff]
        %v734 = vld [vmem:[%s547 + $0x508] sm:$0xff]
        %v735 = vld [vmem:[%s547 + $0x510] sm:$0xff]
        %v736 = vld [vmem:[%s547 + $0x518] sm:$0xff]
        %v737 = vld [vmem:[%s547 + $0x520] sm:$0xff]
        %v738 = vld [vmem:[%s547 + $0x528] sm:$0xff]
        %v739 = vld [vmem:[%s547 + $0x530] sm:$0xff]
        %v740 = vld [vmem:[%s547 + $0x538] sm:$0xff]
        %v741 = vld [vmem:[%s547 + $0x540] sm:$0xff]
        %v742 = vld [vmem:[%s547 + $0x548] sm:$0xff]
        %v743 = vld [vmem:[%s547 + $0x550] sm:$0xff]
        %v744 = vld [vmem:[%s547 + $0x558] sm:$0xff]
        %v745 = vld [vmem:[%s547 + $0x560] sm:$0xff]
        %v746 = vld [vmem:[%s547 + $0x568] sm:$0xff]
        %v747 = vld [vmem:[%s547 + $0x570] sm:$0xff]
        %v748 = vld [vmem:[%s547 + $0x578] sm:$0xff]
        %v749 = vld [vmem:[%s547 + $0x580] sm:$0xff]
        %v750 = vld [vmem:[%s547 + $0x588] sm:$0xff]
        %v751 = vld [vmem:[%s547 + $0x590] sm:$0xff]
        %v752 = vld [vmem:[%s547 + $0x598] sm:$0xff]
        %v753 = vld [vmem:[%s547 + $0x5a0] sm:$0xff]
        %v754 = vld [vmem:[%s547 + $0x5a8] sm:$0xff]
        %v755 = vld [vmem:[%s547 + $0x5b0] sm:$0xff]
        %v756 = vld [vmem:[%s547 + $0x5b8] sm:$0xff]
        %v757 = vld [vmem:[%s547 + $0x5c0] sm:$0xff]
        %v758 = vld [vmem:[%s547 + $0x5c8] sm:$0xff]
        %v759 = vld [vmem:[%s547 + $0x5d0] sm:$0xff]
        %v760 = vld [vmem:[%s547 + $0x5d8] sm:$0xff]
        %v761 = vld [vmem:[%s547 + $0x5e0] sm:$0xff]
        %v762 = vld [vmem:[%s547 + $0x5e8] sm:$0xff]
        %v763 = vld [vmem:[%s547 + $0x5f0] sm:$0xff]
        %v764 = vld [vmem:[%s547 + $0x5f8] sm:$0xff]
        %v765 = vld [vmem:[%s2] sm:$0xff]
        %v766 = vld [vmem:[%s2 + $0x8] sm:$0xff]
        %768 = vset.pattern.permute.xlu0 0
        %769 = vperm.xlu0 %768, %v765
        %v770 = vpop.permute.xlu0 %769
        %773 = vset.pattern.permute.xlu0 0
        %774 = vperm.xlu0 %773, %v766
        %v775 = vpop.permute.xlu0 %774
        %v781 = vunpack.c.l.b16 %v569
        %v782 = vunpack.c.h.b16 %v569
        %v783 = vunpack.c.l.b16 %v570
        %v784 = vunpack.c.l.b16 %v571
        %v785 = vunpack.c.h.b16 %v571
        %v786 = vunpack.c.l.b16 %v572
        %v787 = vpack.c.b16 %v784, %v781
        %v788 = vpack.c.b16 %v785, %v782
        %v789 = vpack.c.b16 %v786, %v783
        %v985 = vunpack.c.l.b16 %v573
        %v986 = vunpack.c.h.b16 %v573
        %v987 = vunpack.c.l.b16 %v574
        %v988 = vunpack.c.h.b16 %v574
        %v989 = vunpack.c.l.b16 %v575
        %v990 = vunpack.c.h.b16 %v575
        %v991 = vunpack.c.l.b16 %v576
        %v992 = vunpack.c.h.b16 %v576
        %v993 = vunpack.c.l.b16 %v577
        %v994 = vunpack.c.h.b16 %v577
        %v995 = vunpack.c.l.b16 %v578
        %v996 = vunpack.c.h.b16 %v578
        %v997 = vunpack.c.l.b16 %v579
        %v998 = vunpack.c.h.b16 %v579
        %v999 = vunpack.c.l.b16 %v580
        %v1000 = vunpack.c.h.b16 %v580
        %v1001 = vunpack.c.l.b16 %v581
        %v1002 = vunpack.c.h.b16 %v581
        %v1003 = vunpack.c.l.b16 %v582
        %v1004 = vunpack.c.h.b16 %v582
        %v1005 = vunpack.c.l.b16 %v583
        %v1006 = vunpack.c.h.b16 %v583
        %v1007 = vunpack.c.l.b16 %v584
        %v1008 = vunpack.c.h.b16 %v584
        %v1009 = vunpack.c.l.b16 %v585
        %v1010 = vunpack.c.h.b16 %v585
        %v1011 = vunpack.c.l.b16 %v586
        %v1012 = vunpack.c.h.b16 %v586
        %v1013 = vunpack.c.l.b16 %v587
        %v1014 = vunpack.c.h.b16 %v587
        %v1015 = vunpack.c.l.b16 %v588
        %v1016 = vunpack.c.h.b16 %v588
        %v1017 = vunpack.c.l.b16 %v589
        %v1018 = vunpack.c.h.b16 %v589
        %v1019 = vunpack.c.l.b16 %v590
        %v1020 = vunpack.c.h.b16 %v590
        %v1021 = vunpack.c.l.b16 %v591
        %v1022 = vunpack.c.h.b16 %v591
        %v1023 = vunpack.c.l.b16 %v592
        %v1024 = vunpack.c.h.b16 %v592
        %v1025 = vunpack.c.l.b16 %v593
        %v1026 = vunpack.c.h.b16 %v593
        %v1027 = vunpack.c.l.b16 %v594
        %v1028 = vunpack.c.h.b16 %v594
        %v1029 = vunpack.c.l.b16 %v595
        %v1030 = vunpack.c.h.b16 %v595
        %v1031 = vunpack.c.l.b16 %v596
        %v1032 = vunpack.c.h.b16 %v596
        %v1033 = vunpack.c.l.b16 %v597
        %v1034 = vunpack.c.h.b16 %v597
        %v1035 = vunpack.c.l.b16 %v598
        %v1036 = vunpack.c.h.b16 %v598
        %v1037 = vunpack.c.l.b16 %v599
        %v1038 = vunpack.c.h.b16 %v599
        %v1039 = vunpack.c.l.b16 %v600
        %v1040 = vunpack.c.h.b16 %v600
        %v1041 = vunpack.c.l.b16 %v601
        %v1042 = vunpack.c.h.b16 %v601
        %v1043 = vunpack.c.l.b16 %v602
        %v1044 = vunpack.c.h.b16 %v602
        %v1045 = vunpack.c.l.b16 %v603
        %v1046 = vunpack.c.h.b16 %v603
        %v1047 = vunpack.c.l.b16 %v604
        %v1048 = vunpack.c.h.b16 %v604
        %v1049 = vunpack.c.l.b16 %v605
        %v1050 = vunpack.c.h.b16 %v605
        %v1051 = vunpack.c.l.b16 %v606
        %v1052 = vunpack.c.h.b16 %v606
        %v1053 = vunpack.c.l.b16 %v607
        %v1054 = vunpack.c.h.b16 %v607
        %v1055 = vunpack.c.l.b16 %v608
        %v1056 = vunpack.c.h.b16 %v608
        %v1057 = vunpack.c.l.b16 %v609
        %v1058 = vunpack.c.h.b16 %v609
        %v1059 = vunpack.c.l.b16 %v610
        %v1060 = vunpack.c.h.b16 %v610
        %v1061 = vunpack.c.l.b16 %v611
        %v1062 = vunpack.c.h.b16 %v611
        %v1063 = vunpack.c.l.b16 %v612
        %v1064 = vunpack.c.h.b16 %v612
        %v1065 = vunpack.c.l.b16 %v613
        %v1066 = vunpack.c.h.b16 %v613
        %v1067 = vunpack.c.l.b16 %v614
        %v1068 = vunpack.c.h.b16 %v614
        %v1069 = vunpack.c.l.b16 %v615
        %v1070 = vunpack.c.h.b16 %v615
        %v1071 = vunpack.c.l.b16 %v616
        %v1072 = vunpack.c.h.b16 %v616
        %v1073 = vunpack.c.l.b16 %v617
        %v1074 = vunpack.c.h.b16 %v617
        %v1075 = vunpack.c.l.b16 %v618
        %v1076 = vunpack.c.h.b16 %v618
        %v1077 = vunpack.c.l.b16 %v619
        %v1078 = vunpack.c.h.b16 %v619
        %v1079 = vunpack.c.l.b16 %v620
        %v1080 = vunpack.c.h.b16 %v620
        %v1081 = vunpack.c.l.b16 %v621
        %v1082 = vunpack.c.h.b16 %v621
        %v1083 = vunpack.c.l.b16 %v622
        %v1084 = vunpack.c.h.b16 %v622
        %v1085 = vunpack.c.l.b16 %v623
        %v1086 = vunpack.c.h.b16 %v623
        %v1087 = vunpack.c.l.b16 %v624
        %v1088 = vunpack.c.h.b16 %v624
        %v1089 = vunpack.c.l.b16 %v625
        %v1090 = vunpack.c.h.b16 %v625
        %v1091 = vunpack.c.l.b16 %v626
        %v1092 = vunpack.c.h.b16 %v626
        %v1093 = vunpack.c.l.b16 %v627
        %v1094 = vunpack.c.h.b16 %v627
        %v1095 = vunpack.c.l.b16 %v628
        %v1096 = vunpack.c.h.b16 %v628
        %v1097 = vunpack.c.l.b16 %v629
        %v1098 = vunpack.c.h.b16 %v629
        %v1099 = vunpack.c.l.b16 %v630
        %v1100 = vunpack.c.h.b16 %v630
        %v1101 = vunpack.c.l.b16 %v631
        %v1102 = vunpack.c.h.b16 %v631
        %v1103 = vunpack.c.l.b16 %v632
        %v1104 = vunpack.c.h.b16 %v632
        %v1105 = vunpack.c.l.b16 %v633
        %v1106 = vunpack.c.h.b16 %v633
        %v1107 = vunpack.c.l.b16 %v634
        %v1108 = vunpack.c.h.b16 %v634
        %v1109 = vunpack.c.l.b16 %v635
        %v1110 = vunpack.c.h.b16 %v635
        %v1111 = vunpack.c.l.b16 %v636
        %v1112 = vunpack.c.h.b16 %v636
        %v1113 = vunpack.c.l.b16 %v637
        %v1114 = vunpack.c.h.b16 %v637
        %v1115 = vunpack.c.l.b16 %v638
        %v1116 = vunpack.c.h.b16 %v638
        %v1117 = vunpack.c.l.b16 %v639
        %v1118 = vunpack.c.h.b16 %v639
        %v1119 = vunpack.c.l.b16 %v640
        %v1120 = vunpack.c.h.b16 %v640
        %v1121 = vunpack.c.l.b16 %v641
        %v1122 = vunpack.c.h.b16 %v641
        %v1123 = vunpack.c.l.b16 %v642
        %v1124 = vunpack.c.h.b16 %v642
        %v1125 = vunpack.c.l.b16 %v643
        %v1126 = vunpack.c.h.b16 %v643
        %v1127 = vunpack.c.l.b16 %v644
        %v1128 = vunpack.c.h.b16 %v644
        %v1129 = vunpack.c.l.b16 %v645
        %v1130 = vunpack.c.h.b16 %v645
        %v1131 = vunpack.c.l.b16 %v646
        %v1132 = vunpack.c.h.b16 %v646
        %v1133 = vunpack.c.l.b16 %v647
        %v1134 = vunpack.c.h.b16 %v647
        %v1135 = vunpack.c.l.b16 %v648
        %v1136 = vunpack.c.h.b16 %v648
        %v1137 = vunpack.c.l.b16 %v649
        %v1138 = vunpack.c.h.b16 %v649
        %v1139 = vunpack.c.l.b16 %v650
        %v1140 = vunpack.c.h.b16 %v650
        %v1141 = vunpack.c.l.b16 %v651
        %v1142 = vunpack.c.h.b16 %v651
        %v1143 = vunpack.c.l.b16 %v652
        %v1144 = vunpack.c.h.b16 %v652
        %v1145 = vunpack.c.l.b16 %v653
        %v1146 = vunpack.c.h.b16 %v653
        %v1147 = vunpack.c.l.b16 %v654
        %v1148 = vunpack.c.h.b16 %v654
        %v1149 = vunpack.c.l.b16 %v655
        %v1150 = vunpack.c.h.b16 %v655
        %v1151 = vunpack.c.l.b16 %v656
        %v1152 = vunpack.c.h.b16 %v656
        %v1153 = vunpack.c.l.b16 %v657
        %v1154 = vunpack.c.h.b16 %v657
        %v1155 = vunpack.c.l.b16 %v658
        %v1156 = vunpack.c.h.b16 %v658
        %v1157 = vunpack.c.l.b16 %v659
        %v1158 = vunpack.c.h.b16 %v659
        %v1159 = vunpack.c.l.b16 %v660
        %v1160 = vunpack.c.h.b16 %v660
        %v1161 = vunpack.c.l.b16 %v661
        %v1162 = vunpack.c.h.b16 %v661
        %v1163 = vunpack.c.l.b16 %v662
        %v1164 = vunpack.c.h.b16 %v662
        %v1165 = vunpack.c.l.b16 %v663
        %v1166 = vunpack.c.h.b16 %v663
        %v1167 = vunpack.c.l.b16 %v664
        %v1168 = vunpack.c.h.b16 %v664
        %v1169 = vunpack.c.l.b16 %v665
        %v1170 = vunpack.c.h.b16 %v665
        %v1171 = vunpack.c.l.b16 %v666
        %v1172 = vunpack.c.h.b16 %v666
        %v1173 = vunpack.c.l.b16 %v667
        %v1174 = vunpack.c.h.b16 %v667
        %v1175 = vunpack.c.l.b16 %v668
        %v1176 = vunpack.c.h.b16 %v668
        %v1177 = vunpack.c.l.b16 %v669
        %v1178 = vunpack.c.h.b16 %v669
        %v1179 = vunpack.c.l.b16 %v670
        %v1180 = vunpack.c.h.b16 %v670
        %v1181 = vunpack.c.l.b16 %v671
        %v1182 = vunpack.c.h.b16 %v671
        %v1183 = vunpack.c.l.b16 %v672
        %v1184 = vunpack.c.h.b16 %v672
        %v1185 = vunpack.c.l.b16 %v673
        %v1186 = vunpack.c.h.b16 %v673
        %v1187 = vunpack.c.l.b16 %v674
        %v1188 = vunpack.c.h.b16 %v674
        %v1189 = vunpack.c.l.b16 %v675
        %v1190 = vunpack.c.h.b16 %v675
        %v1191 = vunpack.c.l.b16 %v676
        %v1192 = vunpack.c.h.b16 %v676
        %v1193 = vunpack.c.l.b16 %v677
        %v1194 = vunpack.c.h.b16 %v677
        %v1195 = vunpack.c.l.b16 %v678
        %v1196 = vunpack.c.h.b16 %v678
        %v1197 = vunpack.c.l.b16 %v679
        %v1198 = vunpack.c.h.b16 %v679
        %v1199 = vunpack.c.l.b16 %v680
        %v1200 = vunpack.c.h.b16 %v680
        %v1201 = vunpack.c.l.b16 %v681
        %v1202 = vunpack.c.h.b16 %v681
        %v1203 = vunpack.c.l.b16 %v682
        %v1204 = vunpack.c.h.b16 %v682
        %v1205 = vunpack.c.l.b16 %v683
        %v1206 = vunpack.c.h.b16 %v683
        %v1207 = vunpack.c.l.b16 %v684
        %v1208 = vunpack.c.h.b16 %v684
        %v1209 = vunpack.c.l.b16 %v685
        %v1210 = vunpack.c.h.b16 %v685
        %v1211 = vunpack.c.l.b16 %v686
        %v1212 = vunpack.c.h.b16 %v686
        %v1213 = vunpack.c.l.b16 %v687
        %v1214 = vunpack.c.h.b16 %v687
        %v1215 = vunpack.c.l.b16 %v688
        %v1216 = vunpack.c.h.b16 %v688
        %v1217 = vunpack.c.l.b16 %v689
        %v1218 = vunpack.c.h.b16 %v689
        %v1219 = vunpack.c.l.b16 %v690
        %v1220 = vunpack.c.h.b16 %v690
        %v1221 = vunpack.c.l.b16 %v691
        %v1222 = vunpack.c.h.b16 %v691
        %v1223 = vunpack.c.l.b16 %v692
        %v1224 = vunpack.c.h.b16 %v692
        %v1225 = vunpack.c.l.b16 %v693
        %v1226 = vunpack.c.h.b16 %v693
        %v1227 = vunpack.c.l.b16 %v694
        %v1228 = vunpack.c.h.b16 %v694
        %v1229 = vunpack.c.l.b16 %v695
        %v1230 = vunpack.c.h.b16 %v695
        %v1231 = vunpack.c.l.b16 %v696
        %v1232 = vunpack.c.h.b16 %v696
        %v1233 = vunpack.c.l.b16 %v697
        %v1234 = vunpack.c.h.b16 %v697
        %v1235 = vunpack.c.l.b16 %v698
        %v1236 = vunpack.c.h.b16 %v698
        %v1237 = vunpack.c.l.b16 %v699
        %v1238 = vunpack.c.h.b16 %v699
        %v1239 = vunpack.c.l.b16 %v700
        %v1240 = vunpack.c.h.b16 %v700
        %v1241 = vunpack.c.l.b16 %v701
        %v1242 = vunpack.c.h.b16 %v701
        %v1243 = vunpack.c.l.b16 %v702
        %v1244 = vunpack.c.h.b16 %v702
        %v1245 = vunpack.c.l.b16 %v703
        %v1246 = vunpack.c.h.b16 %v703
        %v1247 = vunpack.c.l.b16 %v704
        %v1248 = vunpack.c.h.b16 %v704
        %v1249 = vunpack.c.l.b16 %v705
        %v1250 = vunpack.c.h.b16 %v705
        %v1251 = vunpack.c.l.b16 %v706
        %v1252 = vunpack.c.h.b16 %v706
        %v1253 = vunpack.c.l.b16 %v707
        %v1254 = vunpack.c.h.b16 %v707
        %v1255 = vunpack.c.l.b16 %v708
        %v1256 = vunpack.c.h.b16 %v708
        %v1257 = vunpack.c.l.b16 %v709
        %v1258 = vunpack.c.h.b16 %v709
        %v1259 = vunpack.c.l.b16 %v710
        %v1260 = vunpack.c.h.b16 %v710
        %v1261 = vunpack.c.l.b16 %v711
        %v1262 = vunpack.c.h.b16 %v711
        %v1263 = vunpack.c.l.b16 %v712
        %v1264 = vunpack.c.h.b16 %v712
        %v1265 = vunpack.c.l.b16 %v713
        %v1266 = vunpack.c.h.b16 %v713
        %v1267 = vunpack.c.l.b16 %v714
        %v1268 = vunpack.c.h.b16 %v714
        %v1269 = vunpack.c.l.b16 %v715
        %v1270 = vunpack.c.h.b16 %v715
        %v1271 = vunpack.c.l.b16 %v716
        %v1272 = vunpack.c.h.b16 %v716
        %v1273 = vunpack.c.l.b16 %v717
        %v1274 = vunpack.c.h.b16 %v717
        %v1275 = vunpack.c.l.b16 %v718
        %v1276 = vunpack.c.h.b16 %v718
        %v1277 = vunpack.c.l.b16 %v719
        %v1278 = vunpack.c.h.b16 %v719
        %v1279 = vunpack.c.l.b16 %v720
        %v1280 = vunpack.c.h.b16 %v720
        %v1281 = vunpack.c.l.b16 %v721
        %v1282 = vunpack.c.h.b16 %v721
        %v1283 = vunpack.c.l.b16 %v722
        %v1284 = vunpack.c.h.b16 %v722
        %v1285 = vunpack.c.l.b16 %v723
        %v1286 = vunpack.c.h.b16 %v723
        %v1287 = vunpack.c.l.b16 %v724
        %v1288 = vunpack.c.h.b16 %v724
        %v1289 = vunpack.c.l.b16 %v725
        %v1290 = vunpack.c.h.b16 %v725
        %v1291 = vunpack.c.l.b16 %v726
        %v1292 = vunpack.c.h.b16 %v726
        %v1293 = vunpack.c.l.b16 %v727
        %v1294 = vunpack.c.h.b16 %v727
        %v1295 = vunpack.c.l.b16 %v728
        %v1296 = vunpack.c.h.b16 %v728
        %v1297 = vunpack.c.l.b16 %v729
        %v1298 = vunpack.c.h.b16 %v729
        %v1299 = vunpack.c.l.b16 %v730
        %v1300 = vunpack.c.h.b16 %v730
        %v1301 = vunpack.c.l.b16 %v731
        %v1302 = vunpack.c.h.b16 %v731
        %v1303 = vunpack.c.l.b16 %v732
        %v1304 = vunpack.c.h.b16 %v732
        %v1305 = vunpack.c.l.b16 %v733
        %v1306 = vunpack.c.h.b16 %v733
        %v1307 = vunpack.c.l.b16 %v734
        %v1308 = vunpack.c.h.b16 %v734
        %v1309 = vunpack.c.l.b16 %v735
        %v1310 = vunpack.c.h.b16 %v735
        %v1311 = vunpack.c.l.b16 %v736
        %v1312 = vunpack.c.h.b16 %v736
        %v1313 = vunpack.c.l.b16 %v737
        %v1314 = vunpack.c.h.b16 %v737
        %v1315 = vunpack.c.l.b16 %v738
        %v1316 = vunpack.c.h.b16 %v738
        %v1317 = vunpack.c.l.b16 %v739
        %v1318 = vunpack.c.h.b16 %v739
        %v1319 = vunpack.c.l.b16 %v740
        %v1320 = vunpack.c.h.b16 %v740
        %v1321 = vunpack.c.l.b16 %v741
        %v1322 = vunpack.c.h.b16 %v741
        %v1323 = vunpack.c.l.b16 %v742
        %v1324 = vunpack.c.h.b16 %v742
        %v1325 = vunpack.c.l.b16 %v743
        %v1326 = vunpack.c.h.b16 %v743
        %v1327 = vunpack.c.l.b16 %v744
        %v1328 = vunpack.c.h.b16 %v744
        %v1329 = vunpack.c.l.b16 %v745
        %v1330 = vunpack.c.h.b16 %v745
        %v1331 = vunpack.c.l.b16 %v746
        %v1332 = vunpack.c.h.b16 %v746
        %v1333 = vunpack.c.l.b16 %v747
        %v1334 = vunpack.c.h.b16 %v747
        %v1335 = vunpack.c.l.b16 %v748
        %v1336 = vunpack.c.h.b16 %v748
        %v1337 = vunpack.c.l.b16 %v749
        %v1338 = vunpack.c.h.b16 %v749
        %v1339 = vunpack.c.l.b16 %v750
        %v1340 = vunpack.c.h.b16 %v750
        %v1341 = vunpack.c.l.b16 %v751
        %v1342 = vunpack.c.h.b16 %v751
        %v1343 = vunpack.c.l.b16 %v752
        %v1344 = vunpack.c.h.b16 %v752
        %v1345 = vunpack.c.l.b16 %v753
        %v1346 = vunpack.c.h.b16 %v753
        %v1347 = vunpack.c.l.b16 %v754
        %v1348 = vunpack.c.h.b16 %v754
        %v1349 = vunpack.c.l.b16 %v755
        %v1350 = vunpack.c.h.b16 %v755
        %v1351 = vunpack.c.l.b16 %v756
        %v1352 = vunpack.c.h.b16 %v756
        %v1353 = vunpack.c.l.b16 %v757
        %v1354 = vunpack.c.h.b16 %v757
        %v1355 = vunpack.c.l.b16 %v758
        %v1356 = vunpack.c.h.b16 %v758
        %v1357 = vunpack.c.l.b16 %v759
        %v1358 = vunpack.c.h.b16 %v759
        %v1359 = vunpack.c.l.b16 %v760
        %v1360 = vunpack.c.h.b16 %v760
        %v1361 = vunpack.c.l.b16 %v761
        %v1362 = vunpack.c.h.b16 %v761
        %v1363 = vunpack.c.l.b16 %v762
        %v1364 = vunpack.c.h.b16 %v762
        %v1365 = vunpack.c.l.b16 %v763
        %v1366 = vunpack.c.h.b16 %v763
        %v1367 = vunpack.c.l.b16 %v764
        %v1368 = vunpack.c.h.b16 %v764
        %v1369 = vpack.c.b16 %v993, %v985
        %v1370 = vpack.c.b16 %v994, %v986
        %v1371 = vpack.c.b16 %v995, %v987
        %v1372 = vpack.c.b16 %v996, %v988
        %v1373 = vpack.c.b16 %v997, %v989
        %v1374 = vpack.c.b16 %v998, %v990
        %v1375 = vpack.c.b16 %v999, %v991
        %v1376 = vpack.c.b16 %v1000, %v992
        %v1377 = vpack.c.b16 %v1009, %v1001
        %v1378 = vpack.c.b16 %v1010, %v1002
        %v1379 = vpack.c.b16 %v1011, %v1003
        %v1380 = vpack.c.b16 %v1012, %v1004
        %v1381 = vpack.c.b16 %v1013, %v1005
        %v1382 = vpack.c.b16 %v1014, %v1006
        %v1383 = vpack.c.b16 %v1015, %v1007
        %v1384 = vpack.c.b16 %v1016, %v1008
        %v1385 = vpack.c.b16 %v1025, %v1017
        %v1386 = vpack.c.b16 %v1026, %v1018
        %v1387 = vpack.c.b16 %v1027, %v1019
        %v1388 = vpack.c.b16 %v1028, %v1020
        %v1389 = vpack.c.b16 %v1029, %v1021
        %v1390 = vpack.c.b16 %v1030, %v1022
        %v1391 = vpack.c.b16 %v1031, %v1023
        %v1392 = vpack.c.b16 %v1032, %v1024
        %v1393 = vpack.c.b16 %v1041, %v1033
        %v1394 = vpack.c.b16 %v1042, %v1034
        %v1395 = vpack.c.b16 %v1043, %v1035
        %v1396 = vpack.c.b16 %v1044, %v1036
        %v1397 = vpack.c.b16 %v1045, %v1037
        %v1398 = vpack.c.b16 %v1046, %v1038
        %v1399 = vpack.c.b16 %v1047, %v1039
        %v1400 = vpack.c.b16 %v1048, %v1040
        %v1401 = vpack.c.b16 %v1057, %v1049
        %v1402 = vpack.c.b16 %v1058, %v1050
        %v1403 = vpack.c.b16 %v1059, %v1051
        %v1404 = vpack.c.b16 %v1060, %v1052
        %v1405 = vpack.c.b16 %v1061, %v1053
        %v1406 = vpack.c.b16 %v1062, %v1054
        %v1407 = vpack.c.b16 %v1063, %v1055
        %v1408 = vpack.c.b16 %v1064, %v1056
        %v1409 = vpack.c.b16 %v1073, %v1065
        %v1410 = vpack.c.b16 %v1074, %v1066
        %v1411 = vpack.c.b16 %v1075, %v1067
        %v1412 = vpack.c.b16 %v1076, %v1068
        %v1413 = vpack.c.b16 %v1077, %v1069
        %v1414 = vpack.c.b16 %v1078, %v1070
        %v1415 = vpack.c.b16 %v1079, %v1071
        %v1416 = vpack.c.b16 %v1080, %v1072
        %v1417 = vpack.c.b16 %v1089, %v1081
        %v1418 = vpack.c.b16 %v1090, %v1082
        %v1419 = vpack.c.b16 %v1091, %v1083
        %v1420 = vpack.c.b16 %v1092, %v1084
        %v1421 = vpack.c.b16 %v1093, %v1085
        %v1422 = vpack.c.b16 %v1094, %v1086
        %v1423 = vpack.c.b16 %v1095, %v1087
        %v1424 = vpack.c.b16 %v1096, %v1088
        %v1425 = vpack.c.b16 %v1105, %v1097
        %v1426 = vpack.c.b16 %v1106, %v1098
        %v1427 = vpack.c.b16 %v1107, %v1099
        %v1428 = vpack.c.b16 %v1108, %v1100
        %v1429 = vpack.c.b16 %v1109, %v1101
        %v1430 = vpack.c.b16 %v1110, %v1102
        %v1431 = vpack.c.b16 %v1111, %v1103
        %v1432 = vpack.c.b16 %v1112, %v1104
        %v1433 = vpack.c.b16 %v1121, %v1113
        %v1434 = vpack.c.b16 %v1122, %v1114
        %v1435 = vpack.c.b16 %v1123, %v1115
        %v1436 = vpack.c.b16 %v1124, %v1116
        %v1437 = vpack.c.b16 %v1125, %v1117
        %v1438 = vpack.c.b16 %v1126, %v1118
        %v1439 = vpack.c.b16 %v1127, %v1119
        %v1440 = vpack.c.b16 %v1128, %v1120
        %v1441 = vpack.c.b16 %v1137, %v1129
        %v1442 = vpack.c.b16 %v1138, %v1130
        %v1443 = vpack.c.b16 %v1139, %v1131
        %v1444 = vpack.c.b16 %v1140, %v1132
        %v1445 = vpack.c.b16 %v1141, %v1133
        %v1446 = vpack.c.b16 %v1142, %v1134
        %v1447 = vpack.c.b16 %v1143, %v1135
        %v1448 = vpack.c.b16 %v1144, %v1136
        %v1449 = vpack.c.b16 %v1153, %v1145
        %v1450 = vpack.c.b16 %v1154, %v1146
        %v1451 = vpack.c.b16 %v1155, %v1147
        %v1452 = vpack.c.b16 %v1156, %v1148
        %v1453 = vpack.c.b16 %v1157, %v1149
        %v1454 = vpack.c.b16 %v1158, %v1150
        %v1455 = vpack.c.b16 %v1159, %v1151
        %v1456 = vpack.c.b16 %v1160, %v1152
        %v1457 = vpack.c.b16 %v1169, %v1161
        %v1458 = vpack.c.b16 %v1170, %v1162
        %v1459 = vpack.c.b16 %v1171, %v1163
        %v1460 = vpack.c.b16 %v1172, %v1164
        %v1461 = vpack.c.b16 %v1173, %v1165
        %v1462 = vpack.c.b16 %v1174, %v1166
        %v1463 = vpack.c.b16 %v1175, %v1167
        %v1464 = vpack.c.b16 %v1176, %v1168
        %v1465 = vpack.c.b16 %v1185, %v1177
        %v1466 = vpack.c.b16 %v1186, %v1178
        %v1467 = vpack.c.b16 %v1187, %v1179
        %v1468 = vpack.c.b16 %v1188, %v1180
        %v1469 = vpack.c.b16 %v1189, %v1181
        %v1470 = vpack.c.b16 %v1190, %v1182
        %v1471 = vpack.c.b16 %v1191, %v1183
        %v1472 = vpack.c.b16 %v1192, %v1184
        %v1473 = vpack.c.b16 %v1201, %v1193
        %v1474 = vpack.c.b16 %v1202, %v1194
        %v1475 = vpack.c.b16 %v1203, %v1195
        %v1476 = vpack.c.b16 %v1204, %v1196
        %v1477 = vpack.c.b16 %v1205, %v1197
        %v1478 = vpack.c.b16 %v1206, %v1198
        %v1479 = vpack.c.b16 %v1207, %v1199
        %v1480 = vpack.c.b16 %v1208, %v1200
        %v1481 = vpack.c.b16 %v1217, %v1209
        %v1482 = vpack.c.b16 %v1218, %v1210
        %v1483 = vpack.c.b16 %v1219, %v1211
        %v1484 = vpack.c.b16 %v1220, %v1212
        %v1485 = vpack.c.b16 %v1221, %v1213
        %v1486 = vpack.c.b16 %v1222, %v1214
        %v1487 = vpack.c.b16 %v1223, %v1215
        %v1488 = vpack.c.b16 %v1224, %v1216
        %v1489 = vpack.c.b16 %v1233, %v1225
        %v1490 = vpack.c.b16 %v1234, %v1226
        %v1491 = vpack.c.b16 %v1235, %v1227
        %v1492 = vpack.c.b16 %v1236, %v1228
        %v1493 = vpack.c.b16 %v1237, %v1229
        %v1494 = vpack.c.b16 %v1238, %v1230
        %v1495 = vpack.c.b16 %v1239, %v1231
        %v1496 = vpack.c.b16 %v1240, %v1232
        %v1497 = vpack.c.b16 %v1249, %v1241
        %v1498 = vpack.c.b16 %v1250, %v1242
        %v1499 = vpack.c.b16 %v1251, %v1243
        %v1500 = vpack.c.b16 %v1252, %v1244
        %v1501 = vpack.c.b16 %v1253, %v1245
        %v1502 = vpack.c.b16 %v1254, %v1246
        %v1503 = vpack.c.b16 %v1255, %v1247
        %v1504 = vpack.c.b16 %v1256, %v1248
        %v1505 = vpack.c.b16 %v1265, %v1257
        %v1506 = vpack.c.b16 %v1266, %v1258
        %v1507 = vpack.c.b16 %v1267, %v1259
        %v1508 = vpack.c.b16 %v1268, %v1260
        %v1509 = vpack.c.b16 %v1269, %v1261
        %v1510 = vpack.c.b16 %v1270, %v1262
        %v1511 = vpack.c.b16 %v1271, %v1263
        %v1512 = vpack.c.b16 %v1272, %v1264
        %v1513 = vpack.c.b16 %v1281, %v1273
        %v1514 = vpack.c.b16 %v1282, %v1274
        %v1515 = vpack.c.b16 %v1283, %v1275
        %v1516 = vpack.c.b16 %v1284, %v1276
        %v1517 = vpack.c.b16 %v1285, %v1277
        %v1518 = vpack.c.b16 %v1286, %v1278
        %v1519 = vpack.c.b16 %v1287, %v1279
        %v1520 = vpack.c.b16 %v1288, %v1280
        %v1521 = vpack.c.b16 %v1297, %v1289
        %v1522 = vpack.c.b16 %v1298, %v1290
        %v1523 = vpack.c.b16 %v1299, %v1291
        %v1524 = vpack.c.b16 %v1300, %v1292
        %v1525 = vpack.c.b16 %v1301, %v1293
        %v1526 = vpack.c.b16 %v1302, %v1294
        %v1527 = vpack.c.b16 %v1303, %v1295
        %v1528 = vpack.c.b16 %v1304, %v1296
        %v1529 = vpack.c.b16 %v1313, %v1305
        %v1530 = vpack.c.b16 %v1314, %v1306
        %v1531 = vpack.c.b16 %v1315, %v1307
        %v1532 = vpack.c.b16 %v1316, %v1308
        %v1533 = vpack.c.b16 %v1317, %v1309
        %v1534 = vpack.c.b16 %v1318, %v1310
        %v1535 = vpack.c.b16 %v1319, %v1311
        %v1536 = vpack.c.b16 %v1320, %v1312
        %v1537 = vpack.c.b16 %v1329, %v1321
        %v1538 = vpack.c.b16 %v1330, %v1322
        %v1539 = vpack.c.b16 %v1331, %v1323
        %v1540 = vpack.c.b16 %v1332, %v1324
        %v1541 = vpack.c.b16 %v1333, %v1325
        %v1542 = vpack.c.b16 %v1334, %v1326
        %v1543 = vpack.c.b16 %v1335, %v1327
        %v1544 = vpack.c.b16 %v1336, %v1328
        %v1545 = vpack.c.b16 %v1345, %v1337
        %v1546 = vpack.c.b16 %v1346, %v1338
        %v1547 = vpack.c.b16 %v1347, %v1339
        %v1548 = vpack.c.b16 %v1348, %v1340
        %v1549 = vpack.c.b16 %v1349, %v1341
        %v1550 = vpack.c.b16 %v1350, %v1342
        %v1551 = vpack.c.b16 %v1351, %v1343
        %v1552 = vpack.c.b16 %v1352, %v1344
        %v1553 = vpack.c.b16 %v1361, %v1353
        %v1554 = vpack.c.b16 %v1362, %v1354
        %v1555 = vpack.c.b16 %v1363, %v1355
        %v1556 = vpack.c.b16 %v1364, %v1356
        %v1557 = vpack.c.b16 %v1365, %v1357
        %v1558 = vpack.c.b16 %v1366, %v1358
        %v1559 = vpack.c.b16 %v1367, %v1359
        %v1560 = vpack.c.b16 %v1368, %v1360
        %1753 = vmatpush.bf16.msra.mxu0 %v1425
        %1754 = vmatpush.bf16.msra.mxu0 %v1417
        %1755 = vmatpush.bf16.msra.mxu0 %v1409
        %1756 = vmatpush.bf16.msra.mxu0 %v1401
        %1757 = vmatpush.bf16.msra.mxu0 %v1393
        %1758 = vmatpush.bf16.msra.mxu0 %v1385
        %1759 = vmatpush.bf16.msra.mxu0 %v1377
        %1760 = vmatpush.bf16.msra.mxu0 %v1369
        %1761 = vmatmul.bf16.gmra.mxu0 %v787
        %v1762 = vpop.f32.mrf.mxu0
        %v1763 = vadd.f32 %v770, %v1762
        %v1764 = vpop.f32.mrf.mxu0
        %v1765 = vadd.f32 %v775, %v1764
        %1766 = vdwg.mxu0
        %1767 = vmatpush.bf16.msra.mxu0 %v1489
        %1768 = vmatpush.bf16.msra.mxu0 %v1481
        %1769 = vmatpush.bf16.msra.mxu0 %v1473
        %1770 = vmatpush.bf16.msra.mxu0 %v1465
        %1771 = vmatpush.bf16.msra.mxu0 %v1457
        %1772 = vmatpush.bf16.msra.mxu0 %v1449
        %1773 = vmatpush.bf16.msra.mxu0 %v1441
        %1774 = vmatpush.bf16.msra.mxu0 %v1433
        %1775 = vmatmul.bf16.gmra.mxu0 %v788
        %v1776 = vpop.f32.mrf.mxu0
        %v1777 = vadd.f32 %v1763, %v1776
        %v1778 = vpop.f32.mrf.mxu0
        %v1779 = vadd.f32 %v1765, %v1778
        %1780 = vdwg.mxu0
        %1781 = vmatpush.bf16.msra.mxu0 %v1553
        %1782 = vmatpush.bf16.msra.mxu0 %v1545
        %1783 = vmatpush.bf16.msra.mxu0 %v1537
        %1784 = vmatpush.bf16.msra.mxu0 %v1529
        %1785 = vmatpush.bf16.msra.mxu0 %v1521
        %1786 = vmatpush.bf16.msra.mxu0 %v1513
        %1787 = vmatpush.bf16.msra.mxu0 %v1505
        %1788 = vmatpush.bf16.msra.mxu0 %v1497
        %1789 = vmatmul.bf16.gmra.mxu0 %v789
        %v1790 = vpop.f32.mrf.mxu0
        %v1791 = vadd.f32 %v1777, %v1790
        %v1792 = vpop.f32.mrf.mxu0
        %v1793 = vadd.f32 %v1779, %v1792
        %1794 = vdwg.mxu0
        %1795 = vmatpush.bf16.msra.mxu0 %v1426
        %1796 = vmatpush.bf16.msra.mxu0 %v1418
        %1797 = vmatpush.bf16.msra.mxu0 %v1410
        %1798 = vmatpush.bf16.msra.mxu0 %v1402
        %1799 = vmatpush.bf16.msra.mxu0 %v1394
        %1800 = vmatpush.bf16.msra.mxu0 %v1386
        %1801 = vmatpush.bf16.msra.mxu0 %v1378
        %1802 = vmatpush.bf16.msra.mxu0 %v1370
        %1803 = vmatmul.bf16.gmra.mxu0 %v787
        %v1804 = vpop.f32.mrf.mxu0
        %v1805 = vadd.f32 %v770, %v1804
        %v1806 = vpop.f32.mrf.mxu0
        %v1807 = vadd.f32 %v775, %v1806
        %1808 = vdwg.mxu0
        %1809 = vmatpush.bf16.msra.mxu0 %v1490
        %1810 = vmatpush.bf16.msra.mxu0 %v1482
        %1811 = vmatpush.bf16.msra.mxu0 %v1474
        %1812 = vmatpush.bf16.msra.mxu0 %v1466
        %1813 = vmatpush.bf16.msra.mxu0 %v1458
        %1814 = vmatpush.bf16.msra.mxu0 %v1450
        %1815 = vmatpush.bf16.msra.mxu0 %v1442
        %1816 = vmatpush.bf16.msra.mxu0 %v1434
        %1817 = vmatmul.bf16.gmra.mxu0 %v788
        %v1818 = vpop.f32.mrf.mxu0
        %v1819 = vadd.f32 %v1805, %v1818
        %v1820 = vpop.f32.mrf.mxu0
        %v1821 = vadd.f32 %v1807, %v1820
        %1822 = vdwg.mxu0
        %1823 = vmatpush.bf16.msra.mxu0 %v1554
        %1824 = vmatpush.bf16.msra.mxu0 %v1546
        %1825 = vmatpush.bf16.msra.mxu0 %v1538
        %1826 = vmatpush.bf16.msra.mxu0 %v1530
        %1827 = vmatpush.bf16.msra.mxu0 %v1522
        %1828 = vmatpush.bf16.msra.mxu0 %v1514
        %1829 = vmatpush.bf16.msra.mxu0 %v1506
        %1830 = vmatpush.bf16.msra.mxu0 %v1498
        %1831 = vmatmul.bf16.gmra.mxu0 %v789
        %v1832 = vpop.f32.mrf.mxu0
        %v1833 = vadd.f32 %v1819, %v1832
        %v1834 = vpop.f32.mrf.mxu0
        %v1835 = vadd.f32 %v1821, %v1834
        %1836 = vdwg.mxu0
        %1837 = vmatpush.bf16.msra.mxu0 %v1427
        %1838 = vmatpush.bf16.msra.mxu0 %v1419
        %1839 = vmatpush.bf16.msra.mxu0 %v1411
        %1840 = vmatpush.bf16.msra.mxu0 %v1403
        %1841 = vmatpush.bf16.msra.mxu0 %v1395
        %1842 = vmatpush.bf16.msra.mxu0 %v1387
        %1843 = vmatpush.bf16.msra.mxu0 %v1379
        %1844 = vmatpush.bf16.msra.mxu0 %v1371
        %1845 = vmatmul.bf16.gmra.mxu0 %v787
        %v1846 = vpop.f32.mrf.mxu0
        %v1847 = vadd.f32 %v770, %v1846
        %v1848 = vpop.f32.mrf.mxu0
        %v1849 = vadd.f32 %v775, %v1848
        %1850 = vdwg.mxu0
        %1851 = vmatpush.bf16.msra.mxu0 %v1491
        %1852 = vmatpush.bf16.msra.mxu0 %v1483
        %1853 = vmatpush.bf16.msra.mxu0 %v1475
        %1854 = vmatpush.bf16.msra.mxu0 %v1467
        %1855 = vmatpush.bf16.msra.mxu0 %v1459
        %1856 = vmatpush.bf16.msra.mxu0 %v1451
        %1857 = vmatpush.bf16.msra.mxu0 %v1443
        %1858 = vmatpush.bf16.msra.mxu0 %v1435
        %1859 = vmatmul.bf16.gmra.mxu0 %v788
        %v1860 = vpop.f32.mrf.mxu0
        %v1861 = vadd.f32 %v1847, %v1860
        %v1862 = vpop.f32.mrf.mxu0
        %v1863 = vadd.f32 %v1849, %v1862
        %1864 = vdwg.mxu0
        %1865 = vmatpush.bf16.msra.mxu0 %v1555
        %1866 = vmatpush.bf16.msra.mxu0 %v1547
        %1867 = vmatpush.bf16.msra.mxu0 %v1539
        %1868 = vmatpush.bf16.msra.mxu0 %v1531
        %1869 = vmatpush.bf16.msra.mxu0 %v1523
        %1870 = vmatpush.bf16.msra.mxu0 %v1515
        %1871 = vmatpush.bf16.msra.mxu0 %v1507
        %1872 = vmatpush.bf16.msra.mxu0 %v1499
        %1873 = vmatmul.bf16.gmra.mxu0 %v789
        %v1874 = vpop.f32.mrf.mxu0
        %v1875 = vadd.f32 %v1861, %v1874
        %v1876 = vpop.f32.mrf.mxu0
        %v1877 = vadd.f32 %v1863, %v1876
        %1878 = vdwg.mxu0
        %1879 = vmatpush.bf16.msra.mxu0 %v1428
        %1880 = vmatpush.bf16.msra.mxu0 %v1420
        %1881 = vmatpush.bf16.msra.mxu0 %v1412
        %1882 = vmatpush.bf16.msra.mxu0 %v1404
        %1883 = vmatpush.bf16.msra.mxu0 %v1396
        %1884 = vmatpush.bf16.msra.mxu0 %v1388
        %1885 = vmatpush.bf16.msra.mxu0 %v1380
        %1886 = vmatpush.bf16.msra.mxu0 %v1372
        %1887 = vmatmul.bf16.gmra.mxu0 %v787
        %v1888 = vpop.f32.mrf.mxu0
        %v1889 = vadd.f32 %v770, %v1888
        %v1890 = vpop.f32.mrf.mxu0
        %v1891 = vadd.f32 %v775, %v1890
        %1892 = vdwg.mxu0
        %1893 = vmatpush.bf16.msra.mxu0 %v1492
        %1894 = vmatpush.bf16.msra.mxu0 %v1484
        %1895 = vmatpush.bf16.msra.mxu0 %v1476
        %1896 = vmatpush.bf16.msra.mxu0 %v1468
        %1897 = vmatpush.bf16.msra.mxu0 %v1460
        %1898 = vmatpush.bf16.msra.mxu0 %v1452
        %1899 = vmatpush.bf16.msra.mxu0 %v1444
        %1900 = vmatpush.bf16.msra.mxu0 %v1436
        %1901 = vmatmul.bf16.gmra.mxu0 %v788
        %v1902 = vpop.f32.mrf.mxu0
        %v1903 = vadd.f32 %v1889, %v1902
        %v1904 = vpop.f32.mrf.mxu0
        %v1905 = vadd.f32 %v1891, %v1904
        %1906 = vdwg.mxu0
        %1907 = vmatpush.bf16.msra.mxu0 %v1556
        %1908 = vmatpush.bf16.msra.mxu0 %v1548
        %1909 = vmatpush.bf16.msra.mxu0 %v1540
        %1910 = vmatpush.bf16.msra.mxu0 %v1532
        %1911 = vmatpush.bf16.msra.mxu0 %v1524
        %1912 = vmatpush.bf16.msra.mxu0 %v1516
        %1913 = vmatpush.bf16.msra.mxu0 %v1508
        %1914 = vmatpush.bf16.msra.mxu0 %v1500
        %1915 = vmatmul.bf16.gmra.mxu0 %v789
        %v1916 = vpop.f32.mrf.mxu0
        %v1917 = vadd.f32 %v1903, %v1916
        %v1918 = vpop.f32.mrf.mxu0
        %v1919 = vadd.f32 %v1905, %v1918
        %1920 = vdwg.mxu0
        %1921 = vmatpush.bf16.msra.mxu0 %v1429
        %1922 = vmatpush.bf16.msra.mxu0 %v1421
        %1923 = vmatpush.bf16.msra.mxu0 %v1413
        %1924 = vmatpush.bf16.msra.mxu0 %v1405
        %1925 = vmatpush.bf16.msra.mxu0 %v1397
        %1926 = vmatpush.bf16.msra.mxu0 %v1389
        %1927 = vmatpush.bf16.msra.mxu0 %v1381
        %1928 = vmatpush.bf16.msra.mxu0 %v1373
        %1929 = vmatmul.bf16.gmra.mxu0 %v787
        %v1930 = vpop.f32.mrf.mxu0
        %v1931 = vadd.f32 %v770, %v1930
        %v1932 = vpop.f32.mrf.mxu0
        %v1933 = vadd.f32 %v775, %v1932
        %1934 = vdwg.mxu0
        %1935 = vmatpush.bf16.msra.mxu0 %v1493
        %1936 = vmatpush.bf16.msra.mxu0 %v1485
        %1937 = vmatpush.bf16.msra.mxu0 %v1477
        %1938 = vmatpush.bf16.msra.mxu0 %v1469
        %1939 = vmatpush.bf16.msra.mxu0 %v1461
        %1940 = vmatpush.bf16.msra.mxu0 %v1453
        %1941 = vmatpush.bf16.msra.mxu0 %v1445
        %1942 = vmatpush.bf16.msra.mxu0 %v1437
        %1943 = vmatmul.bf16.gmra.mxu0 %v788
        %v1944 = vpop.f32.mrf.mxu0
        %v1945 = vadd.f32 %v1931, %v1944
        %v1946 = vpop.f32.mrf.mxu0
        %v1947 = vadd.f32 %v1933, %v1946
        %1948 = vdwg.mxu0
        %1949 = vmatpush.bf16.msra.mxu0 %v1557
        %1950 = vmatpush.bf16.msra.mxu0 %v1549
        %1951 = vmatpush.bf16.msra.mxu0 %v1541
        %1952 = vmatpush.bf16.msra.mxu0 %v1533
        %1953 = vmatpush.bf16.msra.mxu0 %v1525
        %1954 = vmatpush.bf16.msra.mxu0 %v1517
        %1955 = vmatpush.bf16.msra.mxu0 %v1509
        %1956 = vmatpush.bf16.msra.mxu0 %v1501
        %1957 = vmatmul.bf16.gmra.mxu0 %v789
        %v1958 = vpop.f32.mrf.mxu0
        %v1959 = vadd.f32 %v1945, %v1958
        %v1960 = vpop.f32.mrf.mxu0
        %v1961 = vadd.f32 %v1947, %v1960
        %1962 = vdwg.mxu0
        %1963 = vmatpush.bf16.msra.mxu0 %v1430
        %1964 = vmatpush.bf16.msra.mxu0 %v1422
        %1965 = vmatpush.bf16.msra.mxu0 %v1414
        %1966 = vmatpush.bf16.msra.mxu0 %v1406
        %1967 = vmatpush.bf16.msra.mxu0 %v1398
        %1968 = vmatpush.bf16.msra.mxu0 %v1390
        %1969 = vmatpush.bf16.msra.mxu0 %v1382
        %1970 = vmatpush.bf16.msra.mxu0 %v1374
        %1971 = vmatmul.bf16.gmra.mxu0 %v787
        %v1972 = vpop.f32.mrf.mxu0
        %v1973 = vadd.f32 %v770, %v1972
        %v1974 = vpop.f32.mrf.mxu0
        %v1975 = vadd.f32 %v775, %v1974
        %1976 = vdwg.mxu0
        %1977 = vmatpush.bf16.msra.mxu0 %v1494
        %1978 = vmatpush.bf16.msra.mxu0 %v1486
        %1979 = vmatpush.bf16.msra.mxu0 %v1478
        %1980 = vmatpush.bf16.msra.mxu0 %v1470
        %1981 = vmatpush.bf16.msra.mxu0 %v1462
        %1982 = vmatpush.bf16.msra.mxu0 %v1454
        %1983 = vmatpush.bf16.msra.mxu0 %v1446
        %1984 = vmatpush.bf16.msra.mxu0 %v1438
        %1985 = vmatmul.bf16.gmra.mxu0 %v788
        %v1986 = vpop.f32.mrf.mxu0
        %v1987 = vadd.f32 %v1973, %v1986
        %v1988 = vpop.f32.mrf.mxu0
        %v1989 = vadd.f32 %v1975, %v1988
        %1990 = vdwg.mxu0
        %1991 = vmatpush.bf16.msra.mxu0 %v1558
        %1992 = vmatpush.bf16.msra.mxu0 %v1550
        %1993 = vmatpush.bf16.msra.mxu0 %v1542
        %1994 = vmatpush.bf16.msra.mxu0 %v1534
        %1995 = vmatpush.bf16.msra.mxu0 %v1526
        %1996 = vmatpush.bf16.msra.mxu0 %v1518
        %1997 = vmatpush.bf16.msra.mxu0 %v1510
        %1998 = vmatpush.bf16.msra.mxu0 %v1502
        %1999 = vmatmul.bf16.gmra.mxu0 %v789
        %v2000 = vpop.f32.mrf.mxu0
        %v2001 = vadd.f32 %v1987, %v2000
        %v2002 = vpop.f32.mrf.mxu0
        %v2003 = vadd.f32 %v1989, %v2002
        %2004 = vdwg.mxu0
        %2005 = vmatpush.bf16.msra.mxu0 %v1431
        %2006 = vmatpush.bf16.msra.mxu0 %v1423
        %2007 = vmatpush.bf16.msra.mxu0 %v1415
        %2008 = vmatpush.bf16.msra.mxu0 %v1407
        %2009 = vmatpush.bf16.msra.mxu0 %v1399
        %2010 = vmatpush.bf16.msra.mxu0 %v1391
        %2011 = vmatpush.bf16.msra.mxu0 %v1383
        %2012 = vmatpush.bf16.msra.mxu0 %v1375
        %2013 = vmatmul.bf16.gmra.mxu0 %v787
        %v2014 = vpop.f32.mrf.mxu0
        %v2015 = vadd.f32 %v770, %v2014
        %v2016 = vpop.f32.mrf.mxu0
        %v2017 = vadd.f32 %v775, %v2016
        %2018 = vdwg.mxu0
        %2019 = vmatpush.bf16.msra.mxu0 %v1495
        %2020 = vmatpush.bf16.msra.mxu0 %v1487
        %2021 = vmatpush.bf16.msra.mxu0 %v1479
        %2022 = vmatpush.bf16.msra.mxu0 %v1471
        %2023 = vmatpush.bf16.msra.mxu0 %v1463
        %2024 = vmatpush.bf16.msra.mxu0 %v1455
        %2025 = vmatpush.bf16.msra.mxu0 %v1447
        %2026 = vmatpush.bf16.msra.mxu0 %v1439
        %2027 = vmatmul.bf16.gmra.mxu0 %v788
        %v2028 = vpop.f32.mrf.mxu0
        %v2029 = vadd.f32 %v2015, %v2028
        %v2030 = vpop.f32.mrf.mxu0
        %v2031 = vadd.f32 %v2017, %v2030
        %2032 = vdwg.mxu0
        %2033 = vmatpush.bf16.msra.mxu0 %v1559
        %2034 = vmatpush.bf16.msra.mxu0 %v1551
        %2035 = vmatpush.bf16.msra.mxu0 %v1543
        %2036 = vmatpush.bf16.msra.mxu0 %v1535
        %2037 = vmatpush.bf16.msra.mxu0 %v1527
        %2038 = vmatpush.bf16.msra.mxu0 %v1519
        %2039 = vmatpush.bf16.msra.mxu0 %v1511
        %2040 = vmatpush.bf16.msra.mxu0 %v1503
        %2041 = vmatmul.bf16.gmra.mxu0 %v789
        %v2042 = vpop.f32.mrf.mxu0
        %v2043 = vadd.f32 %v2029, %v2042
        %v2044 = vpop.f32.mrf.mxu0
        %v2045 = vadd.f32 %v2031, %v2044
        %2046 = vdwg.mxu0
        %2047 = vmatpush.bf16.msra.mxu0 %v1432
        %2048 = vmatpush.bf16.msra.mxu0 %v1424
        %2049 = vmatpush.bf16.msra.mxu0 %v1416
        %2050 = vmatpush.bf16.msra.mxu0 %v1408
        %2051 = vmatpush.bf16.msra.mxu0 %v1400
        %2052 = vmatpush.bf16.msra.mxu0 %v1392
        %2053 = vmatpush.bf16.msra.mxu0 %v1384
        %2054 = vmatpush.bf16.msra.mxu0 %v1376
        %2055 = vmatmul.bf16.gmra.mxu0 %v787
        %v2056 = vpop.f32.mrf.mxu0
        %v2057 = vadd.f32 %v770, %v2056
        %v2058 = vpop.f32.mrf.mxu0
        %v2059 = vadd.f32 %v775, %v2058
        %2060 = vdwg.mxu0
        %2061 = vmatpush.bf16.msra.mxu0 %v1496
        %2062 = vmatpush.bf16.msra.mxu0 %v1488
        %2063 = vmatpush.bf16.msra.mxu0 %v1480
        %2064 = vmatpush.bf16.msra.mxu0 %v1472
        %2065 = vmatpush.bf16.msra.mxu0 %v1464
        %2066 = vmatpush.bf16.msra.mxu0 %v1456
        %2067 = vmatpush.bf16.msra.mxu0 %v1448
        %2068 = vmatpush.bf16.msra.mxu0 %v1440
        %2069 = vmatmul.bf16.gmra.mxu0 %v788
        %v2070 = vpop.f32.mrf.mxu0
        %v2071 = vadd.f32 %v2057, %v2070
        %v2072 = vpop.f32.mrf.mxu0
        %v2073 = vadd.f32 %v2059, %v2072
        %2074 = vdwg.mxu0
        %2075 = vmatpush.bf16.msra.mxu0 %v1560
        %2076 = vmatpush.bf16.msra.mxu0 %v1552
        %2077 = vmatpush.bf16.msra.mxu0 %v1544
        %2078 = vmatpush.bf16.msra.mxu0 %v1536
        %2079 = vmatpush.bf16.msra.mxu0 %v1528
        %2080 = vmatpush.bf16.msra.mxu0 %v1520
        %2081 = vmatpush.bf16.msra.mxu0 %v1512
        %2082 = vmatpush.bf16.msra.mxu0 %v1504
        %2083 = vmatmul.bf16.gmra.mxu0 %v789
        %v2084 = vpop.f32.mrf.mxu0
        %v2085 = vadd.f32 %v2071, %v2084
        %v2086 = vpop.f32.mrf.mxu0
        %v2087 = vadd.f32 %v2073, %v2086
        %2088 = vdwg.mxu0
        %v2089 = vpack.c.bf16 %v1833, %v1791
        %v2090 = vpack.c.bf16 %v1917, %v1875
        %v2091 = vpack.c.bf16 %v2001, %v1959
        %v2092 = vpack.c.bf16 %v2085, %v2043
        %v2093 = vpack.c.bf16 %v1835, %v1793
        %v2094 = vpack.c.bf16 %v1919, %v1877
        %v2095 = vpack.c.bf16 %v2003, %v1961
        %v2096 = vpack.c.bf16 %v2087, %v2045
        %2097 = vst [vmem:[%s566] sm:$0xff] %v2089
        %2098 = vst [vmem:[%s566 + $0x8] sm:$0xff] %v2090
        %2099 = vst [vmem:[%s566 + $0x10] sm:$0xff] %v2091
        %2100 = vst [vmem:[%s566 + $0x18] sm:$0xff] %v2092
        %2101 = vst [vmem:[%s566 + $0x20] sm:$0xff] %v2093
        %2102 = vst [vmem:[%s566 + $0x28] sm:$0xff] %v2094
        %2103 = vst [vmem:[%s566 + $0x30] sm:$0xff] %v2095
        %2104 = vst [vmem:[%s566 + $0x38] sm:$0xff] %v2096
        %s2105 = sand.u32 %s90, 1
        %s2106 = sand.u32 %s90, 1
        %s2107 = smul.addr %s2106, 64
        %s2108 = scalar_lea.vmem [#allocation3], %s2107
        // Predicated region
        $region56: #{fpn_backbone_radar.7} parent=50 // pred_check
          %p2109 = pneg %p100
        $region57: #{fpn_backbone_radar.7} parent=50 // pred_check_branch
          %2111 = sbr.rel (%p2109) target = $region59
        $region58: #{fpn_backbone_radar.7} parent=50 // pred_region
          %s2112 = smul.u32 8, %s14
          %s2113 = smul.addr %s2112, 4
          %s2114 = scalar_lea.vmem %s3, %s2113
          // Predicated region
          $region60: #{fpn_backbone_radar.7} parent=58 // pred_check
            _
          $region61: #{fpn_backbone_radar.7} parent=58 // pred_check_branch
            %2116 = sbr.rel (0) target = $region63
          $region62: #{fpn_backbone_radar.7} parent=58 // pred_region
            // Predicated region
            $region64: #{fpn_backbone_radar.7} parent=62 // pred_check
              _
            $region65: #{fpn_backbone_radar.7} parent=62 // pred_check_branch
              %2118 = sbr.rel (0) target = $region67
            $region66: #{fpn_backbone_radar.7} parent=62 // pred_region
              loop: start=0, step=1, limit=1
              $region68: #{fpn_backbone_radar.7} parent=66 // loop_pre_header
                _
              $region69: #{fpn_backbone_radar.7} parent=66 // loop_header
                %s2120 = sphi 0, %s2124
                %p2121 = scmp.ge.s32.totalorder %s2120, 1
                %s2125 = sphi %s2108, %s2108
                %s2126 = sphi %s2114, %s2114
              $region70: #{fpn_backbone_radar.7} parent=66 // loop_header_branch
                %2123 = sbr.rel (%p2121) target = $region74
              $region71: #{fpn_backbone_radar.7} parent=66 // loop_body
                %v2127 = vld [vmem:[%s2125] sm:$0xff]
                %2128 = vst [vmem:[%s2126] sm:$0xff] %v2127
                %v2129 = vld [vmem:[%s2125 + $0x8] sm:$0xff]
                %2130 = vst [vmem:[%s2126 + $0x8] sm:$0xff] %v2129
                %v2131 = vld [vmem:[%s2125 + $0x10] sm:$0xff]
                %2132 = vst [vmem:[%s2126 + $0x10] sm:$0xff] %v2131
                %v2133 = vld [vmem:[%s2125 + $0x18] sm:$0xff]
                %2134 = vst [vmem:[%s2126 + $0x18] sm:$0xff] %v2133
                %v2135 = vld [vmem:[%s2125 + $0x20] sm:$0xff]
                %2136 = vst [vmem:[%s2126 + $0x80] sm:$0xff] %v2135
                %v2137 = vld [vmem:[%s2125 + $0x28] sm:$0xff]
                %2138 = vst [vmem:[%s2126 + $0x88] sm:$0xff] %v2137
                %v2139 = vld [vmem:[%s2125 + $0x30] sm:$0xff]
                %2140 = vst [vmem:[%s2126 + $0x90] sm:$0xff] %v2139
                %v2141 = vld [vmem:[%s2125 + $0x38] sm:$0xff]
                %2142 = vst [vmem:[%s2126 + $0x98] sm:$0xff] %v2141
              $region72: #{fpn_backbone_radar.7} parent=66 // loop_footer
                %s2124 = sadd.s32 1, %s2120
              $region73: #{fpn_backbone_radar.7} parent=66 // loop_footer_branch
                %2119 = sbr.rel target = $region69
              $region74: #{fpn_backbone_radar.7} parent=66 // loop_exit
                _
            $region67: #{fpn_backbone_radar.7} parent=62 // pred_fallthru
              _
            // Predicated region
            $region75: #{fpn_backbone_radar.7} parent=62 // pred_check
              _
            $region76: #{fpn_backbone_radar.7} parent=62 // pred_check_branch
              %2144 = sbr.rel target = $region78
            $region77: #{fpn_backbone_radar.7} parent=62 // pred_region
              _
            $region78: #{fpn_backbone_radar.7} parent=62 // pred_fallthru
              _
          $region63: #{fpn_backbone_radar.7} parent=58 // pred_fallthru
            _
          %2145 = vnop
        $region59: #{fpn_backbone_radar.7} parent=50 // pred_fallthru
          _
      $region51: #{fpn_backbone_radar.7} parent=5 // pred_fallthru
        _
      %p2146 = scmp.le.s32.totalorder 2, %s9
      // Predicated region
      $region79: #{fpn_backbone_radar.7} parent=5 // pred_check
        %p2147 = pneg %p2146
      $region80: #{fpn_backbone_radar.7} parent=5 // pred_check_branch
        %2149 = sbr.rel (%p2147) target = $region82
      $region81: #{fpn_backbone_radar.7} parent=5 // pred_region
        %s2150 = ssub.s32 %s9, 2
        // Predicated region
        $region83: #{fpn_backbone_radar.7} parent=81 // pred_check
          %p2151 = pneg %p106
        $region84: #{fpn_backbone_radar.7} parent=81 // pred_check_branch
          %2153 = sbr.rel (%p2151) target = $region86
        $region85: #{fpn_backbone_radar.7} parent=81 // pred_region
          %s2154 = sand.u32 %s91, 1
          %s2155 = sand.u32 %s91, 1
          %s2156 = smul.addr %s2155, 64
          %s2157 = scalar_lea.vmem [#allocation3], %s2156
        $region86: #{fpn_backbone_radar.7} parent=81 // pred_fallthru
          _
      $region82: #{fpn_backbone_radar.7} parent=5 // pred_fallthru
        _
    $region6: #{fpn_backbone_radar.7} parent=1 // loop_footer
      %s13 = sadd.s32 1, %s9
    $region7: #{fpn_backbone_radar.7} parent=1 // loop_footer_branch
      %8 = sbr.rel target = $region3
    $region8: #{fpn_backbone_radar.7} parent=1 // loop_exit
      _

// kernel: fpn_backbone_radar.8
$region0: #{fpn_backbone_radar.8}
  #allocation0 [shape = 'u32[]', space=smem, size = 0x4, offset = 0x4, fixed_abs, tag = 'smem constant byte address 0x4 - core index']
  #allocation1 [shape = 'u32[72,128]{1,0:T(1,128)}', space=vmem, size = 0x9000, scoped, tag = 'internal scratch']
  %s0 = inlined_call_operand.vmem [shape: bf16[144,4096], index: 0, kind: input, shape index: {}]
  %s1 = inlined_call_operand.vmem [shape: bf16[16,144], index: 1, kind: input, shape index: {}]
  %s2 = inlined_call_operand.vmem [shape: f32[16,1], index: 2, kind: input, shape index: {}]
  %s3 = inlined_call_operand.vmem [shape: bf16[16,4096], index: 3, kind: output, shape index: {}]
  %s4 = sld [smem:[#allocation0]]
  $region87: #{fpn_backbone_radar.8} parent=0
    _
  %s6 = ssub.s32 1, %s4
  %s7 = scalar_select 0, %s6, %s4
  $region1: #{fpn_backbone_radar.8} parent=0
    #allocation2 [shape = 'u8[589824]{0}', space=vmem, size = 0x90000, scoped, tag = 'input window, operand 0']
    #allocation3 [shape = 'u8[65536]{0}', space=vmem, size = 0x10000, scoped, tag = 'output window, operand 0']
    loop: start=0, step=1, limit=6
    $region2: #{fpn_backbone_radar.8} parent=1 // loop_pre_header
      _
    $region3: #{fpn_backbone_radar.8} parent=1 // loop_header
      %s9 = sphi 0, %s13
      %p10 = scmp.ge.s32.totalorder %s9, 6
      %s19 = sphi 0, %s21
      %s22 = sphi 0, %s19
      %s23 = sphi 0, %s22
      %s39 = sphi 0, %s23
      %s43 = sphi 0, %s43
      %s45 = sphi 0, %s43
      %s46 = sphi 0, %s45
      %s60 = sphi 0, %s46
      %s64 = sphi 0, %s64
      %s66 = sphi 0, %s64
      %s67 = sphi 0, %s66
      %s81 = sphi 0, %s67
      %s87 = sphi 0, %s89
      %s90 = sphi 0, %s87
      %s91 = sphi 0, %s90
      %s107 = sphi 0, %s91
    $region4: #{fpn_backbone_radar.8} parent=1 // loop_header_branch
      %12 = sbr.rel (%p10) target = $region8
    $region5: #{fpn_backbone_radar.8} parent=1 // loop_body
      %s14 = ssub.s32 %s9, 1
      %s15 = ssub.s32 %s9, 2
      %s16 = sadd.s32 %s9, 1
      %s17 = ssub.s32 %s9, %s16
      %p18 = scmp.eq.s32.totalorder %s17, 0
      %s20 = sadd.s32 %s19, 1
      %s21 = scalar_select %p18, %s19, %s20
      %p24 = pneg %p18
      %p25 = scmp.eq.s32.totalorder %s9, 3
      %p26 = por %p24, %p25
      %p27 = scmp.ne.s32.totalorder %s19, %s22
      %p28 = scmp.eq.s32.totalorder %s9, 0
      %p29 = por %p27, %p28
      %p30 = scmp.ne.s32.totalorder %s19, %s22
      %p31 = scmp.eq.s32.totalorder %s14, 3
      %p32 = por %p30, %p31
      %p33 = scmp.ne.s32.totalorder %s22, %s23
      %p34 = scmp.eq.s32.totalorder %s14, 0
      %p35 = por %p33, %p34
      %p36 = scmp.ne.s32.totalorder %s22, %s23
      %p37 = scmp.eq.s32.totalorder %s15, 3
      %p38 = por %p36, %p37
      %p40 = scmp.ne.s32.totalorder %s23, %s39
      %p41 = scmp.eq.s32.totalorder %s15, 0
      %p42 = por %p40, %p41
      %s44 = sadd.s32 %s43, 1
      %p47 = scmp.eq.s32.totalorder %s9, 3
      %p48 = scmp.ne.s32.totalorder %s43, %s45
      %p49 = scmp.eq.s32.totalorder %s9, 0
      %p50 = por %p48, %p49
      %p51 = scmp.ne.s32.totalorder %s43, %s45
      %p52 = scmp.eq.s32.totalorder %s14, 3
      %p53 = por %p51, %p52
      %p54 = scmp.ne.s32.totalorder %s45, %s46
      %p55 = scmp.eq.s32.totalorder %s14, 0
      %p56 = por %p54, %p55
      %p57 = scmp.ne.s32.totalorder %s45, %s46
      %p58 = scmp.eq.s32.totalorder %s15, 3
      %p59 = por %p57, %p58
      %p61 = scmp.ne.s32.totalorder %s46, %s60
      %p62 = scmp.eq.s32.totalorder %s15, 0
      %p63 = por %p61, %p62
      %s65 = sadd.s32 %s64, 1
      %p68 = scmp.eq.s32.totalorder %s9, 3
      %p69 = scmp.ne.s32.totalorder %s64, %s66
      %p70 = scmp.eq.s32.totalorder %s9, 0
      %p71 = por %p69, %p70
      %p72 = scmp.ne.s32.totalorder %s64, %s66
      %p73 = scmp.eq.s32.totalorder %s14, 3
      %p74 = por %p72, %p73
      %p75 = scmp.ne.s32.totalorder %s66, %s67
      %p76 = scmp.eq.s32.totalorder %s14, 0
      %p77 = por %p75, %p76
      %p78 = scmp.ne.s32.totalorder %s66, %s67
      %p79 = scmp.eq.s32.totalorder %s15, 3
      %p80 = por %p78, %p79
      %p82 = scmp.ne.s32.totalorder %s67, %s81
      %p83 = scmp.eq.s32.totalorder %s15, 0
      %p84 = por %p82, %p83
      %s85 = ssub.s32 %s9, %s16
      %p86 = scmp.eq.s32.totalorder %s85, 0
      %s88 = sadd.s32 %s87, 1
      %s89 = scalar_select %p86, %s87, %s88
      %p92 = pneg %p86
      %p93 = scmp.eq.s32.totalorder %s9, 3
      %p94 = por %p92, %p93
      %p95 = scmp.ne.s32.totalorder %s87, %s90
      %p96 = scmp.eq.s32.totalorder %s9, 0
      %p97 = por %p95, %p96
      %p98 = scmp.ne.s32.totalorder %s87, %s90
      %p99 = scmp.eq.s32.totalorder %s14, 3
      %p100 = por %p98, %p99
      %p101 = scmp.ne.s32.totalorder %s90, %s91
      %p102 = scmp.eq.s32.totalorder %s14, 0
      %p103 = por %p101, %p102
      %p104 = scmp.ne.s32.totalorder %s90, %s91
      %p105 = scmp.eq.s32.totalorder %s15, 3
      %p106 = por %p104, %p105
      %p108 = scmp.ne.s32.totalorder %s91, %s107
      %p109 = scmp.eq.s32.totalorder %s15, 0
      %p110 = por %p108, %p109
      %p111 = scmp.le.s32.totalorder 1, %s9
      %p112 = scmp.lt.s32.totalorder %s9, 5
      %p113 = pnand %p111, %p112
      %p114 = pneg %p113
      // Predicated region
      $region9: #{fpn_backbone_radar.8} parent=5 // pred_check
        _
      $region10: #{fpn_backbone_radar.8} parent=5 // pred_check_branch
        %116 = sbr.rel (%p113) target = $region12
      $region11: #{fpn_backbone_radar.8} parent=5 // pred_region
        %s117 = ssub.s32 %s9, 1
        // Predicated region
        $region13: #{fpn_backbone_radar.8} parent=11 // pred_check
          %p118 = pneg %p56
        $region14: #{fpn_backbone_radar.8} parent=11 // pred_check_branch
          %120 = sbr.rel (%p118) target = $region16
        $region15: #{fpn_backbone_radar.8} parent=11 // pred_region
          _
        $region16: #{fpn_backbone_radar.8} parent=11 // pred_fallthru
          _
        // Predicated region
        $region17: #{fpn_backbone_radar.8} parent=11 // pred_check
          %p121 = pneg %p77
        $region18: #{fpn_backbone_radar.8} parent=11 // pred_check_branch
          %123 = sbr.rel (%p121) target = $region20
        $region19: #{fpn_backbone_radar.8} parent=11 // pred_region
          _
        $region20: #{fpn_backbone_radar.8} parent=11 // pred_fallthru
          _
      $region12: #{fpn_backbone_radar.8} parent=5 // pred_fallthru
        _
      %p124 = scmp.lt.s32.totalorder %s9, 4
      // Predicated region
      $region21: #{fpn_backbone_radar.8} parent=5 // pred_check
        %p125 = pneg %p124
      $region22: #{fpn_backbone_radar.8} parent=5 // pred_check_branch
        %127 = sbr.rel (%p125) target = $region24
      $region23: #{fpn_backbone_radar.8} parent=5 // pred_region
        // Predicated region
        $region25: #{fpn_backbone_radar.8} parent=23 // pred_check
          %p128 = pneg %p29
        $region26: #{fpn_backbone_radar.8} parent=23 // pred_check_branch
          %130 = sbr.rel (%p128) target = $region28
        $region27: #{fpn_backbone_radar.8} parent=23 // pred_region
          %s131 = sand.u32 %s19, 1
          %s132 = sand.u32 %s19, 1
          %s133 = smul.addr %s132, 576
          %s134 = scalar_lea.vmem [#allocation2], %s133
          %s135 = smul.u32 8, %s9
          %s136 = smul.addr %s135, 4
          %s137 = scalar_lea.vmem %s0, %s136
          // Predicated region
          $region29: #{fpn_backbone_radar.8} parent=27 // pred_check
            _
          $region30: #{fpn_backbone_radar.8} parent=27 // pred_check_branch
            %139 = sbr.rel (0) target = $region32
          $region31: #{fpn_backbone_radar.8} parent=27 // pred_region
            // Predicated region
            $region33: #{fpn_backbone_radar.8} parent=31 // pred_check
              _
            $region34: #{fpn_backbone_radar.8} parent=31 // pred_check_branch
              %141 = sbr.rel (0) target = $region36
            $region35: #{fpn_backbone_radar.8} parent=31 // pred_region
              loop: start=0, step=1, limit=1
              $region37: #{fpn_backbone_radar.8} parent=35 // loop_pre_header
                _
              $region38: #{fpn_backbone_radar.8} parent=35 // loop_header
                %s143 = sphi 0, %s147
                %p144 = scmp.ge.s32.totalorder %s143, 1
                %s148 = sphi %s137, %s137
                %s149 = sphi %s134, %s134
              $region39: #{fpn_backbone_radar.8} parent=35 // loop_header_branch
                %146 = sbr.rel (%p144) target = $region43
              $region40: #{fpn_backbone_radar.8} parent=35 // loop_body
                %v150 = vld [vmem:[%s148] sm:$0xff]
                %151 = vst [vmem:[%s149] sm:$0xff] %v150
                %v152 = vld [vmem:[%s148 + $0x8] sm:$0xff]
                %153 = vst [vmem:[%s149 + $0x8] sm:$0xff] %v152
                %v154 = vld [vmem:[%s148 + $0x10] sm:$0xff]
                %155 = vst [vmem:[%s149 + $0x10] sm:$0xff] %v154
                %v156 = vld [vmem:[%s148 + $0x18] sm:$0xff]
                %157 = vst [vmem:[%s149 + $0x18] sm:$0xff] %v156
                %v158 = vld [vmem:[%s148 + $0x80] sm:$0xff]
                %159 = vst [vmem:[%s149 + $0x20] sm:$0xff] %v158
                %v160 = vld [vmem:[%s148 + $0x88] sm:$0xff]
                %161 = vst [vmem:[%s149 + $0x28] sm:$0xff] %v160
                %v162 = vld [vmem:[%s148 + $0x90] sm:$0xff]
                %163 = vst [vmem:[%s149 + $0x30] sm:$0xff] %v162
                %v164 = vld [vmem:[%s148 + $0x98] sm:$0xff]
                %165 = vst [vmem:[%s149 + $0x38] sm:$0xff] %v164
                %v166 = vld [vmem:[%s148 + $0x100] sm:$0xff]
                %167 = vst [vmem:[%s149 + $0x40] sm:$0xff] %v166
                %v168 = vld [vmem:[%s148 + $0x108] sm:$0xff]
                %169 = vst [vmem:[%s149 + $0x48] sm:$0xff] %v168
                %v170 = vld [vmem:[%s148 + $0x110] sm:$0xff]
                %171 = vst [vmem:[%s149 + $0x50] sm:$0xff] %v170
                %v172 = vld [vmem:[%s148 + $0x118] sm:$0xff]
                %173 = vst [vmem:[%s149 + $0x58] sm:$0xff] %v172
                %v174 = vld [vmem:[%s148 + $0x180] sm:$0xff]
                %175 = vst [vmem:[%s149 + $0x60] sm:$0xff] %v174
                %v176 = vld [vmem:[%s148 + $0x188] sm:$0xff]
                %177 = vst [vmem:[%s149 + $0x68] sm:$0xff] %v176
                %v178 = vld [vmem:[%s148 + $0x190] sm:$0xff]
                %179 = vst [vmem:[%s149 + $0x70] sm:$0xff] %v178
                %v180 = vld [vmem:[%s148 + $0x198] sm:$0xff]
                %181 = vst [vmem:[%s149 + $0x78] sm:$0xff] %v180
                %v182 = vld [vmem:[%s148 + $0x200] sm:$0xff]
                %183 = vst [vmem:[%s149 + $0x80] sm:$0xff] %v182
                %v184 = vld [vmem:[%s148 + $0x208] sm:$0xff]
                %185 = vst [vmem:[%s149 + $0x88] sm:$0xff] %v184
                %v186 = vld [vmem:[%s148 + $0x210] sm:$0xff]
                %187 = vst [vmem:[%s149 + $0x90] sm:$0xff] %v186
                %v188 = vld [vmem:[%s148 + $0x218] sm:$0xff]
                %189 = vst [vmem:[%s149 + $0x98] sm:$0xff] %v188
                %v190 = vld [vmem:[%s148 + $0x280] sm:$0xff]
                %191 = vst [vmem:[%s149 + $0xa0] sm:$0xff] %v190
                %v192 = vld [vmem:[%s148 + $0x288] sm:$0xff]
                %193 = vst [vmem:[%s149 + $0xa8] sm:$0xff] %v192
                %v194 = vld [vmem:[%s148 + $0x290] sm:$0xff]
                %195 = vst [vmem:[%s149 + $0xb0] sm:$0xff] %v194
                %v196 = vld [vmem:[%s148 + $0x298] sm:$0xff]
                %197 = vst [vmem:[%s149 + $0xb8] sm:$0xff] %v196
                %v198 = vld [vmem:[%s148 + $0x300] sm:$0xff]
                %199 = vst [vmem:[%s149 + $0xc0] sm:$0xff] %v198
                %v200 = vld [vmem:[%s148 + $0x308] sm:$0xff]
                %201 = vst [vmem:[%s149 + $0xc8] sm:$0xff] %v200
                %v202 = vld [vmem:[%s148 + $0x310] sm:$0xff]
                %203 = vst [vmem:[%s149 + $0xd0] sm:$0xff] %v202
                %v204 = vld [vmem:[%s148 + $0x318] sm:$0xff]
                %205 = vst [vmem:[%s149 + $0xd8] sm:$0xff] %v204
                %v206 = vld [vmem:[%s148 + $0x380] sm:$0xff]
                %207 = vst [vmem:[%s149 + $0xe0] sm:$0xff] %v206
                %v208 = vld [vmem:[%s148 + $0x388] sm:$0xff]
                %209 = vst [vmem:[%s149 + $0xe8] sm:$0xff] %v208
                %v210 = vld [vmem:[%s148 + $0x390] sm:$0xff]
                %211 = vst [vmem:[%s149 + $0xf0] sm:$0xff] %v210
                %v212 = vld [vmem:[%s148 + $0x398] sm:$0xff]
                %213 = vst [vmem:[%s149 + $0xf8] sm:$0xff] %v212
                %v214 = vld [vmem:[%s148 + $0x400] sm:$0xff]
                %215 = vst [vmem:[%s149 + $0x100] sm:$0xff] %v214
                %v216 = vld [vmem:[%s148 + $0x408] sm:$0xff]
                %217 = vst [vmem:[%s149 + $0x108] sm:$0xff] %v216
                %v218 = vld [vmem:[%s148 + $0x410] sm:$0xff]
                %219 = vst [vmem:[%s149 + $0x110] sm:$0xff] %v218
                %v220 = vld [vmem:[%s148 + $0x418] sm:$0xff]
                %221 = vst [vmem:[%s149 + $0x118] sm:$0xff] %v220
                %v222 = vld [vmem:[%s148 + $0x480] sm:$0xff]
                %223 = vst [vmem:[%s149 + $0x120] sm:$0xff] %v222
                %v224 = vld [vmem:[%s148 + $0x488] sm:$0xff]
                %225 = vst [vmem:[%s149 + $0x128] sm:$0xff] %v224
                %v226 = vld [vmem:[%s148 + $0x490] sm:$0xff]
                %227 = vst [vmem:[%s149 + $0x130] sm:$0xff] %v226
                %v228 = vld [vmem:[%s148 + $0x498] sm:$0xff]
                %229 = vst [vmem:[%s149 + $0x138] sm:$0xff] %v228
                %v230 = vld [vmem:[%s148 + $0x500] sm:$0xff]
                %231 = vst [vmem:[%s149 + $0x140] sm:$0xff] %v230
                %v232 = vld [vmem:[%s148 + $0x508] sm:$0xff]
                %233 = vst [vmem:[%s149 + $0x148] sm:$0xff] %v232
                %v234 = vld [vmem:[%s148 + $0x510] sm:$0xff]
                %235 = vst [vmem:[%s149 + $0x150] sm:$0xff] %v234
                %v236 = vld [vmem:[%s148 + $0x518] sm:$0xff]
                %237 = vst [vmem:[%s149 + $0x158] sm:$0xff] %v236
                %v238 = vld [vmem:[%s148 + $0x580] sm:$0xff]
                %239 = vst [vmem:[%s149 + $0x160] sm:$0xff] %v238
                %v240 = vld [vmem:[%s148 + $0x588] sm:$0xff]
                %241 = vst [vmem:[%s149 + $0x168] sm:$0xff] %v240
                %v242 = vld [vmem:[%s148 + $0x590] sm:$0xff]
                %243 = vst [vmem:[%s149 + $0x170] sm:$0xff] %v242
                %v244 = vld [vmem:[%s148 + $0x598] sm:$0xff]
                %245 = vst [vmem:[%s149 + $0x178] sm:$0xff] %v244
                %v246 = vld [vmem:[%s148 + $0x600] sm:$0xff]
                %247 = vst [vmem:[%s149 + $0x180] sm:$0xff] %v246
                %v248 = vld [vmem:[%s148 + $0x608] sm:$0xff]
                %249 = vst [vmem:[%s149 + $0x188] sm:$0xff] %v248
                %v250 = vld [vmem:[%s148 + $0x610] sm:$0xff]
                %251 = vst [vmem:[%s149 + $0x190] sm:$0xff] %v250
                %v252 = vld [vmem:[%s148 + $0x618] sm:$0xff]
                %253 = vst [vmem:[%s149 + $0x198] sm:$0xff] %v252
                %v254 = vld [vmem:[%s148 + $0x680] sm:$0xff]
                %255 = vst [vmem:[%s149 + $0x1a0] sm:$0xff] %v254
                %v256 = vld [vmem:[%s148 + $0x688] sm:$0xff]
                %257 = vst [vmem:[%s149 + $0x1a8] sm:$0xff] %v256
                %v258 = vld [vmem:[%s148 + $0x690] sm:$0xff]
                %259 = vst [vmem:[%s149 + $0x1b0] sm:$0xff] %v258
                %v260 = vld [vmem:[%s148 + $0x698] sm:$0xff]
                %261 = vst [vmem:[%s149 + $0x1b8] sm:$0xff] %v260
                %v262 = vld [vmem:[%s148 + $0x700] sm:$0xff]
                %263 = vst [vmem:[%s149 + $0x1c0] sm:$0xff] %v262
                %v264 = vld [vmem:[%s148 + $0x708] sm:$0xff]
                %265 = vst [vmem:[%s149 + $0x1c8] sm:$0xff] %v264
                %v266 = vld [vmem:[%s148 + $0x710] sm:$0xff]
                %267 = vst [vmem:[%s149 + $0x1d0] sm:$0xff] %v266
                %v268 = vld [vmem:[%s148 + $0x718] sm:$0xff]
                %269 = vst [vmem:[%s149 + $0x1d8] sm:$0xff] %v268
                %v270 = vld [vmem:[%s148 + $0x780] sm:$0xff]
                %271 = vst [vmem:[%s149 + $0x1e0] sm:$0xff] %v270
                %v272 = vld [vmem:[%s148 + $0x788] sm:$0xff]
                %273 = vst [vmem:[%s149 + $0x1e8] sm:$0xff] %v272
                %v274 = vld [vmem:[%s148 + $0x790] sm:$0xff]
                %275 = vst [vmem:[%s149 + $0x1f0] sm:$0xff] %v274
                %v276 = vld [vmem:[%s148 + $0x798] sm:$0xff]
                %277 = vst [vmem:[%s149 + $0x1f8] sm:$0xff] %v276
                %v278 = vld [vmem:[%s148 + $0x800] sm:$0xff]
                %279 = vst [vmem:[%s149 + $0x200] sm:$0xff] %v278
                %v280 = vld [vmem:[%s148 + $0x808] sm:$0xff]
                %281 = vst [vmem:[%s149 + $0x208] sm:$0xff] %v280
                %v282 = vld [vmem:[%s148 + $0x810] sm:$0xff]
                %283 = vst [vmem:[%s149 + $0x210] sm:$0xff] %v282
                %v284 = vld [vmem:[%s148 + $0x818] sm:$0xff]
                %285 = vst [vmem:[%s149 + $0x218] sm:$0xff] %v284
                %v286 = vld [vmem:[%s148 + $0x880] sm:$0xff]
                %287 = vst [vmem:[%s149 + $0x220] sm:$0xff] %v286
                %v288 = vld [vmem:[%s148 + $0x888] sm:$0xff]
                %289 = vst [vmem:[%s149 + $0x228] sm:$0xff] %v288
                %v290 = vld [vmem:[%s148 + $0x890] sm:$0xff]
                %291 = vst [vmem:[%s149 + $0x230] sm:$0xff] %v290
                %v292 = vld [vmem:[%s148 + $0x898] sm:$0xff]
                %293 = vst [vmem:[%s149 + $0x238] sm:$0xff] %v292
              $region41: #{fpn_backbone_radar.8} parent=35 // loop_footer
                %s147 = sadd.s32 1, %s143
              $region42: #{fpn_backbone_radar.8} parent=35 // loop_footer_branch
                %142 = sbr.rel target = $region38
              $region43: #{fpn_backbone_radar.8} parent=35 // loop_exit
                _
            $region36: #{fpn_backbone_radar.8} parent=31 // pred_fallthru
              _
            // Predicated region
            $region44: #{fpn_backbone_radar.8} parent=31 // pred_check
              _
            $region45: #{fpn_backbone_radar.8} parent=31 // pred_check_branch
              %295 = sbr.rel target = $region47
            $region46: #{fpn_backbone_radar.8} parent=31 // pred_region
              _
            $region47: #{fpn_backbone_radar.8} parent=31 // pred_fallthru
              _
          $region32: #{fpn_backbone_radar.8} parent=27 // pred_fallthru
            _
          %296 = vnop
        $region28: #{fpn_backbone_radar.8} parent=23 // pred_fallthru
          _
      $region24: #{fpn_backbone_radar.8} parent=5 // pred_fallthru
        _
      %p297 = scmp.le.s32.totalorder 1, %s9
      %p298 = scmp.lt.s32.totalorder %s9, 5
      %p299 = pnand %p297, %p298
      %p300 = pneg %p299
      // Predicated region
      $region48: #{fpn_backbone_radar.8} parent=5 // pred_check
        _
      $region49: #{fpn_backbone_radar.8} parent=5 // pred_check_branch
        %302 = sbr.rel (%p299) target = $region51
      $region50: #{fpn_backbone_radar.8} parent=5 // pred_region
        %s303 = ssub.s32 %s9, 1
        %s304 = sand.u32 %s22, 1
        %s305 = sand.u32 %s22, 1
        %s306 = smul.addr %s305, 576
        %s307 = scalar_lea.vmem [#allocation2], %s306
        // Predicated region
        $region52: #{fpn_backbone_radar.8} parent=50 // pred_check
          %p308 = pneg %p35
        $region53: #{fpn_backbone_radar.8} parent=50 // pred_check_branch
          %310 = sbr.rel (%p308) target = $region55
        $region54: #{fpn_backbone_radar.8} parent=50 // pred_region
          _
        $region55: #{fpn_backbone_radar.8} parent=50 // pred_fallthru
          _
        %s311 = sand.u32 %s22, 1
        %s312 = sand.u32 %s22, 1
        %s313 = smul.addr %s312, 576
        %s314 = scalar_lea.vmem [#allocation2], %s313
        %p315 = pneg %p35
        %p316 = pneg %p32
        %p317 = pneg %p56
        %p318 = pneg %p53
        %p319 = pneg %p77
        %p320 = pneg %p74
        %p321 = pneg %p103
        %p322 = pneg %p100
        %s323 = sand.u32 %s90, 1
        %s324 = sand.u32 %s90, 1
        %s325 = smul.addr %s324, 64
        %s326 = scalar_lea.vmem [#allocation3], %s325
        %s327 = smul.u32 8, %s14
        %s328 = smul.u32 8, %s14
        %v330 = vld [vmem:[%s1] sm:$0xff]
        %v331 = vld [vmem:[%s1 + $0x8] sm:$0xff]
        %v332 = vld [vmem:[%s307] sm:$0xff]
        %v333 = vld [vmem:[%s307 + $0x8] sm:$0xff]
        %v334 = vld [vmem:[%s307 + $0x10] sm:$0xff]
        %v335 = vld [vmem:[%s307 + $0x18] sm:$0xff]
        %v336 = vld [vmem:[%s307 + $0x20] sm:$0xff]
        %v337 = vld [vmem:[%s307 + $0x28] sm:$0xff]
        %v338 = vld [vmem:[%s307 + $0x30] sm:$0xff]
        %v339 = vld [vmem:[%s307 + $0x38] sm:$0xff]
        %v340 = vld [vmem:[%s307 + $0x40] sm:$0xff]
        %v341 = vld [vmem:[%s307 + $0x48] sm:$0xff]
        %v342 = vld [vmem:[%s307 + $0x50] sm:$0xff]
        %v343 = vld [vmem:[%s307 + $0x58] sm:$0xff]
        %v344 = vld [vmem:[%s307 + $0x60] sm:$0xff]
        %v345 = vld [vmem:[%s307 + $0x68] sm:$0xff]
        %v346 = vld [vmem:[%s307 + $0x70] sm:$0xff]
        %v347 = vld [vmem:[%s307 + $0x78] sm:$0xff]
        %v348 = vld [vmem:[%s307 + $0x80] sm:$0xff]
        %v349 = vld [vmem:[%s307 + $0x88] sm:$0xff]
        %v350 = vld [vmem:[%s307 + $0x90] sm:$0xff]
        %v351 = vld [vmem:[%s307 + $0x98] sm:$0xff]
        %v352 = vld [vmem:[%s307 + $0xa0] sm:$0xff]
        %v353 = vld [vmem:[%s307 + $0xa8] sm:$0xff]
        %v354 = vld [vmem:[%s307 + $0xb0] sm:$0xff]
        %v355 = vld [vmem:[%s307 + $0xb8] sm:$0xff]
        %v356 = vld [vmem:[%s307 + $0xc0] sm:$0xff]
        %v357 = vld [vmem:[%s307 + $0xc8] sm:$0xff]
        %v358 = vld [vmem:[%s307 + $0xd0] sm:$0xff]
        %v359 = vld [vmem:[%s307 + $0xd8] sm:$0xff]
        %v360 = vld [vmem:[%s307 + $0xe0] sm:$0xff]
        %v361 = vld [vmem:[%s307 + $0xe8] sm:$0xff]
        %v362 = vld [vmem:[%s307 + $0xf0] sm:$0xff]
        %v363 = vld [vmem:[%s307 + $0xf8] sm:$0xff]
        %v364 = vld [vmem:[%s307 + $0x100] sm:$0xff]
        %v365 = vld [vmem:[%s307 + $0x108] sm:$0xff]
        %v366 = vld [vmem:[%s307 + $0x110] sm:$0xff]
        %v367 = vld [vmem:[%s307 + $0x118] sm:$0xff]
        %v368 = vld [vmem:[%s307 + $0x120] sm:$0xff]
        %v369 = vld [vmem:[%s307 + $0x128] sm:$0xff]
        %v370 = vld [vmem:[%s307 + $0x130] sm:$0xff]
        %v371 = vld [vmem:[%s307 + $0x138] sm:$0xff]
        %v372 = vld [vmem:[%s307 + $0x140] sm:$0xff]
        %v373 = vld [vmem:[%s307 + $0x148] sm:$0xff]
        %v374 = vld [vmem:[%s307 + $0x150] sm:$0xff]
        %v375 = vld [vmem:[%s307 + $0x158] sm:$0xff]
        %v376 = vld [vmem:[%s307 + $0x160] sm:$0xff]
        %v377 = vld [vmem:[%s307 + $0x168] sm:$0xff]
        %v378 = vld [vmem:[%s307 + $0x170] sm:$0xff]
        %v379 = vld [vmem:[%s307 + $0x178] sm:$0xff]
        %v380 = vld [vmem:[%s307 + $0x180] sm:$0xff]
        %v381 = vld [vmem:[%s307 + $0x188] sm:$0xff]
        %v382 = vld [vmem:[%s307 + $0x190] sm:$0xff]
        %v383 = vld [vmem:[%s307 + $0x198] sm:$0xff]
        %v384 = vld [vmem:[%s307 + $0x1a0] sm:$0xff]
        %v385 = vld [vmem:[%s307 + $0x1a8] sm:$0xff]
        %v386 = vld [vmem:[%s307 + $0x1b0] sm:$0xff]
        %v387 = vld [vmem:[%s307 + $0x1b8] sm:$0xff]
        %v388 = vld [vmem:[%s307 + $0x1c0] sm:$0xff]
        %v389 = vld [vmem:[%s307 + $0x1c8] sm:$0xff]
        %v390 = vld [vmem:[%s307 + $0x1d0] sm:$0xff]
        %v391 = vld [vmem:[%s307 + $0x1d8] sm:$0xff]
        %v392 = vld [vmem:[%s307 + $0x1e0] sm:$0xff]
        %v393 = vld [vmem:[%s307 + $0x1e8] sm:$0xff]
        %v394 = vld [vmem:[%s307 + $0x1f0] sm:$0xff]
        %v395 = vld [vmem:[%s307 + $0x1f8] sm:$0xff]
        %v396 = vld [vmem:[%s307 + $0x200] sm:$0xff]
        %v397 = vld [vmem:[%s307 + $0x208] sm:$0xff]
        %v398 = vld [vmem:[%s307 + $0x210] sm:$0xff]
        %v399 = vld [vmem:[%s307 + $0x218] sm:$0xff]
        %v400 = vld [vmem:[%s307 + $0x220] sm:$0xff]
        %v401 = vld [vmem:[%s307 + $0x228] sm:$0xff]
        %v402 = vld [vmem:[%s307 + $0x230] sm:$0xff]
        %v403 = vld [vmem:[%s307 + $0x238] sm:$0xff]
        %v404 = vld [vmem:[%s2] sm:$0xff]
        %v405 = vld [vmem:[%s2 + $0x8] sm:$0xff]
        %407 = vset.pattern.permute.xlu0 0
        %408 = vperm.xlu0 %407, %v404
        %v409 = vpop.permute.xlu0 %408
        %412 = vset.pattern.permute.xlu0 0
        %413 = vperm.xlu0 %412, %v405
        %v414 = vpop.permute.xlu0 %413
        %v418 = vunpack.c.l.b16 %v330
        %v419 = vunpack.c.h.b16 %v330
        %v420 = vunpack.c.l.b16 %v331
        %v421 = vunpack.c.h.b16 %v331
        %v422 = vpack.c.b16 %v420, %v418
        %v423 = vpack.c.b16 %v421, %v419
        %v497 = vunpack.c.l.b16 %v332
        %v498 = vunpack.c.h.b16 %v332
        %v499 = vunpack.c.l.b16 %v333
        %v500 = vunpack.c.h.b16 %v333
        %v501 = vunpack.c.l.b16 %v334
        %v502 = vunpack.c.h.b16 %v334
        %v503 = vunpack.c.l.b16 %v335
        %v504 = vunpack.c.h.b16 %v335
        %v505 = vunpack.c.l.b16 %v336
        %v506 = vunpack.c.h.b16 %v336
        %v507 = vunpack.c.l.b16 %v337
        %v508 = vunpack.c.h.b16 %v337
        %v509 = vunpack.c.l.b16 %v338
        %v510 = vunpack.c.h.b16 %v338
        %v511 = vunpack.c.l.b16 %v339
        %v512 = vunpack.c.h.b16 %v339
        %v513 = vunpack.c.l.b16 %v340
        %v514 = vunpack.c.h.b16 %v340
        %v515 = vunpack.c.l.b16 %v341
        %v516 = vunpack.c.h.b16 %v341
        %v517 = vunpack.c.l.b16 %v342
        %v518 = vunpack.c.h.b16 %v342
        %v519 = vunpack.c.l.b16 %v343
        %v520 = vunpack.c.h.b16 %v343
        %v521 = vunpack.c.l.b16 %v344
        %v522 = vunpack.c.h.b16 %v344
        %v523 = vunpack.c.l.b16 %v345
        %v524 = vunpack.c.h.b16 %v345
        %v525 = vunpack.c.l.b16 %v346
        %v526 = vunpack.c.h.b16 %v346
        %v527 = vunpack.c.l.b16 %v347
        %v528 = vunpack.c.h.b16 %v347
        %v529 = vunpack.c.l.b16 %v348
        %v530 = vunpack.c.h.b16 %v348
        %v531 = vunpack.c.l.b16 %v349
        %v532 = vunpack.c.h.b16 %v349
        %v533 = vunpack.c.l.b16 %v350
        %v534 = vunpack.c.h.b16 %v350
        %v535 = vunpack.c.l.b16 %v351
        %v536 = vunpack.c.h.b16 %v351
        %v537 = vunpack.c.l.b16 %v352
        %v538 = vunpack.c.h.b16 %v352
        %v539 = vunpack.c.l.b16 %v353
        %v540 = vunpack.c.h.b16 %v353
        %v541 = vunpack.c.l.b16 %v354
        %v542 = vunpack.c.h.b16 %v354
        %v543 = vunpack.c.l.b16 %v355
        %v544 = vunpack.c.h.b16 %v355
        %v545 = vunpack.c.l.b16 %v356
        %v546 = vunpack.c.h.b16 %v356
        %v547 = vunpack.c.l.b16 %v357
        %v548 = vunpack.c.h.b16 %v357
        %v549 = vunpack.c.l.b16 %v358
        %v550 = vunpack.c.h.b16 %v358
        %v551 = vunpack.c.l.b16 %v359
        %v552 = vunpack.c.h.b16 %v359
        %v553 = vunpack.c.l.b16 %v360
        %v554 = vunpack.c.h.b16 %v360
        %v555 = vunpack.c.l.b16 %v361
        %v556 = vunpack.c.h.b16 %v361
        %v557 = vunpack.c.l.b16 %v362
        %v558 = vunpack.c.h.b16 %v362
        %v559 = vunpack.c.l.b16 %v363
        %v560 = vunpack.c.h.b16 %v363
        %v561 = vunpack.c.l.b16 %v364
        %v562 = vunpack.c.h.b16 %v364
        %v563 = vunpack.c.l.b16 %v365
        %v564 = vunpack.c.h.b16 %v365
        %v565 = vunpack.c.l.b16 %v366
        %v566 = vunpack.c.h.b16 %v366
        %v567 = vunpack.c.l.b16 %v367
        %v568 = vunpack.c.h.b16 %v367
        %v569 = vunpack.c.l.b16 %v368
        %v570 = vunpack.c.h.b16 %v368
        %v571 = vunpack.c.l.b16 %v369
        %v572 = vunpack.c.h.b16 %v369
        %v573 = vunpack.c.l.b16 %v370
        %v574 = vunpack.c.h.b16 %v370
        %v575 = vunpack.c.l.b16 %v371
        %v576 = vunpack.c.h.b16 %v371
        %v577 = vunpack.c.l.b16 %v372
        %v578 = vunpack.c.h.b16 %v372
        %v579 = vunpack.c.l.b16 %v373
        %v580 = vunpack.c.h.b16 %v373
        %v581 = vunpack.c.l.b16 %v374
        %v582 = vunpack.c.h.b16 %v374
        %v583 = vunpack.c.l.b16 %v375
        %v584 = vunpack.c.h.b16 %v375
        %v585 = vunpack.c.l.b16 %v376
        %v586 = vunpack.c.h.b16 %v376
        %v587 = vunpack.c.l.b16 %v377
        %v588 = vunpack.c.h.b16 %v377
        %v589 = vunpack.c.l.b16 %v378
        %v590 = vunpack.c.h.b16 %v378
        %v591 = vunpack.c.l.b16 %v379
        %v592 = vunpack.c.h.b16 %v379
        %v593 = vunpack.c.l.b16 %v380
        %v594 = vunpack.c.h.b16 %v380
        %v595 = vunpack.c.l.b16 %v381
        %v596 = vunpack.c.h.b16 %v381
        %v597 = vunpack.c.l.b16 %v382
        %v598 = vunpack.c.h.b16 %v382
        %v599 = vunpack.c.l.b16 %v383
        %v600 = vunpack.c.h.b16 %v383
        %v601 = vunpack.c.l.b16 %v384
        %v602 = vunpack.c.h.b16 %v384
        %v603 = vunpack.c.l.b16 %v385
        %v604 = vunpack.c.h.b16 %v385
        %v605 = vunpack.c.l.b16 %v386
        %v606 = vunpack.c.h.b16 %v386
        %v607 = vunpack.c.l.b16 %v387
        %v608 = vunpack.c.h.b16 %v387
        %v609 = vunpack.c.l.b16 %v388
        %v610 = vunpack.c.h.b16 %v388
        %v611 = vunpack.c.l.b16 %v389
        %v612 = vunpack.c.h.b16 %v389
        %v613 = vunpack.c.l.b16 %v390
        %v614 = vunpack.c.h.b16 %v390
        %v615 = vunpack.c.l.b16 %v391
        %v616 = vunpack.c.h.b16 %v391
        %v617 = vunpack.c.l.b16 %v392
        %v618 = vunpack.c.h.b16 %v392
        %v619 = vunpack.c.l.b16 %v393
        %v620 = vunpack.c.h.b16 %v393
        %v621 = vunpack.c.l.b16 %v394
        %v622 = vunpack.c.h.b16 %v394
        %v623 = vunpack.c.l.b16 %v395
        %v624 = vunpack.c.h.b16 %v395
        %v625 = vunpack.c.l.b16 %v396
        %v626 = vunpack.c.h.b16 %v396
        %v627 = vunpack.c.l.b16 %v397
        %v628 = vunpack.c.h.b16 %v397
        %v629 = vunpack.c.l.b16 %v398
        %v630 = vunpack.c.h.b16 %v398
        %v631 = vunpack.c.l.b16 %v399
        %v632 = vunpack.c.h.b16 %v399
        %v633 = vunpack.c.l.b16 %v400
        %v634 = vunpack.c.h.b16 %v400
        %v635 = vunpack.c.l.b16 %v401
        %v636 = vunpack.c.h.b16 %v401
        %v637 = vunpack.c.l.b16 %v402
        %v638 = vunpack.c.h.b16 %v402
        %v639 = vunpack.c.l.b16 %v403
        %v640 = vunpack.c.h.b16 %v403
        %v641 = vpack.c.b16 %v505, %v497
        %v642 = vpack.c.b16 %v506, %v498
        %v643 = vpack.c.b16 %v507, %v499
        %v644 = vpack.c.b16 %v508, %v500
        %v645 = vpack.c.b16 %v509, %v501
        %v646 = vpack.c.b16 %v510, %v502
        %v647 = vpack.c.b16 %v511, %v503
        %v648 = vpack.c.b16 %v512, %v504
        %v649 = vpack.c.b16 %v521, %v513
        %v650 = vpack.c.b16 %v522, %v514
        %v651 = vpack.c.b16 %v523, %v515
        %v652 = vpack.c.b16 %v524, %v516
        %v653 = vpack.c.b16 %v525, %v517
        %v654 = vpack.c.b16 %v526, %v518
        %v655 = vpack.c.b16 %v527, %v519
        %v656 = vpack.c.b16 %v528, %v520
        %v657 = vpack.c.b16 %v537, %v529
        %v658 = vpack.c.b16 %v538, %v530
        %v659 = vpack.c.b16 %v539, %v531
        %v660 = vpack.c.b16 %v540, %v532
        %v661 = vpack.c.b16 %v541, %v533
        %v662 = vpack.c.b16 %v542, %v534
        %v663 = vpack.c.b16 %v543, %v535
        %v664 = vpack.c.b16 %v544, %v536
        %v665 = vpack.c.b16 %v553, %v545
        %v666 = vpack.c.b16 %v554, %v546
        %v667 = vpack.c.b16 %v555, %v547
        %v668 = vpack.c.b16 %v556, %v548
        %v669 = vpack.c.b16 %v557, %v549
        %v670 = vpack.c.b16 %v558, %v550
        %v671 = vpack.c.b16 %v559, %v551
        %v672 = vpack.c.b16 %v560, %v552
        %v673 = vpack.c.b16 %v569, %v561
        %v674 = vpack.c.b16 %v570, %v562
        %v675 = vpack.c.b16 %v571, %v563
        %v676 = vpack.c.b16 %v572, %v564
        %v677 = vpack.c.b16 %v573, %v565
        %v678 = vpack.c.b16 %v574, %v566
        %v679 = vpack.c.b16 %v575, %v567
        %v680 = vpack.c.b16 %v576, %v568
        %v681 = vpack.c.b16 %v585, %v577
        %v682 = vpack.c.b16 %v586, %v578
        %v683 = vpack.c.b16 %v587, %v579
        %v684 = vpack.c.b16 %v588, %v580
        %v685 = vpack.c.b16 %v589, %v581
        %v686 = vpack.c.b16 %v590, %v582
        %v687 = vpack.c.b16 %v591, %v583
        %v688 = vpack.c.b16 %v592, %v584
        %v689 = vpack.c.b16 %v601, %v593
        %v690 = vpack.c.b16 %v602, %v594
        %v691 = vpack.c.b16 %v603, %v595
        %v692 = vpack.c.b16 %v604, %v596
        %v693 = vpack.c.b16 %v605, %v597
        %v694 = vpack.c.b16 %v606, %v598
        %v695 = vpack.c.b16 %v607, %v599
        %v696 = vpack.c.b16 %v608, %v600
        %v697 = vpack.c.b16 %v617, %v609
        %v698 = vpack.c.b16 %v618, %v610
        %v699 = vpack.c.b16 %v619, %v611
        %v700 = vpack.c.b16 %v620, %v612
        %v701 = vpack.c.b16 %v621, %v613
        %v702 = vpack.c.b16 %v622, %v614
        %v703 = vpack.c.b16 %v623, %v615
        %v704 = vpack.c.b16 %v624, %v616
        %v705 = vpack.c.b16 %v633, %v625
        %v706 = vpack.c.b16 %v634, %v626
        %v707 = vpack.c.b16 %v635, %v627
        %v708 = vpack.c.b16 %v636, %v628
        %v709 = vpack.c.b16 %v637, %v629
        %v710 = vpack.c.b16 %v638, %v630
        %v711 = vpack.c.b16 %v639, %v631
        %v712 = vpack.c.b16 %v640, %v632
        %vm785 = vcmask 130048
        %v787 = vsel %vm785, %v423, 0
        %789 = vmatpush.bf16.msra.mxu0 %v697
        %790 = vmatpush.bf16.msra.mxu0 %v689
        %791 = vmatpush.bf16.msra.mxu0 %v681
        %792 = vmatpush.bf16.msra.mxu0 %v673
        %793 = vmatpush.bf16.msra.mxu0 %v665
        %794 = vmatpush.bf16.msra.mxu0 %v657
        %795 = vmatpush.bf16.msra.mxu0 %v649
        %796 = vmatpush.bf16.msra.mxu0 %v641
        %797 = vmatmul.bf16.gmra.mxu0 %v422
        %v798 = vpop.f32.mrf.mxu0
        %v799 = vadd.f32 %v409, %v798
        %v800 = vpop.f32.mrf.mxu0
        %v801 = vadd.f32 %v414, %v800
        %802 = vdwg.mxu0
        %803 = vmatpush.bf16.msra.mxu0 0
        %804 = vmatpush.bf16.msra.mxu0 0
        %805 = vmatpush.bf16.msra.mxu0 0
        %806 = vmatpush.bf16.msra.mxu0 0
        %807 = vmatpush.bf16.msra.mxu0 0
        %808 = vmatpush.bf16.msra.mxu0 0
        %809 = vmatpush.bf16.msra.mxu0 0
        %810 = vmatpush.bf16.msra.mxu0 %v705
        %811 = vmatmul.bf16.gmra.mxu0 %v787
        %v812 = vpop.f32.mrf.mxu0
        %v813 = vadd.f32 %v799, %v812
        %v814 = vpop.f32.mrf.mxu0
        %v815 = vadd.f32 %v801, %v814
        %816 = vdwg.mxu0
        %817 = vmatpush.bf16.msra.mxu0 %v698
        %818 = vmatpush.bf16.msra.mxu0 %v690
        %819 = vmatpush.bf16.msra.mxu0 %v682
        %820 = vmatpush.bf16.msra.mxu0 %v674
        %821 = vmatpush.bf16.msra.mxu0 %v666
        %822 = vmatpush.bf16.msra.mxu0 %v658
        %823 = vmatpush.bf16.msra.mxu0 %v650
        %824 = vmatpush.bf16.msra.mxu0 %v642
        %825 = vmatmul.bf16.gmra.mxu0 %v422
        %v826 = vpop.f32.mrf.mxu0
        %v827 = vadd.f32 %v409, %v826
        %v828 = vpop.f32.mrf.mxu0
        %v829 = vadd.f32 %v414, %v828
        %830 = vdwg.mxu0
        %831 = vmatpush.bf16.msra.mxu0 0
        %832 = vmatpush.bf16.msra.mxu0 0
        %833 = vmatpush.bf16.msra.mxu0 0
        %834 = vmatpush.bf16.msra.mxu0 0
        %835 = vmatpush.bf16.msra.mxu0 0
        %836 = vmatpush.bf16.msra.mxu0 0
        %837 = vmatpush.bf16.msra.mxu0 0
        %838 = vmatpush.bf16.msra.mxu0 %v706
        %839 = vmatmul.bf16.gmra.mxu0 %v787
        %v840 = vpop.f32.mrf.mxu0
        %v841 = vadd.f32 %v827, %v840
        %v842 = vpop.f32.mrf.mxu0
        %v843 = vadd.f32 %v829, %v842
        %844 = vdwg.mxu0
        %845 = vmatpush.bf16.msra.mxu0 %v699
        %846 = vmatpush.bf16.msra.mxu0 %v691
        %847 = vmatpush.bf16.msra.mxu0 %v683
        %848 = vmatpush.bf16.msra.mxu0 %v675
        %849 = vmatpush.bf16.msra.mxu0 %v667
        %850 = vmatpush.bf16.msra.mxu0 %v659
        %851 = vmatpush.bf16.msra.mxu0 %v651
        %852 = vmatpush.bf16.msra.mxu0 %v643
        %853 = vmatmul.bf16.gmra.mxu0 %v422
        %v854 = vpop.f32.mrf.mxu0
        %v855 = vadd.f32 %v409, %v854
        %v856 = vpop.f32.mrf.mxu0
        %v857 = vadd.f32 %v414, %v856
        %858 = vdwg.mxu0
        %859 = vmatpush.bf16.msra.mxu0 0
        %860 = vmatpush.bf16.msra.mxu0 0
        %861 = vmatpush.bf16.msra.mxu0 0
        %862 = vmatpush.bf16.msra.mxu0 0
        %863 = vmatpush.bf16.msra.mxu0 0
        %864 = vmatpush.bf16.msra.mxu0 0
        %865 = vmatpush.bf16.msra.mxu0 0
        %866 = vmatpush.bf16.msra.mxu0 %v707
        %867 = vmatmul.bf16.gmra.mxu0 %v787
        %v868 = vpop.f32.mrf.mxu0
        %v869 = vadd.f32 %v855, %v868
        %v870 = vpop.f32.mrf.mxu0
        %v871 = vadd.f32 %v857, %v870
        %872 = vdwg.mxu0
        %873 = vmatpush.bf16.msra.mxu0 %v700
        %874 = vmatpush.bf16.msra.mxu0 %v692
        %875 = vmatpush.bf16.msra.mxu0 %v684
        %876 = vmatpush.bf16.msra.mxu0 %v676
        %877 = vmatpush.bf16.msra.mxu0 %v668
        %878 = vmatpush.bf16.msra.mxu0 %v660
        %879 = vmatpush.bf16.msra.mxu0 %v652
        %880 = vmatpush.bf16.msra.mxu0 %v644
        %881 = vmatmul.bf16.gmra.mxu0 %v422
        %v882 = vpop.f32.mrf.mxu0
        %v883 = vadd.f32 %v409, %v882
        %v884 = vpop.f32.mrf.mxu0
        %v885 = vadd.f32 %v414, %v884
        %886 = vdwg.mxu0
        %887 = vmatpush.bf16.msra.mxu0 0
        %888 = vmatpush.bf16.msra.mxu0 0
        %889 = vmatpush.bf16.msra.mxu0 0
        %890 = vmatpush.bf16.msra.mxu0 0
        %891 = vmatpush.bf16.msra.mxu0 0
        %892 = vmatpush.bf16.msra.mxu0 0
        %893 = vmatpush.bf16.msra.mxu0 0
        %894 = vmatpush.bf16.msra.mxu0 %v708
        %895 = vmatmul.bf16.gmra.mxu0 %v787
        %v896 = vpop.f32.mrf.mxu0
        %v897 = vadd.f32 %v883, %v896
        %v898 = vpop.f32.mrf.mxu0
        %v899 = vadd.f32 %v885, %v898
        %900 = vdwg.mxu0
        %901 = vmatpush.bf16.msra.mxu0 %v701
        %902 = vmatpush.bf16.msra.mxu0 %v693
        %903 = vmatpush.bf16.msra.mxu0 %v685
        %904 = vmatpush.bf16.msra.mxu0 %v677
        %905 = vmatpush.bf16.msra.mxu0 %v669
        %906 = vmatpush.bf16.msra.mxu0 %v661
        %907 = vmatpush.bf16.msra.mxu0 %v653
        %908 = vmatpush.bf16.msra.mxu0 %v645
        %909 = vmatmul.bf16.gmra.mxu0 %v422
        %v910 = vpop.f32.mrf.mxu0
        %v911 = vadd.f32 %v409, %v910
        %v912 = vpop.f32.mrf.mxu0
        %v913 = vadd.f32 %v414, %v912
        %914 = vdwg.mxu0
        %915 = vmatpush.bf16.msra.mxu0 0
        %916 = vmatpush.bf16.msra.mxu0 0
        %917 = vmatpush.bf16.msra.mxu0 0
        %918 = vmatpush.bf16.msra.mxu0 0
        %919 = vmatpush.bf16.msra.mxu0 0
        %920 = vmatpush.bf16.msra.mxu0 0
        %921 = vmatpush.bf16.msra.mxu0 0
        %922 = vmatpush.bf16.msra.mxu0 %v709
        %923 = vmatmul.bf16.gmra.mxu0 %v787
        %v924 = vpop.f32.mrf.mxu0
        %v925 = vadd.f32 %v911, %v924
        %v926 = vpop.f32.mrf.mxu0
        %v927 = vadd.f32 %v913, %v926
        %928 = vdwg.mxu0
        %929 = vmatpush.bf16.msra.mxu0 %v702
        %930 = vmatpush.bf16.msra.mxu0 %v694
        %931 = vmatpush.bf16.msra.mxu0 %v686
        %932 = vmatpush.bf16.msra.mxu0 %v678
        %933 = vmatpush.bf16.msra.mxu0 %v670
        %934 = vmatpush.bf16.msra.mxu0 %v662
        %935 = vmatpush.bf16.msra.mxu0 %v654
        %936 = vmatpush.bf16.msra.mxu0 %v646
        %937 = vmatmul.bf16.gmra.mxu0 %v422
        %v938 = vpop.f32.mrf.mxu0
        %v939 = vadd.f32 %v409, %v938
        %v940 = vpop.f32.mrf.mxu0
        %v941 = vadd.f32 %v414, %v940
        %942 = vdwg.mxu0
        %943 = vmatpush.bf16.msra.mxu0 0
        %944 = vmatpush.bf16.msra.mxu0 0
        %945 = vmatpush.bf16.msra.mxu0 0
        %946 = vmatpush.bf16.msra.mxu0 0
        %947 = vmatpush.bf16.msra.mxu0 0
        %948 = vmatpush.bf16.msra.mxu0 0
        %949 = vmatpush.bf16.msra.mxu0 0
        %950 = vmatpush.bf16.msra.mxu0 %v710
        %951 = vmatmul.bf16.gmra.mxu0 %v787
        %v952 = vpop.f32.mrf.mxu0
        %v953 = vadd.f32 %v939, %v952
        %v954 = vpop.f32.mrf.mxu0
        %v955 = vadd.f32 %v941, %v954
        %956 = vdwg.mxu0
        %957 = vmatpush.bf16.msra.mxu0 %v703
        %958 = vmatpush.bf16.msra.mxu0 %v695
        %959 = vmatpush.bf16.msra.mxu0 %v687
        %960 = vmatpush.bf16.msra.mxu0 %v679
        %961 = vmatpush.bf16.msra.mxu0 %v671
        %962 = vmatpush.bf16.msra.mxu0 %v663
        %963 = vmatpush.bf16.msra.mxu0 %v655
        %964 = vmatpush.bf16.msra.mxu0 %v647
        %965 = vmatmul.bf16.gmra.mxu0 %v422
        %v966 = vpop.f32.mrf.mxu0
        %v967 = vadd.f32 %v409, %v966
        %v968 = vpop.f32.mrf.mxu0
        %v969 = vadd.f32 %v414, %v968
        %970 = vdwg.mxu0
        %971 = vmatpush.bf16.msra.mxu0 0
        %972 = vmatpush.bf16.msra.mxu0 0
        %973 = vmatpush.bf16.msra.mxu0 0
        %974 = vmatpush.bf16.msra.mxu0 0
        %975 = vmatpush.bf16.msra.mxu0 0
        %976 = vmatpush.bf16.msra.mxu0 0
        %977 = vmatpush.bf16.msra.mxu0 0
        %978 = vmatpush.bf16.msra.mxu0 %v711
        %979 = vmatmul.bf16.gmra.mxu0 %v787
        %v980 = vpop.f32.mrf.mxu0
        %v981 = vadd.f32 %v967, %v980
        %v982 = vpop.f32.mrf.mxu0
        %v983 = vadd.f32 %v969, %v982
        %984 = vdwg.mxu0
        %985 = vmatpush.bf16.msra.mxu0 %v704
        %986 = vmatpush.bf16.msra.mxu0 %v696
        %987 = vmatpush.bf16.msra.mxu0 %v688
        %988 = vmatpush.bf16.msra.mxu0 %v680
        %989 = vmatpush.bf16.msra.mxu0 %v672
        %990 = vmatpush.bf16.msra.mxu0 %v664
        %991 = vmatpush.bf16.msra.mxu0 %v656
        %992 = vmatpush.bf16.msra.mxu0 %v648
        %993 = vmatmul.bf16.gmra.mxu0 %v422
        %v994 = vpop.f32.mrf.mxu0
        %v995 = vadd.f32 %v409, %v994
        %v996 = vpop.f32.mrf.mxu0
        %v997 = vadd.f32 %v414, %v996
        %998 = vdwg.mxu0
        %999 = vmatpush.bf16.msra.mxu0 0
        %1000 = vmatpush.bf16.msra.mxu0 0
        %1001 = vmatpush.bf16.msra.mxu0 0
        %1002 = vmatpush.bf16.msra.mxu0 0
        %1003 = vmatpush.bf16.msra.mxu0 0
        %1004 = vmatpush.bf16.msra.mxu0 0
        %1005 = vmatpush.bf16.msra.mxu0 0
        %1006 = vmatpush.bf16.msra.mxu0 %v712
        %1007 = vmatmul.bf16.gmra.mxu0 %v787
        %v1008 = vpop.f32.mrf.mxu0
        %v1009 = vadd.f32 %v995, %v1008
        %v1010 = vpop.f32.mrf.mxu0
        %v1011 = vadd.f32 %v997, %v1010
        %1012 = vdwg.mxu0
        %v1013 = vmax.f32 %v813, 0.0
        %v1014 = vmax.f32 %v841, 0.0
        %v1015 = vmax.f32 %v869, 0.0
        %v1016 = vmax.f32 %v897, 0.0
        %v1017 = vmax.f32 %v925, 0.0
        %v1018 = vmax.f32 %v953, 0.0
        %v1019 = vmax.f32 %v981, 0.0
        %v1020 = vmax.f32 %v1009, 0.0
        %v1021 = vmax.f32 %v815, 0.0
        %v1022 = vmax.f32 %v843, 0.0
        %v1023 = vmax.f32 %v871, 0.0
        %v1024 = vmax.f32 %v899, 0.0
        %v1025 = vmax.f32 %v927, 0.0
        %v1026 = vmax.f32 %v955, 0.0
        %v1027 = vmax.f32 %v983, 0.0
        %v1028 = vmax.f32 %v1011, 0.0
        %v1029 = vpack.c.bf16 %v1014, %v1013
        %v1030 = vpack.c.bf16 %v1016, %v1015
        %v1031 = vpack.c.bf16 %v1018, %v1017
        %v1032 = vpack.c.bf16 %v1020, %v1019
        %v1033 = vpack.c.bf16 %v1022, %v1021
        %v1034 = vpack.c.bf16 %v1024, %v1023
        %v1035 = vpack.c.bf16 %v1026, %v1025
        %v1036 = vpack.c.bf16 %v1028, %v1027
        %1037 = vst [vmem:[%s326] sm:$0xff] %v1029
        %1038 = vst [vmem:[%s326 + $0x8] sm:$0xff] %v1030
        %1039 = vst [vmem:[%s326 + $0x10] sm:$0xff] %v1031
        %1040 = vst [vmem:[%s326 + $0x18] sm:$0xff] %v1032
        %1041 = vst [vmem:[%s326 + $0x20] sm:$0xff] %v1033
        %1042 = vst [vmem:[%s326 + $0x28] sm:$0xff] %v1034
        %1043 = vst [vmem:[%s326 + $0x30] sm:$0xff] %v1035
        %1044 = vst [vmem:[%s326 + $0x38] sm:$0xff] %v1036
        %s1045 = sand.u32 %s90, 1
        %s1046 = sand.u32 %s90, 1
        %s1047 = smul.addr %s1046, 64
        %s1048 = scalar_lea.vmem [#allocation3], %s1047
        // Predicated region
        $region56: #{fpn_backbone_radar.8} parent=50 // pred_check
          %p1049 = pneg %p100
        $region57: #{fpn_backbone_radar.8} parent=50 // pred_check_branch
          %1051 = sbr.rel (%p1049) target = $region59
        $region58: #{fpn_backbone_radar.8} parent=50 // pred_region
          %s1052 = smul.u32 8, %s14
          %s1053 = smul.addr %s1052, 4
          %s1054 = scalar_lea.vmem %s3, %s1053
          // Predicated region
          $region60: #{fpn_backbone_radar.8} parent=58 // pred_check
            _
          $region61: #{fpn_backbone_radar.8} parent=58 // pred_check_branch
            %1056 = sbr.rel (0) target = $region63
          $region62: #{fpn_backbone_radar.8} parent=58 // pred_region
            // Predicated region
            $region64: #{fpn_backbone_radar.8} parent=62 // pred_check
              _
            $region65: #{fpn_backbone_radar.8} parent=62 // pred_check_branch
              %1058 = sbr.rel (0) target = $region67
            $region66: #{fpn_backbone_radar.8} parent=62 // pred_region
              loop: start=0, step=1, limit=1
              $region68: #{fpn_backbone_radar.8} parent=66 // loop_pre_header
                _
              $region69: #{fpn_backbone_radar.8} parent=66 // loop_header
                %s1060 = sphi 0, %s1064
                %p1061 = scmp.ge.s32.totalorder %s1060, 1
                %s1065 = sphi %s1048, %s1048
                %s1066 = sphi %s1054, %s1054
              $region70: #{fpn_backbone_radar.8} parent=66 // loop_header_branch
                %1063 = sbr.rel (%p1061) target = $region74
              $region71: #{fpn_backbone_radar.8} parent=66 // loop_body
                %v1067 = vld [vmem:[%s1065] sm:$0xff]
                %1068 = vst [vmem:[%s1066] sm:$0xff] %v1067
                %v1069 = vld [vmem:[%s1065 + $0x8] sm:$0xff]
                %1070 = vst [vmem:[%s1066 + $0x8] sm:$0xff] %v1069
                %v1071 = vld [vmem:[%s1065 + $0x10] sm:$0xff]
                %1072 = vst [vmem:[%s1066 + $0x10] sm:$0xff] %v1071
                %v1073 = vld [vmem:[%s1065 + $0x18] sm:$0xff]
                %1074 = vst [vmem:[%s1066 + $0x18] sm:$0xff] %v1073
                %v1075 = vld [vmem:[%s1065 + $0x20] sm:$0xff]
                %1076 = vst [vmem:[%s1066 + $0x80] sm:$0xff] %v1075
                %v1077 = vld [vmem:[%s1065 + $0x28] sm:$0xff]
                %1078 = vst [vmem:[%s1066 + $0x88] sm:$0xff] %v1077
                %v1079 = vld [vmem:[%s1065 + $0x30] sm:$0xff]
                %1080 = vst [vmem:[%s1066 + $0x90] sm:$0xff] %v1079
                %v1081 = vld [vmem:[%s1065 + $0x38] sm:$0xff]
                %1082 = vst [vmem:[%s1066 + $0x98] sm:$0xff] %v1081
              $region72: #{fpn_backbone_radar.8} parent=66 // loop_footer
                %s1064 = sadd.s32 1, %s1060
              $region73: #{fpn_backbone_radar.8} parent=66 // loop_footer_branch
                %1059 = sbr.rel target = $region69
              $region74: #{fpn_backbone_radar.8} parent=66 // loop_exit
                _
            $region67: #{fpn_backbone_radar.8} parent=62 // pred_fallthru
              _
            // Predicated region
            $region75: #{fpn_backbone_radar.8} parent=62 // pred_check
              _
            $region76: #{fpn_backbone_radar.8} parent=62 // pred_check_branch
              %1084 = sbr.rel target = $region78
            $region77: #{fpn_backbone_radar.8} parent=62 // pred_region
              _
            $region78: #{fpn_backbone_radar.8} parent=62 // pred_fallthru
              _
          $region63: #{fpn_backbone_radar.8} parent=58 // pred_fallthru
            _
          %1085 = vnop
        $region59: #{fpn_backbone_radar.8} parent=50 // pred_fallthru
          _
      $region51: #{fpn_backbone_radar.8} parent=5 // pred_fallthru
        _
      %p1086 = scmp.le.s32.totalorder 2, %s9
      // Predicated region
      $region79: #{fpn_backbone_radar.8} parent=5 // pred_check
        %p1087 = pneg %p1086
      $region80: #{fpn_backbone_radar.8} parent=5 // pred_check_branch
        %1089 = sbr.rel (%p1087) target = $region82
      $region81: #{fpn_backbone_radar.8} parent=5 // pred_region
        %s1090 = ssub.s32 %s9, 2
        // Predicated region
        $region83: #{fpn_backbone_radar.8} parent=81 // pred_check
          %p1091 = pneg %p106
        $region84: #{fpn_backbone_radar.8} parent=81 // pred_check_branch
          %1093 = sbr.rel (%p1091) target = $region86
        $region85: #{fpn_backbone_radar.8} parent=81 // pred_region
          %s1094 = sand.u32 %s91, 1
          %s1095 = sand.u32 %s91, 1
          %s1096 = smul.addr %s1095, 64
          %s1097 = scalar_lea.vmem [#allocation3], %s1096
        $region86: #{fpn_backbone_radar.8} parent=81 // pred_fallthru
          _
      $region82: #{fpn_backbone_radar.8} parent=5 // pred_fallthru
        _
    $region6: #{fpn_backbone_radar.8} parent=1 // loop_footer
      %s13 = sadd.s32 1, %s9
    $region7: #{fpn_backbone_radar.8} parent=1 // loop_footer_branch
      %8 = sbr.rel target = $region3
    $region8: #{fpn_backbone_radar.8} parent=1 // loop_exit
      _

// kernel: fpn_backbone_radar.9
$region0: #{fpn_backbone_radar.9}
  #allocation0 [shape = 'u32[]', space=smem, size = 0x4, offset = 0x4, fixed_abs, tag = 'smem constant byte address 0x4 - core index']
  #allocation1 [shape = 'u32[72,128]{1,0:T(1,128)}', space=vmem, size = 0x9000, scoped, tag = 'internal scratch']
  %s0 = inlined_call_operand.vmem [shape: bf16[153,1024], index: 0, kind: input, shape index: {}]
  %s1 = inlined_call_operand.vmem [shape: bf16[72,153], index: 1, kind: input, shape index: {}]
  %s2 = inlined_call_operand.vmem [shape: bf16[8,72], index: 2, kind: input, shape index: {}]
  %s3 = inlined_call_operand.vmem [shape: f32[8,1], index: 3, kind: input, shape index: {}]
  %s4 = inlined_call_operand.vmem [shape: bf16[16,8], index: 4, kind: input, shape index: {}]
  %s5 = inlined_call_operand.vmem [shape: f32[16,1], index: 5, kind: input, shape index: {}]
  %s6 = inlined_call_operand.vmem [shape: bf16[16,16], index: 6, kind: input, shape index: {}]
  %s7 = inlined_call_operand.vmem [shape: f32[16,1], index: 7, kind: input, shape index: {}]
  %s8 = inlined_call_operand.vmem [shape: bf16[16,1024], index: 8, kind: output, shape index: {}]
  %s9 = sld [smem:[#allocation0]]
  $region107: #{fpn_backbone_radar.9} parent=0
    _
  %s11 = ssub.s32 1, %s9
  %s12 = scalar_select 0, %s11, %s9
  $region1: #{fpn_backbone_radar.9} parent=0
    #allocation2 [shape = 'u8[327680]{0}', space=vmem, size = 0x50000, scoped, tag = 'input window, operand 0']
    #allocation3 [shape = 'u8[32768]{0}', space=vmem, size = 0x8000, scoped, tag = 'output window, operand 0']
    loop: start=0, step=1, limit=4
    $region2: #{fpn_backbone_radar.9} parent=1 // loop_pre_header
      _
    $region3: #{fpn_backbone_radar.9} parent=1 // loop_header
      %s14 = sphi 0, %s18
      %p15 = scmp.ge.s32.totalorder %s14, 4
      %s24 = sphi 0, %s26
      %s27 = sphi 0, %s24
      %s28 = sphi 0, %s27
      %s44 = sphi 0, %s28
      %s48 = sphi 0, %s48
      %s50 = sphi 0, %s48
      %s51 = sphi 0, %s50
      %s65 = sphi 0, %s51
      %s69 = sphi 0, %s69
      %s71 = sphi 0, %s69
      %s72 = sphi 0, %s71
      %s86 = sphi 0, %s72
      %s90 = sphi 0, %s90
      %s92 = sphi 0, %s90
      %s93 = sphi 0, %s92
      %s107 = sphi 0, %s93
      %s111 = sphi 0, %s111
      %s113 = sphi 0, %s111
      %s114 = sphi 0, %s113
      %s128 = sphi 0, %s114
      %s132 = sphi 0, %s132
      %s134 = sphi 0, %s132
      %s135 = sphi 0, %s134
      %s149 = sphi 0, %s135
      %s153 = sphi 0, %s153
      %s155 = sphi 0, %s153
      %s156 = sphi 0, %s155
      %s170 = sphi 0, %s156
      %s174 = sphi 0, %s174
      %s176 = sphi 0, %s174
      %s177 = sphi 0, %s176
      %s191 = sphi 0, %s177
      %s197 = sphi 0, %s199
      %s200 = sphi 0, %s197
      %s201 = sphi 0, %s200
      %s217 = sphi 0, %s201
    $region4: #{fpn_backbone_radar.9} parent=1 // loop_header_branch
      %17 = sbr.rel (%p15) target = $region8
    $region5: #{fpn_backbone_radar.9} parent=1 // loop_body
      %s19 = ssub.s32 %s14, 1
      %s20 = ssub.s32 %s14, 2
      %s21 = sadd.s32 %s14, 1
      %s22 = ssub.s32 %s14, %s21
      %p23 = scmp.eq.s32.totalorder %s22, 0
      %s25 = sadd.s32 %s24, 1
      %s26 = scalar_select %p23, %s24, %s25
      %p29 = pneg %p23
      %p30 = scmp.eq.s32.totalorder %s14, 1
      %p31 = por %p29, %p30
      %p32 = scmp.ne.s32.totalorder %s24, %s27
      %p33 = scmp.eq.s32.totalorder %s14, 0
      %p34 = por %p32, %p33
      %p35 = scmp.ne.s32.totalorder %s24, %s27
      %p36 = scmp.eq.s32.totalorder %s19, 1
      %p37 = por %p35, %p36
      %p38 = scmp.ne.s32.totalorder %s27, %s28
      %p39 = scmp.eq.s32.totalorder %s19, 0
      %p40 = por %p38, %p39
      %p41 = scmp.ne.s32.totalorder %s27, %s28
      %p42 = scmp.eq.s32.totalorder %s20, 1
      %p43 = por %p41, %p42
      %p45 = scmp.ne.s32.totalorder %s28, %s44
      %p46 = scmp.eq.s32.totalorder %s20, 0
      %p47 = por %p45, %p46
      %s49 = sadd.s32 %s48, 1
      %p52 = scmp.eq.s32.totalorder %s14, 1
      %p53 = scmp.ne.s32.totalorder %s48, %s50
      %p54 = scmp.eq.s32.totalorder %s14, 0
      %p55 = por %p53, %p54
      %p56 = scmp.ne.s32.totalorder %s48, %s50
      %p57 = scmp.eq.s32.totalorder %s19, 1
      %p58 = por %p56, %p57
      %p59 = scmp.ne.s32.totalorder %s50, %s51
      %p60 = scmp.eq.s32.totalorder %s19, 0
      %p61 = por %p59, %p60
      %p62 = scmp.ne.s32.totalorder %s50, %s51
      %p63 = scmp.eq.s32.totalorder %s20, 1
      %p64 = por %p62, %p63
      %p66 = scmp.ne.s32.totalorder %s51, %s65
      %p67 = scmp.eq.s32.totalorder %s20, 0
      %p68 = por %p66, %p67
      %s70 = sadd.s32 %s69, 1
      %p73 = scmp.eq.s32.totalorder %s14, 1
      %p74 = scmp.ne.s32.totalorder %s69, %s71
      %p75 = scmp.eq.s32.totalorder %s14, 0
      %p76 = por %p74, %p75
      %p77 = scmp.ne.s32.totalorder %s69, %s71
      %p78 = scmp.eq.s32.totalorder %s19, 1
      %p79 = por %p77, %p78
      %p80 = scmp.ne.s32.totalorder %s71, %s72
      %p81 = scmp.eq.s32.totalorder %s19, 0
      %p82 = por %p80, %p81
      %p83 = scmp.ne.s32.totalorder %s71, %s72
      %p84 = scmp.eq.s32.totalorder %s20, 1
      %p85 = por %p83, %p84
      %p87 = scmp.ne.s32.totalorder %s72, %s86
      %p88 = scmp.eq.s32.totalorder %s20, 0
      %p89 = por %p87, %p88
      %s91 = sadd.s32 %s90, 1
      %p94 = scmp.eq.s32.totalorder %s14, 1
      %p95 = scmp.ne.s32.totalorder %s90, %s92
      %p96 = scmp.eq.s32.totalorder %s14, 0
      %p97 = por %p95, %p96
      %p98 = scmp.ne.s32.totalorder %s90, %s92
      %p99 = scmp.eq.s32.totalorder %s19, 1
      %p100 = por %p98, %p99
      %p101 = scmp.ne.s32.totalorder %s92, %s93
      %p102 = scmp.eq.s32.totalorder %s19, 0
      %p103 = por %p101, %p102
      %p104 = scmp.ne.s32.totalorder %s92, %s93
      %p105 = scmp.eq.s32.totalorder %s20, 1
      %p106 = por %p104, %p105
      %p108 = scmp.ne.s32.totalorder %s93, %s107
      %p109 = scmp.eq.s32.totalorder %s20, 0
      %p110 = por %p108, %p109
      %s112 = sadd.s32 %s111, 1
      %p115 = scmp.eq.s32.totalorder %s14, 1
      %p116 = scmp.ne.s32.totalorder %s111, %s113
      %p117 = scmp.eq.s32.totalorder %s14, 0
      %p118 = por %p116, %p117
      %p119 = scmp.ne.s32.totalorder %s111, %s113
      %p120 = scmp.eq.s32.totalorder %s19, 1
      %p121 = por %p119, %p120
      %p122 = scmp.ne.s32.totalorder %s113, %s114
      %p123 = scmp.eq.s32.totalorder %s19, 0
      %p124 = por %p122, %p123
      %p125 = scmp.ne.s32.totalorder %s113, %s114
      %p126 = scmp.eq.s32.totalorder %s20, 1
      %p127 = por %p125, %p126
      %p129 = scmp.ne.s32.totalorder %s114, %s128
      %p130 = scmp.eq.s32.totalorder %s20, 0
      %p131 = por %p129, %p130
      %s133 = sadd.s32 %s132, 1
      %p136 = scmp.eq.s32.totalorder %s14, 1
      %p137 = scmp.ne.s32.totalorder %s132, %s134
      %p138 = scmp.eq.s32.totalorder %s14, 0
      %p139 = por %p137, %p138
      %p140 = scmp.ne.s32.totalorder %s132, %s134
      %p141 = scmp.eq.s32.totalorder %s19, 1
      %p142 = por %p140, %p141
      %p143 = scmp.ne.s32.totalorder %s134, %s135
      %p144 = scmp.eq.s32.totalorder %s19, 0
      %p145 = por %p143, %p144
      %p146 = scmp.ne.s32.totalorder %s134, %s135
      %p147 = scmp.eq.s32.totalorder %s20, 1
      %p148 = por %p146, %p147
      %p150 = scmp.ne.s32.totalorder %s135, %s149
      %p151 = scmp.eq.s32.totalorder %s20, 0
      %p152 = por %p150, %p151
      %s154 = sadd.s32 %s153, 1
      %p157 = scmp.eq.s32.totalorder %s14, 1
      %p158 = scmp.ne.s32.totalorder %s153, %s155
      %p159 = scmp.eq.s32.totalorder %s14, 0
      %p160 = por %p158, %p159
      %p161 = scmp.ne.s32.totalorder %s153, %s155
      %p162 = scmp.eq.s32.totalorder %s19, 1
      %p163 = por %p161, %p162
      %p164 = scmp.ne.s32.totalorder %s155, %s156
      %p165 = scmp.eq.s32.totalorder %s19, 0
      %p166 = por %p164, %p165
      %p167 = scmp.ne.s32.totalorder %s155, %s156
      %p168 = scmp.eq.s32.totalorder %s20, 1
      %p169 = por %p167, %p168
      %p171 = scmp.ne.s32.totalorder %s156, %s170
      %p172 = scmp.eq.s32.totalorder %s20, 0
      %p173 = por %p171, %p172
      %s175 = sadd.s32 %s174, 1
      %p178 = scmp.eq.s32.totalorder %s14, 1
      %p179 = scmp.ne.s32.totalorder %s174, %s176
      %p180 = scmp.eq.s32.totalorder %s14, 0
      %p181 = por %p179, %p180
      %p182 = scmp.ne.s32.totalorder %s174, %s176
      %p183 = scmp.eq.s32.totalorder %s19, 1
      %p184 = por %p182, %p183
      %p185 = scmp.ne.s32.totalorder %s176, %s177
      %p186 = scmp.eq.s32.totalorder %s19, 0
      %p187 = por %p185, %p186
      %p188 = scmp.ne.s32.totalorder %s176, %s177
      %p189 = scmp.eq.s32.totalorder %s20, 1
      %p190 = por %p188, %p189
      %p192 = scmp.ne.s32.totalorder %s177, %s191
      %p193 = scmp.eq.s32.totalorder %s20, 0
      %p194 = por %p192, %p193
      %s195 = ssub.s32 %s14, %s21
      %p196 = scmp.eq.s32.totalorder %s195, 0
      %s198 = sadd.s32 %s197, 1
      %s199 = scalar_select %p196, %s197, %s198
      %p202 = pneg %p196
      %p203 = scmp.eq.s32.totalorder %s14, 1
      %p204 = por %p202, %p203
      %p205 = scmp.ne.s32.totalorder %s197, %s200
      %p206 = scmp.eq.s32.totalorder %s14, 0
      %p207 = por %p205, %p206
      %p208 = scmp.ne.s32.totalorder %s197, %s200
      %p209 = scmp.eq.s32.totalorder %s19, 1
      %p210 = por %p208, %p209
      %p211 = scmp.ne.s32.totalorder %s200, %s201
      %p212 = scmp.eq.s32.totalorder %s19, 0
      %p213 = por %p211, %p212
      %p214 = scmp.ne.s32.totalorder %s200, %s201
      %p215 = scmp.eq.s32.totalorder %s20, 1
      %p216 = por %p214, %p215
      %p218 = scmp.ne.s32.totalorder %s201, %s217
      %p219 = scmp.eq.s32.totalorder %s20, 0
      %p220 = por %p218, %p219
      %p221 = scmp.le.s32.totalorder 1, %s14
      %p222 = scmp.lt.s32.totalorder %s14, 3
      %p223 = pnand %p221, %p222
      %p224 = pneg %p223
      // Predicated region
      $region9: #{fpn_backbone_radar.9} parent=5 // pred_check
        _
      $region10: #{fpn_backbone_radar.9} parent=5 // pred_check_branch
        %226 = sbr.rel (%p223) target = $region12
      $region11: #{fpn_backbone_radar.9} parent=5 // pred_region
        %s227 = ssub.s32 %s14, 1
        // Predicated region
        $region13: #{fpn_backbone_radar.9} parent=11 // pred_check
          %p228 = pneg %p61
        $region14: #{fpn_backbone_radar.9} parent=11 // pred_check_branch
          %230 = sbr.rel (%p228) target = $region16
        $region15: #{fpn_backbone_radar.9} parent=11 // pred_region
          _
        $region16: #{fpn_backbone_radar.9} parent=11 // pred_fallthru
          _
        // Predicated region
        $region17: #{fpn_backbone_radar.9} parent=11 // pred_check
          %p231 = pneg %p82
        $region18: #{fpn_backbone_radar.9} parent=11 // pred_check_branch
          %233 = sbr.rel (%p231) target = $region20
        $region19: #{fpn_backbone_radar.9} parent=11 // pred_region
          _
        $region20: #{fpn_backbone_radar.9} parent=11 // pred_fallthru
          _
        // Predicated region
        $region21: #{fpn_backbone_radar.9} parent=11 // pred_check
          %p234 = pneg %p103
        $region22: #{fpn_backbone_radar.9} parent=11 // pred_check_branch
          %236 = sbr.rel (%p234) target = $region24
        $region23: #{fpn_backbone_radar.9} parent=11 // pred_region
          _
        $region24: #{fpn_backbone_radar.9} parent=11 // pred_fallthru
          _
        // Predicated region
        $region25: #{fpn_backbone_radar.9} parent=11 // pred_check
          %p237 = pneg %p124
        $region26: #{fpn_backbone_radar.9} parent=11 // pred_check_branch
          %239 = sbr.rel (%p237) target = $region28
        $region27: #{fpn_backbone_radar.9} parent=11 // pred_region
          _
        $region28: #{fpn_backbone_radar.9} parent=11 // pred_fallthru
          _
        // Predicated region
        $region29: #{fpn_backbone_radar.9} parent=11 // pred_check
          %p240 = pneg %p145
        $region30: #{fpn_backbone_radar.9} parent=11 // pred_check_branch
          %242 = sbr.rel (%p240) target = $region32
        $region31: #{fpn_backbone_radar.9} parent=11 // pred_region
          _
        $region32: #{fpn_backbone_radar.9} parent=11 // pred_fallthru
          _
        // Predicated region
        $region33: #{fpn_backbone_radar.9} parent=11 // pred_check
          %p243 = pneg %p166
        $region34: #{fpn_backbone_radar.9} parent=11 // pred_check_branch
          %245 = sbr.rel (%p243) target = $region36
        $region35: #{fpn_backbone_radar.9} parent=11 // pred_region
          _
        $region36: #{fpn_backbone_radar.9} parent=11 // pred_fallthru
          _
        // Predicated region
        $region37: #{fpn_backbone_radar.9} parent=11 // pred_check
          %p246 = pneg %p187
        $region38: #{fpn_backbone_radar.9} parent=11 // pred_check_branch
          %248 = sbr.rel (%p246) target = $region40
        $region39: #{fpn_backbone_radar.9} parent=11 // pred_region
          _
        $region40: #{fpn_backbone_radar.9} parent=11 // pred_fallthru
          _
      $region12: #{fpn_backbone_radar.9} parent=5 // pred_fallthru
        _
      %p249 = scmp.lt.s32.totalorder %s14, 2
      // Predicated region
      $region41: #{fpn_backbone_radar.9} parent=5 // pred_check
        %p250 = pneg %p249
      $region42: #{fpn_backbone_radar.9} parent=5 // pred_check_branch
        %252 = sbr.rel (%p250) target = $region44
      $region43: #{fpn_backbone_radar.9} parent=5 // pred_region
        // Predicated region
        $region45: #{fpn_backbone_radar.9} parent=43 // pred_check
          %p253 = pneg %p34
        $region46: #{fpn_backbone_radar.9} parent=43 // pred_check_branch
          %255 = sbr.rel (%p253) target = $region48
        $region47: #{fpn_backbone_radar.9} parent=43 // pred_region
          %s256 = sand.u32 %s24, 1
          %s257 = sand.u32 %s24, 1
          %s258 = smul.addr %s257, 320
          %s259 = scalar_lea.vmem [#allocation2], %s258
          %s260 = smul.u32 4, %s14
          %s261 = smul.addr %s260, 4
          %s262 = scalar_lea.vmem %s0, %s261
          // Predicated region
          $region49: #{fpn_backbone_radar.9} parent=47 // pred_check
            _
          $region50: #{fpn_backbone_radar.9} parent=47 // pred_check_branch
            %264 = sbr.rel (0) target = $region52
          $region51: #{fpn_backbone_radar.9} parent=47 // pred_region
            // Predicated region
            $region53: #{fpn_backbone_radar.9} parent=51 // pred_check
              _
            $region54: #{fpn_backbone_radar.9} parent=51 // pred_check_branch
              %266 = sbr.rel (0) target = $region56
            $region55: #{fpn_backbone_radar.9} parent=51 // pred_region
              loop: start=0, step=1, limit=1
              $region57: #{fpn_backbone_radar.9} parent=55 // loop_pre_header
                _
              $region58: #{fpn_backbone_radar.9} parent=55 // loop_header
                %s268 = sphi 0, %s272
                %p269 = scmp.ge.s32.totalorder %s268, 1
                %s273 = sphi %s262, %s262
                %s274 = sphi %s259, %s259
              $region59: #{fpn_backbone_radar.9} parent=55 // loop_header_branch
                %271 = sbr.rel (%p269) target = $region63
              $region60: #{fpn_backbone_radar.9} parent=55 // loop_body
                %v275 = vld [vmem:[%s273] sm:$0xff]
                %276 = vst [vmem:[%s274] sm:$0xff] %v275
                %v277 = vld [vmem:[%s273 + $0x8] sm:$0xff]
                %278 = vst [vmem:[%s274 + $0x8] sm:$0xff] %v277
                %v279 = vld [vmem:[%s273 + $0x20] sm:$0xff]
                %280 = vst [vmem:[%s274 + $0x10] sm:$0xff] %v279
                %v281 = vld [vmem:[%s273 + $0x28] sm:$0xff]
                %282 = vst [vmem:[%s274 + $0x18] sm:$0xff] %v281
                %v283 = vld [vmem:[%s273 + $0x40] sm:$0xff]
                %284 = vst [vmem:[%s274 + $0x20] sm:$0xff] %v283
                %v285 = vld [vmem:[%s273 + $0x48] sm:$0xff]
                %286 = vst [vmem:[%s274 + $0x28] sm:$0xff] %v285
                %v287 = vld [vmem:[%s273 + $0x60] sm:$0xff]
                %288 = vst [vmem:[%s274 + $0x30] sm:$0xff] %v287
                %v289 = vld [vmem:[%s273 + $0x68] sm:$0xff]
                %290 = vst [vmem:[%s274 + $0x38] sm:$0xff] %v289
                %v291 = vld [vmem:[%s273 + $0x80] sm:$0xff]
                %292 = vst [vmem:[%s274 + $0x40] sm:$0xff] %v291
                %v293 = vld [vmem:[%s273 + $0x88] sm:$0xff]
                %294 = vst [vmem:[%s274 + $0x48] sm:$0xff] %v293
                %v295 = vld [vmem:[%s273 + $0xa0] sm:$0xff]
                %296 = vst [vmem:[%s274 + $0x50] sm:$0xff] %v295
                %v297 = vld [vmem:[%s273 + $0xa8] sm:$0xff]
                %298 = vst [vmem:[%s274 + $0x58] sm:$0xff] %v297
                %v299 = vld [vmem:[%s273 + $0xc0] sm:$0xff]
                %300 = vst [vmem:[%s274 + $0x60] sm:$0xff] %v299
                %v301 = vld [vmem:[%s273 + $0xc8] sm:$0xff]
                %302 = vst [vmem:[%s274 + $0x68] sm:$0xff] %v301
                %v303 = vld [vmem:[%s273 + $0xe0] sm:$0xff]
                %304 = vst [vmem:[%s274 + $0x70] sm:$0xff] %v303
                %v305 = vld [vmem:[%s273 + $0xe8] sm:$0xff]
                %306 = vst [vmem:[%s274 + $0x78] sm:$0xff] %v305
                %v307 = vld [vmem:[%s273 + $0x100] sm:$0xff]
                %308 = vst [vmem:[%s274 + $0x80] sm:$0xff] %v307
                %v309 = vld [vmem:[%s273 + $0x108] sm:$0xff]
                %310 = vst [vmem:[%s274 + $0x88] sm:$0xff] %v309
                %v311 = vld [vmem:[%s273 + $0x120] sm:$0xff]
                %312 = vst [vmem:[%s274 + $0x90] sm:$0xff] %v311
                %v313 = vld [vmem:[%s273 + $0x128] sm:$0xff]
                %314 = vst [vmem:[%s274 + $0x98] sm:$0xff] %v313
                %v315 = vld [vmem:[%s273 + $0x140] sm:$0xff]
                %316 = vst [vmem:[%s274 + $0xa0] sm:$0xff] %v315
                %v317 = vld [vmem:[%s273 + $0x148] sm:$0xff]
                %318 = vst [vmem:[%s274 + $0xa8] sm:$0xff] %v317
                %v319 = vld [vmem:[%s273 + $0x160] sm:$0xff]
                %320 = vst [vmem:[%s274 + $0xb0] sm:$0xff] %v319
                %v321 = vld [vmem:[%s273 + $0x168] sm:$0xff]
                %322 = vst [vmem:[%s274 + $0xb8] sm:$0xff] %v321
                %v323 = vld [vmem:[%s273 + $0x180] sm:$0xff]
                %324 = vst [vmem:[%s274 + $0xc0] sm:$0xff] %v323
                %v325 = vld [vmem:[%s273 + $0x188] sm:$0xff]
                %326 = vst [vmem:[%s274 + $0xc8] sm:$0xff] %v325
                %v327 = vld [vmem:[%s273 + $0x1a0] sm:$0xff]
                %328 = vst [vmem:[%s274 + $0xd0] sm:$0xff] %v327
                %v329 = vld [vmem:[%s273 + $0x1a8] sm:$0xff]
                %330 = vst [vmem:[%s274 + $0xd8] sm:$0xff] %v329
                %v331 = vld [vmem:[%s273 + $0x1c0] sm:$0xff]
                %332 = vst [vmem:[%s274 + $0xe0] sm:$0xff] %v331
                %v333 = vld [vmem:[%s273 + $0x1c8] sm:$0xff]
                %334 = vst [vmem:[%s274 + $0xe8] sm:$0xff] %v333
                %v335 = vld [vmem:[%s273 + $0x1e0] sm:$0xff]
                %336 = vst [vmem:[%s274 + $0xf0] sm:$0xff] %v335
                %v337 = vld [vmem:[%s273 + $0x1e8] sm:$0xff]
                %338 = vst [vmem:[%s274 + $0xf8] sm:$0xff] %v337
                %v339 = vld [vmem:[%s273 + $0x200] sm:$0xff]
                %340 = vst [vmem:[%s274 + $0x100] sm:$0xff] %v339
                %v341 = vld [vmem:[%s273 + $0x208] sm:$0xff]
                %342 = vst [vmem:[%s274 + $0x108] sm:$0xff] %v341
                %v343 = vld [vmem:[%s273 + $0x220] sm:$0xff]
                %344 = vst [vmem:[%s274 + $0x110] sm:$0xff] %v343
                %v345 = vld [vmem:[%s273 + $0x228] sm:$0xff]
                %346 = vst [vmem:[%s274 + $0x118] sm:$0xff] %v345
                %v347 = vld [vmem:[%s273 + $0x240] sm:$0xff]
                %348 = vst [vmem:[%s274 + $0x120] sm:$0xff] %v347
                %v349 = vld [vmem:[%s273 + $0x248] sm:$0xff]
                %350 = vst [vmem:[%s274 + $0x128] sm:$0xff] %v349
                %v351 = vld [vmem:[%s273 + $0x260] sm:$0xff]
                %352 = vst [vmem:[%s274 + $0x130] sm:$0xff] %v351
                %v353 = vld [vmem:[%s273 + $0x268] sm:$0xff]
                %354 = vst [vmem:[%s274 + $0x138] sm:$0xff] %v353
              $region61: #{fpn_backbone_radar.9} parent=55 // loop_footer
                %s272 = sadd.s32 1, %s268
              $region62: #{fpn_backbone_radar.9} parent=55 // loop_footer_branch
                %267 = sbr.rel target = $region58
              $region63: #{fpn_backbone_radar.9} parent=55 // loop_exit
                _
            $region56: #{fpn_backbone_radar.9} parent=51 // pred_fallthru
              _
            // Predicated region
            $region64: #{fpn_backbone_radar.9} parent=51 // pred_check
              _
            $region65: #{fpn_backbone_radar.9} parent=51 // pred_check_branch
              %356 = sbr.rel target = $region67
            $region66: #{fpn_backbone_radar.9} parent=51 // pred_region
              _
            $region67: #{fpn_backbone_radar.9} parent=51 // pred_fallthru
              _
          $region52: #{fpn_backbone_radar.9} parent=47 // pred_fallthru
            _
          %357 = vnop
        $region48: #{fpn_backbone_radar.9} parent=43 // pred_fallthru
          _
      $region44: #{fpn_backbone_radar.9} parent=5 // pred_fallthru
        _
      %p358 = scmp.le.s32.totalorder 1, %s14
      %p359 = scmp.lt.s32.totalorder %s14, 3
      %p360 = pnand %p358, %p359
      %p361 = pneg %p360
      // Predicated region
      $region68: #{fpn_backbone_radar.9} parent=5 // pred_check
        _
      $region69: #{fpn_backbone_radar.9} parent=5 // pred_check_branch
        %363 = sbr.rel (%p360) target = $region71
      $region70: #{fpn_backbone_radar.9} parent=5 // pred_region
        %s364 = ssub.s32 %s14, 1
        %s365 = sand.u32 %s27, 1
        %s366 = sand.u32 %s27, 1
        %s367 = smul.addr %s366, 320
        %s368 = scalar_lea.vmem [#allocation2], %s367
        // Predicated region
        $region72: #{fpn_backbone_radar.9} parent=70 // pred_check
          %p369 = pneg %p40
        $region73: #{fpn_backbone_radar.9} parent=70 // pred_check_branch
          %371 = sbr.rel (%p369) target = $region75
        $region74: #{fpn_backbone_radar.9} parent=70 // pred_region
          _
        $region75: #{fpn_backbone_radar.9} parent=70 // pred_fallthru
          _
        %s372 = sand.u32 %s27, 1
        %s373 = sand.u32 %s27, 1
        %s374 = smul.addr %s373, 320
        %s375 = scalar_lea.vmem [#allocation2], %s374
        %p376 = pneg %p40
        %p377 = pneg %p37
        %p378 = pneg %p61
        %p379 = pneg %p58
        %p380 = pneg %p82
        %p381 = pneg %p79
        %p382 = pneg %p103
        %p383 = pneg %p100
        %p384 = pneg %p124
        %p385 = pneg %p121
        %p386 = pneg %p145
        %p387 = pneg %p142
        %p388 = pneg %p166
        %p389 = pneg %p163
        %p390 = pneg %p187
        %p391 = pneg %p184
        %p392 = pneg %p213
        %p393 = pneg %p210
        %s394 = sand.u32 %s200, 1
        %s395 = sand.u32 %s200, 1
        %s396 = smul.addr %s395, 32
        %s397 = scalar_lea.vmem [#allocation3], %s396
        %s398 = smul.u32 4, %s19
        %s399 = smul.u32 4, %s19
        %v401 = vld [vmem:[%s368] sm:$0xff]
        %v402 = vld [vmem:[%s368 + $0x8] sm:$0xff]
        %v403 = vld [vmem:[%s368 + $0x10] sm:$0xff]
        %v404 = vld [vmem:[%s368 + $0x18] sm:$0xff]
        %v405 = vld [vmem:[%s368 + $0x20] sm:$0xff]
        %v406 = vld [vmem:[%s368 + $0x28] sm:$0xff]
        %v407 = vld [vmem:[%s368 + $0x30] sm:$0xff]
        %v408 = vld [vmem:[%s368 + $0x38] sm:$0xff]
        %v409 = vld [vmem:[%s368 + $0x40] sm:$0xff]
        %v410 = vld [vmem:[%s368 + $0x48] sm:$0xff]
        %v411 = vld [vmem:[%s368 + $0x50] sm:$0xff]
        %v412 = vld [vmem:[%s368 + $0x58] sm:$0xff]
        %v413 = vld [vmem:[%s368 + $0x60] sm:$0xff]
        %v414 = vld [vmem:[%s368 + $0x68] sm:$0xff]
        %v415 = vld [vmem:[%s368 + $0x70] sm:$0xff]
        %v416 = vld [vmem:[%s368 + $0x78] sm:$0xff]
        %v417 = vld [vmem:[%s368 + $0x80] sm:$0xff]
        %v418 = vld [vmem:[%s368 + $0x88] sm:$0xff]
        %v419 = vld [vmem:[%s368 + $0x90] sm:$0xff]
        %v420 = vld [vmem:[%s368 + $0x98] sm:$0xff]
        %v421 = vld [vmem:[%s368 + $0xa0] sm:$0xff]
        %v422 = vld [vmem:[%s368 + $0xa8] sm:$0xff]
        %v423 = vld [vmem:[%s368 + $0xb0] sm:$0xff]
        %v424 = vld [vmem:[%s368 + $0xb8] sm:$0xff]
        %v425 = vld [vmem:[%s368 + $0xc0] sm:$0xff]
        %v426 = vld [vmem:[%s368 + $0xc8] sm:$0xff]
        %v427 = vld [vmem:[%s368 + $0xd0] sm:$0xff]
        %v428 = vld [vmem:[%s368 + $0xd8] sm:$0xff]
        %v429 = vld [vmem:[%s368 + $0xe0] sm:$0xff]
        %v430 = vld [vmem:[%s368 + $0xe8] sm:$0xff]
        %v431 = vld [vmem:[%s368 + $0xf0] sm:$0xff]
        %v432 = vld [vmem:[%s368 + $0xf8] sm:$0xff]
        %v433 = vld [vmem:[%s368 + $0x100] sm:$0xff]
        %v434 = vld [vmem:[%s368 + $0x108] sm:$0xff]
        %v435 = vld [vmem:[%s368 + $0x110] sm:$0xff]
        %v436 = vld [vmem:[%s368 + $0x118] sm:$0xff]
        %v437 = vld [vmem:[%s368 + $0x120] sm:$0xff]
        %v438 = vld [vmem:[%s368 + $0x128] sm:$0xff]
        %v439 = vld [vmem:[%s368 + $0x130] sm:$0x11]
        %v440 = vld [vmem:[%s368 + $0x138] sm:$0x11]
        %v441 = vld [vmem:[%s1] sm:$0xff]
        %v442 = vld [vmem:[%s1 + $0x8] sm:$0xff]
        %v443 = vld [vmem:[%s1 + $0x10] sm:$0xff]
        %v444 = vld [vmem:[%s1 + $0x18] sm:$0xff]
        %v445 = vld [vmem:[%s1 + $0x20] sm:$0xff]
        %v446 = vld [vmem:[%s1 + $0x28] sm:$0xff]
        %v447 = vld [vmem:[%s1 + $0x30] sm:$0xff]
        %v448 = vld [vmem:[%s1 + $0x38] sm:$0xff]
        %v449 = vld [vmem:[%s1 + $0x40] sm:$0xff]
        %v459 = vunpack.c.l.b16 %v441
        %v460 = vunpack.c.h.b16 %v441
        %v461 = vunpack.c.l.b16 %v442
        %v462 = vunpack.c.h.b16 %v442
        %v463 = vunpack.c.l.b16 %v443
        %v464 = vunpack.c.h.b16 %v443
        %v465 = vunpack.c.l.b16 %v444
        %v466 = vunpack.c.h.b16 %v444
        %v467 = vunpack.c.l.b16 %v445
        %v468 = vunpack.c.h.b16 %v445
        %v469 = vunpack.c.l.b16 %v446
        %v470 = vunpack.c.h.b16 %v446
        %v471 = vunpack.c.l.b16 %v447
        %v472 = vunpack.c.h.b16 %v447
        %v473 = vunpack.c.l.b16 %v448
        %v474 = vunpack.c.h.b16 %v448
        %v475 = vunpack.c.l.b16 %v449
        %v476 = vunpack.c.h.b16 %v449
        %v477 = vpack.c.b16 %v461, %v459
        %v478 = vpack.c.b16 %v462, %v460
        %v479 = vpack.c.b16 %v465, %v463
        %v480 = vpack.c.b16 %v466, %v464
        %v481 = vpack.c.b16 %v469, %v467
        %v482 = vpack.c.b16 %v470, %v468
        %v483 = vpack.c.b16 %v473, %v471
        %v484 = vpack.c.b16 %v474, %v472
        %v485 = vpack.c.b16 %v475, %v475
        %v486 = vpack.c.b16 %v476, %v476
        %v532 = vunpack.c.l.b16 %v401
        %v533 = vunpack.c.h.b16 %v401
        %v534 = vunpack.c.l.b16 %v402
        %v535 = vunpack.c.h.b16 %v402
        %v536 = vunpack.c.l.b16 %v403
        %v537 = vunpack.c.h.b16 %v403
        %v538 = vunpack.c.l.b16 %v404
        %v539 = vunpack.c.h.b16 %v404
        %v540 = vunpack.c.l.b16 %v405
        %v541 = vunpack.c.h.b16 %v405
        %v542 = vunpack.c.l.b16 %v406
        %v543 = vunpack.c.h.b16 %v406
        %v544 = vunpack.c.l.b16 %v407
        %v545 = vunpack.c.h.b16 %v407
        %v546 = vunpack.c.l.b16 %v408
        %v547 = vunpack.c.h.b16 %v408
        %v548 = vunpack.c.l.b16 %v409
        %v549 = vunpack.c.h.b16 %v409
        %v550 = vunpack.c.l.b16 %v410
        %v551 = vunpack.c.h.b16 %v410
        %v552 = vunpack.c.l.b16 %v411
        %v553 = vunpack.c.h.b16 %v411
        %v554 = vunpack.c.l.b16 %v412
        %v555 = vunpack.c.h.b16 %v412
        %v556 = vunpack.c.l.b16 %v413
        %v557 = vunpack.c.h.b16 %v413
        %v558 = vunpack.c.l.b16 %v414
        %v559 = vunpack.c.h.b16 %v414
        %v560 = vunpack.c.l.b16 %v415
        %v561 = vunpack.c.h.b16 %v415
        %v562 = vunpack.c.l.b16 %v416
        %v563 = vunpack.c.h.b16 %v416
        %v564 = vunpack.c.l.b16 %v417
        %v565 = vunpack.c.h.b16 %v417
        %v566 = vunpack.c.l.b16 %v418
        %v567 = vunpack.c.h.b16 %v418
        %v568 = vunpack.c.l.b16 %v419
        %v569 = vunpack.c.h.b16 %v419
        %v570 = vunpack.c.l.b16 %v420
        %v571 = vunpack.c.h.b16 %v420
        %v572 = vunpack.c.l.b16 %v421
        %v573 = vunpack.c.h.b16 %v421
        %v574 = vunpack.c.l.b16 %v422
        %v575 = vunpack.c.h.b16 %v422
        %v576 = vunpack.c.l.b16 %v423
        %v577 = vunpack.c.h.b16 %v423
        %v578 = vunpack.c.l.b16 %v424
        %v579 = vunpack.c.h.b16 %v424
        %v580 = vunpack.c.l.b16 %v425
        %v581 = vunpack.c.h.b16 %v425
        %v582 = vunpack.c.l.b16 %v426
        %v583 = vunpack.c.h.b16 %v426
        %v584 = vunpack.c.l.b16 %v427
        %v585 = vunpack.c.h.b16 %v427
        %v586 = vunpack.c.l.b16 %v428
        %v587 = vunpack.c.h.b16 %v428
        %v588 = vunpack.c.l.b16 %v429
        %v589 = vunpack.c.h.b16 %v429
        %v590 = vunpack.c.l.b16 %v430
        %v591 = vunpack.c.h.b16 %v430
        %v592 = vunpack.c.l.b16 %v431
        %v593 = vunpack.c.h.b16 %v431
        %v594 = vunpack.c.l.b16 %v432
        %v595 = vunpack.c.h.b16 %v432
        %v596 = vunpack.c.l.b16 %v433
        %v597 = vunpack.c.h.b16 %v433
        %v598 = vunpack.c.l.b16 %v434
        %v599 = vunpack.c.h.b16 %v434
        %v600 = vunpack.c.l.b16 %v435
        %v601 = vunpack.c.h.b16 %v435
        %v602 = vunpack.c.l.b16 %v436
        %v603 = vunpack.c.h.b16 %v436
        %v604 = vunpack.c.l.b16 %v437
        %v605 = vunpack.c.h.b16 %v437
        %v606 = vunpack.c.l.b16 %v438
        %v607 = vunpack.c.h.b16 %v438
        %v608 = vunpack.c.l.b16 %v439
        %v609 = vunpack.c.h.b16 %v439
        %v610 = vunpack.c.l.b16 %v440
        %v611 = vunpack.c.h.b16 %v440
        %v612 = vpack.c.b16 %v536, %v532
        %v613 = vpack.c.b16 %v537, %v533
        %v614 = vpack.c.b16 %v538, %v534
        %v615 = vpack.c.b16 %v539, %v535
        %v616 = vpack.c.b16 %v544, %v540
        %v617 = vpack.c.b16 %v545, %v541
        %v618 = vpack.c.b16 %v546, %v542
        %v619 = vpack.c.b16 %v547, %v543
        %v620 = vpack.c.b16 %v552, %v548
        %v621 = vpack.c.b16 %v553, %v549
        %v622 = vpack.c.b16 %v554, %v550
        %v623 = vpack.c.b16 %v555, %v551
        %v624 = vpack.c.b16 %v560, %v556
        %v625 = vpack.c.b16 %v561, %v557
        %v626 = vpack.c.b16 %v562, %v558
        %v627 = vpack.c.b16 %v563, %v559
        %v628 = vpack.c.b16 %v568, %v564
        %v629 = vpack.c.b16 %v569, %v565
        %v630 = vpack.c.b16 %v570, %v566
        %v631 = vpack.c.b16 %v571, %v567
        %v632 = vpack.c.b16 %v576, %v572
        %v633 = vpack.c.b16 %v577, %v573
        %v634 = vpack.c.b16 %v578, %v574
        %v635 = vpack.c.b16 %v579, %v575
        %v636 = vpack.c.b16 %v584, %v580
        %v637 = vpack.c.b16 %v585, %v581
        %v638 = vpack.c.b16 %v586, %v582
        %v639 = vpack.c.b16 %v587, %v583
        %v640 = vpack.c.b16 %v592, %v588
        %v641 = vpack.c.b16 %v593, %v589
        %v642 = vpack.c.b16 %v594, %v590
        %v643 = vpack.c.b16 %v595, %v591
        %v644 = vpack.c.b16 %v600, %v596
        %v645 = vpack.c.b16 %v601, %v597
        %v646 = vpack.c.b16 %v602, %v598
        %v647 = vpack.c.b16 %v603, %v599
        %v648 = vpack.c.b16 %v608, %v604
        %v649 = vpack.c.b16 %v609, %v605
        %v650 = vpack.c.b16 %v610, %v606
        %v651 = vpack.c.b16 %v611, %v607
        %vm688 = vcmask 203776
        %v690 = vsel %vm688, %v478, 0
        %v693 = vsel %vm688, %v480, 0
        %v696 = vsel %vm688, %v482, 0
        %v699 = vsel %vm688, %v484, 0
        %v702 = vsel %vm688, %v486, 0
        %vm704 = vcmask 1043456
        %vm705 = vcmask 1044480
        %v706 = vsel %vm704, 4294967295, 65535
        %v707 = vsel %vm705, %v706, 0
        %v709 = vand.u32 %v648, %v707
        %v712 = vand.u32 %v649, %v707
        %v715 = vand.u32 %v650, %v707
        %v718 = vand.u32 %v651, %v707
        %720 = vmatpush.bf16.msra.mxu0 %v640
        %721 = vmatpush.bf16.msra.mxu0 %v636
        %722 = vmatpush.bf16.msra.mxu0 %v632
        %723 = vmatpush.bf16.msra.mxu0 %v628
        %724 = vmatpush.bf16.msra.mxu0 %v624
        %725 = vmatpush.bf16.msra.mxu0 %v620
        %726 = vmatpush.bf16.msra.mxu0 %v616
        %727 = vmatpush.bf16.msra.mxu0 %v612
        %728 = vmatmul.bf16.gmra.mxu0 %v477
        %v729 = vpop.f32.mrf.mxu0
        %v730 = vadd.f32 0.0, %v729
        %v731 = vpop.f32.mrf.mxu0
        %v732 = vadd.f32 0.0, %v731
        %733 = vmatmul.bf16.gmra.mxu0 %v479
        %v734 = vpop.f32.mrf.mxu0
        %v735 = vadd.f32 0.0, %v734
        %v736 = vpop.f32.mrf.mxu0
        %v737 = vadd.f32 0.0, %v736
        %738 = vmatmul.bf16.gmra.mxu0 %v481
        %v739 = vpop.f32.mrf.mxu0
        %v740 = vadd.f32 0.0, %v739
        %v741 = vpop.f32.mrf.mxu0
        %v742 = vadd.f32 0.0, %v741
        %743 = vmatmul.bf16.gmra.mxu0 %v483
        %v744 = vpop.f32.mrf.mxu0
        %v745 = vadd.f32 0.0, %v744
        %v746 = vpop.f32.mrf.mxu0
        %v747 = vadd.f32 0.0, %v746
        %748 = vmatmul.bf16.gmra.mxu0 %v485
        %v749 = vpop.f32.mrf.mxu0
        %v750 = vadd.f32 0.0, %v749
        %v751 = vpop.f32.mrf.mxu0
        %752 = vdwg.mxu0
        %753 = vmatpush.bf16.msra.mxu0 0
        %754 = vmatpush.bf16.msra.mxu0 0
        %755 = vmatpush.bf16.msra.mxu0 0
        %756 = vmatpush.bf16.msra.mxu0 0
        %757 = vmatpush.bf16.msra.mxu0 0
        %758 = vmatpush.bf16.msra.mxu0 0
        %759 = vmatpush.bf16.msra.mxu0 %v709
        %760 = vmatpush.bf16.msra.mxu0 %v644
        %761 = vmatmul.bf16.gmra.mxu0 %v690
        %v762 = vpop.f32.mrf.mxu0
        %v763 = vadd.f32 %v730, %v762
        %v764 = vpop.f32.mrf.mxu0
        %v765 = vadd.f32 %v732, %v764
        %766 = vmatmul.bf16.gmra.mxu0 %v693
        %v767 = vpop.f32.mrf.mxu0
        %v768 = vadd.f32 %v735, %v767
        %v769 = vpop.f32.mrf.mxu0
        %v770 = vadd.f32 %v737, %v769
        %771 = vmatmul.bf16.gmra.mxu0 %v696
        %v772 = vpop.f32.mrf.mxu0
        %v773 = vadd.f32 %v740, %v772
        %v774 = vpop.f32.mrf.mxu0
        %v775 = vadd.f32 %v742, %v774
        %776 = vmatmul.bf16.gmra.mxu0 %v699
        %v777 = vpop.f32.mrf.mxu0
        %v778 = vadd.f32 %v745, %v777
        %v779 = vpop.f32.mrf.mxu0
        %v780 = vadd.f32 %v747, %v779
        %781 = vmatmul.bf16.gmra.mxu0 %v702
        %v782 = vpop.f32.mrf.mxu0
        %v783 = vadd.f32 %v750, %v782
        %v784 = vpop.f32.mrf.mxu0
        %785 = vdwg.mxu0
        %786 = vmatpush.bf16.msra.mxu0 %v641
        %787 = vmatpush.bf16.msra.mxu0 %v637
        %788 = vmatpush.bf16.msra.mxu0 %v633
        %789 = vmatpush.bf16.msra.mxu0 %v629
        %790 = vmatpush.bf16.msra.mxu0 %v625
        %791 = vmatpush.bf16.msra.mxu0 %v621
        %792 = vmatpush.bf16.msra.mxu0 %v617
        %793 = vmatpush.bf16.msra.mxu0 %v613
        %794 = vmatmul.bf16.gmra.mxu0 %v477
        %v795 = vpop.f32.mrf.mxu0
        %v796 = vadd.f32 0.0, %v795
        %v797 = vpop.f32.mrf.mxu0
        %v798 = vadd.f32 0.0, %v797
        %799 = vmatmul.bf16.gmra.mxu0 %v479
        %v800 = vpop.f32.mrf.mxu0
        %v801 = vadd.f32 0.0, %v800
        %v802 = vpop.f32.mrf.mxu0
        %v803 = vadd.f32 0.0, %v802
        %804 = vmatmul.bf16.gmra.mxu0 %v481
        %v805 = vpop.f32.mrf.mxu0
        %v806 = vadd.f32 0.0, %v805
        %v807 = vpop.f32.mrf.mxu0
        %v808 = vadd.f32 0.0, %v807
        %809 = vmatmul.bf16.gmra.mxu0 %v483
        %v810 = vpop.f32.mrf.mxu0
        %v811 = vadd.f32 0.0, %v810
        %v812 = vpop.f32.mrf.mxu0
        %v813 = vadd.f32 0.0, %v812
        %814 = vmatmul.bf16.gmra.mxu0 %v485
        %v815 = vpop.f32.mrf.mxu0
        %v816 = vadd.f32 0.0, %v815
        %v817 = vpop.f32.mrf.mxu0
        %818 = vdwg.mxu0
        %819 = vmatpush.bf16.msra.mxu0 0
        %820 = vmatpush.bf16.msra.mxu0 0
        %821 = vmatpush.bf16.msra.mxu0 0
        %822 = vmatpush.bf16.msra.mxu0 0
        %823 = vmatpush.bf16.msra.mxu0 0
        %824 = vmatpush.bf16.msra.mxu0 0
        %825 = vmatpush.bf16.msra.mxu0 %v712
        %826 = vmatpush.bf16.msra.mxu0 %v645
        %827 = vmatmul.bf16.gmra.mxu0 %v690
        %v828 = vpop.f32.mrf.mxu0
        %v829 = vadd.f32 %v796, %v828
        %v830 = vpop.f32.mrf.mxu0
        %v831 = vadd.f32 %v798, %v830
        %832 = vmatmul.bf16.gmra.mxu0 %v693
        %v833 = vpop.f32.mrf.mxu0
        %v834 = vadd.f32 %v801, %v833
        %v835 = vpop.f32.mrf.mxu0
        %v836 = vadd.f32 %v803, %v835
        %837 = vmatmul.bf16.gmra.mxu0 %v696
        %v838 = vpop.f32.mrf.mxu0
        %v839 = vadd.f32 %v806, %v838
        %v840 = vpop.f32.mrf.mxu0
        %v841 = vadd.f32 %v808, %v840
        %842 = vmatmul.bf16.gmra.mxu0 %v699
        %v843 = vpop.f32.mrf.mxu0
        %v844 = vadd.f32 %v811, %v843
        %v845 = vpop.f32.mrf.mxu0
        %v846 = vadd.f32 %v813, %v845
        %847 = vmatmul.bf16.gmra.mxu0 %v702
        %v848 = vpop.f32.mrf.mxu0
        %v849 = vadd.f32 %v816, %v848
        %v850 = vpop.f32.mrf.mxu0
        %851 = vdwg.mxu0
        %852 = vmatpush.bf16.msra.mxu0 %v642
        %853 = vmatpush.bf16.msra.mxu0 %v638
        %854 = vmatpush.bf16.msra.mxu0 %v634
        %855 = vmatpush.bf16.msra.mxu0 %v630
        %856 = vmatpush.bf16.msra.mxu0 %v626
        %857 = vmatpush.bf16.msra.mxu0 %v622
        %858 = vmatpush.bf16.msra.mxu0 %v618
        %859 = vmatpush.bf16.msra.mxu0 %v614
        %860 = vmatmul.bf16.gmra.mxu0 %v477
        %v861 = vpop.f32.mrf.mxu0
        %v862 = vadd.f32 0.0, %v861
        %v863 = vpop.f32.mrf.mxu0
        %v864 = vadd.f32 0.0, %v863
        %865 = vmatmul.bf16.gmra.mxu0 %v479
        %v866 = vpop.f32.mrf.mxu0
        %v867 = vadd.f32 0.0, %v866
        %v868 = vpop.f32.mrf.mxu0
        %v869 = vadd.f32 0.0, %v868
        %870 = vmatmul.bf16.gmra.mxu0 %v481
        %v871 = vpop.f32.mrf.mxu0
        %v872 = vadd.f32 0.0, %v871
        %v873 = vpop.f32.mrf.mxu0
        %v874 = vadd.f32 0.0, %v873
        %875 = vmatmul.bf16.gmra.mxu0 %v483
        %v876 = vpop.f32.mrf.mxu0
        %v877 = vadd.f32 0.0, %v876
        %v878 = vpop.f32.mrf.mxu0
        %v879 = vadd.f32 0.0, %v878
        %880 = vmatmul.bf16.gmra.mxu0 %v485
        %v881 = vpop.f32.mrf.mxu0
        %v882 = vadd.f32 0.0, %v881
        %v883 = vpop.f32.mrf.mxu0
        %884 = vdwg.mxu0
        %885 = vmatpush.bf16.msra.mxu0 0
        %886 = vmatpush.bf16.msra.mxu0 0
        %887 = vmatpush.bf16.msra.mxu0 0
        %888 = vmatpush.bf16.msra.mxu0 0
        %889 = vmatpush.bf16.msra.mxu0 0
        %890 = vmatpush.bf16.msra.mxu0 0
        %891 = vmatpush.bf16.msra.mxu0 %v715
        %892 = vmatpush.bf16.msra.mxu0 %v646
        %893 = vmatmul.bf16.gmra.mxu0 %v690
        %v894 = vpop.f32.mrf.mxu0
        %v895 = vadd.f32 %v862, %v894
        %v896 = vpop.f32.mrf.mxu0
        %v897 = vadd.f32 %v864, %v896
        %898 = vmatmul.bf16.gmra.mxu0 %v693
        %v899 = vpop.f32.mrf.mxu0
        %v900 = vadd.f32 %v867, %v899
        %v901 = vpop.f32.mrf.mxu0
        %v902 = vadd.f32 %v869, %v901
        %903 = vmatmul.bf16.gmra.mxu0 %v696
        %v904 = vpop.f32.mrf.mxu0
        %v905 = vadd.f32 %v872, %v904
        %v906 = vpop.f32.mrf.mxu0
        %v907 = vadd.f32 %v874, %v906
        %908 = vmatmul.bf16.gmra.mxu0 %v699
        %v909 = vpop.f32.mrf.mxu0
        %v910 = vadd.f32 %v877, %v909
        %v911 = vpop.f32.mrf.mxu0
        %v912 = vadd.f32 %v879, %v911
        %913 = vmatmul.bf16.gmra.mxu0 %v702
        %v914 = vpop.f32.mrf.mxu0
        %v915 = vadd.f32 %v882, %v914
        %v916 = vpop.f32.mrf.mxu0
        %917 = vdwg.mxu0
        %918 = vmatpush.bf16.msra.mxu0 %v643
        %919 = vmatpush.bf16.msra.mxu0 %v639
        %920 = vmatpush.bf16.msra.mxu0 %v635
        %921 = vmatpush.bf16.msra.mxu0 %v631
        %922 = vmatpush.bf16.msra.mxu0 %v627
        %923 = vmatpush.bf16.msra.mxu0 %v623
        %924 = vmatpush.bf16.msra.mxu0 %v619
        %925 = vmatpush.bf16.msra.mxu0 %v615
        %926 = vmatmul.bf16.gmra.mxu0 %v477
        %v927 = vpop.f32.mrf.mxu0
        %v928 = vadd.f32 0.0, %v927
        %v929 = vpop.f32.mrf.mxu0
        %v930 = vadd.f32 0.0, %v929
        %931 = vmatmul.bf16.gmra.mxu0 %v479
        %v932 = vpop.f32.mrf.mxu0
        %v933 = vadd.f32 0.0, %v932
        %v934 = vpop.f32.mrf.mxu0
        %v935 = vadd.f32 0.0, %v934
        %936 = vmatmul.bf16.gmra.mxu0 %v481
        %v937 = vpop.f32.mrf.mxu0
        %v938 = vadd.f32 0.0, %v937
        %v939 = vpop.f32.mrf.mxu0
        %v940 = vadd.f32 0.0, %v939
        %941 = vmatmul.bf16.gmra.mxu0 %v483
        %v942 = vpop.f32.mrf.mxu0
        %v943 = vadd.f32 0.0, %v942
        %v944 = vpop.f32.mrf.mxu0
        %v945 = vadd.f32 0.0, %v944
        %946 = vmatmul.bf16.gmra.mxu0 %v485
        %v947 = vpop.f32.mrf.mxu0
        %v948 = vadd.f32 0.0, %v947
        %v949 = vpop.f32.mrf.mxu0
        %950 = vdwg.mxu0
        %951 = vmatpush.bf16.msra.mxu0 0
        %952 = vmatpush.bf16.msra.mxu0 0
        %953 = vmatpush.bf16.msra.mxu0 0
        %954 = vmatpush.bf16.msra.mxu0 0
        %955 = vmatpush.bf16.msra.mxu0 0
        %956 = vmatpush.bf16.msra.mxu0 0
        %957 = vmatpush.bf16.msra.mxu0 %v718
        %958 = vmatpush.bf16.msra.mxu0 %v647
        %959 = vmatmul.bf16.gmra.mxu0 %v690
        %v960 = vpop.f32.mrf.mxu0
        %v961 = vadd.f32 %v928, %v960
        %v962 = vpop.f32.mrf.mxu0
        %v963 = vadd.f32 %v930, %v962
        %964 = vmatmul.bf16.gmra.mxu0 %v693
        %v965 = vpop.f32.mrf.mxu0
        %v966 = vadd.f32 %v933, %v965
        %v967 = vpop.f32.mrf.mxu0
        %v968 = vadd.f32 %v935, %v967
        %969 = vmatmul.bf16.gmra.mxu0 %v696
        %v970 = vpop.f32.mrf.mxu0
        %v971 = vadd.f32 %v938, %v970
        %v972 = vpop.f32.mrf.mxu0
        %v973 = vadd.f32 %v940, %v972
        %974 = vmatmul.bf16.gmra.mxu0 %v699
        %v975 = vpop.f32.mrf.mxu0
        %v976 = vadd.f32 %v943, %v975
        %v977 = vpop.f32.mrf.mxu0
        %v978 = vadd.f32 %v945, %v977
        %979 = vmatmul.bf16.gmra.mxu0 %v702
        %v980 = vpop.f32.mrf.mxu0
        %v981 = vadd.f32 %v948, %v980
        %v982 = vpop.f32.mrf.mxu0
        %983 = vdwg.mxu0
        %v984 = vmax.f32 %v763, 0.0
        %v985 = vmax.f32 %v829, 0.0
        %v986 = vmax.f32 %v895, 0.0
        %v987 = vmax.f32 %v961, 0.0
        %v988 = vmax.f32 %v765, 0.0
        %v989 = vmax.f32 %v831, 0.0
        %v990 = vmax.f32 %v897, 0.0
        %v991 = vmax.f32 %v963, 0.0
        %v992 = vmax.f32 %v768, 0.0
        %v993 = vmax.f32 %v834, 0.0
        %v994 = vmax.f32 %v900, 0.0
        %v995 = vmax.f32 %v966, 0.0
        %v996 = vmax.f32 %v770, 0.0
        %v997 = vmax.f32 %v836, 0.0
        %v998 = vmax.f32 %v902, 0.0
        %v999 = vmax.f32 %v968, 0.0
        %v1000 = vmax.f32 %v773, 0.0
        %v1001 = vmax.f32 %v839, 0.0
        %v1002 = vmax.f32 %v905, 0.0
        %v1003 = vmax.f32 %v971, 0.0
        %v1004 = vmax.f32 %v775, 0.0
        %v1005 = vmax.f32 %v841, 0.0
        %v1006 = vmax.f32 %v907, 0.0
        %v1007 = vmax.f32 %v973, 0.0
        %v1008 = vmax.f32 %v778, 0.0
        %v1009 = vmax.f32 %v844, 0.0
        %v1010 = vmax.f32 %v910, 0.0
        %v1011 = vmax.f32 %v976, 0.0
        %v1012 = vmax.f32 %v780, 0.0
        %v1013 = vmax.f32 %v846, 0.0
        %v1014 = vmax.f32 %v912, 0.0
        %v1015 = vmax.f32 %v978, 0.0
        %v1016 = vmax.f32 %v783, 0.0
        %v1017 = vmax.f32 %v849, 0.0
        %v1018 = vmax.f32 %v915, 0.0
        %v1019 = vmax.f32 %v981, 0.0
        %v1020 = vpack.c.bf16 %v988, %v984
        %v1021 = vpack.c.bf16 %v989, %v985
        %v1022 = vpack.c.bf16 %v990, %v986
        %v1023 = vpack.c.bf16 %v991, %v987
        %v1024 = vpack.c.bf16 %v996, %v992
        %v1025 = vpack.c.bf16 %v997, %v993
        %v1026 = vpack.c.bf16 %v998, %v994
        %v1027 = vpack.c.bf16 %v999, %v995
        %v1028 = vpack.c.bf16 %v1004, %v1000
        %v1029 = vpack.c.bf16 %v1005, %v1001
        %v1030 = vpack.c.bf16 %v1006, %v1002
        %v1031 = vpack.c.bf16 %v1007, %v1003
        %v1032 = vpack.c.bf16 %v1012, %v1008
        %v1033 = vpack.c.bf16 %v1013, %v1009
        %v1034 = vpack.c.bf16 %v1014, %v1010
        %v1035 = vpack.c.bf16 %v1015, %v1011
        %v1036 = vpack.c.bf16 %v1016, %v1016
        %v1037 = vpack.c.bf16 %v1017, %v1017
        %v1038 = vpack.c.bf16 %v1018, %v1018
        %v1039 = vpack.c.bf16 %v1019, %v1019
        %v1040 = vld [vmem:[%s2] sm:$0xf]
        %v1041 = vld [vmem:[%s3] sm:$0xff]
        %1043 = vset.pattern.permute.xlu0 0
        %1044 = vperm.xlu0 %1043, %v1041
        %v1045 = vpop.permute.xlu0 %1044
        %vm1047 = vcmask 588800
        %v1049 = vsel %vm1047, %v1040, 0
        %v1052 = vsel %vm704, %v1036, 0
        %v1055 = vsel %vm704, %v1037, 0
        %v1058 = vsel %vm704, %v1038, 0
        %v1061 = vsel %vm704, %v1039, 0
        %1063 = vmatpush.bf16.msra.mxu0 0
        %1064 = vmatpush.bf16.msra.mxu0 0
        %1065 = vmatpush.bf16.msra.mxu0 0
        %1066 = vmatpush.bf16.msra.mxu0 %v1052
        %1067 = vmatpush.bf16.msra.mxu0 %v1032
        %1068 = vmatpush.bf16.msra.mxu0 %v1028
        %1069 = vmatpush.bf16.msra.mxu0 %v1024
        %1070 = vmatpush.bf16.msra.mxu0 %v1020
        %1071 = vmatmul.bf16.gmra.mxu0 %v1049
        %v1072 = vpop.f32.mrf.mxu0
        %v1073 = vadd.f32 %v1045, %v1072
        %v1074 = vpop.f32.mrf.mxu0
        %1075 = vdwg.mxu0
        %1076 = vmatpush.bf16.msra.mxu0 0
        %1077 = vmatpush.bf16.msra.mxu0 0
        %1078 = vmatpush.bf16.msra.mxu0 0
        %1079 = vmatpush.bf16.msra.mxu0 %v1055
        %1080 = vmatpush.bf16.msra.mxu0 %v1033
        %1081 = vmatpush.bf16.msra.mxu0 %v1029
        %1082 = vmatpush.bf16.msra.mxu0 %v1025
        %1083 = vmatpush.bf16.msra.mxu0 %v1021
        %1084 = vmatmul.bf16.gmra.mxu0 %v1049
        %v1085 = vpop.f32.mrf.mxu0
        %v1086 = vadd.f32 %v1045, %v1085
        %v1087 = vpop.f32.mrf.mxu0
        %1088 = vdwg.mxu0
        %1089 = vmatpush.bf16.msra.mxu0 0
        %1090 = vmatpush.bf16.msra.mxu0 0
        %1091 = vmatpush.bf16.msra.mxu0 0
        %1092 = vmatpush.bf16.msra.mxu0 %v1058
        %1093 = vmatpush.bf16.msra.mxu0 %v1034
        %1094 = vmatpush.bf16.msra.mxu0 %v1030
        %1095 = vmatpush.bf16.msra.mxu0 %v1026
        %1096 = vmatpush.bf16.msra.mxu0 %v1022
        %1097 = vmatmul.bf16.gmra.mxu0 %v1049
        %v1098 = vpop.f32.mrf.mxu0
        %v1099 = vadd.f32 %v1045, %v1098
        %v1100 = vpop.f32.mrf.mxu0
        %1101 = vdwg.mxu0
        %1102 = vmatpush.bf16.msra.mxu0 0
        %1103 = vmatpush.bf16.msra.mxu0 0
        %1104 = vmatpush.bf16.msra.mxu0 0
        %1105 = vmatpush.bf16.msra.mxu0 %v1061
        %1106 = vmatpush.bf16.msra.mxu0 %v1035
        %1107 = vmatpush.bf16.msra.mxu0 %v1031
        %1108 = vmatpush.bf16.msra.mxu0 %v1027
        %1109 = vmatpush.bf16.msra.mxu0 %v1023
        %1110 = vmatmul.bf16.gmra.mxu0 %v1049
        %v1111 = vpop.f32.mrf.mxu0
        %v1112 = vadd.f32 %v1045, %v1111
        %v1113 = vpop.f32.mrf.mxu0
        %1114 = vdwg.mxu0
        %v1115 = vmax.f32 %v1073, 0.0
        %v1116 = vmax.f32 %v1086, 0.0
        %v1117 = vmax.f32 %v1099, 0.0
        %v1118 = vmax.f32 %v1112, 0.0
        %v1119 = vpack.c.bf16 %v1115, %v1115
        %v1120 = vpack.c.bf16 %v1116, %v1116
        %v1121 = vpack.c.bf16 %v1117, %v1117
        %v1122 = vpack.c.bf16 %v1118, %v1118
        %v1123 = vld [vmem:[%s4] sm:$0xf]
        %v1124 = vld [vmem:[%s4 + $0x4] sm:$0xf]
        %v1125 = vld [vmem:[%s5] sm:$0xff]
        %v1126 = vld [vmem:[%s5 + $0x8] sm:$0xff]
        %1128 = vset.pattern.permute.xlu0 0
        %1129 = vperm.xlu0 %1128, %v1125
        %v1130 = vpop.permute.xlu0 %1129
        %1133 = vset.pattern.permute.xlu0 0
        %1134 = vperm.xlu0 %1133, %v1126
        %v1135 = vpop.permute.xlu0 %1134
        %v1139 = vunpack.c.l.b16 %v1123
        %v1140 = vunpack.c.l.b16 %v1124
        %v1141 = vpack.c.b16 %v1140, %v1139
        %vm1142 = vcmask 64512
        %v1144 = vsel %vm1142, %v1141, 0
        %v1147 = vsel %vm704, %v1119, 0
        %v1150 = vsel %vm704, %v1120, 0
        %v1153 = vsel %vm704, %v1121, 0
        %v1156 = vsel %vm704, %v1122, 0
        %1158 = vmatpush.bf16.msra.mxu0 0
        %1159 = vmatpush.bf16.msra.mxu0 0
        %1160 = vmatpush.bf16.msra.mxu0 0
        %1161 = vmatpush.bf16.msra.mxu0 0
        %1162 = vmatpush.bf16.msra.mxu0 0
        %1163 = vmatpush.bf16.msra.mxu0 0
        %1164 = vmatpush.bf16.msra.mxu0 0
        %1165 = vmatpush.bf16.msra.mxu0 %v1147
        %1166 = vmatmul.bf16.gmra.mxu0 %v1144
        %v1167 = vpop.f32.mrf.mxu0
        %v1168 = vadd.f32 %v1130, %v1167
        %v1169 = vpop.f32.mrf.mxu0
        %v1170 = vadd.f32 %v1135, %v1169
        %1171 = vdwg.mxu0
        %1172 = vmatpush.bf16.msra.mxu0 0
        %1173 = vmatpush.bf16.msra.mxu0 0
        %1174 = vmatpush.bf16.msra.mxu0 0
        %1175 = vmatpush.bf16.msra.mxu0 0
        %1176 = vmatpush.bf16.msra.mxu0 0
        %1177 = vmatpush.bf16.msra.mxu0 0
        %1178 = vmatpush.bf16.msra.mxu0 0
        %1179 = vmatpush.bf16.msra.mxu0 %v1150
        %1180 = vmatmul.bf16.gmra.mxu0 %v1144
        %v1181 = vpop.f32.mrf.mxu0
        %v1182 = vadd.f32 %v1130, %v1181
        %v1183 = vpop.f32.mrf.mxu0
        %v1184 = vadd.f32 %v1135, %v1183
        %1185 = vdwg.mxu0
        %1186 = vmatpush.bf16.msra.mxu0 0
        %1187 = vmatpush.bf16.msra.mxu0 0
        %1188 = vmatpush.bf16.msra.mxu0 0
        %1189 = vmatpush.bf16.msra.mxu0 0
        %1190 = vmatpush.bf16.msra.mxu0 0
        %1191 = vmatpush.bf16.msra.mxu0 0
        %1192 = vmatpush.bf16.msra.mxu0 0
        %1193 = vmatpush.bf16.msra.mxu0 %v1153
        %1194 = vmatmul.bf16.gmra.mxu0 %v1144
        %v1195 = vpop.f32.mrf.mxu0
        %v1196 = vadd.f32 %v1130, %v1195
        %v1197 = vpop.f32.mrf.mxu0
        %v1198 = vadd.f32 %v1135, %v1197
        %1199 = vdwg.mxu0
        %1200 = vmatpush.bf16.msra.mxu0 0
        %1201 = vmatpush.bf16.msra.mxu0 0
        %1202 = vmatpush.bf16.msra.mxu0 0
        %1203 = vmatpush.bf16.msra.mxu0 0
        %1204 = vmatpush.bf16.msra.mxu0 0
        %1205 = vmatpush.bf16.msra.mxu0 0
        %1206 = vmatpush.bf16.msra.mxu0 0
        %1207 = vmatpush.bf16.msra.mxu0 %v1156
        %1208 = vmatmul.bf16.gmra.mxu0 %v1144
        %v1209 = vpop.f32.mrf.mxu0
        %v1210 = vadd.f32 %v1130, %v1209
        %v1211 = vpop.f32.mrf.mxu0
        %v1212 = vadd.f32 %v1135, %v1211
        %1213 = vdwg.mxu0
        %v1214 = vld [vmem:[%s6] sm:$0xf]
        %v1215 = vld [vmem:[%s6 + $0x4] sm:$0xf]
        %v1216 = vld [vmem:[%s7] sm:$0xff]
        %v1217 = vld [vmem:[%s7 + $0x8] sm:$0xff]
        %1219 = vset.pattern.permute.xlu0 0
        %1220 = vperm.xlu0 %1219, %v1216
        %v1221 = vpop.permute.xlu0 %1220
        %1224 = vset.pattern.permute.xlu0 0
        %1225 = vperm.xlu0 %1224, %v1217
        %v1226 = vpop.permute.xlu0 %1225
        %v1230 = vunpack.c.l.b16 %v1214
        %v1231 = vunpack.c.l.b16 %v1215
        %v1232 = vpack.c.b16 %v1231, %v1230
        %vm1233 = vcmask 130048
        %v1235 = vsel %vm1233, %v1232, 0
        %1237 = vmatpush.bf16.msra.mxu0 0
        %1238 = vmatpush.bf16.msra.mxu0 0
        %1239 = vmatpush.bf16.msra.mxu0 0
        %1240 = vmatpush.bf16.msra.mxu0 0
        %1241 = vmatpush.bf16.msra.mxu0 0
        %1242 = vmatpush.bf16.msra.mxu0 0
        %1243 = vmatpush.bf16.msra.mxu0 0
        %1244 = vmatpush.bf16.msra.mxu0 %v628
        %1245 = vmatmul.bf16.gmra.mxu0 %v1235
        %v1246 = vpop.f32.mrf.mxu0
        %v1247 = vadd.f32 %v1221, %v1246
        %v1248 = vpop.f32.mrf.mxu0
        %v1249 = vadd.f32 %v1226, %v1248
        %1250 = vdwg.mxu0
        %1251 = vmatpush.bf16.msra.mxu0 0
        %1252 = vmatpush.bf16.msra.mxu0 0
        %1253 = vmatpush.bf16.msra.mxu0 0
        %1254 = vmatpush.bf16.msra.mxu0 0
        %1255 = vmatpush.bf16.msra.mxu0 0
        %1256 = vmatpush.bf16.msra.mxu0 0
        %1257 = vmatpush.bf16.msra.mxu0 0
        %1258 = vmatpush.bf16.msra.mxu0 %v629
        %1259 = vmatmul.bf16.gmra.mxu0 %v1235
        %v1260 = vpop.f32.mrf.mxu0
        %v1261 = vadd.f32 %v1221, %v1260
        %v1262 = vpop.f32.mrf.mxu0
        %v1263 = vadd.f32 %v1226, %v1262
        %1264 = vdwg.mxu0
        %1265 = vmatpush.bf16.msra.mxu0 0
        %1266 = vmatpush.bf16.msra.mxu0 0
        %1267 = vmatpush.bf16.msra.mxu0 0
        %1268 = vmatpush.bf16.msra.mxu0 0
        %1269 = vmatpush.bf16.msra.mxu0 0
        %1270 = vmatpush.bf16.msra.mxu0 0
        %1271 = vmatpush.bf16.msra.mxu0 0
        %1272 = vmatpush.bf16.msra.mxu0 %v630
        %1273 = vmatmul.bf16.gmra.mxu0 %v1235
        %v1274 = vpop.f32.mrf.mxu0
        %v1275 = vadd.f32 %v1221, %v1274
        %v1276 = vpop.f32.mrf.mxu0
        %v1277 = vadd.f32 %v1226, %v1276
        %1278 = vdwg.mxu0
        %1279 = vmatpush.bf16.msra.mxu0 0
        %1280 = vmatpush.bf16.msra.mxu0 0
        %1281 = vmatpush.bf16.msra.mxu0 0
        %1282 = vmatpush.bf16.msra.mxu0 0
        %1283 = vmatpush.bf16.msra.mxu0 0
        %1284 = vmatpush.bf16.msra.mxu0 0
        %1285 = vmatpush.bf16.msra.mxu0 0
        %1286 = vmatpush.bf16.msra.mxu0 %v631
        %1287 = vmatmul.bf16.gmra.mxu0 %v1235
        %v1288 = vpop.f32.mrf.mxu0
        %v1289 = vadd.f32 %v1221, %v1288
        %v1290 = vpop.f32.mrf.mxu0
        %v1291 = vadd.f32 %v1226, %v1290
        %1292 = vdwg.mxu0
        %v1293 = vadd.f32 %v1168, %v1247
        %v1294 = vadd.f32 %v1182, %v1261
        %v1295 = vadd.f32 %v1196, %v1275
        %v1296 = vadd.f32 %v1210, %v1289
        %v1297 = vadd.f32 %v1170, %v1249
        %v1298 = vadd.f32 %v1184, %v1263
        %v1299 = vadd.f32 %v1198, %v1277
        %v1300 = vadd.f32 %v1212, %v1291
        %v1301 = vmax.f32 %v1293, 0.0
        %v1302 = vmax.f32 %v1294, 0.0
        %v1303 = vmax.f32 %v1295, 0.0
        %v1304 = vmax.f32 %v1296, 0.0
        %v1305 = vmax.f32 %v1297, 0.0
        %v1306 = vmax.f32 %v1298, 0.0
        %v1307 = vmax.f32 %v1299, 0.0
        %v1308 = vmax.f32 %v1300, 0.0
        %v1309 = vpack.c.bf16 %v1302, %v1301
        %v1310 = vpack.c.bf16 %v1304, %v1303
        %v1311 = vpack.c.bf16 %v1306, %v1305
        %v1312 = vpack.c.bf16 %v1308, %v1307
        %1313 = vst [vmem:[%s397] sm:$0xff] %v1309
        %1314 = vst [vmem:[%s397 + $0x8] sm:$0xff] %v1310
        %1315 = vst [vmem:[%s397 + $0x10] sm:$0xff] %v1311
        %1316 = vst [vmem:[%s397 + $0x18] sm:$0xff] %v1312
        %s1317 = sand.u32 %s200, 1
        %s1318 = sand.u32 %s200, 1
        %s1319 = smul.addr %s1318, 32
        %s1320 = scalar_lea.vmem [#allocation3], %s1319
        // Predicated region
        $region76: #{fpn_backbone_radar.9} parent=70 // pred_check
          %p1321 = pneg %p210
        $region77: #{fpn_backbone_radar.9} parent=70 // pred_check_branch
          %1323 = sbr.rel (%p1321) target = $region79
        $region78: #{fpn_backbone_radar.9} parent=70 // pred_region
          %s1324 = smul.u32 4, %s19
          %s1325 = smul.addr %s1324, 4
          %s1326 = scalar_lea.vmem %s8, %s1325
          // Predicated region
          $region80: #{fpn_backbone_radar.9} parent=78 // pred_check
            _
          $region81: #{fpn_backbone_radar.9} parent=78 // pred_check_branch
            %1328 = sbr.rel (0) target = $region83
          $region82: #{fpn_backbone_radar.9} parent=78 // pred_region
            // Predicated region
            $region84: #{fpn_backbone_radar.9} parent=82 // pred_check
              _
            $region85: #{fpn_backbone_radar.9} parent=82 // pred_check_branch
              %1330 = sbr.rel (0) target = $region87
            $region86: #{fpn_backbone_radar.9} parent=82 // pred_region
              loop: start=0, step=1, limit=1
              $region88: #{fpn_backbone_radar.9} parent=86 // loop_pre_header
                _
              $region89: #{fpn_backbone_radar.9} parent=86 // loop_header
                %s1332 = sphi 0, %s1336
                %p1333 = scmp.ge.s32.totalorder %s1332, 1
                %s1337 = sphi %s1320, %s1320
                %s1338 = sphi %s1326, %s1326
              $region90: #{fpn_backbone_radar.9} parent=86 // loop_header_branch
                %1335 = sbr.rel (%p1333) target = $region94
              $region91: #{fpn_backbone_radar.9} parent=86 // loop_body
                %v1339 = vld [vmem:[%s1337] sm:$0xff]
                %1340 = vst [vmem:[%s1338] sm:$0xff] %v1339
                %v1341 = vld [vmem:[%s1337 + $0x8] sm:$0xff]
                %1342 = vst [vmem:[%s1338 + $0x8] sm:$0xff] %v1341
                %v1343 = vld [vmem:[%s1337 + $0x10] sm:$0xff]
                %1344 = vst [vmem:[%s1338 + $0x20] sm:$0xff] %v1343
                %v1345 = vld [vmem:[%s1337 + $0x18] sm:$0xff]
                %1346 = vst [vmem:[%s1338 + $0x28] sm:$0xff] %v1345
              $region92: #{fpn_backbone_radar.9} parent=86 // loop_footer
                %s1336 = sadd.s32 1, %s1332
              $region93: #{fpn_backbone_radar.9} parent=86 // loop_footer_branch
                %1331 = sbr.rel target = $region89
              $region94: #{fpn_backbone_radar.9} parent=86 // loop_exit
                _
            $region87: #{fpn_backbone_radar.9} parent=82 // pred_fallthru
              _
            // Predicated region
            $region95: #{fpn_backbone_radar.9} parent=82 // pred_check
              _
            $region96: #{fpn_backbone_radar.9} parent=82 // pred_check_branch
              %1348 = sbr.rel target = $region98
            $region97: #{fpn_backbone_radar.9} parent=82 // pred_region
              _
            $region98: #{fpn_backbone_radar.9} parent=82 // pred_fallthru
              _
          $region83: #{fpn_backbone_radar.9} parent=78 // pred_fallthru
            _
          %1349 = vnop
        $region79: #{fpn_backbone_radar.9} parent=70 // pred_fallthru
          _
      $region71: #{fpn_backbone_radar.9} parent=5 // pred_fallthru
        _
      %p1350 = scmp.le.s32.totalorder 2, %s14
      // Predicated region
      $region99: #{fpn_backbone_radar.9} parent=5 // pred_check
        %p1351 = pneg %p1350
      $region100: #{fpn_backbone_radar.9} parent=5 // pred_check_branch
        %1353 = sbr.rel (%p1351) target = $region102
      $region101: #{fpn_backbone_radar.9} parent=5 // pred_region
        %s1354 = ssub.s32 %s14, 2
        // Predicated region
        $region103: #{fpn_backbone_radar.9} parent=101 // pred_check
          %p1355 = pneg %p216
        $region104: #{fpn_backbone_radar.9} parent=101 // pred_check_branch
          %1357 = sbr.rel (%p1355) target = $region106
        $region105: #{fpn_backbone_radar.9} parent=101 // pred_region
          %s1358 = sand.u32 %s201, 1
          %s1359 = sand.u32 %s201, 1
          %s1360 = smul.addr %s1359, 32
          %s1361 = scalar_lea.vmem [#allocation3], %s1360
        $region106: #{fpn_backbone_radar.9} parent=101 // pred_fallthru
          _
      $region102: #{fpn_backbone_radar.9} parent=5 // pred_fallthru
        _
    $region6: #{fpn_backbone_radar.9} parent=1 // loop_footer
      %s18 = sadd.s32 1, %s14
    $region7: #{fpn_backbone_radar.9} parent=1 // loop_footer_branch
      %13 = sbr.rel target = $region3
    $region8: #{fpn_backbone_radar.9} parent=1 // loop_exit
      _

// kernel: fpn_backbone_radar.10
$region0: #{fpn_backbone_radar.10}
  #allocation0 [shape = 'u32[]', space=smem, size = 0x4, offset = 0x4, fixed_abs, tag = 'smem constant byte address 0x4 - core index']
  #allocation1 [shape = 'u32[72,128]{1,0:T(1,128)}', space=vmem, size = 0x9000, scoped, tag = 'internal scratch']
  %s0 = inlined_call_operand.vmem [shape: bf16[153,256], index: 0, kind: input, shape index: {}]
  %s1 = inlined_call_operand.vmem [shape: bf16[72,153], index: 1, kind: input, shape index: {}]
  %s2 = inlined_call_operand.vmem [shape: bf16[8,72], index: 2, kind: input, shape index: {}]
  %s3 = inlined_call_operand.vmem [shape: f32[8,1], index: 3, kind: input, shape index: {}]
  %s4 = inlined_call_operand.vmem [shape: bf16[16,8], index: 4, kind: input, shape index: {}]
  %s5 = inlined_call_operand.vmem [shape: f32[16,1], index: 5, kind: input, shape index: {}]
  %s6 = inlined_call_operand.vmem [shape: bf16[16,16], index: 6, kind: input, shape index: {}]
  %s7 = inlined_call_operand.vmem [shape: f32[16,1], index: 7, kind: input, shape index: {}]
  %s8 = inlined_call_operand.vmem [shape: bf16[16,256], index: 8, kind: output, shape index: {}]
  %s9 = sld [smem:[#allocation0]]
  $region143: #{fpn_backbone_radar.10} parent=0
    _
  %s11 = ssub.s32 1, %s9
  %s12 = scalar_select 0, %s11, %s9
  $region1: #{fpn_backbone_radar.10} parent=0
    #allocation2 [shape = 'u8[81920]{0}', space=vmem, size = 0x14000, scoped, tag = 'input window, operand 0']
    #allocation3 [shape = 'u8[8192]{0}', space=vmem, size = 0x2000, scoped, tag = 'output window, operand 0']
    loop: start=0, step=1, limit=4
    $region2: #{fpn_backbone_radar.10} parent=1 // loop_pre_header
      _
    $region3: #{fpn_backbone_radar.10} parent=1 // loop_header
      %s14 = sphi 0, %s18
      %p15 = scmp.ge.s32.totalorder %s14, 4
      %s24 = sphi 0, %s26
      %s27 = sphi 0, %s24
      %s28 = sphi 0, %s27
      %s44 = sphi 0, %s28
      %s48 = sphi 0, %s48
      %s50 = sphi 0, %s48
      %s51 = sphi 0, %s50
      %s65 = sphi 0, %s51
      %s69 = sphi 0, %s69
      %s71 = sphi 0, %s69
      %s72 = sphi 0, %s71
      %s86 = sphi 0, %s72
      %s90 = sphi 0, %s90
      %s92 = sphi 0, %s90
      %s93 = sphi 0, %s92
      %s107 = sphi 0, %s93
      %s111 = sphi 0, %s111
      %s113 = sphi 0, %s111
      %s114 = sphi 0, %s113
      %s128 = sphi 0, %s114
      %s132 = sphi 0, %s132
      %s134 = sphi 0, %s132
      %s135 = sphi 0, %s134
      %s149 = sphi 0, %s135
      %s153 = sphi 0, %s153
      %s155 = sphi 0, %s153
      %s156 = sphi 0, %s155
      %s170 = sphi 0, %s156
      %s174 = sphi 0, %s174
      %s176 = sphi 0, %s174
      %s177 = sphi 0, %s176
      %s191 = sphi 0, %s177
      %s197 = sphi 0, %s199
      %s200 = sphi 0, %s197
      %s201 = sphi 0, %s200
      %s217 = sphi 0, %s201
    $region4: #{fpn_backbone_radar.10} parent=1 // loop_header_branch
      %17 = sbr.rel (%p15) target = $region8
    $region5: #{fpn_backbone_radar.10} parent=1 // loop_body
      %s19 = ssub.s32 %s14, 1
      %s20 = ssub.s32 %s14, 2
      %s21 = sadd.s32 %s14, 1
      %s22 = ssub.s32 %s14, %s21
      %p23 = scmp.eq.s32.totalorder %s22, 0
      %s25 = sadd.s32 %s24, 1
      %s26 = scalar_select %p23, %s24, %s25
      %p29 = pneg %p23
      %p30 = scmp.eq.s32.totalorder %s14, 1
      %p31 = por %p29, %p30
      %p32 = scmp.ne.s32.totalorder %s24, %s27
      %p33 = scmp.eq.s32.totalorder %s14, 0
      %p34 = por %p32, %p33
      %p35 = scmp.ne.s32.totalorder %s24, %s27
      %p36 = scmp.eq.s32.totalorder %s19, 1
      %p37 = por %p35, %p36
      %p38 = scmp.ne.s32.totalorder %s27, %s28
      %p39 = scmp.eq.s32.totalorder %s19, 0
      %p40 = por %p38, %p39
      %p41 = scmp.ne.s32.totalorder %s27, %s28
      %p42 = scmp.eq.s32.totalorder %s20, 1
      %p43 = por %p41, %p42
      %p45 = scmp.ne.s32.totalorder %s28, %s44
      %p46 = scmp.eq.s32.totalorder %s20, 0
      %p47 = por %p45, %p46
      %s49 = sadd.s32 %s48, 1
      %p52 = scmp.eq.s32.totalorder %s14, 1
      %p53 = scmp.ne.s32.totalorder %s48, %s50
      %p54 = scmp.eq.s32.totalorder %s14, 0
      %p55 = por %p53, %p54
      %p56 = scmp.ne.s32.totalorder %s48, %s50
      %p57 = scmp.eq.s32.totalorder %s19, 1
      %p58 = por %p56, %p57
      %p59 = scmp.ne.s32.totalorder %s50, %s51
      %p60 = scmp.eq.s32.totalorder %s19, 0
      %p61 = por %p59, %p60
      %p62 = scmp.ne.s32.totalorder %s50, %s51
      %p63 = scmp.eq.s32.totalorder %s20, 1
      %p64 = por %p62, %p63
      %p66 = scmp.ne.s32.totalorder %s51, %s65
      %p67 = scmp.eq.s32.totalorder %s20, 0
      %p68 = por %p66, %p67
      %s70 = sadd.s32 %s69, 1
      %p73 = scmp.eq.s32.totalorder %s14, 1
      %p74 = scmp.ne.s32.totalorder %s69, %s71
      %p75 = scmp.eq.s32.totalorder %s14, 0
      %p76 = por %p74, %p75
      %p77 = scmp.ne.s32.totalorder %s69, %s71
      %p78 = scmp.eq.s32.totalorder %s19, 1
      %p79 = por %p77, %p78
      %p80 = scmp.ne.s32.totalorder %s71, %s72
      %p81 = scmp.eq.s32.totalorder %s19, 0
      %p82 = por %p80, %p81
      %p83 = scmp.ne.s32.totalorder %s71, %s72
      %p84 = scmp.eq.s32.totalorder %s20, 1
      %p85 = por %p83, %p84
      %p87 = scmp.ne.s32.totalorder %s72, %s86
      %p88 = scmp.eq.s32.totalorder %s20, 0
      %p89 = por %p87, %p88
      %s91 = sadd.s32 %s90, 1
      %p94 = scmp.eq.s32.totalorder %s14, 1
      %p95 = scmp.ne.s32.totalorder %s90, %s92
      %p96 = scmp.eq.s32.totalorder %s14, 0
      %p97 = por %p95, %p96
      %p98 = scmp.ne.s32.totalorder %s90, %s92
      %p99 = scmp.eq.s32.totalorder %s19, 1
      %p100 = por %p98, %p99
      %p101 = scmp.ne.s32.totalorder %s92, %s93
      %p102 = scmp.eq.s32.totalorder %s19, 0
      %p103 = por %p101, %p102
      %p104 = scmp.ne.s32.totalorder %s92, %s93
      %p105 = scmp.eq.s32.totalorder %s20, 1
      %p106 = por %p104, %p105
      %p108 = scmp.ne.s32.totalorder %s93, %s107
      %p109 = scmp.eq.s32.totalorder %s20, 0
      %p110 = por %p108, %p109
      %s112 = sadd.s32 %s111, 1
      %p115 = scmp.eq.s32.totalorder %s14, 1
      %p116 = scmp.ne.s32.totalorder %s111, %s113
      %p117 = scmp.eq.s32.totalorder %s14, 0
      %p118 = por %p116, %p117
      %p119 = scmp.ne.s32.totalorder %s111, %s113
      %p120 = scmp.eq.s32.totalorder %s19, 1
      %p121 = por %p119, %p120
      %p122 = scmp.ne.s32.totalorder %s113, %s114
      %p123 = scmp.eq.s32.totalorder %s19, 0
      %p124 = por %p122, %p123
      %p125 = scmp.ne.s32.totalorder %s113, %s114
      %p126 = scmp.eq.s32.totalorder %s20, 1
      %p127 = por %p125, %p126
      %p129 = scmp.ne.s32.totalorder %s114, %s128
      %p130 = scmp.eq.s32.totalorder %s20, 0
      %p131 = por %p129, %p130
      %s133 = sadd.s32 %s132, 1
      %p136 = scmp.eq.s32.totalorder %s14, 1
      %p137 = scmp.ne.s32.totalorder %s132, %s134
      %p138 = scmp.eq.s32.totalorder %s14, 0
      %p139 = por %p137, %p138
      %p140 = scmp.ne.s32.totalorder %s132, %s134
      %p141 = scmp.eq.s32.totalorder %s19, 1
      %p142 = por %p140, %p141
      %p143 = scmp.ne.s32.totalorder %s134, %s135
      %p144 = scmp.eq.s32.totalorder %s19, 0
      %p145 = por %p143, %p144
      %p146 = scmp.ne.s32.totalorder %s134, %s135
      %p147 = scmp.eq.s32.totalorder %s20, 1
      %p148 = por %p146, %p147
      %p150 = scmp.ne.s32.totalorder %s135, %s149
      %p151 = scmp.eq.s32.totalorder %s20, 0
      %p152 = por %p150, %p151
      %s154 = sadd.s32 %s153, 1
      %p157 = scmp.eq.s32.totalorder %s14, 1
      %p158 = scmp.ne.s32.totalorder %s153, %s155
      %p159 = scmp.eq.s32.totalorder %s14, 0
      %p160 = por %p158, %p159
      %p161 = scmp.ne.s32.totalorder %s153, %s155
      %p162 = scmp.eq.s32.totalorder %s19, 1
      %p163 = por %p161, %p162
      %p164 = scmp.ne.s32.totalorder %s155, %s156
      %p165 = scmp.eq.s32.totalorder %s19, 0
      %p166 = por %p164, %p165
      %p167 = scmp.ne.s32.totalorder %s155, %s156
      %p168 = scmp.eq.s32.totalorder %s20, 1
      %p169 = por %p167, %p168
      %p171 = scmp.ne.s32.totalorder %s156, %s170
      %p172 = scmp.eq.s32.totalorder %s20, 0
      %p173 = por %p171, %p172
      %s175 = sadd.s32 %s174, 1
      %p178 = scmp.eq.s32.totalorder %s14, 1
      %p179 = scmp.ne.s32.totalorder %s174, %s176
      %p180 = scmp.eq.s32.totalorder %s14, 0
      %p181 = por %p179, %p180
      %p182 = scmp.ne.s32.totalorder %s174, %s176
      %p183 = scmp.eq.s32.totalorder %s19, 1
      %p184 = por %p182, %p183
      %p185 = scmp.ne.s32.totalorder %s176, %s177
      %p186 = scmp.eq.s32.totalorder %s19, 0
      %p187 = por %p185, %p186
      %p188 = scmp.ne.s32.totalorder %s176, %s177
      %p189 = scmp.eq.s32.totalorder %s20, 1
      %p190 = por %p188, %p189
      %p192 = scmp.ne.s32.totalorder %s177, %s191
      %p193 = scmp.eq.s32.totalorder %s20, 0
      %p194 = por %p192, %p193
      %s195 = ssub.s32 %s14, %s21
      %p196 = scmp.eq.s32.totalorder %s195, 0
      %s198 = sadd.s32 %s197, 1
      %s199 = scalar_select %p196, %s197, %s198
      %p202 = pneg %p196
      %p203 = scmp.eq.s32.totalorder %s14, 1
      %p204 = por %p202, %p203
      %p205 = scmp.ne.s32.totalorder %s197, %s200
      %p206 = scmp.eq.s32.totalorder %s14, 0
      %p207 = por %p205, %p206
      %p208 = scmp.ne.s32.totalorder %s197, %s200
      %p209 = scmp.eq.s32.totalorder %s19, 1
      %p210 = por %p208, %p209
      %p211 = scmp.ne.s32.totalorder %s200, %s201
      %p212 = scmp.eq.s32.totalorder %s19, 0
      %p213 = por %p211, %p212
      %p214 = scmp.ne.s32.totalorder %s200, %s201
      %p215 = scmp.eq.s32.totalorder %s20, 1
      %p216 = por %p214, %p215
      %p218 = scmp.ne.s32.totalorder %s201, %s217
      %p219 = scmp.eq.s32.totalorder %s20, 0
      %p220 = por %p218, %p219
      %p221 = scmp.le.s32.totalorder 1, %s14
      %p222 = scmp.lt.s32.totalorder %s14, 3
      %p223 = pnand %p221, %p222
      %p224 = pneg %p223
      // Predicated region
      $region9: #{fpn_backbone_radar.10} parent=5 // pred_check
        _
      $region10: #{fpn_backbone_radar.10} parent=5 // pred_check_branch
        %226 = sbr.rel (%p223) target = $region12
      $region11: #{fpn_backbone_radar.10} parent=5 // pred_region
        %s227 = ssub.s32 %s14, 1
        // Predicated region
        $region13: #{fpn_backbone_radar.10} parent=11 // pred_check
          %p228 = pneg %p61
        $region14: #{fpn_backbone_radar.10} parent=11 // pred_check_branch
          %230 = sbr.rel (%p228) target = $region16
        $region15: #{fpn_backbone_radar.10} parent=11 // pred_region
          _
        $region16: #{fpn_backbone_radar.10} parent=11 // pred_fallthru
          _
        // Predicated region
        $region17: #{fpn_backbone_radar.10} parent=11 // pred_check
          %p231 = pneg %p82
        $region18: #{fpn_backbone_radar.10} parent=11 // pred_check_branch
          %233 = sbr.rel (%p231) target = $region20
        $region19: #{fpn_backbone_radar.10} parent=11 // pred_region
          _
        $region20: #{fpn_backbone_radar.10} parent=11 // pred_fallthru
          _
        // Predicated region
        $region21: #{fpn_backbone_radar.10} parent=11 // pred_check
          %p234 = pneg %p103
        $region22: #{fpn_backbone_radar.10} parent=11 // pred_check_branch
          %236 = sbr.rel (%p234) target = $region24
        $region23: #{fpn_backbone_radar.10} parent=11 // pred_region
          _
        $region24: #{fpn_backbone_radar.10} parent=11 // pred_fallthru
          _
        // Predicated region
        $region25: #{fpn_backbone_radar.10} parent=11 // pred_check
          %p237 = pneg %p124
        $region26: #{fpn_backbone_radar.10} parent=11 // pred_check_branch
          %239 = sbr.rel (%p237) target = $region28
        $region27: #{fpn_backbone_radar.10} parent=11 // pred_region
          _
        $region28: #{fpn_backbone_radar.10} parent=11 // pred_fallthru
          _
        // Predicated region
        $region29: #{fpn_backbone_radar.10} parent=11 // pred_check
          %p240 = pneg %p145
        $region30: #{fpn_backbone_radar.10} parent=11 // pred_check_branch
          %242 = sbr.rel (%p240) target = $region32
        $region31: #{fpn_backbone_radar.10} parent=11 // pred_region
          _
        $region32: #{fpn_backbone_radar.10} parent=11 // pred_fallthru
          _
        // Predicated region
        $region33: #{fpn_backbone_radar.10} parent=11 // pred_check
          %p243 = pneg %p166
        $region34: #{fpn_backbone_radar.10} parent=11 // pred_check_branch
          %245 = sbr.rel (%p243) target = $region36
        $region35: #{fpn_backbone_radar.10} parent=11 // pred_region
          _
        $region36: #{fpn_backbone_radar.10} parent=11 // pred_fallthru
          _
        // Predicated region
        $region37: #{fpn_backbone_radar.10} parent=11 // pred_check
          %p246 = pneg %p187
        $region38: #{fpn_backbone_radar.10} parent=11 // pred_check_branch
          %248 = sbr.rel (%p246) target = $region40
        $region39: #{fpn_backbone_radar.10} parent=11 // pred_region
          _
        $region40: #{fpn_backbone_radar.10} parent=11 // pred_fallthru
          _
      $region12: #{fpn_backbone_radar.10} parent=5 // pred_fallthru
        _
      %p249 = scmp.lt.s32.totalorder %s14, 2
      // Predicated region
      $region41: #{fpn_backbone_radar.10} parent=5 // pred_check
        %p250 = pneg %p249
      $region42: #{fpn_backbone_radar.10} parent=5 // pred_check_branch
        %252 = sbr.rel (%p250) target = $region44
      $region43: #{fpn_backbone_radar.10} parent=5 // pred_region
        // Predicated region
        $region45: #{fpn_backbone_radar.10} parent=43 // pred_check
          %p253 = pneg %p34
        $region46: #{fpn_backbone_radar.10} parent=43 // pred_check_branch
          %255 = sbr.rel (%p253) target = $region48
        $region47: #{fpn_backbone_radar.10} parent=43 // pred_region
          %s256 = sand.u32 %s24, 1
          %s257 = sand.u32 %s24, 1
          %s258 = smul.addr %s257, 80
          %s259 = scalar_lea.vmem [#allocation2], %s258
          %s260 = smul.addr %s14, 4
          %s261 = scalar_lea.vmem %s0, %s260
          // Predicated region
          $region49: #{fpn_backbone_radar.10} parent=47 // pred_check
            _
          $region50: #{fpn_backbone_radar.10} parent=47 // pred_check_branch
            %263 = sbr.rel (0) target = $region52
          $region51: #{fpn_backbone_radar.10} parent=47 // pred_region
            // Predicated region
            $region53: #{fpn_backbone_radar.10} parent=51 // pred_check
              _
            $region54: #{fpn_backbone_radar.10} parent=51 // pred_check_branch
              %265 = sbr.rel target = $region56
            $region55: #{fpn_backbone_radar.10} parent=51 // pred_region
              // Predicated region
              $region68: #{fpn_backbone_radar.10} parent=55 // pred_check
                _
              $region69: #{fpn_backbone_radar.10} parent=55 // pred_check_branch
                %319 = sbr.rel (0) target = $region71
              $region70: #{fpn_backbone_radar.10} parent=55 // pred_region
                loop: start=0, step=1, limit=1
                $region72: #{fpn_backbone_radar.10} parent=70 // loop_pre_header
                  _
                $region73: #{fpn_backbone_radar.10} parent=70 // loop_header
                  %s321 = sphi 0, %s325
                  %p322 = scmp.ge.s32.totalorder %s321, 1
                  %s326 = sphi %s261, %s261
                  %s327 = sphi %s259, %s259
                $region74: #{fpn_backbone_radar.10} parent=70 // loop_header_branch
                  %324 = sbr.rel (%p322) target = $region78
                $region75: #{fpn_backbone_radar.10} parent=70 // loop_body
                  _
                $region76: #{fpn_backbone_radar.10} parent=70 // loop_footer
                  %s325 = sadd.s32 1, %s321
                $region77: #{fpn_backbone_radar.10} parent=70 // loop_footer_branch
                  %320 = sbr.rel target = $region73
                $region78: #{fpn_backbone_radar.10} parent=70 // loop_exit
                  _
                %s329 = ssub.s32 16, 1
                loop: start=0, step=1, limit=1
                $region79: #{fpn_backbone_radar.10} parent=70 // loop_pre_header
                  _
                $region80: #{fpn_backbone_radar.10} parent=70 // loop_header
                  %s331 = sphi 0, %s335
                  %p332 = scmp.ge.s32.totalorder %s331, 1
                  %s336 = sphi %s261, %s261
                  %s337 = sphi %s259, %s259
                $region81: #{fpn_backbone_radar.10} parent=70 // loop_header_branch
                  %334 = sbr.rel (%p332) target = $region85
                $region82: #{fpn_backbone_radar.10} parent=70 // loop_body
                  %v338 = vld [vmem:[%s336] sm:%s329]
                  %339 = vst [vmem:[%s337] sm:%s329] %v338
                  %v340 = vld [vmem:[%s336 + $0x8] sm:%s329]
                  %341 = vst [vmem:[%s337 + $0x4] sm:%s329] %v340
                  %v342 = vld [vmem:[%s336 + $0x10] sm:%s329]
                  %343 = vst [vmem:[%s337 + $0x8] sm:%s329] %v342
                  %v344 = vld [vmem:[%s336 + $0x18] sm:%s329]
                  %345 = vst [vmem:[%s337 + $0xc] sm:%s329] %v344
                  %v346 = vld [vmem:[%s336 + $0x20] sm:%s329]
                  %347 = vst [vmem:[%s337 + $0x10] sm:%s329] %v346
                  %v348 = vld [vmem:[%s336 + $0x28] sm:%s329]
                  %349 = vst [vmem:[%s337 + $0x14] sm:%s329] %v348
                  %v350 = vld [vmem:[%s336 + $0x30] sm:%s329]
                  %351 = vst [vmem:[%s337 + $0x18] sm:%s329] %v350
                  %v352 = vld [vmem:[%s336 + $0x38] sm:%s329]
                  %353 = vst [vmem:[%s337 + $0x1c] sm:%s329] %v352
                  %v354 = vld [vmem:[%s336 + $0x40] sm:%s329]
                  %355 = vst [vmem:[%s337 + $0x20] sm:%s329] %v354
                  %v356 = vld [vmem:[%s336 + $0x48] sm:%s329]
                  %357 = vst [vmem:[%s337 + $0x24] sm:%s329] %v356
                  %v358 = vld [vmem:[%s336 + $0x50] sm:%s329]
                  %359 = vst [vmem:[%s337 + $0x28] sm:%s329] %v358
                  %v360 = vld [vmem:[%s336 + $0x58] sm:%s329]
                  %361 = vst [vmem:[%s337 + $0x2c] sm:%s329] %v360
                  %v362 = vld [vmem:[%s336 + $0x60] sm:%s329]
                  %363 = vst [vmem:[%s337 + $0x30] sm:%s329] %v362
                  %v364 = vld [vmem:[%s336 + $0x68] sm:%s329]
                  %365 = vst [vmem:[%s337 + $0x34] sm:%s329] %v364
                  %v366 = vld [vmem:[%s336 + $0x70] sm:%s329]
                  %367 = vst [vmem:[%s337 + $0x38] sm:%s329] %v366
                  %v368 = vld [vmem:[%s336 + $0x78] sm:%s329]
                  %369 = vst [vmem:[%s337 + $0x3c] sm:%s329] %v368
                  %v370 = vld [vmem:[%s336 + $0x80] sm:%s329]
                  %371 = vst [vmem:[%s337 + $0x40] sm:%s329] %v370
                  %v372 = vld [vmem:[%s336 + $0x88] sm:%s329]
                  %373 = vst [vmem:[%s337 + $0x44] sm:%s329] %v372
                  %v374 = vld [vmem:[%s336 + $0x90] sm:%s329]
                  %375 = vst [vmem:[%s337 + $0x48] sm:%s329] %v374
                  %v376 = vld [vmem:[%s336 + $0x98] sm:%s329]
                  %377 = vst [vmem:[%s337 + $0x4c] sm:%s329] %v376
                $region83: #{fpn_backbone_radar.10} parent=70 // loop_footer
                  %s335 = sadd.s32 1, %s331
                $region84: #{fpn_backbone_radar.10} parent=70 // loop_footer_branch
                  %330 = sbr.rel target = $region80
                $region85: #{fpn_backbone_radar.10} parent=70 // loop_exit
                  _
              $region71: #{fpn_backbone_radar.10} parent=55 // pred_fallthru
                _
            $region56: #{fpn_backbone_radar.10} parent=51 // pred_fallthru
              _
            // Predicated region
            $region57: #{fpn_backbone_radar.10} parent=51 // pred_check
              _
            $region58: #{fpn_backbone_radar.10} parent=51 // pred_check_branch
              %267 = sbr.rel (0) target = $region60
            $region59: #{fpn_backbone_radar.10} parent=51 // pred_region
              %s269 = ssub.s32 16, 1
              loop: start=0, step=1, limit=1
              $region61: #{fpn_backbone_radar.10} parent=59 // loop_pre_header
                _
              $region62: #{fpn_backbone_radar.10} parent=59 // loop_header
                %s271 = sphi 0, %s275
                %p272 = scmp.ge.s32.totalorder %s271, 1
                %s276 = sphi %s261, %s261
                %s277 = sphi %s259, %s259
              $region63: #{fpn_backbone_radar.10} parent=59 // loop_header_branch
                %274 = sbr.rel (%p272) target = $region67
              $region64: #{fpn_backbone_radar.10} parent=59 // loop_body
                %v278 = vld [vmem:[%s276] sm:%s269]
                %279 = vst [vmem:[%s277] sm:%s269] %v278
                %v280 = vld [vmem:[%s276 + $0x8] sm:%s269]
                %281 = vst [vmem:[%s277 + $0x4] sm:%s269] %v280
                %v282 = vld [vmem:[%s276 + $0x10] sm:%s269]
                %283 = vst [vmem:[%s277 + $0x8] sm:%s269] %v282
                %v284 = vld [vmem:[%s276 + $0x18] sm:%s269]
                %285 = vst [vmem:[%s277 + $0xc] sm:%s269] %v284
                %v286 = vld [vmem:[%s276 + $0x20] sm:%s269]
                %287 = vst [vmem:[%s277 + $0x10] sm:%s269] %v286
                %v288 = vld [vmem:[%s276 + $0x28] sm:%s269]
                %289 = vst [vmem:[%s277 + $0x14] sm:%s269] %v288
                %v290 = vld [vmem:[%s276 + $0x30] sm:%s269]
                %291 = vst [vmem:[%s277 + $0x18] sm:%s269] %v290
                %v292 = vld [vmem:[%s276 + $0x38] sm:%s269]
                %293 = vst [vmem:[%s277 + $0x1c] sm:%s269] %v292
                %v294 = vld [vmem:[%s276 + $0x40] sm:%s269]
                %295 = vst [vmem:[%s277 + $0x20] sm:%s269] %v294
                %v296 = vld [vmem:[%s276 + $0x48] sm:%s269]
                %297 = vst [vmem:[%s277 + $0x24] sm:%s269] %v296
                %v298 = vld [vmem:[%s276 + $0x50] sm:%s269]
                %299 = vst [vmem:[%s277 + $0x28] sm:%s269] %v298
                %v300 = vld [vmem:[%s276 + $0x58] sm:%s269]
                %301 = vst [vmem:[%s277 + $0x2c] sm:%s269] %v300
                %v302 = vld [vmem:[%s276 + $0x60] sm:%s269]
                %303 = vst [vmem:[%s277 + $0x30] sm:%s269] %v302
                %v304 = vld [vmem:[%s276 + $0x68] sm:%s269]
                %305 = vst [vmem:[%s277 + $0x34] sm:%s269] %v304
                %v306 = vld [vmem:[%s276 + $0x70] sm:%s269]
                %307 = vst [vmem:[%s277 + $0x38] sm:%s269] %v306
                %v308 = vld [vmem:[%s276 + $0x78] sm:%s269]
                %309 = vst [vmem:[%s277 + $0x3c] sm:%s269] %v308
                %v310 = vld [vmem:[%s276 + $0x80] sm:%s269]
                %311 = vst [vmem:[%s277 + $0x40] sm:%s269] %v310
                %v312 = vld [vmem:[%s276 + $0x88] sm:%s269]
                %313 = vst [vmem:[%s277 + $0x44] sm:%s269] %v312
                %v314 = vld [vmem:[%s276 + $0x90] sm:%s269]
                %315 = vst [vmem:[%s277 + $0x48] sm:%s269] %v314
                %v316 = vld [vmem:[%s276 + $0x98] sm:%s269]
                %317 = vst [vmem:[%s277 + $0x4c] sm:%s269] %v316
              $region65: #{fpn_backbone_radar.10} parent=59 // loop_footer
                %s275 = sadd.s32 1, %s271
              $region66: #{fpn_backbone_radar.10} parent=59 // loop_footer_branch
                %270 = sbr.rel target = $region62
              $region67: #{fpn_backbone_radar.10} parent=59 // loop_exit
                _
            $region60: #{fpn_backbone_radar.10} parent=51 // pred_fallthru
              _
          $region52: #{fpn_backbone_radar.10} parent=47 // pred_fallthru
            _
          %378 = vnop
        $region48: #{fpn_backbone_radar.10} parent=43 // pred_fallthru
          _
      $region44: #{fpn_backbone_radar.10} parent=5 // pred_fallthru
        _
      %p379 = scmp.le.s32.totalorder 1, %s14
      %p380 = scmp.lt.s32.totalorder %s14, 3
      %p381 = pnand %p379, %p380
      %p382 = pneg %p381
      // Predicated region
      $region86: #{fpn_backbone_radar.10} parent=5 // pred_check
        _
      $region87: #{fpn_backbone_radar.10} parent=5 // pred_check_branch
        %384 = sbr.rel (%p381) target = $region89
      $region88: #{fpn_backbone_radar.10} parent=5 // pred_region
        %s385 = ssub.s32 %s14, 1
        %s386 = sand.u32 %s27, 1
        %s387 = sand.u32 %s27, 1
        %s388 = smul.addr %s387, 80
        %s389 = scalar_lea.vmem [#allocation2], %s388
        // Predicated region
        $region90: #{fpn_backbone_radar.10} parent=88 // pred_check
          %p390 = pneg %p40
        $region91: #{fpn_backbone_radar.10} parent=88 // pred_check_branch
          %392 = sbr.rel (%p390) target = $region93
        $region92: #{fpn_backbone_radar.10} parent=88 // pred_region
          _
        $region93: #{fpn_backbone_radar.10} parent=88 // pred_fallthru
          _
        %s393 = sand.u32 %s27, 1
        %s394 = sand.u32 %s27, 1
        %s395 = smul.addr %s394, 80
        %s396 = scalar_lea.vmem [#allocation2], %s395
        %p397 = pneg %p40
        %p398 = pneg %p37
        %p399 = pneg %p61
        %p400 = pneg %p58
        %p401 = pneg %p82
        %p402 = pneg %p79
        %p403 = pneg %p103
        %p404 = pneg %p100
        %p405 = pneg %p124
        %p406 = pneg %p121
        %p407 = pneg %p145
        %p408 = pneg %p142
        %p409 = pneg %p166
        %p410 = pneg %p163
        %p411 = pneg %p187
        %p412 = pneg %p184
        %p413 = pneg %p213
        %p414 = pneg %p210
        %s415 = sand.u32 %s200, 1
        %s416 = sand.u32 %s200, 1
        %s417 = smul.addr %s416, 8
        %s418 = scalar_lea.vmem [#allocation3], %s417
        %v420 = vld [vmem:[%s389] sm:$0xf]
        %v421 = vld [vmem:[%s389 + $0x4] sm:$0xf]
        %v422 = vld [vmem:[%s389 + $0x8] sm:$0xf]
        %v423 = vld [vmem:[%s389 + $0xc] sm:$0xf]
        %v424 = vld [vmem:[%s389 + $0x10] sm:$0xf]
        %v425 = vld [vmem:[%s389 + $0x14] sm:$0xf]
        %v426 = vld [vmem:[%s389 + $0x18] sm:$0xf]
        %v427 = vld [vmem:[%s389 + $0x1c] sm:$0xf]
        %v428 = vld [vmem:[%s389 + $0x20] sm:$0xf]
        %v429 = vld [vmem:[%s389 + $0x24] sm:$0xf]
        %v430 = vld [vmem:[%s389 + $0x28] sm:$0xf]
        %v431 = vld [vmem:[%s389 + $0x2c] sm:$0xf]
        %v432 = vld [vmem:[%s389 + $0x30] sm:$0xf]
        %v433 = vld [vmem:[%s389 + $0x34] sm:$0xf]
        %v434 = vld [vmem:[%s389 + $0x38] sm:$0xf]
        %v435 = vld [vmem:[%s389 + $0x3c] sm:$0xf]
        %v436 = vld [vmem:[%s389 + $0x40] sm:$0xf]
        %v437 = vld [vmem:[%s389 + $0x44] sm:$0xf]
        %v438 = vld [vmem:[%s389 + $0x48] sm:$0xf]
        %v439 = vld [vmem:[%s389 + $0x4c] sm:$0x1]
        %v440 = vld [vmem:[%s1] sm:$0xff]
        %v441 = vld [vmem:[%s1 + $0x8] sm:$0xff]
        %v442 = vld [vmem:[%s1 + $0x10] sm:$0xff]
        %v443 = vld [vmem:[%s1 + $0x18] sm:$0xff]
        %v444 = vld [vmem:[%s1 + $0x20] sm:$0xff]
        %v445 = vld [vmem:[%s1 + $0x28] sm:$0xff]
        %v446 = vld [vmem:[%s1 + $0x30] sm:$0xff]
        %v447 = vld [vmem:[%s1 + $0x38] sm:$0xff]
        %v448 = vld [vmem:[%s1 + $0x40] sm:$0xff]
        %v458 = vunpack.c.l.b16 %v440
        %v459 = vunpack.c.h.b16 %v440
        %v460 = vunpack.c.l.b16 %v441
        %v461 = vunpack.c.h.b16 %v441
        %v462 = vunpack.c.l.b16 %v442
        %v463 = vunpack.c.h.b16 %v442
        %v464 = vunpack.c.l.b16 %v443
        %v465 = vunpack.c.h.b16 %v443
        %v466 = vunpack.c.l.b16 %v444
        %v467 = vunpack.c.h.b16 %v444
        %v468 = vunpack.c.l.b16 %v445
        %v469 = vunpack.c.h.b16 %v445
        %v470 = vunpack.c.l.b16 %v446
        %v471 = vunpack.c.h.b16 %v446
        %v472 = vunpack.c.l.b16 %v447
        %v473 = vunpack.c.h.b16 %v447
        %v474 = vunpack.c.l.b16 %v448
        %v475 = vunpack.c.h.b16 %v448
        %v476 = vpack.c.b16 %v460, %v458
        %v477 = vpack.c.b16 %v461, %v459
        %v478 = vpack.c.b16 %v464, %v462
        %v479 = vpack.c.b16 %v465, %v463
        %v480 = vpack.c.b16 %v468, %v466
        %v481 = vpack.c.b16 %v469, %v467
        %v482 = vpack.c.b16 %v472, %v470
        %v483 = vpack.c.b16 %v473, %v471
        %v484 = vpack.c.b16 %v474, %v474
        %v485 = vpack.c.b16 %v475, %v475
        %v511 = vunpack.c.l.b16 %v420
        %v512 = vunpack.c.l.b16 %v421
        %v513 = vunpack.c.l.b16 %v422
        %v514 = vunpack.c.l.b16 %v423
        %v515 = vunpack.c.l.b16 %v424
        %v516 = vunpack.c.l.b16 %v425
        %v517 = vunpack.c.l.b16 %v426
        %v518 = vunpack.c.l.b16 %v427
        %v519 = vunpack.c.l.b16 %v428
        %v520 = vunpack.c.l.b16 %v429
        %v521 = vunpack.c.l.b16 %v430
        %v522 = vunpack.c.l.b16 %v431
        %v523 = vunpack.c.l.b16 %v432
        %v524 = vunpack.c.l.b16 %v433
        %v525 = vunpack.c.l.b16 %v434
        %v526 = vunpack.c.l.b16 %v435
        %v527 = vunpack.c.l.b16 %v436
        %v528 = vunpack.c.l.b16 %v437
        %v529 = vunpack.c.l.b16 %v438
        %v530 = vunpack.c.l.b16 %v439
        %v531 = vpack.c.b16 %v512, %v511
        %v532 = vpack.c.b16 %v514, %v513
        %v533 = vpack.c.b16 %v516, %v515
        %v534 = vpack.c.b16 %v518, %v517
        %v535 = vpack.c.b16 %v520, %v519
        %v536 = vpack.c.b16 %v522, %v521
        %v537 = vpack.c.b16 %v524, %v523
        %v538 = vpack.c.b16 %v526, %v525
        %v539 = vpack.c.b16 %v528, %v527
        %v540 = vpack.c.b16 %v530, %v529
        %vm550 = vcmask 203776
        %v552 = vsel %vm550, %v477, 0
        %v555 = vsel %vm550, %v479, 0
        %v558 = vsel %vm550, %v481, 0
        %v561 = vsel %vm550, %v483, 0
        %v564 = vsel %vm550, %v485, 0
        %vm566 = vcmask 1043456
        %vm567 = vcmask 1044480
        %v568 = vsel %vm566, 4294967295, 65535
        %v569 = vsel %vm567, %v568, 0
        %v571 = vand.u32 %v540, %v569
        %573 = vmatpush.bf16.msra.mxu0 %v538
        %574 = vmatpush.bf16.msra.mxu0 %v537
        %575 = vmatpush.bf16.msra.mxu0 %v536
        %576 = vmatpush.bf16.msra.mxu0 %v535
        %577 = vmatpush.bf16.msra.mxu0 %v534
        %578 = vmatpush.bf16.msra.mxu0 %v533
        %579 = vmatpush.bf16.msra.mxu0 %v532
        %580 = vmatpush.bf16.msra.mxu0 %v531
        %581 = vmatmul.bf16.gmra.mxu0 %v476
        %v582 = vpop.f32.mrf.mxu0
        %v583 = vadd.f32 0.0, %v582
        %v584 = vpop.f32.mrf.mxu0
        %v585 = vadd.f32 0.0, %v584
        %586 = vmatmul.bf16.gmra.mxu0 %v478
        %v587 = vpop.f32.mrf.mxu0
        %v588 = vadd.f32 0.0, %v587
        %v589 = vpop.f32.mrf.mxu0
        %v590 = vadd.f32 0.0, %v589
        %591 = vmatmul.bf16.gmra.mxu0 %v480
        %v592 = vpop.f32.mrf.mxu0
        %v593 = vadd.f32 0.0, %v592
        %v594 = vpop.f32.mrf.mxu0
        %v595 = vadd.f32 0.0, %v594
        %596 = vmatmul.bf16.gmra.mxu0 %v482
        %v597 = vpop.f32.mrf.mxu0
        %v598 = vadd.f32 0.0, %v597
        %v599 = vpop.f32.mrf.mxu0
        %v600 = vadd.f32 0.0, %v599
        %601 = vmatmul.bf16.gmra.mxu0 %v484
        %v602 = vpop.f32.mrf.mxu0
        %v603 = vadd.f32 0.0, %v602
        %v604 = vpop.f32.mrf.mxu0
        %605 = vdwg.mxu0
        %606 = vmatpush.bf16.msra.mxu0 0
        %607 = vmatpush.bf16.msra.mxu0 0
        %608 = vmatpush.bf16.msra.mxu0 0
        %609 = vmatpush.bf16.msra.mxu0 0
        %610 = vmatpush.bf16.msra.mxu0 0
        %611 = vmatpush.bf16.msra.mxu0 0
        %612 = vmatpush.bf16.msra.mxu0 %v571
        %613 = vmatpush.bf16.msra.mxu0 %v539
        %614 = vmatmul.bf16.gmra.mxu0 %v552
        %v615 = vpop.f32.mrf.mxu0
        %v616 = vadd.f32 %v583, %v615
        %v617 = vpop.f32.mrf.mxu0
        %v618 = vadd.f32 %v585, %v617
        %619 = vmatmul.bf16.gmra.mxu0 %v555
        %v620 = vpop.f32.mrf.mxu0
        %v621 = vadd.f32 %v588, %v620
        %v622 = vpop.f32.mrf.mxu0
        %v623 = vadd.f32 %v590, %v622
        %624 = vmatmul.bf16.gmra.mxu0 %v558
        %v625 = vpop.f32.mrf.mxu0
        %v626 = vadd.f32 %v593, %v625
        %v627 = vpop.f32.mrf.mxu0
        %v628 = vadd.f32 %v595, %v627
        %629 = vmatmul.bf16.gmra.mxu0 %v561
        %v630 = vpop.f32.mrf.mxu0
        %v631 = vadd.f32 %v598, %v630
        %v632 = vpop.f32.mrf.mxu0
        %v633 = vadd.f32 %v600, %v632
        %634 = vmatmul.bf16.gmra.mxu0 %v564
        %v635 = vpop.f32.mrf.mxu0
        %v636 = vadd.f32 %v603, %v635
        %v637 = vpop.f32.mrf.mxu0
        %638 = vdwg.mxu0
        %v639 = vmax.f32 %v616, 0.0
        %v640 = vmax.f32 %v618, 0.0
        %v641 = vmax.f32 %v621, 0.0
        %v642 = vmax.f32 %v623, 0.0
        %v643 = vmax.f32 %v626, 0.0
        %v644 = vmax.f32 %v628, 0.0
        %v645 = vmax.f32 %v631, 0.0
        %v646 = vmax.f32 %v633, 0.0
        %v647 = vmax.f32 %v636, 0.0
        %v648 = vpack.c.bf16 %v640, %v639
        %v649 = vpack.c.bf16 %v642, %v641
        %v650 = vpack.c.bf16 %v644, %v643
        %v651 = vpack.c.bf16 %v646, %v645
        %v652 = vpack.c.bf16 %v647, %v647
        %v653 = vld [vmem:[%s2] sm:$0xf]
        %v654 = vld [vmem:[%s3] sm:$0xff]
        %656 = vset.pattern.permute.xlu0 0
        %657 = vperm.xlu0 %656, %v654
        %v658 = vpop.permute.xlu0 %657
        %vm660 = vcmask 588800
        %v662 = vsel %vm660, %v653, 0
        %v665 = vsel %vm566, %v652, 0
        %667 = vmatpush.bf16.msra.mxu0 0
        %668 = vmatpush.bf16.msra.mxu0 0
        %669 = vmatpush.bf16.msra.mxu0 0
        %670 = vmatpush.bf16.msra.mxu0 %v665
        %671 = vmatpush.bf16.msra.mxu0 %v651
        %672 = vmatpush.bf16.msra.mxu0 %v650
        %673 = vmatpush.bf16.msra.mxu0 %v649
        %674 = vmatpush.bf16.msra.mxu0 %v648
        %675 = vmatmul.bf16.gmra.mxu0 %v662
        %v676 = vpop.f32.mrf.mxu0
        %v677 = vadd.f32 %v658, %v676
        %v678 = vpop.f32.mrf.mxu0
        %679 = vdwg.mxu0
        %v680 = vmax.f32 %v677, 0.0
        %v681 = vpack.c.bf16 %v680, %v680
        %v682 = vld [vmem:[%s4] sm:$0xf]
        %v683 = vld [vmem:[%s4 + $0x4] sm:$0xf]
        %v684 = vld [vmem:[%s5] sm:$0xff]
        %v685 = vld [vmem:[%s5 + $0x8] sm:$0xff]
        %687 = vset.pattern.permute.xlu0 0
        %688 = vperm.xlu0 %687, %v684
        %v689 = vpop.permute.xlu0 %688
        %692 = vset.pattern.permute.xlu0 0
        %693 = vperm.xlu0 %692, %v685
        %v694 = vpop.permute.xlu0 %693
        %v698 = vunpack.c.l.b16 %v682
        %v699 = vunpack.c.l.b16 %v683
        %v700 = vpack.c.b16 %v699, %v698
        %vm701 = vcmask 64512
        %v703 = vsel %vm701, %v700, 0
        %v706 = vsel %vm566, %v681, 0
        %708 = vmatpush.bf16.msra.mxu0 0
        %709 = vmatpush.bf16.msra.mxu0 0
        %710 = vmatpush.bf16.msra.mxu0 0
        %711 = vmatpush.bf16.msra.mxu0 0
        %712 = vmatpush.bf16.msra.mxu0 0
        %713 = vmatpush.bf16.msra.mxu0 0
        %714 = vmatpush.bf16.msra.mxu0 0
        %715 = vmatpush.bf16.msra.mxu0 %v706
        %716 = vmatmul.bf16.gmra.mxu0 %v703
        %v717 = vpop.f32.mrf.mxu0
        %v718 = vadd.f32 %v689, %v717
        %v719 = vpop.f32.mrf.mxu0
        %v720 = vadd.f32 %v694, %v719
        %721 = vdwg.mxu0
        %v722 = vld [vmem:[%s6] sm:$0xf]
        %v723 = vld [vmem:[%s6 + $0x4] sm:$0xf]
        %v724 = vld [vmem:[%s7] sm:$0xff]
        %v725 = vld [vmem:[%s7 + $0x8] sm:$0xff]
        %727 = vset.pattern.permute.xlu0 0
        %728 = vperm.xlu0 %727, %v724
        %v729 = vpop.permute.xlu0 %728
        %732 = vset.pattern.permute.xlu0 0
        %733 = vperm.xlu0 %732, %v725
        %v734 = vpop.permute.xlu0 %733
        %v738 = vunpack.c.l.b16 %v722
        %v739 = vunpack.c.l.b16 %v723
        %v740 = vpack.c.b16 %v739, %v738
        %vm741 = vcmask 130048
        %v743 = vsel %vm741, %v740, 0
        %745 = vmatpush.bf16.msra.mxu0 0
        %746 = vmatpush.bf16.msra.mxu0 0
        %747 = vmatpush.bf16.msra.mxu0 0
        %748 = vmatpush.bf16.msra.mxu0 0
        %749 = vmatpush.bf16.msra.mxu0 0
        %750 = vmatpush.bf16.msra.mxu0 0
        %751 = vmatpush.bf16.msra.mxu0 0
        %752 = vmatpush.bf16.msra.mxu0 %v535
        %753 = vmatmul.bf16.gmra.mxu0 %v743
        %v754 = vpop.f32.mrf.mxu0
        %v755 = vadd.f32 %v729, %v754
        %v756 = vpop.f32.mrf.mxu0
        %v757 = vadd.f32 %v734, %v756
        %758 = vdwg.mxu0
        %v759 = vadd.f32 %v718, %v755
        %v760 = vadd.f32 %v720, %v757
        %v761 = vmax.f32 %v759, 0.0
        %v762 = vmax.f32 %v760, 0.0
        %v763 = vpack.c.bf16 %v761, %v761
        %v764 = vpack.c.bf16 %v762, %v762
        %765 = vst [vmem:[%s418] sm:$0xf] %v763
        %766 = vst [vmem:[%s418 + $0x4] sm:$0xf] %v764
        %s767 = sand.u32 %s200, 1
        %s768 = sand.u32 %s200, 1
        %s769 = smul.addr %s768, 8
        %s770 = scalar_lea.vmem [#allocation3], %s769
        // Predicated region
        $region94: #{fpn_backbone_radar.10} parent=88 // pred_check
          %p771 = pneg %p210
        $region95: #{fpn_backbone_radar.10} parent=88 // pred_check_branch
          %773 = sbr.rel (%p771) target = $region97
        $region96: #{fpn_backbone_radar.10} parent=88 // pred_region
          %s774 = smul.addr %s19, 4
          %s775 = scalar_lea.vmem %s8, %s774
          // Predicated region
          $region98: #{fpn_backbone_radar.10} parent=96 // pred_check
            _
          $region99: #{fpn_backbone_radar.10} parent=96 // pred_check_branch
            %777 = sbr.rel (0) target = $region101
          $region100: #{fpn_backbone_radar.10} parent=96 // pred_region
            // Predicated region
            $region102: #{fpn_backbone_radar.10} parent=100 // pred_check
              _
            $region103: #{fpn_backbone_radar.10} parent=100 // pred_check_branch
              %779 = sbr.rel target = $region105
            $region104: #{fpn_backbone_radar.10} parent=100 // pred_region
              // Predicated region
              $region117: #{fpn_backbone_radar.10} parent=104 // pred_check
                _
              $region118: #{fpn_backbone_radar.10} parent=104 // pred_check_branch
                %797 = sbr.rel (0) target = $region120
              $region119: #{fpn_backbone_radar.10} parent=104 // pred_region
                loop: start=0, step=1, limit=1
                $region121: #{fpn_backbone_radar.10} parent=119 // loop_pre_header
                  _
                $region122: #{fpn_backbone_radar.10} parent=119 // loop_header
                  %s799 = sphi 0, %s803
                  %p800 = scmp.ge.s32.totalorder %s799, 1
                  %s804 = sphi %s770, %s770
                  %s805 = sphi %s775, %s775
                $region123: #{fpn_backbone_radar.10} parent=119 // loop_header_branch
                  %802 = sbr.rel (%p800) target = $region127
                $region124: #{fpn_backbone_radar.10} parent=119 // loop_body
                  _
                $region125: #{fpn_backbone_radar.10} parent=119 // loop_footer
                  %s803 = sadd.s32 1, %s799
                $region126: #{fpn_backbone_radar.10} parent=119 // loop_footer_branch
                  %798 = sbr.rel target = $region122
                $region127: #{fpn_backbone_radar.10} parent=119 // loop_exit
                  _
                %s807 = ssub.s32 16, 1
                loop: start=0, step=1, limit=1
                $region128: #{fpn_backbone_radar.10} parent=119 // loop_pre_header
                  _
                $region129: #{fpn_backbone_radar.10} parent=119 // loop_header
                  %s809 = sphi 0, %s813
                  %p810 = scmp.ge.s32.totalorder %s809, 1
                  %s814 = sphi %s770, %s770
                  %s815 = sphi %s775, %s775
                $region130: #{fpn_backbone_radar.10} parent=119 // loop_header_branch
                  %812 = sbr.rel (%p810) target = $region134
                $region131: #{fpn_backbone_radar.10} parent=119 // loop_body
                  %v816 = vld [vmem:[%s814] sm:%s807]
                  %817 = vst [vmem:[%s815] sm:%s807] %v816
                  %v818 = vld [vmem:[%s814 + $0x4] sm:%s807]
                  %819 = vst [vmem:[%s815 + $0x8] sm:%s807] %v818
                $region132: #{fpn_backbone_radar.10} parent=119 // loop_footer
                  %s813 = sadd.s32 1, %s809
                $region133: #{fpn_backbone_radar.10} parent=119 // loop_footer_branch
                  %808 = sbr.rel target = $region129
                $region134: #{fpn_backbone_radar.10} parent=119 // loop_exit
                  _
              $region120: #{fpn_backbone_radar.10} parent=104 // pred_fallthru
                _
            $region105: #{fpn_backbone_radar.10} parent=100 // pred_fallthru
              _
            // Predicated region
            $region106: #{fpn_backbone_radar.10} parent=100 // pred_check
              _
            $region107: #{fpn_backbone_radar.10} parent=100 // pred_check_branch
              %781 = sbr.rel (0) target = $region109
            $region108: #{fpn_backbone_radar.10} parent=100 // pred_region
              %s783 = ssub.s32 16, 1
              loop: start=0, step=1, limit=1
              $region110: #{fpn_backbone_radar.10} parent=108 // loop_pre_header
                _
              $region111: #{fpn_backbone_radar.10} parent=108 // loop_header
                %s785 = sphi 0, %s789
                %p786 = scmp.ge.s32.totalorder %s785, 1
                %s790 = sphi %s770, %s770
                %s791 = sphi %s775, %s775
              $region112: #{fpn_backbone_radar.10} parent=108 // loop_header_branch
                %788 = sbr.rel (%p786) target = $region116
              $region113: #{fpn_backbone_radar.10} parent=108 // loop_body
                %v792 = vld [vmem:[%s790] sm:%s783]
                %793 = vst [vmem:[%s791] sm:%s783] %v792
                %v794 = vld [vmem:[%s790 + $0x4] sm:%s783]
                %795 = vst [vmem:[%s791 + $0x8] sm:%s783] %v794
              $region114: #{fpn_backbone_radar.10} parent=108 // loop_footer
                %s789 = sadd.s32 1, %s785
              $region115: #{fpn_backbone_radar.10} parent=108 // loop_footer_branch
                %784 = sbr.rel target = $region111
              $region116: #{fpn_backbone_radar.10} parent=108 // loop_exit
                _
            $region109: #{fpn_backbone_radar.10} parent=100 // pred_fallthru
              _
          $region101: #{fpn_backbone_radar.10} parent=96 // pred_fallthru
            _
          %820 = vnop
        $region97: #{fpn_backbone_radar.10} parent=88 // pred_fallthru
          _
      $region89: #{fpn_backbone_radar.10} parent=5 // pred_fallthru
        _
      %p821 = scmp.le.s32.totalorder 2, %s14
      // Predicated region
      $region135: #{fpn_backbone_radar.10} parent=5 // pred_check
        %p822 = pneg %p821
      $region136: #{fpn_backbone_radar.10} parent=5 // pred_check_branch
        %824 = sbr.rel (%p822) target = $region138
      $region137: #{fpn_backbone_radar.10} parent=5 // pred_region
        %s825 = ssub.s32 %s14, 2
        // Predicated region
        $region139: #{fpn_backbone_radar.10} parent=137 // pred_check
          %p826 = pneg %p216
        $region140: #{fpn_backbone_radar.10} parent=137 // pred_check_branch
          %828 = sbr.rel (%p826) target = $region142
        $region141: #{fpn_backbone_radar.10} parent=137 // pred_region
          %s829 = sand.u32 %s201, 1
          %s830 = sand.u32 %s201, 1
          %s831 = smul.addr %s830, 8
          %s832 = scalar_lea.vmem [#allocation3], %s831
        $region142: #{fpn_backbone_radar.10} parent=137 // pred_fallthru
          _
      $region138: #{fpn_backbone_radar.10} parent=5 // pred_fallthru
        _
    $region6: #{fpn_backbone_radar.10} parent=1 // loop_footer
      %s18 = sadd.s32 1, %s14
    $region7: #{fpn_backbone_radar.10} parent=1 // loop_footer_branch
      %13 = sbr.rel target = $region3
    $region8: #{fpn_backbone_radar.10} parent=1 // loop_exit
      _

// kernel: fpn_backbone_radar.11
$region0: #{fpn_backbone_radar.11}
  #allocation0 [shape = 'u32[]', space=smem, size = 0x4, offset = 0x4, fixed_abs, tag = 'smem constant byte address 0x4 - core index']
  #allocation1 [shape = 'u32[72,128]{1,0:T(1,128)}', space=vmem, size = 0x9000, scoped, tag = 'internal scratch']
  %s0 = inlined_call_operand.vmem [shape: bf16[153,256], index: 0, kind: input, shape index: {}]
  %s1 = inlined_call_operand.vmem [shape: bf16[72,153], index: 1, kind: input, shape index: {}]
  %s2 = inlined_call_operand.vmem [shape: bf16[8,72], index: 2, kind: input, shape index: {}]
  %s3 = inlined_call_operand.vmem [shape: f32[8,1], index: 3, kind: input, shape index: {}]
  %s4 = inlined_call_operand.vmem [shape: bf16[16,8], index: 4, kind: input, shape index: {}]
  %s5 = inlined_call_operand.vmem [shape: f32[16,1], index: 5, kind: input, shape index: {}]
  %s6 = inlined_call_operand.vmem [shape: bf16[16,256], index: 6, kind: output, shape index: {}]
  %s7 = sld [smem:[#allocation0]]
  $region135: #{fpn_backbone_radar.11} parent=0
    _
  %s9 = ssub.s32 1, %s7
  %s10 = scalar_select 0, %s9, %s7
  $region1: #{fpn_backbone_radar.11} parent=0
    #allocation2 [shape = 'u8[81920]{0}', space=vmem, size = 0x14000, scoped, tag = 'input window, operand 0']
    #allocation3 [shape = 'u8[8192]{0}', space=vmem, size = 0x2000, scoped, tag = 'output window, operand 0']
    loop: start=0, step=1, limit=4
    $region2: #{fpn_backbone_radar.11} parent=1 // loop_pre_header
      _
    $region3: #{fpn_backbone_radar.11} parent=1 // loop_header
      %s12 = sphi 0, %s16
      %p13 = scmp.ge.s32.totalorder %s12, 4
      %s22 = sphi 0, %s24
      %s25 = sphi 0, %s22
      %s26 = sphi 0, %s25
      %s42 = sphi 0, %s26
      %s46 = sphi 0, %s46
      %s48 = sphi 0, %s46
      %s49 = sphi 0, %s48
      %s63 = sphi 0, %s49
      %s67 = sphi 0, %s67
      %s69 = sphi 0, %s67
      %s70 = sphi 0, %s69
      %s84 = sphi 0, %s70
      %s88 = sphi 0, %s88
      %s90 = sphi 0, %s88
      %s91 = sphi 0, %s90
      %s105 = sphi 0, %s91
      %s109 = sphi 0, %s109
      %s111 = sphi 0, %s109
      %s112 = sphi 0, %s111
      %s126 = sphi 0, %s112
      %s130 = sphi 0, %s130
      %s132 = sphi 0, %s130
      %s133 = sphi 0, %s132
      %s147 = sphi 0, %s133
      %s153 = sphi 0, %s155
      %s156 = sphi 0, %s153
      %s157 = sphi 0, %s156
      %s173 = sphi 0, %s157
    $region4: #{fpn_backbone_radar.11} parent=1 // loop_header_branch
      %15 = sbr.rel (%p13) target = $region8
    $region5: #{fpn_backbone_radar.11} parent=1 // loop_body
      %s17 = ssub.s32 %s12, 1
      %s18 = ssub.s32 %s12, 2
      %s19 = sadd.s32 %s12, 1
      %s20 = ssub.s32 %s12, %s19
      %p21 = scmp.eq.s32.totalorder %s20, 0
      %s23 = sadd.s32 %s22, 1
      %s24 = scalar_select %p21, %s22, %s23
      %p27 = pneg %p21
      %p28 = scmp.eq.s32.totalorder %s12, 1
      %p29 = por %p27, %p28
      %p30 = scmp.ne.s32.totalorder %s22, %s25
      %p31 = scmp.eq.s32.totalorder %s12, 0
      %p32 = por %p30, %p31
      %p33 = scmp.ne.s32.totalorder %s22, %s25
      %p34 = scmp.eq.s32.totalorder %s17, 1
      %p35 = por %p33, %p34
      %p36 = scmp.ne.s32.totalorder %s25, %s26
      %p37 = scmp.eq.s32.totalorder %s17, 0
      %p38 = por %p36, %p37
      %p39 = scmp.ne.s32.totalorder %s25, %s26
      %p40 = scmp.eq.s32.totalorder %s18, 1
      %p41 = por %p39, %p40
      %p43 = scmp.ne.s32.totalorder %s26, %s42
      %p44 = scmp.eq.s32.totalorder %s18, 0
      %p45 = por %p43, %p44
      %s47 = sadd.s32 %s46, 1
      %p50 = scmp.eq.s32.totalorder %s12, 1
      %p51 = scmp.ne.s32.totalorder %s46, %s48
      %p52 = scmp.eq.s32.totalorder %s12, 0
      %p53 = por %p51, %p52
      %p54 = scmp.ne.s32.totalorder %s46, %s48
      %p55 = scmp.eq.s32.totalorder %s17, 1
      %p56 = por %p54, %p55
      %p57 = scmp.ne.s32.totalorder %s48, %s49
      %p58 = scmp.eq.s32.totalorder %s17, 0
      %p59 = por %p57, %p58
      %p60 = scmp.ne.s32.totalorder %s48, %s49
      %p61 = scmp.eq.s32.totalorder %s18, 1
      %p62 = por %p60, %p61
      %p64 = scmp.ne.s32.totalorder %s49, %s63
      %p65 = scmp.eq.s32.totalorder %s18, 0
      %p66 = por %p64, %p65
      %s68 = sadd.s32 %s67, 1
      %p71 = scmp.eq.s32.totalorder %s12, 1
      %p72 = scmp.ne.s32.totalorder %s67, %s69
      %p73 = scmp.eq.s32.totalorder %s12, 0
      %p74 = por %p72, %p73
      %p75 = scmp.ne.s32.totalorder %s67, %s69
      %p76 = scmp.eq.s32.totalorder %s17, 1
      %p77 = por %p75, %p76
      %p78 = scmp.ne.s32.totalorder %s69, %s70
      %p79 = scmp.eq.s32.totalorder %s17, 0
      %p80 = por %p78, %p79
      %p81 = scmp.ne.s32.totalorder %s69, %s70
      %p82 = scmp.eq.s32.totalorder %s18, 1
      %p83 = por %p81, %p82
      %p85 = scmp.ne.s32.totalorder %s70, %s84
      %p86 = scmp.eq.s32.totalorder %s18, 0
      %p87 = por %p85, %p86
      %s89 = sadd.s32 %s88, 1
      %p92 = scmp.eq.s32.totalorder %s12, 1
      %p93 = scmp.ne.s32.totalorder %s88, %s90
      %p94 = scmp.eq.s32.totalorder %s12, 0
      %p95 = por %p93, %p94
      %p96 = scmp.ne.s32.totalorder %s88, %s90
      %p97 = scmp.eq.s32.totalorder %s17, 1
      %p98 = por %p96, %p97
      %p99 = scmp.ne.s32.totalorder %s90, %s91
      %p100 = scmp.eq.s32.totalorder %s17, 0
      %p101 = por %p99, %p100
      %p102 = scmp.ne.s32.totalorder %s90, %s91
      %p103 = scmp.eq.s32.totalorder %s18, 1
      %p104 = por %p102, %p103
      %p106 = scmp.ne.s32.totalorder %s91, %s105
      %p107 = scmp.eq.s32.totalorder %s18, 0
      %p108 = por %p106, %p107
      %s110 = sadd.s32 %s109, 1
      %p113 = scmp.eq.s32.totalorder %s12, 1
      %p114 = scmp.ne.s32.totalorder %s109, %s111
      %p115 = scmp.eq.s32.totalorder %s12, 0
      %p116 = por %p114, %p115
      %p117 = scmp.ne.s32.totalorder %s109, %s111
      %p118 = scmp.eq.s32.totalorder %s17, 1
      %p119 = por %p117, %p118
      %p120 = scmp.ne.s32.totalorder %s111, %s112
      %p121 = scmp.eq.s32.totalorder %s17, 0
      %p122 = por %p120, %p121
      %p123 = scmp.ne.s32.totalorder %s111, %s112
      %p124 = scmp.eq.s32.totalorder %s18, 1
      %p125 = por %p123, %p124
      %p127 = scmp.ne.s32.totalorder %s112, %s126
      %p128 = scmp.eq.s32.totalorder %s18, 0
      %p129 = por %p127, %p128
      %s131 = sadd.s32 %s130, 1
      %p134 = scmp.eq.s32.totalorder %s12, 1
      %p135 = scmp.ne.s32.totalorder %s130, %s132
      %p136 = scmp.eq.s32.totalorder %s12, 0
      %p137 = por %p135, %p136
      %p138 = scmp.ne.s32.totalorder %s130, %s132
      %p139 = scmp.eq.s32.totalorder %s17, 1
      %p140 = por %p138, %p139
      %p141 = scmp.ne.s32.totalorder %s132, %s133
      %p142 = scmp.eq.s32.totalorder %s17, 0
      %p143 = por %p141, %p142
      %p144 = scmp.ne.s32.totalorder %s132, %s133
      %p145 = scmp.eq.s32.totalorder %s18, 1
      %p146 = por %p144, %p145
      %p148 = scmp.ne.s32.totalorder %s133, %s147
      %p149 = scmp.eq.s32.totalorder %s18, 0
      %p150 = por %p148, %p149
      %s151 = ssub.s32 %s12, %s19
      %p152 = scmp.eq.s32.totalorder %s151, 0
      %s154 = sadd.s32 %s153, 1
      %s155 = scalar_select %p152, %s153, %s154
      %p158 = pneg %p152
      %p159 = scmp.eq.s32.totalorder %s12, 1
      %p160 = por %p158, %p159
      %p161 = scmp.ne.s32.totalorder %s153, %s156
      %p162 = scmp.eq.s32.totalorder %s12, 0
      %p163 = por %p161, %p162
      %p164 = scmp.ne.s32.totalorder %s153, %s156
      %p165 = scmp.eq.s32.totalorder %s17, 1
      %p166 = por %p164, %p165
      %p167 = scmp.ne.s32.totalorder %s156, %s157
      %p168 = scmp.eq.s32.totalorder %s17, 0
      %p169 = por %p167, %p168
      %p170 = scmp.ne.s32.totalorder %s156, %s157
      %p171 = scmp.eq.s32.totalorder %s18, 1
      %p172 = por %p170, %p171
      %p174 = scmp.ne.s32.totalorder %s157, %s173
      %p175 = scmp.eq.s32.totalorder %s18, 0
      %p176 = por %p174, %p175
      %p177 = scmp.le.s32.totalorder 1, %s12
      %p178 = scmp.lt.s32.totalorder %s12, 3
      %p179 = pnand %p177, %p178
      %p180 = pneg %p179
      // Predicated region
      $region9: #{fpn_backbone_radar.11} parent=5 // pred_check
        _
      $region10: #{fpn_backbone_radar.11} parent=5 // pred_check_branch
        %182 = sbr.rel (%p179) target = $region12
      $region11: #{fpn_backbone_radar.11} parent=5 // pred_region
        %s183 = ssub.s32 %s12, 1
        // Predicated region
        $region13: #{fpn_backbone_radar.11} parent=11 // pred_check
          %p184 = pneg %p59
        $region14: #{fpn_backbone_radar.11} parent=11 // pred_check_branch
          %186 = sbr.rel (%p184) target = $region16
        $region15: #{fpn_backbone_radar.11} parent=11 // pred_region
          _
        $region16: #{fpn_backbone_radar.11} parent=11 // pred_fallthru
          _
        // Predicated region
        $region17: #{fpn_backbone_radar.11} parent=11 // pred_check
          %p187 = pneg %p80
        $region18: #{fpn_backbone_radar.11} parent=11 // pred_check_branch
          %189 = sbr.rel (%p187) target = $region20
        $region19: #{fpn_backbone_radar.11} parent=11 // pred_region
          _
        $region20: #{fpn_backbone_radar.11} parent=11 // pred_fallthru
          _
        // Predicated region
        $region21: #{fpn_backbone_radar.11} parent=11 // pred_check
          %p190 = pneg %p101
        $region22: #{fpn_backbone_radar.11} parent=11 // pred_check_branch
          %192 = sbr.rel (%p190) target = $region24
        $region23: #{fpn_backbone_radar.11} parent=11 // pred_region
          _
        $region24: #{fpn_backbone_radar.11} parent=11 // pred_fallthru
          _
        // Predicated region
        $region25: #{fpn_backbone_radar.11} parent=11 // pred_check
          %p193 = pneg %p122
        $region26: #{fpn_backbone_radar.11} parent=11 // pred_check_branch
          %195 = sbr.rel (%p193) target = $region28
        $region27: #{fpn_backbone_radar.11} parent=11 // pred_region
          _
        $region28: #{fpn_backbone_radar.11} parent=11 // pred_fallthru
          _
        // Predicated region
        $region29: #{fpn_backbone_radar.11} parent=11 // pred_check
          %p196 = pneg %p143
        $region30: #{fpn_backbone_radar.11} parent=11 // pred_check_branch
          %198 = sbr.rel (%p196) target = $region32
        $region31: #{fpn_backbone_radar.11} parent=11 // pred_region
          _
        $region32: #{fpn_backbone_radar.11} parent=11 // pred_fallthru
          _
      $region12: #{fpn_backbone_radar.11} parent=5 // pred_fallthru
        _
      %p199 = scmp.lt.s32.totalorder %s12, 2
      // Predicated region
      $region33: #{fpn_backbone_radar.11} parent=5 // pred_check
        %p200 = pneg %p199
      $region34: #{fpn_backbone_radar.11} parent=5 // pred_check_branch
        %202 = sbr.rel (%p200) target = $region36
      $region35: #{fpn_backbone_radar.11} parent=5 // pred_region
        // Predicated region
        $region37: #{fpn_backbone_radar.11} parent=35 // pred_check
          %p203 = pneg %p32
        $region38: #{fpn_backbone_radar.11} parent=35 // pred_check_branch
          %205 = sbr.rel (%p203) target = $region40
        $region39: #{fpn_backbone_radar.11} parent=35 // pred_region
          %s206 = sand.u32 %s22, 1
          %s207 = sand.u32 %s22, 1
          %s208 = smul.addr %s207, 80
          %s209 = scalar_lea.vmem [#allocation2], %s208
          %s210 = smul.addr %s12, 4
          %s211 = scalar_lea.vmem %s0, %s210
          // Predicated region
          $region41: #{fpn_backbone_radar.11} parent=39 // pred_check
            _
          $region42: #{fpn_backbone_radar.11} parent=39 // pred_check_branch
            %213 = sbr.rel (0) target = $region44
          $region43: #{fpn_backbone_radar.11} parent=39 // pred_region
            // Predicated region
            $region45: #{fpn_backbone_radar.11} parent=43 // pred_check
              _
            $region46: #{fpn_backbone_radar.11} parent=43 // pred_check_branch
              %215 = sbr.rel target = $region48
            $region47: #{fpn_backbone_radar.11} parent=43 // pred_region
              // Predicated region
              $region60: #{fpn_backbone_radar.11} parent=47 // pred_check
                _
              $region61: #{fpn_backbone_radar.11} parent=47 // pred_check_branch
                %269 = sbr.rel (0) target = $region63
              $region62: #{fpn_backbone_radar.11} parent=47 // pred_region
                loop: start=0, step=1, limit=1
                $region64: #{fpn_backbone_radar.11} parent=62 // loop_pre_header
                  _
                $region65: #{fpn_backbone_radar.11} parent=62 // loop_header
                  %s271 = sphi 0, %s275
                  %p272 = scmp.ge.s32.totalorder %s271, 1
                  %s276 = sphi %s211, %s211
                  %s277 = sphi %s209, %s209
                $region66: #{fpn_backbone_radar.11} parent=62 // loop_header_branch
                  %274 = sbr.rel (%p272) target = $region70
                $region67: #{fpn_backbone_radar.11} parent=62 // loop_body
                  _
                $region68: #{fpn_backbone_radar.11} parent=62 // loop_footer
                  %s275 = sadd.s32 1, %s271
                $region69: #{fpn_backbone_radar.11} parent=62 // loop_footer_branch
                  %270 = sbr.rel target = $region65
                $region70: #{fpn_backbone_radar.11} parent=62 // loop_exit
                  _
                %s279 = ssub.s32 16, 1
                loop: start=0, step=1, limit=1
                $region71: #{fpn_backbone_radar.11} parent=62 // loop_pre_header
                  _
                $region72: #{fpn_backbone_radar.11} parent=62 // loop_header
                  %s281 = sphi 0, %s285
                  %p282 = scmp.ge.s32.totalorder %s281, 1
                  %s286 = sphi %s211, %s211
                  %s287 = sphi %s209, %s209
                $region73: #{fpn_backbone_radar.11} parent=62 // loop_header_branch
                  %284 = sbr.rel (%p282) target = $region77
                $region74: #{fpn_backbone_radar.11} parent=62 // loop_body
                  %v288 = vld [vmem:[%s286] sm:%s279]
                  %289 = vst [vmem:[%s287] sm:%s279] %v288
                  %v290 = vld [vmem:[%s286 + $0x8] sm:%s279]
                  %291 = vst [vmem:[%s287 + $0x4] sm:%s279] %v290
                  %v292 = vld [vmem:[%s286 + $0x10] sm:%s279]
                  %293 = vst [vmem:[%s287 + $0x8] sm:%s279] %v292
                  %v294 = vld [vmem:[%s286 + $0x18] sm:%s279]
                  %295 = vst [vmem:[%s287 + $0xc] sm:%s279] %v294
                  %v296 = vld [vmem:[%s286 + $0x20] sm:%s279]
                  %297 = vst [vmem:[%s287 + $0x10] sm:%s279] %v296
                  %v298 = vld [vmem:[%s286 + $0x28] sm:%s279]
                  %299 = vst [vmem:[%s287 + $0x14] sm:%s279] %v298
                  %v300 = vld [vmem:[%s286 + $0x30] sm:%s279]
                  %301 = vst [vmem:[%s287 + $0x18] sm:%s279] %v300
                  %v302 = vld [vmem:[%s286 + $0x38] sm:%s279]
                  %303 = vst [vmem:[%s287 + $0x1c] sm:%s279] %v302
                  %v304 = vld [vmem:[%s286 + $0x40] sm:%s279]
                  %305 = vst [vmem:[%s287 + $0x20] sm:%s279] %v304
                  %v306 = vld [vmem:[%s286 + $0x48] sm:%s279]
                  %307 = vst [vmem:[%s287 + $0x24] sm:%s279] %v306
                  %v308 = vld [vmem:[%s286 + $0x50] sm:%s279]
                  %309 = vst [vmem:[%s287 + $0x28] sm:%s279] %v308
                  %v310 = vld [vmem:[%s286 + $0x58] sm:%s279]
                  %311 = vst [vmem:[%s287 + $0x2c] sm:%s279] %v310
                  %v312 = vld [vmem:[%s286 + $0x60] sm:%s279]
                  %313 = vst [vmem:[%s287 + $0x30] sm:%s279] %v312
                  %v314 = vld [vmem:[%s286 + $0x68] sm:%s279]
                  %315 = vst [vmem:[%s287 + $0x34] sm:%s279] %v314
                  %v316 = vld [vmem:[%s286 + $0x70] sm:%s279]
                  %317 = vst [vmem:[%s287 + $0x38] sm:%s279] %v316
                  %v318 = vld [vmem:[%s286 + $0x78] sm:%s279]
                  %319 = vst [vmem:[%s287 + $0x3c] sm:%s279] %v318
                  %v320 = vld [vmem:[%s286 + $0x80] sm:%s279]
                  %321 = vst [vmem:[%s287 + $0x40] sm:%s279] %v320
                  %v322 = vld [vmem:[%s286 + $0x88] sm:%s279]
                  %323 = vst [vmem:[%s287 + $0x44] sm:%s279] %v322
                  %v324 = vld [vmem:[%s286 + $0x90] sm:%s279]
                  %325 = vst [vmem:[%s287 + $0x48] sm:%s279] %v324
                  %v326 = vld [vmem:[%s286 + $0x98] sm:%s279]
                  %327 = vst [vmem:[%s287 + $0x4c] sm:%s279] %v326
                $region75: #{fpn_backbone_radar.11} parent=62 // loop_footer
                  %s285 = sadd.s32 1, %s281
                $region76: #{fpn_backbone_radar.11} parent=62 // loop_footer_branch
                  %280 = sbr.rel target = $region72
                $region77: #{fpn_backbone_radar.11} parent=62 // loop_exit
                  _
              $region63: #{fpn_backbone_radar.11} parent=47 // pred_fallthru
                _
            $region48: #{fpn_backbone_radar.11} parent=43 // pred_fallthru
              _
            // Predicated region
            $region49: #{fpn_backbone_radar.11} parent=43 // pred_check
              _
            $region50: #{fpn_backbone_radar.11} parent=43 // pred_check_branch
              %217 = sbr.rel (0) target = $region52
            $region51: #{fpn_backbone_radar.11} parent=43 // pred_region
              %s219 = ssub.s32 16, 1
              loop: start=0, step=1, limit=1
              $region53: #{fpn_backbone_radar.11} parent=51 // loop_pre_header
                _
              $region54: #{fpn_backbone_radar.11} parent=51 // loop_header
                %s221 = sphi 0, %s225
                %p222 = scmp.ge.s32.totalorder %s221, 1
                %s226 = sphi %s211, %s211
                %s227 = sphi %s209, %s209
              $region55: #{fpn_backbone_radar.11} parent=51 // loop_header_branch
                %224 = sbr.rel (%p222) target = $region59
              $region56: #{fpn_backbone_radar.11} parent=51 // loop_body
                %v228 = vld [vmem:[%s226] sm:%s219]
                %229 = vst [vmem:[%s227] sm:%s219] %v228
                %v230 = vld [vmem:[%s226 + $0x8] sm:%s219]
                %231 = vst [vmem:[%s227 + $0x4] sm:%s219] %v230
                %v232 = vld [vmem:[%s226 + $0x10] sm:%s219]
                %233 = vst [vmem:[%s227 + $0x8] sm:%s219] %v232
                %v234 = vld [vmem:[%s226 + $0x18] sm:%s219]
                %235 = vst [vmem:[%s227 + $0xc] sm:%s219] %v234
                %v236 = vld [vmem:[%s226 + $0x20] sm:%s219]
                %237 = vst [vmem:[%s227 + $0x10] sm:%s219] %v236
                %v238 = vld [vmem:[%s226 + $0x28] sm:%s219]
                %239 = vst [vmem:[%s227 + $0x14] sm:%s219] %v238
                %v240 = vld [vmem:[%s226 + $0x30] sm:%s219]
                %241 = vst [vmem:[%s227 + $0x18] sm:%s219] %v240
                %v242 = vld [vmem:[%s226 + $0x38] sm:%s219]
                %243 = vst [vmem:[%s227 + $0x1c] sm:%s219] %v242
                %v244 = vld [vmem:[%s226 + $0x40] sm:%s219]
                %245 = vst [vmem:[%s227 + $0x20] sm:%s219] %v244
                %v246 = vld [vmem:[%s226 + $0x48] sm:%s219]
                %247 = vst [vmem:[%s227 + $0x24] sm:%s219] %v246
                %v248 = vld [vmem:[%s226 + $0x50] sm:%s219]
                %249 = vst [vmem:[%s227 + $0x28] sm:%s219] %v248
                %v250 = vld [vmem:[%s226 + $0x58] sm:%s219]
                %251 = vst [vmem:[%s227 + $0x2c] sm:%s219] %v250
                %v252 = vld [vmem:[%s226 + $0x60] sm:%s219]
                %253 = vst [vmem:[%s227 + $0x30] sm:%s219] %v252
                %v254 = vld [vmem:[%s226 + $0x68] sm:%s219]
                %255 = vst [vmem:[%s227 + $0x34] sm:%s219] %v254
                %v256 = vld [vmem:[%s226 + $0x70] sm:%s219]
                %257 = vst [vmem:[%s227 + $0x38] sm:%s219] %v256
                %v258 = vld [vmem:[%s226 + $0x78] sm:%s219]
                %259 = vst [vmem:[%s227 + $0x3c] sm:%s219] %v258
                %v260 = vld [vmem:[%s226 + $0x80] sm:%s219]
                %261 = vst [vmem:[%s227 + $0x40] sm:%s219] %v260
                %v262 = vld [vmem:[%s226 + $0x88] sm:%s219]
                %263 = vst [vmem:[%s227 + $0x44] sm:%s219] %v262
                %v264 = vld [vmem:[%s226 + $0x90] sm:%s219]
                %265 = vst [vmem:[%s227 + $0x48] sm:%s219] %v264
                %v266 = vld [vmem:[%s226 + $0x98] sm:%s219]
                %267 = vst [vmem:[%s227 + $0x4c] sm:%s219] %v266
              $region57: #{fpn_backbone_radar.11} parent=51 // loop_footer
                %s225 = sadd.s32 1, %s221
              $region58: #{fpn_backbone_radar.11} parent=51 // loop_footer_branch
                %220 = sbr.rel target = $region54
              $region59: #{fpn_backbone_radar.11} parent=51 // loop_exit
                _
            $region52: #{fpn_backbone_radar.11} parent=43 // pred_fallthru
              _
          $region44: #{fpn_backbone_radar.11} parent=39 // pred_fallthru
            _
          %328 = vnop
        $region40: #{fpn_backbone_radar.11} parent=35 // pred_fallthru
          _
      $region36: #{fpn_backbone_radar.11} parent=5 // pred_fallthru
        _
      %p329 = scmp.le.s32.totalorder 1, %s12
      %p330 = scmp.lt.s32.totalorder %s12, 3
      %p331 = pnand %p329, %p330
      %p332 = pneg %p331
      // Predicated region
      $region78: #{fpn_backbone_radar.11} parent=5 // pred_check
        _
      $region79: #{fpn_backbone_radar.11} parent=5 // pred_check_branch
        %334 = sbr.rel (%p331) target = $region81
      $region80: #{fpn_backbone_radar.11} parent=5 // pred_region
        %s335 = ssub.s32 %s12, 1
        %s336 = sand.u32 %s25, 1
        %s337 = sand.u32 %s25, 1
        %s338 = smul.addr %s337, 80
        %s339 = scalar_lea.vmem [#allocation2], %s338
        // Predicated region
        $region82: #{fpn_backbone_radar.11} parent=80 // pred_check
          %p340 = pneg %p38
        $region83: #{fpn_backbone_radar.11} parent=80 // pred_check_branch
          %342 = sbr.rel (%p340) target = $region85
        $region84: #{fpn_backbone_radar.11} parent=80 // pred_region
          _
        $region85: #{fpn_backbone_radar.11} parent=80 // pred_fallthru
          _
        %s343 = sand.u32 %s25, 1
        %s344 = sand.u32 %s25, 1
        %s345 = smul.addr %s344, 80
        %s346 = scalar_lea.vmem [#allocation2], %s345
        %p347 = pneg %p38
        %p348 = pneg %p35
        %p349 = pneg %p59
        %p350 = pneg %p56
        %p351 = pneg %p80
        %p352 = pneg %p77
        %p353 = pneg %p101
        %p354 = pneg %p98
        %p355 = pneg %p122
        %p356 = pneg %p119
        %p357 = pneg %p143
        %p358 = pneg %p140
        %p359 = pneg %p169
        %p360 = pneg %p166
        %s361 = sand.u32 %s156, 1
        %s362 = sand.u32 %s156, 1
        %s363 = smul.addr %s362, 8
        %s364 = scalar_lea.vmem [#allocation3], %s363
        %v366 = vld [vmem:[%s339] sm:$0xf]
        %v367 = vld [vmem:[%s339 + $0x4] sm:$0xf]
        %v368 = vld [vmem:[%s339 + $0x8] sm:$0xf]
        %v369 = vld [vmem:[%s339 + $0xc] sm:$0xf]
        %v370 = vld [vmem:[%s339 + $0x10] sm:$0xf]
        %v371 = vld [vmem:[%s339 + $0x14] sm:$0xf]
        %v372 = vld [vmem:[%s339 + $0x18] sm:$0xf]
        %v373 = vld [vmem:[%s339 + $0x1c] sm:$0xf]
        %v374 = vld [vmem:[%s339 + $0x20] sm:$0xf]
        %v375 = vld [vmem:[%s339 + $0x24] sm:$0xf]
        %v376 = vld [vmem:[%s339 + $0x28] sm:$0xf]
        %v377 = vld [vmem:[%s339 + $0x2c] sm:$0xf]
        %v378 = vld [vmem:[%s339 + $0x30] sm:$0xf]
        %v379 = vld [vmem:[%s339 + $0x34] sm:$0xf]
        %v380 = vld [vmem:[%s339 + $0x38] sm:$0xf]
        %v381 = vld [vmem:[%s339 + $0x3c] sm:$0xf]
        %v382 = vld [vmem:[%s339 + $0x40] sm:$0xf]
        %v383 = vld [vmem:[%s339 + $0x44] sm:$0xf]
        %v384 = vld [vmem:[%s339 + $0x48] sm:$0xf]
        %v385 = vld [vmem:[%s339 + $0x4c] sm:$0x1]
        %v386 = vld [vmem:[%s1] sm:$0xff]
        %v387 = vld [vmem:[%s1 + $0x8] sm:$0xff]
        %v388 = vld [vmem:[%s1 + $0x10] sm:$0xff]
        %v389 = vld [vmem:[%s1 + $0x18] sm:$0xff]
        %v390 = vld [vmem:[%s1 + $0x20] sm:$0xff]
        %v391 = vld [vmem:[%s1 + $0x28] sm:$0xff]
        %v392 = vld [vmem:[%s1 + $0x30] sm:$0xff]
        %v393 = vld [vmem:[%s1 + $0x38] sm:$0xff]
        %v394 = vld [vmem:[%s1 + $0x40] sm:$0xff]
        %v404 = vunpack.c.l.b16 %v386
        %v405 = vunpack.c.h.b16 %v386
        %v406 = vunpack.c.l.b16 %v387
        %v407 = vunpack.c.h.b16 %v387
        %v408 = vunpack.c.l.b16 %v388
        %v409 = vunpack.c.h.b16 %v388
        %v410 = vunpack.c.l.b16 %v389
        %v411 = vunpack.c.h.b16 %v389
        %v412 = vunpack.c.l.b16 %v390
        %v413 = vunpack.c.h.b16 %v390
        %v414 = vunpack.c.l.b16 %v391
        %v415 = vunpack.c.h.b16 %v391
        %v416 = vunpack.c.l.b16 %v392
        %v417 = vunpack.c.h.b16 %v392
        %v418 = vunpack.c.l.b16 %v393
        %v419 = vunpack.c.h.b16 %v393
        %v420 = vunpack.c.l.b16 %v394
        %v421 = vunpack.c.h.b16 %v394
        %v422 = vpack.c.b16 %v406, %v404
        %v423 = vpack.c.b16 %v407, %v405
        %v424 = vpack.c.b16 %v410, %v408
        %v425 = vpack.c.b16 %v411, %v409
        %v426 = vpack.c.b16 %v414, %v412
        %v427 = vpack.c.b16 %v415, %v413
        %v428 = vpack.c.b16 %v418, %v416
        %v429 = vpack.c.b16 %v419, %v417
        %v430 = vpack.c.b16 %v420, %v420
        %v431 = vpack.c.b16 %v421, %v421
        %v457 = vunpack.c.l.b16 %v366
        %v458 = vunpack.c.l.b16 %v367
        %v459 = vunpack.c.l.b16 %v368
        %v460 = vunpack.c.l.b16 %v369
        %v461 = vunpack.c.l.b16 %v370
        %v462 = vunpack.c.l.b16 %v371
        %v463 = vunpack.c.l.b16 %v372
        %v464 = vunpack.c.l.b16 %v373
        %v465 = vunpack.c.l.b16 %v374
        %v466 = vunpack.c.l.b16 %v375
        %v467 = vunpack.c.l.b16 %v376
        %v468 = vunpack.c.l.b16 %v377
        %v469 = vunpack.c.l.b16 %v378
        %v470 = vunpack.c.l.b16 %v379
        %v471 = vunpack.c.l.b16 %v380
        %v472 = vunpack.c.l.b16 %v381
        %v473 = vunpack.c.l.b16 %v382
        %v474 = vunpack.c.l.b16 %v383
        %v475 = vunpack.c.l.b16 %v384
        %v476 = vunpack.c.l.b16 %v385
        %v477 = vpack.c.b16 %v458, %v457
        %v478 = vpack.c.b16 %v460, %v459
        %v479 = vpack.c.b16 %v462, %v461
        %v480 = vpack.c.b16 %v464, %v463
        %v481 = vpack.c.b16 %v466, %v465
        %v482 = vpack.c.b16 %v468, %v467
        %v483 = vpack.c.b16 %v470, %v469
        %v484 = vpack.c.b16 %v472, %v471
        %v485 = vpack.c.b16 %v474, %v473
        %v486 = vpack.c.b16 %v476, %v475
        %vm496 = vcmask 203776
        %v498 = vsel %vm496, %v423, 0
        %v501 = vsel %vm496, %v425, 0
        %v504 = vsel %vm496, %v427, 0
        %v507 = vsel %vm496, %v429, 0
        %v510 = vsel %vm496, %v431, 0
        %vm512 = vcmask 1043456
        %vm513 = vcmask 1044480
        %v514 = vsel %vm512, 4294967295, 65535
        %v515 = vsel %vm513, %v514, 0
        %v517 = vand.u32 %v486, %v515
        %519 = vmatpush.bf16.msra.mxu0 %v484
        %520 = vmatpush.bf16.msra.mxu0 %v483
        %521 = vmatpush.bf16.msra.mxu0 %v482
        %522 = vmatpush.bf16.msra.mxu0 %v481
        %523 = vmatpush.bf16.msra.mxu0 %v480
        %524 = vmatpush.bf16.msra.mxu0 %v479
        %525 = vmatpush.bf16.msra.mxu0 %v478
        %526 = vmatpush.bf16.msra.mxu0 %v477
        %527 = vmatmul.bf16.gmra.mxu0 %v422
        %v528 = vpop.f32.mrf.mxu0
        %v529 = vadd.f32 0.0, %v528
        %v530 = vpop.f32.mrf.mxu0
        %v531 = vadd.f32 0.0, %v530
        %532 = vmatmul.bf16.gmra.mxu0 %v424
        %v533 = vpop.f32.mrf.mxu0
        %v534 = vadd.f32 0.0, %v533
        %v535 = vpop.f32.mrf.mxu0
        %v536 = vadd.f32 0.0, %v535
        %537 = vmatmul.bf16.gmra.mxu0 %v426
        %v538 = vpop.f32.mrf.mxu0
        %v539 = vadd.f32 0.0, %v538
        %v540 = vpop.f32.mrf.mxu0
        %v541 = vadd.f32 0.0, %v540
        %542 = vmatmul.bf16.gmra.mxu0 %v428
        %v543 = vpop.f32.mrf.mxu0
        %v544 = vadd.f32 0.0, %v543
        %v545 = vpop.f32.mrf.mxu0
        %v546 = vadd.f32 0.0, %v545
        %547 = vmatmul.bf16.gmra.mxu0 %v430
        %v548 = vpop.f32.mrf.mxu0
        %v549 = vadd.f32 0.0, %v548
        %v550 = vpop.f32.mrf.mxu0
        %551 = vdwg.mxu0
        %552 = vmatpush.bf16.msra.mxu0 0
        %553 = vmatpush.bf16.msra.mxu0 0
        %554 = vmatpush.bf16.msra.mxu0 0
        %555 = vmatpush.bf16.msra.mxu0 0
        %556 = vmatpush.bf16.msra.mxu0 0
        %557 = vmatpush.bf16.msra.mxu0 0
        %558 = vmatpush.bf16.msra.mxu0 %v517
        %559 = vmatpush.bf16.msra.mxu0 %v485
        %560 = vmatmul.bf16.gmra.mxu0 %v498
        %v561 = vpop.f32.mrf.mxu0
        %v562 = vadd.f32 %v529, %v561
        %v563 = vpop.f32.mrf.mxu0
        %v564 = vadd.f32 %v531, %v563
        %565 = vmatmul.bf16.gmra.mxu0 %v501
        %v566 = vpop.f32.mrf.mxu0
        %v567 = vadd.f32 %v534, %v566
        %v568 = vpop.f32.mrf.mxu0
        %v569 = vadd.f32 %v536, %v568
        %570 = vmatmul.bf16.gmra.mxu0 %v504
        %v571 = vpop.f32.mrf.mxu0
        %v572 = vadd.f32 %v539, %v571
        %v573 = vpop.f32.mrf.mxu0
        %v574 = vadd.f32 %v541, %v573
        %575 = vmatmul.bf16.gmra.mxu0 %v507
        %v576 = vpop.f32.mrf.mxu0
        %v577 = vadd.f32 %v544, %v576
        %v578 = vpop.f32.mrf.mxu0
        %v579 = vadd.f32 %v546, %v578
        %580 = vmatmul.bf16.gmra.mxu0 %v510
        %v581 = vpop.f32.mrf.mxu0
        %v582 = vadd.f32 %v549, %v581
        %v583 = vpop.f32.mrf.mxu0
        %584 = vdwg.mxu0
        %v585 = vmax.f32 %v562, 0.0
        %v586 = vmax.f32 %v564, 0.0
        %v587 = vmax.f32 %v567, 0.0
        %v588 = vmax.f32 %v569, 0.0
        %v589 = vmax.f32 %v572, 0.0
        %v590 = vmax.f32 %v574, 0.0
        %v591 = vmax.f32 %v577, 0.0
        %v592 = vmax.f32 %v579, 0.0
        %v593 = vmax.f32 %v582, 0.0
        %v594 = vpack.c.bf16 %v586, %v585
        %v595 = vpack.c.bf16 %v588, %v587
        %v596 = vpack.c.bf16 %v590, %v589
        %v597 = vpack.c.bf16 %v592, %v591
        %v598 = vpack.c.bf16 %v593, %v593
        %v599 = vld [vmem:[%s2] sm:$0xf]
        %v600 = vld [vmem:[%s3] sm:$0xff]
        %602 = vset.pattern.permute.xlu0 0
        %603 = vperm.xlu0 %602, %v600
        %v604 = vpop.permute.xlu0 %603
        %vm606 = vcmask 588800
        %v608 = vsel %vm606, %v599, 0
        %v611 = vsel %vm512, %v598, 0
        %613 = vmatpush.bf16.msra.mxu0 0
        %614 = vmatpush.bf16.msra.mxu0 0
        %615 = vmatpush.bf16.msra.mxu0 0
        %616 = vmatpush.bf16.msra.mxu0 %v611
        %617 = vmatpush.bf16.msra.mxu0 %v597
        %618 = vmatpush.bf16.msra.mxu0 %v596
        %619 = vmatpush.bf16.msra.mxu0 %v595
        %620 = vmatpush.bf16.msra.mxu0 %v594
        %621 = vmatmul.bf16.gmra.mxu0 %v608
        %v622 = vpop.f32.mrf.mxu0
        %v623 = vadd.f32 %v604, %v622
        %v624 = vpop.f32.mrf.mxu0
        %625 = vdwg.mxu0
        %v626 = vmax.f32 %v623, 0.0
        %v627 = vpack.c.bf16 %v626, %v626
        %v628 = vld [vmem:[%s4] sm:$0xf]
        %v629 = vld [vmem:[%s4 + $0x4] sm:$0xf]
        %v630 = vld [vmem:[%s5] sm:$0xff]
        %v631 = vld [vmem:[%s5 + $0x8] sm:$0xff]
        %633 = vset.pattern.permute.xlu0 0
        %634 = vperm.xlu0 %633, %v630
        %v635 = vpop.permute.xlu0 %634
        %638 = vset.pattern.permute.xlu0 0
        %639 = vperm.xlu0 %638, %v631
        %v640 = vpop.permute.xlu0 %639
        %v644 = vunpack.c.l.b16 %v628
        %v645 = vunpack.c.l.b16 %v629
        %v646 = vpack.c.b16 %v645, %v644
        %vm647 = vcmask 64512
        %v649 = vsel %vm647, %v646, 0
        %v652 = vsel %vm512, %v627, 0
        %654 = vmatpush.bf16.msra.mxu0 0
        %655 = vmatpush.bf16.msra.mxu0 0
        %656 = vmatpush.bf16.msra.mxu0 0
        %657 = vmatpush.bf16.msra.mxu0 0
        %658 = vmatpush.bf16.msra.mxu0 0
        %659 = vmatpush.bf16.msra.mxu0 0
        %660 = vmatpush.bf16.msra.mxu0 0
        %661 = vmatpush.bf16.msra.mxu0 %v652
        %662 = vmatmul.bf16.gmra.mxu0 %v649
        %v663 = vpop.f32.mrf.mxu0
        %v664 = vadd.f32 %v635, %v663
        %v665 = vpop.f32.mrf.mxu0
        %v666 = vadd.f32 %v640, %v665
        %667 = vdwg.mxu0
        %v668 = vunpack.c.l.bf16 %v374
        %v669 = vunpack.c.l.bf16 %v375
        %v670 = vadd.f32 %v664, %v668
        %v671 = vadd.f32 %v666, %v669
        %v672 = vmax.f32 %v670, 0.0
        %v673 = vmax.f32 %v671, 0.0
        %v674 = vpack.c.bf16 %v672, %v672
        %v675 = vpack.c.bf16 %v673, %v673
        %676 = vst [vmem:[%s364] sm:$0xf] %v674
        %677 = vst [vmem:[%s364 + $0x4] sm:$0xf] %v675
        %s678 = sand.u32 %s156, 1
        %s679 = sand.u32 %s156, 1
        %s680 = smul.addr %s679, 8
        %s681 = scalar_lea.vmem [#allocation3], %s680
        // Predicated region
        $region86: #{fpn_backbone_radar.11} parent=80 // pred_check
          %p682 = pneg %p166
        $region87: #{fpn_backbone_radar.11} parent=80 // pred_check_branch
          %684 = sbr.rel (%p682) target = $region89
        $region88: #{fpn_backbone_radar.11} parent=80 // pred_region
          %s685 = smul.addr %s17, 4
          %s686 = scalar_lea.vmem %s6, %s685
          // Predicated region
          $region90: #{fpn_backbone_radar.11} parent=88 // pred_check
            _
          $region91: #{fpn_backbone_radar.11} parent=88 // pred_check_branch
            %688 = sbr.rel (0) target = $region93
          $region92: #{fpn_backbone_radar.11} parent=88 // pred_region
            // Predicated region
            $region94: #{fpn_backbone_radar.11} parent=92 // pred_check
              _
            $region95: #{fpn_backbone_radar.11} parent=92 // pred_check_branch
              %690 = sbr.rel target = $region97
            $region96: #{fpn_backbone_radar.11} parent=92 // pred_region
              // Predicated region
              $region109: #{fpn_backbone_radar.11} parent=96 // pred_check
                _
              $region110: #{fpn_backbone_radar.11} parent=96 // pred_check_branch
                %708 = sbr.rel (0) target = $region112
              $region111: #{fpn_backbone_radar.11} parent=96 // pred_region
                loop: start=0, step=1, limit=1
                $region113: #{fpn_backbone_radar.11} parent=111 // loop_pre_header
                  _
                $region114: #{fpn_backbone_radar.11} parent=111 // loop_header
                  %s710 = sphi 0, %s714
                  %p711 = scmp.ge.s32.totalorder %s710, 1
                  %s715 = sphi %s681, %s681
                  %s716 = sphi %s686, %s686
                $region115: #{fpn_backbone_radar.11} parent=111 // loop_header_branch
                  %713 = sbr.rel (%p711) target = $region119
                $region116: #{fpn_backbone_radar.11} parent=111 // loop_body
                  _
                $region117: #{fpn_backbone_radar.11} parent=111 // loop_footer
                  %s714 = sadd.s32 1, %s710
                $region118: #{fpn_backbone_radar.11} parent=111 // loop_footer_branch
                  %709 = sbr.rel target = $region114
                $region119: #{fpn_backbone_radar.11} parent=111 // loop_exit
                  _
                %s718 = ssub.s32 16, 1
                loop: start=0, step=1, limit=1
                $region120: #{fpn_backbone_radar.11} parent=111 // loop_pre_header
                  _
                $region121: #{fpn_backbone_radar.11} parent=111 // loop_header
                  %s720 = sphi 0, %s724
                  %p721 = scmp.ge.s32.totalorder %s720, 1
                  %s725 = sphi %s681, %s681
                  %s726 = sphi %s686, %s686
                $region122: #{fpn_backbone_radar.11} parent=111 // loop_header_branch
                  %723 = sbr.rel (%p721) target = $region126
                $region123: #{fpn_backbone_radar.11} parent=111 // loop_body
                  %v727 = vld [vmem:[%s725] sm:%s718]
                  %728 = vst [vmem:[%s726] sm:%s718] %v727
                  %v729 = vld [vmem:[%s725 + $0x4] sm:%s718]
                  %730 = vst [vmem:[%s726 + $0x8] sm:%s718] %v729
                $region124: #{fpn_backbone_radar.11} parent=111 // loop_footer
                  %s724 = sadd.s32 1, %s720
                $region125: #{fpn_backbone_radar.11} parent=111 // loop_footer_branch
                  %719 = sbr.rel target = $region121
                $region126: #{fpn_backbone_radar.11} parent=111 // loop_exit
                  _
              $region112: #{fpn_backbone_radar.11} parent=96 // pred_fallthru
                _
            $region97: #{fpn_backbone_radar.11} parent=92 // pred_fallthru
              _
            // Predicated region
            $region98: #{fpn_backbone_radar.11} parent=92 // pred_check
              _
            $region99: #{fpn_backbone_radar.11} parent=92 // pred_check_branch
              %692 = sbr.rel (0) target = $region101
            $region100: #{fpn_backbone_radar.11} parent=92 // pred_region
              %s694 = ssub.s32 16, 1
              loop: start=0, step=1, limit=1
              $region102: #{fpn_backbone_radar.11} parent=100 // loop_pre_header
                _
              $region103: #{fpn_backbone_radar.11} parent=100 // loop_header
                %s696 = sphi 0, %s700
                %p697 = scmp.ge.s32.totalorder %s696, 1
                %s701 = sphi %s681, %s681
                %s702 = sphi %s686, %s686
              $region104: #{fpn_backbone_radar.11} parent=100 // loop_header_branch
                %699 = sbr.rel (%p697) target = $region108
              $region105: #{fpn_backbone_radar.11} parent=100 // loop_body
                %v703 = vld [vmem:[%s701] sm:%s694]
                %704 = vst [vmem:[%s702] sm:%s694] %v703
                %v705 = vld [vmem:[%s701 + $0x4] sm:%s694]
                %706 = vst [vmem:[%s702 + $0x8] sm:%s694] %v705
              $region106: #{fpn_backbone_radar.11} parent=100 // loop_footer
                %s700 = sadd.s32 1, %s696
              $region107: #{fpn_backbone_radar.11} parent=100 // loop_footer_branch
                %695 = sbr.rel target = $region103
              $region108: #{fpn_backbone_radar.11} parent=100 // loop_exit
                _
            $region101: #{fpn_backbone_radar.11} parent=92 // pred_fallthru
              _
          $region93: #{fpn_backbone_radar.11} parent=88 // pred_fallthru
            _
          %731 = vnop
        $region89: #{fpn_backbone_radar.11} parent=80 // pred_fallthru
          _
      $region81: #{fpn_backbone_radar.11} parent=5 // pred_fallthru
        _
      %p732 = scmp.le.s32.totalorder 2, %s12
      // Predicated region
      $region127: #{fpn_backbone_radar.11} parent=5 // pred_check
        %p733 = pneg %p732
      $region128: #{fpn_backbone_radar.11} parent=5 // pred_check_branch
        %735 = sbr.rel (%p733) target = $region130
      $region129: #{fpn_backbone_radar.11} parent=5 // pred_region
        %s736 = ssub.s32 %s12, 2
        // Predicated region
        $region131: #{fpn_backbone_radar.11} parent=129 // pred_check
          %p737 = pneg %p172
        $region132: #{fpn_backbone_radar.11} parent=129 // pred_check_branch
          %739 = sbr.rel (%p737) target = $region134
        $region133: #{fpn_backbone_radar.11} parent=129 // pred_region
          %s740 = sand.u32 %s157, 1
          %s741 = sand.u32 %s157, 1
          %s742 = smul.addr %s741, 8
          %s743 = scalar_lea.vmem [#allocation3], %s742
        $region134: #{fpn_backbone_radar.11} parent=129 // pred_fallthru
          _
      $region130: #{fpn_backbone_radar.11} parent=5 // pred_fallthru
        _
    $region6: #{fpn_backbone_radar.11} parent=1 // loop_footer
      %s16 = sadd.s32 1, %s12
    $region7: #{fpn_backbone_radar.11} parent=1 // loop_footer_branch
      %11 = sbr.rel target = $region3
    $region8: #{fpn_backbone_radar.11} parent=1 // loop_exit
      _

// kernel: fpn_backbone_radar.12
$region0: #{fpn_backbone_radar.12}
  #allocation0 [shape = 'u32[]', space=smem, size = 0x4, offset = 0x4, fixed_abs, tag = 'smem constant byte address 0x4 - core index']
  #allocation1 [shape = 'u32[72,128]{1,0:T(1,128)}', space=vmem, size = 0x9000, scoped, tag = 'internal scratch']
  %s0 = inlined_call_operand.vmem [shape: bf16[153,128], index: 0, kind: input, shape index: {}]
  %s1 = inlined_call_operand.vmem [shape: bf16[144,153], index: 1, kind: input, shape index: {}]
  %s2 = inlined_call_operand.vmem [shape: bf16[16,144], index: 2, kind: input, shape index: {}]
  %s3 = inlined_call_operand.vmem [shape: f32[16,1], index: 3, kind: input, shape index: {}]
  %s4 = inlined_call_operand.vmem [shape: bf16[32,16], index: 4, kind: input, shape index: {}]
  %s5 = inlined_call_operand.vmem [shape: f32[32,1], index: 5, kind: input, shape index: {}]
  %s6 = inlined_call_operand.vmem [shape: bf16[32,16], index: 6, kind: input, shape index: {}]
  %s7 = inlined_call_operand.vmem [shape: f32[32,1], index: 7, kind: input, shape index: {}]
  %s8 = inlined_call_operand.vmem [shape: bf16[32,128], index: 8, kind: output, shape index: {}]
  %s9 = sld [smem:[#allocation0]]
  $region42: #{fpn_backbone_radar.12} parent=0
    _
  %s11 = ssub.s32 1, %s9
  %s12 = scalar_select 0, %s11, %s9
  // Predicated region
  $region2: #{fpn_backbone_radar.12} parent=0 // pred_check
    _
  $region3: #{fpn_backbone_radar.12} parent=0 // pred_check_branch
    %14 = sbr.rel (0) target = $region5
  $region4: #{fpn_backbone_radar.12} parent=0 // pred_region
    _
  $region5: #{fpn_backbone_radar.12} parent=0 // pred_fallthru
    _
  // Predicated region
  $region6: #{fpn_backbone_radar.12} parent=0 // pred_check
    _
  $region7: #{fpn_backbone_radar.12} parent=0 // pred_check_branch
    %16 = sbr.rel (0) target = $region9
  $region8: #{fpn_backbone_radar.12} parent=0 // pred_region
    _
  $region9: #{fpn_backbone_radar.12} parent=0 // pred_fallthru
    _
  // Predicated region
  $region10: #{fpn_backbone_radar.12} parent=0 // pred_check
    _
  $region11: #{fpn_backbone_radar.12} parent=0 // pred_check_branch
    %18 = sbr.rel (0) target = $region13
  $region12: #{fpn_backbone_radar.12} parent=0 // pred_region
    _
  $region13: #{fpn_backbone_radar.12} parent=0 // pred_fallthru
    _
  // Predicated region
  $region14: #{fpn_backbone_radar.12} parent=0 // pred_check
    _
  $region15: #{fpn_backbone_radar.12} parent=0 // pred_check_branch
    %20 = sbr.rel (0) target = $region17
  $region16: #{fpn_backbone_radar.12} parent=0 // pred_region
    _
  $region17: #{fpn_backbone_radar.12} parent=0 // pred_fallthru
    _
  // Predicated region
  $region18: #{fpn_backbone_radar.12} parent=0 // pred_check
    _
  $region19: #{fpn_backbone_radar.12} parent=0 // pred_check_branch
    %22 = sbr.rel (0) target = $region21
  $region20: #{fpn_backbone_radar.12} parent=0 // pred_region
    _
  $region21: #{fpn_backbone_radar.12} parent=0 // pred_fallthru
    _
  // Predicated region
  $region22: #{fpn_backbone_radar.12} parent=0 // pred_check
    _
  $region23: #{fpn_backbone_radar.12} parent=0 // pred_check_branch
    %24 = sbr.rel (0) target = $region25
  $region24: #{fpn_backbone_radar.12} parent=0 // pred_region
    _
  $region25: #{fpn_backbone_radar.12} parent=0 // pred_fallthru
    _
  // Predicated region
  $region26: #{fpn_backbone_radar.12} parent=0 // pred_check
    _
  $region27: #{fpn_backbone_radar.12} parent=0 // pred_check_branch
    %26 = sbr.rel (0) target = $region29
  $region28: #{fpn_backbone_radar.12} parent=0 // pred_region
    _
  $region29: #{fpn_backbone_radar.12} parent=0 // pred_fallthru
    _
  // Predicated region
  $region30: #{fpn_backbone_radar.12} parent=0 // pred_check
    _
  $region31: #{fpn_backbone_radar.12} parent=0 // pred_check_branch
    %28 = sbr.rel (0) target = $region33
  $region32: #{fpn_backbone_radar.12} parent=0 // pred_region
    _
  $region33: #{fpn_backbone_radar.12} parent=0 // pred_fallthru
    _
  %v30 = vld [vmem:[%s0] sm:$0xf]
  %v31 = vld [vmem:[%s0 + $0x4] sm:$0xf]
  %v32 = vld [vmem:[%s0 + $0x8] sm:$0xf]
  %v33 = vld [vmem:[%s0 + $0xc] sm:$0xf]
  %v34 = vld [vmem:[%s0 + $0x10] sm:$0xf]
  %v35 = vld [vmem:[%s0 + $0x14] sm:$0xf]
  %v36 = vld [vmem:[%s0 + $0x18] sm:$0xf]
  %v37 = vld [vmem:[%s0 + $0x1c] sm:$0xf]
  %v38 = vld [vmem:[%s0 + $0x20] sm:$0xf]
  %v39 = vld [vmem:[%s0 + $0x24] sm:$0xf]
  %v40 = vld [vmem:[%s0 + $0x28] sm:$0xf]
  %v41 = vld [vmem:[%s0 + $0x2c] sm:$0xf]
  %v42 = vld [vmem:[%s0 + $0x30] sm:$0xf]
  %v43 = vld [vmem:[%s0 + $0x34] sm:$0xf]
  %v44 = vld [vmem:[%s0 + $0x38] sm:$0xf]
  %v45 = vld [vmem:[%s0 + $0x3c] sm:$0xf]
  %v46 = vld [vmem:[%s0 + $0x40] sm:$0xf]
  %v47 = vld [vmem:[%s0 + $0x44] sm:$0xf]
  %v48 = vld [vmem:[%s0 + $0x48] sm:$0xf]
  %v49 = vld [vmem:[%s0 + $0x4c] sm:$0x1]
  %v50 = vld [vmem:[%s1] sm:$0xff]
  %v51 = vld [vmem:[%s1 + $0x8] sm:$0xff]
  %v52 = vld [vmem:[%s1 + $0x10] sm:$0xff]
  %v53 = vld [vmem:[%s1 + $0x18] sm:$0xff]
  %v54 = vld [vmem:[%s1 + $0x20] sm:$0xff]
  %v55 = vld [vmem:[%s1 + $0x28] sm:$0xff]
  %v56 = vld [vmem:[%s1 + $0x30] sm:$0xff]
  %v57 = vld [vmem:[%s1 + $0x38] sm:$0xff]
  %v58 = vld [vmem:[%s1 + $0x40] sm:$0xff]
  %v59 = vld [vmem:[%s1 + $0x48] sm:$0xff]
  %v60 = vld [vmem:[%s1 + $0x50] sm:$0xff]
  %v61 = vld [vmem:[%s1 + $0x58] sm:$0xff]
  %v62 = vld [vmem:[%s1 + $0x60] sm:$0xff]
  %v63 = vld [vmem:[%s1 + $0x68] sm:$0xff]
  %v64 = vld [vmem:[%s1 + $0x70] sm:$0xff]
  %v65 = vld [vmem:[%s1 + $0x78] sm:$0xff]
  %v66 = vld [vmem:[%s1 + $0x80] sm:$0xff]
  %v67 = vld [vmem:[%s1 + $0x88] sm:$0xff]
  %v86 = vunpack.c.l.b16 %v50
  %v87 = vunpack.c.h.b16 %v50
  %v88 = vunpack.c.l.b16 %v51
  %v89 = vunpack.c.h.b16 %v51
  %v90 = vunpack.c.l.b16 %v52
  %v91 = vunpack.c.h.b16 %v52
  %v92 = vunpack.c.l.b16 %v53
  %v93 = vunpack.c.h.b16 %v53
  %v94 = vunpack.c.l.b16 %v54
  %v95 = vunpack.c.h.b16 %v54
  %v96 = vunpack.c.l.b16 %v55
  %v97 = vunpack.c.h.b16 %v55
  %v98 = vunpack.c.l.b16 %v56
  %v99 = vunpack.c.h.b16 %v56
  %v100 = vunpack.c.l.b16 %v57
  %v101 = vunpack.c.h.b16 %v57
  %v102 = vunpack.c.l.b16 %v58
  %v103 = vunpack.c.h.b16 %v58
  %v104 = vunpack.c.l.b16 %v59
  %v105 = vunpack.c.h.b16 %v59
  %v106 = vunpack.c.l.b16 %v60
  %v107 = vunpack.c.h.b16 %v60
  %v108 = vunpack.c.l.b16 %v61
  %v109 = vunpack.c.h.b16 %v61
  %v110 = vunpack.c.l.b16 %v62
  %v111 = vunpack.c.h.b16 %v62
  %v112 = vunpack.c.l.b16 %v63
  %v113 = vunpack.c.h.b16 %v63
  %v114 = vunpack.c.l.b16 %v64
  %v115 = vunpack.c.h.b16 %v64
  %v116 = vunpack.c.l.b16 %v65
  %v117 = vunpack.c.h.b16 %v65
  %v118 = vunpack.c.l.b16 %v66
  %v119 = vunpack.c.h.b16 %v66
  %v120 = vunpack.c.l.b16 %v67
  %v121 = vunpack.c.h.b16 %v67
  %v122 = vpack.c.b16 %v88, %v86
  %v123 = vpack.c.b16 %v89, %v87
  %v124 = vpack.c.b16 %v92, %v90
  %v125 = vpack.c.b16 %v93, %v91
  %v126 = vpack.c.b16 %v96, %v94
  %v127 = vpack.c.b16 %v97, %v95
  %v128 = vpack.c.b16 %v100, %v98
  %v129 = vpack.c.b16 %v101, %v99
  %v130 = vpack.c.b16 %v104, %v102
  %v131 = vpack.c.b16 %v105, %v103
  %v132 = vpack.c.b16 %v108, %v106
  %v133 = vpack.c.b16 %v109, %v107
  %v134 = vpack.c.b16 %v112, %v110
  %v135 = vpack.c.b16 %v113, %v111
  %v136 = vpack.c.b16 %v116, %v114
  %v137 = vpack.c.b16 %v117, %v115
  %v138 = vpack.c.b16 %v120, %v118
  %v139 = vpack.c.b16 %v121, %v119
  %v169 = vunpack.c.l.b16 %v30
  %v170 = vunpack.c.l.b16 %v31
  %v171 = vunpack.c.l.b16 %v32
  %v172 = vunpack.c.l.b16 %v33
  %v173 = vunpack.c.l.b16 %v34
  %v174 = vunpack.c.l.b16 %v35
  %v175 = vunpack.c.l.b16 %v36
  %v176 = vunpack.c.l.b16 %v37
  %v177 = vunpack.c.l.b16 %v38
  %v178 = vunpack.c.l.b16 %v39
  %v179 = vunpack.c.l.b16 %v40
  %v180 = vunpack.c.l.b16 %v41
  %v181 = vunpack.c.l.b16 %v42
  %v182 = vunpack.c.l.b16 %v43
  %v183 = vunpack.c.l.b16 %v44
  %v184 = vunpack.c.l.b16 %v45
  %v185 = vunpack.c.l.b16 %v46
  %v186 = vunpack.c.l.b16 %v47
  %v187 = vunpack.c.l.b16 %v48
  %v188 = vunpack.c.l.b16 %v49
  %v189 = vpack.c.b16 %v170, %v169
  %v190 = vpack.c.b16 %v172, %v171
  %v191 = vpack.c.b16 %v174, %v173
  %v192 = vpack.c.b16 %v176, %v175
  %v193 = vpack.c.b16 %v178, %v177
  %v194 = vpack.c.b16 %v180, %v179
  %v195 = vpack.c.b16 %v182, %v181
  %v196 = vpack.c.b16 %v184, %v183
  %v197 = vpack.c.b16 %v186, %v185
  %v198 = vpack.c.b16 %v188, %v187
  %vm208 = vcmask 203776
  %v210 = vsel %vm208, %v123, 0
  %v213 = vsel %vm208, %v125, 0
  %v216 = vsel %vm208, %v127, 0
  %v219 = vsel %vm208, %v129, 0
  %v222 = vsel %vm208, %v131, 0
  %v225 = vsel %vm208, %v133, 0
  %v228 = vsel %vm208, %v135, 0
  %v231 = vsel %vm208, %v137, 0
  %v234 = vsel %vm208, %v139, 0
  %vm236 = vcmask 1043456
  %vm237 = vcmask 1044480
  %v238 = vsel %vm236, 4294967295, 65535
  %v239 = vsel %vm237, %v238, 0
  %v241 = vand.u32 %v198, %v239
  %243 = vmatpush.bf16.msra.mxu0 %v196
  %244 = vmatpush.bf16.msra.mxu0 %v195
  %245 = vmatpush.bf16.msra.mxu0 %v194
  %246 = vmatpush.bf16.msra.mxu0 %v193
  %247 = vmatpush.bf16.msra.mxu0 %v192
  %248 = vmatpush.bf16.msra.mxu0 %v191
  %249 = vmatpush.bf16.msra.mxu0 %v190
  %250 = vmatpush.bf16.msra.mxu0 %v189
  %251 = vmatmul.bf16.gmra.mxu0 %v122
  %v252 = vpop.f32.mrf.mxu0
  %v253 = vadd.f32 0.0, %v252
  %v254 = vpop.f32.mrf.mxu0
  %v255 = vadd.f32 0.0, %v254
  %256 = vmatmul.bf16.gmra.mxu0 %v124
  %v257 = vpop.f32.mrf.mxu0
  %v258 = vadd.f32 0.0, %v257
  %v259 = vpop.f32.mrf.mxu0
  %v260 = vadd.f32 0.0, %v259
  %261 = vmatmul.bf16.gmra.mxu0 %v126
  %v262 = vpop.f32.mrf.mxu0
  %v263 = vadd.f32 0.0, %v262
  %v264 = vpop.f32.mrf.mxu0
  %v265 = vadd.f32 0.0, %v264
  %266 = vmatmul.bf16.gmra.mxu0 %v128
  %v267 = vpop.f32.mrf.mxu0
  %v268 = vadd.f32 0.0, %v267
  %v269 = vpop.f32.mrf.mxu0
  %v270 = vadd.f32 0.0, %v269
  %271 = vmatmul.bf16.gmra.mxu0 %v130
  %v272 = vpop.f32.mrf.mxu0
  %v273 = vadd.f32 0.0, %v272
  %v274 = vpop.f32.mrf.mxu0
  %v275 = vadd.f32 0.0, %v274
  %276 = vmatmul.bf16.gmra.mxu0 %v132
  %v277 = vpop.f32.mrf.mxu0
  %v278 = vadd.f32 0.0, %v277
  %v279 = vpop.f32.mrf.mxu0
  %v280 = vadd.f32 0.0, %v279
  %281 = vmatmul.bf16.gmra.mxu0 %v134
  %v282 = vpop.f32.mrf.mxu0
  %v283 = vadd.f32 0.0, %v282
  %v284 = vpop.f32.mrf.mxu0
  %v285 = vadd.f32 0.0, %v284
  %286 = vmatmul.bf16.gmra.mxu0 %v136
  %v287 = vpop.f32.mrf.mxu0
  %v288 = vadd.f32 0.0, %v287
  %v289 = vpop.f32.mrf.mxu0
  %v290 = vadd.f32 0.0, %v289
  %291 = vmatmul.bf16.gmra.mxu0 %v138
  %v292 = vpop.f32.mrf.mxu0
  %v293 = vadd.f32 0.0, %v292
  %v294 = vpop.f32.mrf.mxu0
  %v295 = vadd.f32 0.0, %v294
  %296 = vdwg.mxu0
  %297 = vmatpush.bf16.msra.mxu0 0
  %298 = vmatpush.bf16.msra.mxu0 0
  %299 = vmatpush.bf16.msra.mxu0 0
  %300 = vmatpush.bf16.msra.mxu0 0
  %301 = vmatpush.bf16.msra.mxu0 0
  %302 = vmatpush.bf16.msra.mxu0 0
  %303 = vmatpush.bf16.msra.mxu0 %v241
  %304 = vmatpush.bf16.msra.mxu0 %v197
  %305 = vmatmul.bf16.gmra.mxu0 %v210
  %v306 = vpop.f32.mrf.mxu0
  %v307 = vadd.f32 %v253, %v306
  %v308 = vpop.f32.mrf.mxu0
  %v309 = vadd.f32 %v255, %v308
  %310 = vmatmul.bf16.gmra.mxu0 %v213
  %v311 = vpop.f32.mrf.mxu0
  %v312 = vadd.f32 %v258, %v311
  %v313 = vpop.f32.mrf.mxu0
  %v314 = vadd.f32 %v260, %v313
  %315 = vmatmul.bf16.gmra.mxu0 %v216
  %v316 = vpop.f32.mrf.mxu0
  %v317 = vadd.f32 %v263, %v316
  %v318 = vpop.f32.mrf.mxu0
  %v319 = vadd.f32 %v265, %v318
  %320 = vmatmul.bf16.gmra.mxu0 %v219
  %v321 = vpop.f32.mrf.mxu0
  %v322 = vadd.f32 %v268, %v321
  %v323 = vpop.f32.mrf.mxu0
  %v324 = vadd.f32 %v270, %v323
  %325 = vmatmul.bf16.gmra.mxu0 %v222
  %v326 = vpop.f32.mrf.mxu0
  %v327 = vadd.f32 %v273, %v326
  %v328 = vpop.f32.mrf.mxu0
  %v329 = vadd.f32 %v275, %v328
  %330 = vmatmul.bf16.gmra.mxu0 %v225
  %v331 = vpop.f32.mrf.mxu0
  %v332 = vadd.f32 %v278, %v331
  %v333 = vpop.f32.mrf.mxu0
  %v334 = vadd.f32 %v280, %v333
  %335 = vmatmul.bf16.gmra.mxu0 %v228
  %v336 = vpop.f32.mrf.mxu0
  %v337 = vadd.f32 %v283, %v336
  %v338 = vpop.f32.mrf.mxu0
  %v339 = vadd.f32 %v285, %v338
  %340 = vmatmul.bf16.gmra.mxu0 %v231
  %v341 = vpop.f32.mrf.mxu0
  %v342 = vadd.f32 %v288, %v341
  %v343 = vpop.f32.mrf.mxu0
  %v344 = vadd.f32 %v290, %v343
  %345 = vmatmul.bf16.gmra.mxu0 %v234
  %v346 = vpop.f32.mrf.mxu0
  %v347 = vadd.f32 %v293, %v346
  %v348 = vpop.f32.mrf.mxu0
  %v349 = vadd.f32 %v295, %v348
  %350 = vdwg.mxu0
  %v351 = vmax.f32 %v307, 0.0
  %v352 = vmax.f32 %v309, 0.0
  %v353 = vmax.f32 %v312, 0.0
  %v354 = vmax.f32 %v314, 0.0
  %v355 = vmax.f32 %v317, 0.0
  %v356 = vmax.f32 %v319, 0.0
  %v357 = vmax.f32 %v322, 0.0
  %v358 = vmax.f32 %v324, 0.0
  %v359 = vmax.f32 %v327, 0.0
  %v360 = vmax.f32 %v329, 0.0
  %v361 = vmax.f32 %v332, 0.0
  %v362 = vmax.f32 %v334, 0.0
  %v363 = vmax.f32 %v337, 0.0
  %v364 = vmax.f32 %v339, 0.0
  %v365 = vmax.f32 %v342, 0.0
  %v366 = vmax.f32 %v344, 0.0
  %v367 = vmax.f32 %v347, 0.0
  %v368 = vmax.f32 %v349, 0.0
  %v369 = vpack.c.bf16 %v352, %v351
  %v370 = vpack.c.bf16 %v354, %v353
  %v371 = vpack.c.bf16 %v356, %v355
  %v372 = vpack.c.bf16 %v358, %v357
  %v373 = vpack.c.bf16 %v360, %v359
  %v374 = vpack.c.bf16 %v362, %v361
  %v375 = vpack.c.bf16 %v364, %v363
  %v376 = vpack.c.bf16 %v366, %v365
  %v377 = vpack.c.bf16 %v368, %v367
  %v378 = vld [vmem:[%s2] sm:$0xff]
  %v379 = vld [vmem:[%s2 + $0x8] sm:$0xff]
  %v380 = vld [vmem:[%s3] sm:$0xff]
  %v381 = vld [vmem:[%s3 + $0x8] sm:$0xff]
  %383 = vset.pattern.permute.xlu0 0
  %384 = vperm.xlu0 %383, %v380
  %v385 = vpop.permute.xlu0 %384
  %388 = vset.pattern.permute.xlu0 0
  %389 = vperm.xlu0 %388, %v381
  %v390 = vpop.permute.xlu0 %389
  %v394 = vunpack.c.l.b16 %v378
  %v395 = vunpack.c.h.b16 %v378
  %v396 = vunpack.c.l.b16 %v379
  %v397 = vunpack.c.h.b16 %v379
  %v398 = vpack.c.b16 %v396, %v394
  %v399 = vpack.c.b16 %v397, %v395
  %vm401 = vcmask 130048
  %v403 = vsel %vm401, %v399, 0
  %405 = vmatpush.bf16.msra.mxu0 %v376
  %406 = vmatpush.bf16.msra.mxu0 %v375
  %407 = vmatpush.bf16.msra.mxu0 %v374
  %408 = vmatpush.bf16.msra.mxu0 %v373
  %409 = vmatpush.bf16.msra.mxu0 %v372
  %410 = vmatpush.bf16.msra.mxu0 %v371
  %411 = vmatpush.bf16.msra.mxu0 %v370
  %412 = vmatpush.bf16.msra.mxu0 %v369
  %413 = vmatmul.bf16.gmra.mxu0 %v398
  %v414 = vpop.f32.mrf.mxu0
  %v415 = vadd.f32 %v385, %v414
  %v416 = vpop.f32.mrf.mxu0
  %v417 = vadd.f32 %v390, %v416
  %418 = vdwg.mxu0
  %419 = vmatpush.bf16.msra.mxu0 0
  %420 = vmatpush.bf16.msra.mxu0 0
  %421 = vmatpush.bf16.msra.mxu0 0
  %422 = vmatpush.bf16.msra.mxu0 0
  %423 = vmatpush.bf16.msra.mxu0 0
  %424 = vmatpush.bf16.msra.mxu0 0
  %425 = vmatpush.bf16.msra.mxu0 0
  %426 = vmatpush.bf16.msra.mxu0 %v377
  %427 = vmatmul.bf16.gmra.mxu0 %v403
  %v428 = vpop.f32.mrf.mxu0
  %v429 = vadd.f32 %v415, %v428
  %v430 = vpop.f32.mrf.mxu0
  %v431 = vadd.f32 %v417, %v430
  %432 = vdwg.mxu0
  %v433 = vmax.f32 %v429, 0.0
  %v434 = vmax.f32 %v431, 0.0
  %v435 = vpack.c.bf16 %v434, %v433
  %v436 = vld [vmem:[%s4] sm:$0xf]
  %v437 = vld [vmem:[%s4 + $0x4] sm:$0xf]
  %v438 = vld [vmem:[%s4 + $0x8] sm:$0xf]
  %v439 = vld [vmem:[%s4 + $0xc] sm:$0xf]
  %v440 = vld [vmem:[%s5] sm:$0xff]
  %v441 = vld [vmem:[%s5 + $0x8] sm:$0xff]
  %v442 = vld [vmem:[%s5 + $0x10] sm:$0xff]
  %v443 = vld [vmem:[%s5 + $0x18] sm:$0xff]
  %445 = vset.pattern.permute.xlu0 0
  %446 = vperm.xlu0 %445, %v440
  %v447 = vpop.permute.xlu0 %446
  %450 = vset.pattern.permute.xlu0 0
  %451 = vperm.xlu0 %450, %v441
  %v452 = vpop.permute.xlu0 %451
  %455 = vset.pattern.permute.xlu0 0
  %456 = vperm.xlu0 %455, %v442
  %v457 = vpop.permute.xlu0 %456
  %460 = vset.pattern.permute.xlu0 0
  %461 = vperm.xlu0 %460, %v443
  %v462 = vpop.permute.xlu0 %461
  %v468 = vunpack.c.l.b16 %v436
  %v469 = vunpack.c.l.b16 %v437
  %v470 = vunpack.c.l.b16 %v438
  %v471 = vunpack.c.l.b16 %v439
  %v472 = vpack.c.b16 %v469, %v468
  %v473 = vpack.c.b16 %v471, %v470
  %v475 = vsel %vm401, %v472, 0
  %v478 = vsel %vm401, %v473, 0
  %480 = vmatpush.bf16.msra.mxu0 0
  %481 = vmatpush.bf16.msra.mxu0 0
  %482 = vmatpush.bf16.msra.mxu0 0
  %483 = vmatpush.bf16.msra.mxu0 0
  %484 = vmatpush.bf16.msra.mxu0 0
  %485 = vmatpush.bf16.msra.mxu0 0
  %486 = vmatpush.bf16.msra.mxu0 0
  %487 = vmatpush.bf16.msra.mxu0 %v435
  %488 = vmatmul.bf16.gmra.mxu0 %v475
  %v489 = vpop.f32.mrf.mxu0
  %v490 = vadd.f32 %v447, %v489
  %v491 = vpop.f32.mrf.mxu0
  %v492 = vadd.f32 %v452, %v491
  %493 = vmatmul.bf16.gmra.mxu0 %v478
  %v494 = vpop.f32.mrf.mxu0
  %v495 = vadd.f32 %v457, %v494
  %v496 = vpop.f32.mrf.mxu0
  %v497 = vadd.f32 %v462, %v496
  %498 = vdwg.mxu0
  %v499 = vld [vmem:[%s6] sm:$0xf]
  %v500 = vld [vmem:[%s6 + $0x4] sm:$0xf]
  %v501 = vld [vmem:[%s6 + $0x8] sm:$0xf]
  %v502 = vld [vmem:[%s6 + $0xc] sm:$0xf]
  %v503 = vld [vmem:[%s7] sm:$0xff]
  %v504 = vld [vmem:[%s7 + $0x8] sm:$0xff]
  %v505 = vld [vmem:[%s7 + $0x10] sm:$0xff]
  %v506 = vld [vmem:[%s7 + $0x18] sm:$0xff]
  %508 = vset.pattern.permute.xlu0 0
  %509 = vperm.xlu0 %508, %v503
  %v510 = vpop.permute.xlu0 %509
  %513 = vset.pattern.permute.xlu0 0
  %514 = vperm.xlu0 %513, %v504
  %v515 = vpop.permute.xlu0 %514
  %518 = vset.pattern.permute.xlu0 0
  %519 = vperm.xlu0 %518, %v505
  %v520 = vpop.permute.xlu0 %519
  %523 = vset.pattern.permute.xlu0 0
  %524 = vperm.xlu0 %523, %v506
  %v525 = vpop.permute.xlu0 %524
  %v531 = vunpack.c.l.b16 %v499
  %v532 = vunpack.c.l.b16 %v500
  %v533 = vunpack.c.l.b16 %v501
  %v534 = vunpack.c.l.b16 %v502
  %v535 = vpack.c.b16 %v532, %v531
  %v536 = vpack.c.b16 %v534, %v533
  %v538 = vsel %vm401, %v535, 0
  %v541 = vsel %vm401, %v536, 0
  %543 = vmatpush.bf16.msra.mxu0 0
  %544 = vmatpush.bf16.msra.mxu0 0
  %545 = vmatpush.bf16.msra.mxu0 0
  %546 = vmatpush.bf16.msra.mxu0 0
  %547 = vmatpush.bf16.msra.mxu0 0
  %548 = vmatpush.bf16.msra.mxu0 0
  %549 = vmatpush.bf16.msra.mxu0 0
  %550 = vmatpush.bf16.msra.mxu0 %v193
  %551 = vmatmul.bf16.gmra.mxu0 %v538
  %v552 = vpop.f32.mrf.mxu0
  %v553 = vadd.f32 %v510, %v552
  %v554 = vpop.f32.mrf.mxu0
  %v555 = vadd.f32 %v515, %v554
  %556 = vmatmul.bf16.gmra.mxu0 %v541
  %v557 = vpop.f32.mrf.mxu0
  %v558 = vadd.f32 %v520, %v557
  %v559 = vpop.f32.mrf.mxu0
  %v560 = vadd.f32 %v525, %v559
  %561 = vdwg.mxu0
  %v562 = vadd.f32 %v490, %v553
  %v563 = vadd.f32 %v492, %v555
  %v564 = vadd.f32 %v495, %v558
  %v565 = vadd.f32 %v497, %v560
  %v566 = vmax.f32 %v562, 0.0
  %v567 = vmax.f32 %v563, 0.0
  %v568 = vmax.f32 %v564, 0.0
  %v569 = vmax.f32 %v565, 0.0
  %v570 = vpack.c.bf16 %v566, %v566
  %v571 = vpack.c.bf16 %v567, %v567
  %v572 = vpack.c.bf16 %v568, %v568
  %v573 = vpack.c.bf16 %v569, %v569
  %574 = vst [vmem:[%s8] sm:$0xf] %v570
  %575 = vst [vmem:[%s8 + $0x4] sm:$0xf] %v571
  %576 = vst [vmem:[%s8 + $0x8] sm:$0xf] %v572
  %577 = vst [vmem:[%s8 + $0xc] sm:$0xf] %v573
  // Predicated region
  $region34: #{fpn_backbone_radar.12} parent=0 // pred_check
    _
  $region35: #{fpn_backbone_radar.12} parent=0 // pred_check_branch
    %579 = sbr.rel (0) target = $region37
  $region36: #{fpn_backbone_radar.12} parent=0 // pred_region
    _
  $region37: #{fpn_backbone_radar.12} parent=0 // pred_fallthru
    _
  // Predicated region
  $region38: #{fpn_backbone_radar.12} parent=0 // pred_check
    _
  $region39: #{fpn_backbone_radar.12} parent=0 // pred_check_branch
    %581 = sbr.rel (0) target = $region41
  $region40: #{fpn_backbone_radar.12} parent=0 // pred_region
    _
  $region41: #{fpn_backbone_radar.12} parent=0 // pred_fallthru
    _

// kernel: fpn_backbone_radar.13
$region0: #{fpn_backbone_radar.13}
  #allocation0 [shape = 'u32[]', space=smem, size = 0x4, offset = 0x4, fixed_abs, tag = 'smem constant byte address 0x4 - core index']
  #allocation1 [shape = 'u32[72,128]{1,0:T(1,128)}', space=vmem, size = 0x9000, scoped, tag = 'internal scratch']
  %s0 = inlined_call_operand.vmem [shape: bf16[297,128], index: 0, kind: input, shape index: {}]
  %s1 = inlined_call_operand.vmem [shape: bf16[144,297], index: 1, kind: input, shape index: {}]
  %s2 = inlined_call_operand.vmem [shape: bf16[16,144], index: 2, kind: input, shape index: {}]
  %s3 = inlined_call_operand.vmem [shape: f32[16,1], index: 3, kind: input, shape index: {}]
  %s4 = inlined_call_operand.vmem [shape: bf16[32,16], index: 4, kind: input, shape index: {}]
  %s5 = inlined_call_operand.vmem [shape: f32[32,1], index: 5, kind: input, shape index: {}]
  %s6 = inlined_call_operand.vmem [shape: bf16[32,32], index: 6, kind: input, shape index: {}]
  %s7 = inlined_call_operand.vmem [shape: f32[32,1], index: 7, kind: input, shape index: {}]
  %s8 = inlined_call_operand.vmem [shape: bf16[32,128], index: 8, kind: output, shape index: {}]
  %s9 = sld [smem:[#allocation0]]
  $region42: #{fpn_backbone_radar.13} parent=0
    _
  %s11 = ssub.s32 1, %s9
  %s12 = scalar_select 0, %s11, %s9
  // Predicated region
  $region2: #{fpn_backbone_radar.13} parent=0 // pred_check
    _
  $region3: #{fpn_backbone_radar.13} parent=0 // pred_check_branch
    %14 = sbr.rel (0) target = $region5
  $region4: #{fpn_backbone_radar.13} parent=0 // pred_region
    _
  $region5: #{fpn_backbone_radar.13} parent=0 // pred_fallthru
    _
  // Predicated region
  $region6: #{fpn_backbone_radar.13} parent=0 // pred_check
    _
  $region7: #{fpn_backbone_radar.13} parent=0 // pred_check_branch
    %16 = sbr.rel (0) target = $region9
  $region8: #{fpn_backbone_radar.13} parent=0 // pred_region
    _
  $region9: #{fpn_backbone_radar.13} parent=0 // pred_fallthru
    _
  // Predicated region
  $region10: #{fpn_backbone_radar.13} parent=0 // pred_check
    _
  $region11: #{fpn_backbone_radar.13} parent=0 // pred_check_branch
    %18 = sbr.rel (0) target = $region13
  $region12: #{fpn_backbone_radar.13} parent=0 // pred_region
    _
  $region13: #{fpn_backbone_radar.13} parent=0 // pred_fallthru
    _
  // Predicated region
  $region14: #{fpn_backbone_radar.13} parent=0 // pred_check
    _
  $region15: #{fpn_backbone_radar.13} parent=0 // pred_check_branch
    %20 = sbr.rel (0) target = $region17
  $region16: #{fpn_backbone_radar.13} parent=0 // pred_region
    _
  $region17: #{fpn_backbone_radar.13} parent=0 // pred_fallthru
    _
  // Predicated region
  $region18: #{fpn_backbone_radar.13} parent=0 // pred_check
    _
  $region19: #{fpn_backbone_radar.13} parent=0 // pred_check_branch
    %22 = sbr.rel (0) target = $region21
  $region20: #{fpn_backbone_radar.13} parent=0 // pred_region
    _
  $region21: #{fpn_backbone_radar.13} parent=0 // pred_fallthru
    _
  // Predicated region
  $region22: #{fpn_backbone_radar.13} parent=0 // pred_check
    _
  $region23: #{fpn_backbone_radar.13} parent=0 // pred_check_branch
    %24 = sbr.rel (0) target = $region25
  $region24: #{fpn_backbone_radar.13} parent=0 // pred_region
    _
  $region25: #{fpn_backbone_radar.13} parent=0 // pred_fallthru
    _
  // Predicated region
  $region26: #{fpn_backbone_radar.13} parent=0 // pred_check
    _
  $region27: #{fpn_backbone_radar.13} parent=0 // pred_check_branch
    %26 = sbr.rel (0) target = $region29
  $region28: #{fpn_backbone_radar.13} parent=0 // pred_region
    _
  $region29: #{fpn_backbone_radar.13} parent=0 // pred_fallthru
    _
  // Predicated region
  $region30: #{fpn_backbone_radar.13} parent=0 // pred_check
    _
  $region31: #{fpn_backbone_radar.13} parent=0 // pred_check_branch
    %28 = sbr.rel (0) target = $region33
  $region32: #{fpn_backbone_radar.13} parent=0 // pred_region
    _
  $region33: #{fpn_backbone_radar.13} parent=0 // pred_fallthru
    _
  %v30 = vld [vmem:[%s0] sm:$0xf]
  %v31 = vld [vmem:[%s0 + $0x4] sm:$0xf]
  %v32 = vld [vmem:[%s0 + $0x8] sm:$0xf]
  %v33 = vld [vmem:[%s0 + $0xc] sm:$0xf]
  %v34 = vld [vmem:[%s0 + $0x10] sm:$0xf]
  %v35 = vld [vmem:[%s0 + $0x14] sm:$0xf]
  %v36 = vld [vmem:[%s0 + $0x18] sm:$0xf]
  %v37 = vld [vmem:[%s0 + $0x1c] sm:$0xf]
  %v38 = vld [vmem:[%s0 + $0x20] sm:$0xf]
  %v39 = vld [vmem:[%s0 + $0x24] sm:$0xf]
  %v40 = vld [vmem:[%s0 + $0x28] sm:$0xf]
  %v41 = vld [vmem:[%s0 + $0x2c] sm:$0xf]
  %v42 = vld [vmem:[%s0 + $0x30] sm:$0xf]
  %v43 = vld [vmem:[%s0 + $0x34] sm:$0xf]
  %v44 = vld [vmem:[%s0 + $0x38] sm:$0xf]
  %v45 = vld [vmem:[%s0 + $0x3c] sm:$0xf]
  %v46 = vld [vmem:[%s0 + $0x40] sm:$0xf]
  %v47 = vld [vmem:[%s0 + $0x44] sm:$0xf]
  %v48 = vld [vmem:[%s0 + $0x48] sm:$0xf]
  %v49 = vld [vmem:[%s0 + $0x4c] sm:$0xf]
  %v50 = vld [vmem:[%s0 + $0x50] sm:$0xf]
  %v51 = vld [vmem:[%s0 + $0x54] sm:$0xf]
  %v52 = vld [vmem:[%s0 + $0x58] sm:$0xf]
  %v53 = vld [vmem:[%s0 + $0x5c] sm:$0xf]
  %v54 = vld [vmem:[%s0 + $0x60] sm:$0xf]
  %v55 = vld [vmem:[%s0 + $0x64] sm:$0xf]
  %v56 = vld [vmem:[%s0 + $0x68] sm:$0xf]
  %v57 = vld [vmem:[%s0 + $0x6c] sm:$0xf]
  %v58 = vld [vmem:[%s0 + $0x70] sm:$0xf]
  %v59 = vld [vmem:[%s0 + $0x74] sm:$0xf]
  %v60 = vld [vmem:[%s0 + $0x78] sm:$0xf]
  %v61 = vld [vmem:[%s0 + $0x7c] sm:$0xf]
  %v62 = vld [vmem:[%s0 + $0x80] sm:$0xf]
  %v63 = vld [vmem:[%s0 + $0x84] sm:$0xf]
  %v64 = vld [vmem:[%s0 + $0x88] sm:$0xf]
  %v65 = vld [vmem:[%s0 + $0x8c] sm:$0xf]
  %v66 = vld [vmem:[%s0 + $0x90] sm:$0xf]
  %v67 = vld [vmem:[%s0 + $0x94] sm:$0x1]
  %v68 = vld [vmem:[%s1] sm:$0xff]
  %v69 = vld [vmem:[%s1 + $0x8] sm:$0xf]
  %v70 = vld [vmem:[%s1 + $0xc] sm:$0xff]
  %v71 = vld [vmem:[%s1 + $0x14] sm:$0xf]
  %v72 = vld [vmem:[%s1 + $0x18] sm:$0xff]
  %v73 = vld [vmem:[%s1 + $0x20] sm:$0xf]
  %v74 = vld [vmem:[%s1 + $0x24] sm:$0xff]
  %v75 = vld [vmem:[%s1 + $0x2c] sm:$0xf]
  %v76 = vld [vmem:[%s1 + $0x30] sm:$0xff]
  %v77 = vld [vmem:[%s1 + $0x38] sm:$0xf]
  %v78 = vld [vmem:[%s1 + $0x3c] sm:$0xff]
  %v79 = vld [vmem:[%s1 + $0x44] sm:$0xf]
  %v80 = vld [vmem:[%s1 + $0x48] sm:$0xff]
  %v81 = vld [vmem:[%s1 + $0x50] sm:$0xf]
  %v82 = vld [vmem:[%s1 + $0x54] sm:$0xff]
  %v83 = vld [vmem:[%s1 + $0x5c] sm:$0xf]
  %v84 = vld [vmem:[%s1 + $0x60] sm:$0xff]
  %v85 = vld [vmem:[%s1 + $0x68] sm:$0xf]
  %v86 = vld [vmem:[%s1 + $0x6c] sm:$0xff]
  %v87 = vld [vmem:[%s1 + $0x74] sm:$0xf]
  %v88 = vld [vmem:[%s1 + $0x78] sm:$0xff]
  %v89 = vld [vmem:[%s1 + $0x80] sm:$0xf]
  %v90 = vld [vmem:[%s1 + $0x84] sm:$0xff]
  %v91 = vld [vmem:[%s1 + $0x8c] sm:$0xf]
  %v92 = vld [vmem:[%s1 + $0x90] sm:$0xff]
  %v93 = vld [vmem:[%s1 + $0x98] sm:$0xf]
  %v94 = vld [vmem:[%s1 + $0x9c] sm:$0xff]
  %v95 = vld [vmem:[%s1 + $0xa4] sm:$0xf]
  %v96 = vld [vmem:[%s1 + $0xa8] sm:$0xff]
  %v97 = vld [vmem:[%s1 + $0xb0] sm:$0xf]
  %v98 = vld [vmem:[%s1 + $0xb4] sm:$0xff]
  %v99 = vld [vmem:[%s1 + $0xbc] sm:$0xf]
  %v100 = vld [vmem:[%s1 + $0xc0] sm:$0xff]
  %v101 = vld [vmem:[%s1 + $0xc8] sm:$0xf]
  %v102 = vld [vmem:[%s1 + $0xcc] sm:$0xff]
  %v103 = vld [vmem:[%s1 + $0xd4] sm:$0xf]
  %v140 = vunpack.c.l.b16 %v68
  %v141 = vunpack.c.h.b16 %v68
  %v142 = vunpack.c.l.b16 %v69
  %v143 = vunpack.c.l.b16 %v70
  %v144 = vunpack.c.h.b16 %v70
  %v145 = vunpack.c.l.b16 %v71
  %v146 = vunpack.c.l.b16 %v72
  %v147 = vunpack.c.h.b16 %v72
  %v148 = vunpack.c.l.b16 %v73
  %v149 = vunpack.c.l.b16 %v74
  %v150 = vunpack.c.h.b16 %v74
  %v151 = vunpack.c.l.b16 %v75
  %v152 = vunpack.c.l.b16 %v76
  %v153 = vunpack.c.h.b16 %v76
  %v154 = vunpack.c.l.b16 %v77
  %v155 = vunpack.c.l.b16 %v78
  %v156 = vunpack.c.h.b16 %v78
  %v157 = vunpack.c.l.b16 %v79
  %v158 = vunpack.c.l.b16 %v80
  %v159 = vunpack.c.h.b16 %v80
  %v160 = vunpack.c.l.b16 %v81
  %v161 = vunpack.c.l.b16 %v82
  %v162 = vunpack.c.h.b16 %v82
  %v163 = vunpack.c.l.b16 %v83
  %v164 = vunpack.c.l.b16 %v84
  %v165 = vunpack.c.h.b16 %v84
  %v166 = vunpack.c.l.b16 %v85
  %v167 = vunpack.c.l.b16 %v86
  %v168 = vunpack.c.h.b16 %v86
  %v169 = vunpack.c.l.b16 %v87
  %v170 = vunpack.c.l.b16 %v88
  %v171 = vunpack.c.h.b16 %v88
  %v172 = vunpack.c.l.b16 %v89
  %v173 = vunpack.c.l.b16 %v90
  %v174 = vunpack.c.h.b16 %v90
  %v175 = vunpack.c.l.b16 %v91
  %v176 = vunpack.c.l.b16 %v92
  %v177 = vunpack.c.h.b16 %v92
  %v178 = vunpack.c.l.b16 %v93
  %v179 = vunpack.c.l.b16 %v94
  %v180 = vunpack.c.h.b16 %v94
  %v181 = vunpack.c.l.b16 %v95
  %v182 = vunpack.c.l.b16 %v96
  %v183 = vunpack.c.h.b16 %v96
  %v184 = vunpack.c.l.b16 %v97
  %v185 = vunpack.c.l.b16 %v98
  %v186 = vunpack.c.h.b16 %v98
  %v187 = vunpack.c.l.b16 %v99
  %v188 = vunpack.c.l.b16 %v100
  %v189 = vunpack.c.h.b16 %v100
  %v190 = vunpack.c.l.b16 %v101
  %v191 = vunpack.c.l.b16 %v102
  %v192 = vunpack.c.h.b16 %v102
  %v193 = vunpack.c.l.b16 %v103
  %v194 = vpack.c.b16 %v143, %v140
  %v195 = vpack.c.b16 %v144, %v141
  %v196 = vpack.c.b16 %v145, %v142
  %v197 = vpack.c.b16 %v149, %v146
  %v198 = vpack.c.b16 %v150, %v147
  %v199 = vpack.c.b16 %v151, %v148
  %v200 = vpack.c.b16 %v155, %v152
  %v201 = vpack.c.b16 %v156, %v153
  %v202 = vpack.c.b16 %v157, %v154
  %v203 = vpack.c.b16 %v161, %v158
  %v204 = vpack.c.b16 %v162, %v159
  %v205 = vpack.c.b16 %v163, %v160
  %v206 = vpack.c.b16 %v167, %v164
  %v207 = vpack.c.b16 %v168, %v165
  %v208 = vpack.c.b16 %v169, %v166
  %v209 = vpack.c.b16 %v173, %v170
  %v210 = vpack.c.b16 %v174, %v171
  %v211 = vpack.c.b16 %v175, %v172
  %v212 = vpack.c.b16 %v179, %v176
  %v213 = vpack.c.b16 %v180, %v177
  %v214 = vpack.c.b16 %v181, %v178
  %v215 = vpack.c.b16 %v185, %v182
  %v216 = vpack.c.b16 %v186, %v183
  %v217 = vpack.c.b16 %v187, %v184
  %v218 = vpack.c.b16 %v191, %v188
  %v219 = vpack.c.b16 %v192, %v189
  %v220 = vpack.c.b16 %v193, %v190
  %v277 = vunpack.c.l.b16 %v30
  %v278 = vunpack.c.l.b16 %v31
  %v279 = vunpack.c.l.b16 %v32
  %v280 = vunpack.c.l.b16 %v33
  %v281 = vunpack.c.l.b16 %v34
  %v282 = vunpack.c.l.b16 %v35
  %v283 = vunpack.c.l.b16 %v36
  %v284 = vunpack.c.l.b16 %v37
  %v285 = vunpack.c.l.b16 %v38
  %v286 = vunpack.c.l.b16 %v39
  %v287 = vunpack.c.l.b16 %v40
  %v288 = vunpack.c.l.b16 %v41
  %v289 = vunpack.c.l.b16 %v42
  %v290 = vunpack.c.l.b16 %v43
  %v291 = vunpack.c.l.b16 %v44
  %v292 = vunpack.c.l.b16 %v45
  %v293 = vunpack.c.l.b16 %v46
  %v294 = vunpack.c.l.b16 %v47
  %v295 = vunpack.c.l.b16 %v48
  %v296 = vunpack.c.l.b16 %v49
  %v297 = vunpack.c.l.b16 %v50
  %v298 = vunpack.c.l.b16 %v51
  %v299 = vunpack.c.l.b16 %v52
  %v300 = vunpack.c.l.b16 %v53
  %v301 = vunpack.c.l.b16 %v54
  %v302 = vunpack.c.l.b16 %v55
  %v303 = vunpack.c.l.b16 %v56
  %v304 = vunpack.c.l.b16 %v57
  %v305 = vunpack.c.l.b16 %v58
  %v306 = vunpack.c.l.b16 %v59
  %v307 = vunpack.c.l.b16 %v60
  %v308 = vunpack.c.l.b16 %v61
  %v309 = vunpack.c.l.b16 %v62
  %v310 = vunpack.c.l.b16 %v63
  %v311 = vunpack.c.l.b16 %v64
  %v312 = vunpack.c.l.b16 %v65
  %v313 = vunpack.c.l.b16 %v66
  %v314 = vunpack.c.l.b16 %v67
  %v315 = vpack.c.b16 %v278, %v277
  %v316 = vpack.c.b16 %v280, %v279
  %v317 = vpack.c.b16 %v282, %v281
  %v318 = vpack.c.b16 %v284, %v283
  %v319 = vpack.c.b16 %v286, %v285
  %v320 = vpack.c.b16 %v288, %v287
  %v321 = vpack.c.b16 %v290, %v289
  %v322 = vpack.c.b16 %v292, %v291
  %v323 = vpack.c.b16 %v294, %v293
  %v324 = vpack.c.b16 %v296, %v295
  %v325 = vpack.c.b16 %v298, %v297
  %v326 = vpack.c.b16 %v300, %v299
  %v327 = vpack.c.b16 %v302, %v301
  %v328 = vpack.c.b16 %v304, %v303
  %v329 = vpack.c.b16 %v306, %v305
  %v330 = vpack.c.b16 %v308, %v307
  %v331 = vpack.c.b16 %v310, %v309
  %v332 = vpack.c.b16 %v312, %v311
  %v333 = vpack.c.b16 %v314, %v313
  %vm352 = vcmask 334848
  %v354 = vsel %vm352, %v196, 0
  %v357 = vsel %vm352, %v199, 0
  %v360 = vsel %vm352, %v202, 0
  %v363 = vsel %vm352, %v205, 0
  %v366 = vsel %vm352, %v208, 0
  %v369 = vsel %vm352, %v211, 0
  %v372 = vsel %vm352, %v214, 0
  %v375 = vsel %vm352, %v217, 0
  %v378 = vsel %vm352, %v220, 0
  %vm380 = vcmask 1043456
  %vm381 = vcmask 1044480
  %v382 = vsel %vm380, 4294967295, 65535
  %v383 = vsel %vm381, %v382, 0
  %v385 = vand.u32 %v333, %v383
  %387 = vmatpush.bf16.msra.mxu0 %v322
  %388 = vmatpush.bf16.msra.mxu0 %v321
  %389 = vmatpush.bf16.msra.mxu0 %v320
  %390 = vmatpush.bf16.msra.mxu0 %v319
  %391 = vmatpush.bf16.msra.mxu0 %v318
  %392 = vmatpush.bf16.msra.mxu0 %v317
  %393 = vmatpush.bf16.msra.mxu0 %v316
  %394 = vmatpush.bf16.msra.mxu0 %v315
  %395 = vmatmul.bf16.gmra.mxu0 %v194
  %v396 = vpop.f32.mrf.mxu0
  %v397 = vadd.f32 0.0, %v396
  %v398 = vpop.f32.mrf.mxu0
  %v399 = vadd.f32 0.0, %v398
  %400 = vmatmul.bf16.gmra.mxu0 %v197
  %v401 = vpop.f32.mrf.mxu0
  %v402 = vadd.f32 0.0, %v401
  %v403 = vpop.f32.mrf.mxu0
  %v404 = vadd.f32 0.0, %v403
  %405 = vmatmul.bf16.gmra.mxu0 %v200
  %v406 = vpop.f32.mrf.mxu0
  %v407 = vadd.f32 0.0, %v406
  %v408 = vpop.f32.mrf.mxu0
  %v409 = vadd.f32 0.0, %v408
  %410 = vmatmul.bf16.gmra.mxu0 %v203
  %v411 = vpop.f32.mrf.mxu0
  %v412 = vadd.f32 0.0, %v411
  %v413 = vpop.f32.mrf.mxu0
  %v414 = vadd.f32 0.0, %v413
  %415 = vmatmul.bf16.gmra.mxu0 %v206
  %v416 = vpop.f32.mrf.mxu0
  %v417 = vadd.f32 0.0, %v416
  %v418 = vpop.f32.mrf.mxu0
  %v419 = vadd.f32 0.0, %v418
  %420 = vmatmul.bf16.gmra.mxu0 %v209
  %v421 = vpop.f32.mrf.mxu0
  %v422 = vadd.f32 0.0, %v421
  %v423 = vpop.f32.mrf.mxu0
  %v424 = vadd.f32 0.0, %v423
  %425 = vmatmul.bf16.gmra.mxu0 %v212
  %v426 = vpop.f32.mrf.mxu0
  %v427 = vadd.f32 0.0, %v426
  %v428 = vpop.f32.mrf.mxu0
  %v429 = vadd.f32 0.0, %v428
  %430 = vmatmul.bf16.gmra.mxu0 %v215
  %v431 = vpop.f32.mrf.mxu0
  %v432 = vadd.f32 0.0, %v431
  %v433 = vpop.f32.mrf.mxu0
  %v434 = vadd.f32 0.0, %v433
  %435 = vmatmul.bf16.gmra.mxu0 %v218
  %v436 = vpop.f32.mrf.mxu0
  %v437 = vadd.f32 0.0, %v436
  %v438 = vpop.f32.mrf.mxu0
  %v439 = vadd.f32 0.0, %v438
  %440 = vdwg.mxu0
  %441 = vmatpush.bf16.msra.mxu0 %v330
  %442 = vmatpush.bf16.msra.mxu0 %v329
  %443 = vmatpush.bf16.msra.mxu0 %v328
  %444 = vmatpush.bf16.msra.mxu0 %v327
  %445 = vmatpush.bf16.msra.mxu0 %v326
  %446 = vmatpush.bf16.msra.mxu0 %v325
  %447 = vmatpush.bf16.msra.mxu0 %v324
  %448 = vmatpush.bf16.msra.mxu0 %v323
  %449 = vmatmul.bf16.gmra.mxu0 %v195
  %v450 = vpop.f32.mrf.mxu0
  %v451 = vadd.f32 %v397, %v450
  %v452 = vpop.f32.mrf.mxu0
  %v453 = vadd.f32 %v399, %v452
  %454 = vmatmul.bf16.gmra.mxu0 %v198
  %v455 = vpop.f32.mrf.mxu0
  %v456 = vadd.f32 %v402, %v455
  %v457 = vpop.f32.mrf.mxu0
  %v458 = vadd.f32 %v404, %v457
  %459 = vmatmul.bf16.gmra.mxu0 %v201
  %v460 = vpop.f32.mrf.mxu0
  %v461 = vadd.f32 %v407, %v460
  %v462 = vpop.f32.mrf.mxu0
  %v463 = vadd.f32 %v409, %v462
  %464 = vmatmul.bf16.gmra.mxu0 %v204
  %v465 = vpop.f32.mrf.mxu0
  %v466 = vadd.f32 %v412, %v465
  %v467 = vpop.f32.mrf.mxu0
  %v468 = vadd.f32 %v414, %v467
  %469 = vmatmul.bf16.gmra.mxu0 %v207
  %v470 = vpop.f32.mrf.mxu0
  %v471 = vadd.f32 %v417, %v470
  %v472 = vpop.f32.mrf.mxu0
  %v473 = vadd.f32 %v419, %v472
  %474 = vmatmul.bf16.gmra.mxu0 %v210
  %v475 = vpop.f32.mrf.mxu0
  %v476 = vadd.f32 %v422, %v475
  %v477 = vpop.f32.mrf.mxu0
  %v478 = vadd.f32 %v424, %v477
  %479 = vmatmul.bf16.gmra.mxu0 %v213
  %v480 = vpop.f32.mrf.mxu0
  %v481 = vadd.f32 %v427, %v480
  %v482 = vpop.f32.mrf.mxu0
  %v483 = vadd.f32 %v429, %v482
  %484 = vmatmul.bf16.gmra.mxu0 %v216
  %v485 = vpop.f32.mrf.mxu0
  %v486 = vadd.f32 %v432, %v485
  %v487 = vpop.f32.mrf.mxu0
  %v488 = vadd.f32 %v434, %v487
  %489 = vmatmul.bf16.gmra.mxu0 %v219
  %v490 = vpop.f32.mrf.mxu0
  %v491 = vadd.f32 %v437, %v490
  %v492 = vpop.f32.mrf.mxu0
  %v493 = vadd.f32 %v439, %v492
  %494 = vdwg.mxu0
  %495 = vmatpush.bf16.msra.mxu0 0
  %496 = vmatpush.bf16.msra.mxu0 0
  %497 = vmatpush.bf16.msra.mxu0 0
  %498 = vmatpush.bf16.msra.mxu0 0
  %499 = vmatpush.bf16.msra.mxu0 0
  %500 = vmatpush.bf16.msra.mxu0 %v385
  %501 = vmatpush.bf16.msra.mxu0 %v332
  %502 = vmatpush.bf16.msra.mxu0 %v331
  %503 = vmatmul.bf16.gmra.mxu0 %v354
  %v504 = vpop.f32.mrf.mxu0
  %v505 = vadd.f32 %v451, %v504
  %v506 = vpop.f32.mrf.mxu0
  %v507 = vadd.f32 %v453, %v506
  %508 = vmatmul.bf16.gmra.mxu0 %v357
  %v509 = vpop.f32.mrf.mxu0
  %v510 = vadd.f32 %v456, %v509
  %v511 = vpop.f32.mrf.mxu0
  %v512 = vadd.f32 %v458, %v511
  %513 = vmatmul.bf16.gmra.mxu0 %v360
  %v514 = vpop.f32.mrf.mxu0
  %v515 = vadd.f32 %v461, %v514
  %v516 = vpop.f32.mrf.mxu0
  %v517 = vadd.f32 %v463, %v516
  %518 = vmatmul.bf16.gmra.mxu0 %v363
  %v519 = vpop.f32.mrf.mxu0
  %v520 = vadd.f32 %v466, %v519
  %v521 = vpop.f32.mrf.mxu0
  %v522 = vadd.f32 %v468, %v521
  %523 = vmatmul.bf16.gmra.mxu0 %v366
  %v524 = vpop.f32.mrf.mxu0
  %v525 = vadd.f32 %v471, %v524
  %v526 = vpop.f32.mrf.mxu0
  %v527 = vadd.f32 %v473, %v526
  %528 = vmatmul.bf16.gmra.mxu0 %v369
  %v529 = vpop.f32.mrf.mxu0
  %v530 = vadd.f32 %v476, %v529
  %v531 = vpop.f32.mrf.mxu0
  %v532 = vadd.f32 %v478, %v531
  %533 = vmatmul.bf16.gmra.mxu0 %v372
  %v534 = vpop.f32.mrf.mxu0
  %v535 = vadd.f32 %v481, %v534
  %v536 = vpop.f32.mrf.mxu0
  %v537 = vadd.f32 %v483, %v536
  %538 = vmatmul.bf16.gmra.mxu0 %v375
  %v539 = vpop.f32.mrf.mxu0
  %v540 = vadd.f32 %v486, %v539
  %v541 = vpop.f32.mrf.mxu0
  %v542 = vadd.f32 %v488, %v541
  %543 = vmatmul.bf16.gmra.mxu0 %v378
  %v544 = vpop.f32.mrf.mxu0
  %v545 = vadd.f32 %v491, %v544
  %v546 = vpop.f32.mrf.mxu0
  %v547 = vadd.f32 %v493, %v546
  %548 = vdwg.mxu0
  %v549 = vmax.f32 %v505, 0.0
  %v550 = vmax.f32 %v507, 0.0
  %v551 = vmax.f32 %v510, 0.0
  %v552 = vmax.f32 %v512, 0.0
  %v553 = vmax.f32 %v515, 0.0
  %v554 = vmax.f32 %v517, 0.0
  %v555 = vmax.f32 %v520, 0.0
  %v556 = vmax.f32 %v522, 0.0
  %v557 = vmax.f32 %v525, 0.0
  %v558 = vmax.f32 %v527, 0.0
  %v559 = vmax.f32 %v530, 0.0
  %v560 = vmax.f32 %v532, 0.0
  %v561 = vmax.f32 %v535, 0.0
  %v562 = vmax.f32 %v537, 0.0
  %v563 = vmax.f32 %v540, 0.0
  %v564 = vmax.f32 %v542, 0.0
  %v565 = vmax.f32 %v545, 0.0
  %v566 = vmax.f32 %v547, 0.0
  %v567 = vpack.c.bf16 %v550, %v549
  %v568 = vpack.c.bf16 %v552, %v551
  %v569 = vpack.c.bf16 %v554, %v553
  %v570 = vpack.c.bf16 %v556, %v555
  %v571 = vpack.c.bf16 %v558, %v557
  %v572 = vpack.c.bf16 %v560, %v559
  %v573 = vpack.c.bf16 %v562, %v561
  %v574 = vpack.c.bf16 %v564, %v563
  %v575 = vpack.c.bf16 %v566, %v565
  %v576 = vld [vmem:[%s2] sm:$0xff]
  %v577 = vld [vmem:[%s2 + $0x8] sm:$0xff]
  %v578 = vld [vmem:[%s3] sm:$0xff]
  %v579 = vld [vmem:[%s3 + $0x8] sm:$0xff]
  %581 = vset.pattern.permute.xlu0 0
  %582 = vperm.xlu0 %581, %v578
  %v583 = vpop.permute.xlu0 %582
  %586 = vset.pattern.permute.xlu0 0
  %587 = vperm.xlu0 %586, %v579
  %v588 = vpop.permute.xlu0 %587
  %v592 = vunpack.c.l.b16 %v576
  %v593 = vunpack.c.h.b16 %v576
  %v594 = vunpack.c.l.b16 %v577
  %v595 = vunpack.c.h.b16 %v577
  %v596 = vpack.c.b16 %v594, %v592
  %v597 = vpack.c.b16 %v595, %v593
  %vm599 = vcmask 130048
  %v601 = vsel %vm599, %v597, 0
  %603 = vmatpush.bf16.msra.mxu0 %v574
  %604 = vmatpush.bf16.msra.mxu0 %v573
  %605 = vmatpush.bf16.msra.mxu0 %v572
  %606 = vmatpush.bf16.msra.mxu0 %v571
  %607 = vmatpush.bf16.msra.mxu0 %v570
  %608 = vmatpush.bf16.msra.mxu0 %v569
  %609 = vmatpush.bf16.msra.mxu0 %v568
  %610 = vmatpush.bf16.msra.mxu0 %v567
  %611 = vmatmul.bf16.gmra.mxu0 %v596
  %v612 = vpop.f32.mrf.mxu0
  %v613 = vadd.f32 %v583, %v612
  %v614 = vpop.f32.mrf.mxu0
  %v615 = vadd.f32 %v588, %v614
  %616 = vdwg.mxu0
  %617 = vmatpush.bf16.msra.mxu0 0
  %618 = vmatpush.bf16.msra.mxu0 0
  %619 = vmatpush.bf16.msra.mxu0 0
  %620 = vmatpush.bf16.msra.mxu0 0
  %621 = vmatpush.bf16.msra.mxu0 0
  %622 = vmatpush.bf16.msra.mxu0 0
  %623 = vmatpush.bf16.msra.mxu0 0
  %624 = vmatpush.bf16.msra.mxu0 %v575
  %625 = vmatmul.bf16.gmra.mxu0 %v601
  %v626 = vpop.f32.mrf.mxu0
  %v627 = vadd.f32 %v613, %v626
  %v628 = vpop.f32.mrf.mxu0
  %v629 = vadd.f32 %v615, %v628
  %630 = vdwg.mxu0
  %v631 = vmax.f32 %v627, 0.0
  %v632 = vmax.f32 %v629, 0.0
  %v633 = vpack.c.bf16 %v632, %v631
  %v634 = vld [vmem:[%s4] sm:$0xf]
  %v635 = vld [vmem:[%s4 + $0x4] sm:$0xf]
  %v636 = vld [vmem:[%s4 + $0x8] sm:$0xf]
  %v637 = vld [vmem:[%s4 + $0xc] sm:$0xf]
  %v638 = vld [vmem:[%s5] sm:$0xff]
  %v639 = vld [vmem:[%s5 + $0x8] sm:$0xff]
  %v640 = vld [vmem:[%s5 + $0x10] sm:$0xff]
  %v641 = vld [vmem:[%s5 + $0x18] sm:$0xff]
  %643 = vset.pattern.permute.xlu0 0
  %644 = vperm.xlu0 %643, %v638
  %v645 = vpop.permute.xlu0 %644
  %648 = vset.pattern.permute.xlu0 0
  %649 = vperm.xlu0 %648, %v639
  %v650 = vpop.permute.xlu0 %649
  %653 = vset.pattern.permute.xlu0 0
  %654 = vperm.xlu0 %653, %v640
  %v655 = vpop.permute.xlu0 %654
  %658 = vset.pattern.permute.xlu0 0
  %659 = vperm.xlu0 %658, %v641
  %v660 = vpop.permute.xlu0 %659
  %v666 = vunpack.c.l.b16 %v634
  %v667 = vunpack.c.l.b16 %v635
  %v668 = vunpack.c.l.b16 %v636
  %v669 = vunpack.c.l.b16 %v637
  %v670 = vpack.c.b16 %v667, %v666
  %v671 = vpack.c.b16 %v669, %v668
  %v673 = vsel %vm599, %v670, 0
  %v676 = vsel %vm599, %v671, 0
  %678 = vmatpush.bf16.msra.mxu0 0
  %679 = vmatpush.bf16.msra.mxu0 0
  %680 = vmatpush.bf16.msra.mxu0 0
  %681 = vmatpush.bf16.msra.mxu0 0
  %682 = vmatpush.bf16.msra.mxu0 0
  %683 = vmatpush.bf16.msra.mxu0 0
  %684 = vmatpush.bf16.msra.mxu0 0
  %685 = vmatpush.bf16.msra.mxu0 %v633
  %686 = vmatmul.bf16.gmra.mxu0 %v673
  %v687 = vpop.f32.mrf.mxu0
  %v688 = vadd.f32 %v645, %v687
  %v689 = vpop.f32.mrf.mxu0
  %v690 = vadd.f32 %v650, %v689
  %691 = vmatmul.bf16.gmra.mxu0 %v676
  %v692 = vpop.f32.mrf.mxu0
  %v693 = vadd.f32 %v655, %v692
  %v694 = vpop.f32.mrf.mxu0
  %v695 = vadd.f32 %v660, %v694
  %696 = vdwg.mxu0
  %v697 = vld [vmem:[%s6] sm:$0xf]
  %v698 = vld [vmem:[%s6 + $0x4] sm:$0xf]
  %v699 = vld [vmem:[%s6 + $0x8] sm:$0xf]
  %v700 = vld [vmem:[%s6 + $0xc] sm:$0xf]
  %v701 = vld [vmem:[%s7] sm:$0xff]
  %v702 = vld [vmem:[%s7 + $0x8] sm:$0xff]
  %v703 = vld [vmem:[%s7 + $0x10] sm:$0xff]
  %v704 = vld [vmem:[%s7 + $0x18] sm:$0xff]
  %706 = vset.pattern.permute.xlu0 0
  %707 = vperm.xlu0 %706, %v701
  %v708 = vpop.permute.xlu0 %707
  %711 = vset.pattern.permute.xlu0 0
  %712 = vperm.xlu0 %711, %v702
  %v713 = vpop.permute.xlu0 %712
  %716 = vset.pattern.permute.xlu0 0
  %717 = vperm.xlu0 %716, %v703
  %v718 = vpop.permute.xlu0 %717
  %721 = vset.pattern.permute.xlu0 0
  %722 = vperm.xlu0 %721, %v704
  %v723 = vpop.permute.xlu0 %722
  %v729 = vunpack.c.l.b16 %v697
  %v730 = vunpack.c.l.b16 %v698
  %v731 = vunpack.c.l.b16 %v699
  %v732 = vunpack.c.l.b16 %v700
  %v733 = vpack.c.b16 %v730, %v729
  %v734 = vpack.c.b16 %v732, %v731
  %vm735 = vcmask 261120
  %v737 = vsel %vm735, %v733, 0
  %v740 = vsel %vm735, %v734, 0
  %742 = vmatpush.bf16.msra.mxu0 0
  %743 = vmatpush.bf16.msra.mxu0 0
  %744 = vmatpush.bf16.msra.mxu0 0
  %745 = vmatpush.bf16.msra.mxu0 0
  %746 = vmatpush.bf16.msra.mxu0 0
  %747 = vmatpush.bf16.msra.mxu0 0
  %748 = vmatpush.bf16.msra.mxu0 %v324
  %749 = vmatpush.bf16.msra.mxu0 %v323
  %750 = vmatmul.bf16.gmra.mxu0 %v737
  %v751 = vpop.f32.mrf.mxu0
  %v752 = vadd.f32 %v708, %v751
  %v753 = vpop.f32.mrf.mxu0
  %v754 = vadd.f32 %v713, %v753
  %755 = vmatmul.bf16.gmra.mxu0 %v740
  %v756 = vpop.f32.mrf.mxu0
  %v757 = vadd.f32 %v718, %v756
  %v758 = vpop.f32.mrf.mxu0
  %v759 = vadd.f32 %v723, %v758
  %760 = vdwg.mxu0
  %v761 = vadd.f32 %v688, %v752
  %v762 = vadd.f32 %v690, %v754
  %v763 = vadd.f32 %v693, %v757
  %v764 = vadd.f32 %v695, %v759
  %v765 = vmax.f32 %v761, 0.0
  %v766 = vmax.f32 %v762, 0.0
  %v767 = vmax.f32 %v763, 0.0
  %v768 = vmax.f32 %v764, 0.0
  %v769 = vpack.c.bf16 %v765, %v765
  %v770 = vpack.c.bf16 %v766, %v766
  %v771 = vpack.c.bf16 %v767, %v767
  %v772 = vpack.c.bf16 %v768, %v768
  %773 = vst [vmem:[%s8] sm:$0xf] %v769
  %774 = vst [vmem:[%s8 + $0x4] sm:$0xf] %v770
  %775 = vst [vmem:[%s8 + $0x8] sm:$0xf] %v771
  %776 = vst [vmem:[%s8 + $0xc] sm:$0xf] %v772
  // Predicated region
  $region34: #{fpn_backbone_radar.13} parent=0 // pred_check
    _
  $region35: #{fpn_backbone_radar.13} parent=0 // pred_check_branch
    %778 = sbr.rel (0) target = $region37
  $region36: #{fpn_backbone_radar.13} parent=0 // pred_region
    _
  $region37: #{fpn_backbone_radar.13} parent=0 // pred_fallthru
    _
  // Predicated region
  $region38: #{fpn_backbone_radar.13} parent=0 // pred_check
    _
  $region39: #{fpn_backbone_radar.13} parent=0 // pred_check_branch
    %780 = sbr.rel (0) target = $region41
  $region40: #{fpn_backbone_radar.13} parent=0 // pred_region
    _
  $region41: #{fpn_backbone_radar.13} parent=0 // pred_fallthru
    _

</llo_original>
